<compile_context>
chip_gen: v7x
topology: tpu7x:2x2x1
jax: 0.10.0
libtpu: 0.0.40
codegen_flags: <defaults>
</compile_context>

<pallas_src>
import math

import jax
import jax.numpy as jnp
from jax import lax
from jax.experimental import pallas as pl
from jax.experimental.pallas import tpu as pltpu

LN_EPS = 1e-5


def _make_kernel(n_heads, head_dim, tq, seq_k, compute_dtype):
    def kernel(q_ref, k_ref, v_ref,
               gamma_ref, beta_ref,
               wq_ref, wk_ref, wv_ref,
               bq_ref, bk_ref, bv_ref,
               wo_ref, bo_ref,
               out_ref,
               qh_ref, kh_ref, vh_ref):
        qt = pl.program_id(1)

        gamma = gamma_ref[...]          # (1, D) f32
        beta = beta_ref[...]            # (1, D) f32

        def layer_norm(x):
            xf = x.astype(jnp.float32)
            mu = jnp.mean(xf, axis=-1, keepdims=True)
            var = jnp.mean(jnp.square(xf - mu), axis=-1, keepdims=True)
            return (xf - mu) * lax.rsqrt(var + LN_EPS) * gamma + beta

        # ---- K / V path: shared by every query tile of this batch element. ------
        # Compute LayerNorm + per-head projections once (qt == 0); results live in
        # VMEM scratch, which persists across the (sequential) q-tile grid steps.
        @pl.when(qt == 0)
        def _():
            kn = layer_norm(k_ref[0]).astype(compute_dtype)      # (Sk, D)
            vn = layer_norm(v_ref[0]).astype(compute_dtype)      # (Sk, D)
            # Static unroll over heads: wk_ref[h] / kh_ref[h] are free leading-dim
            # views; the activations are never lane-sliced, transposed or concat'ed.
            # (Broadcasting kn to (H, Sk, D) for a single batched dot would blow up
            #  VMEM H-fold at real sizes, so the weight side carries the head axis.)
            for h in range(n_heads):
                kh_ref[h] = (jnp.dot(kn, wk_ref[h],
                                     preferred_element_type=jnp.float32)
                             + bk_ref[h]).astype(compute_dtype)
                vh_ref[h] = (jnp.dot(vn, wv_ref[h],
                                     preferred_element_type=jnp.float32)
                             + bv_ref[h]).astype(compute_dtype)

        # ---- Q path for this (batch, q-tile). ------------------------------------
        qn_f32 = layer_norm(q_ref[0])                            # (tq, D) f32 (residual)
        qn = qn_f32.astype(compute_dtype)
        for h in range(n_heads):
            # Wq / bq already carry the 1/sqrt(head_dim) scale (folded host-side).
            qh_ref[h] = (jnp.dot(qn, wq_ref[h],
                                 preferred_element_type=jnp.float32)
                         + bq_ref[h]).astype(compute_dtype)

        Qh = qh_ref[...]                 # (H, tq, hd)
        Kh = kh_ref[...]                 # (H, Sk, hd)
        Vh = vh_ref[...]                 # (H, Sk, hd)

        # Heads-batched attention: single leading-batch contractions on the MXU.
        s = jnp.einsum('hqd,hkd->hqk', Qh, Kh,
                       preferred_element_type=jnp.float32)        # (H, tq, Sk)

        # Causal "future" mask generated in-kernel (no HBM/VMEM mask buffer).
        # -1e30 instead of -inf keeps fully-masked rows NaN-free.
        q_pos = qt * tq + lax.broadcasted_iota(jnp.int32, (tq, seq_k), 0)
        k_pos = lax.broadcasted_iota(jnp.int32, (tq, seq_k), 1)
        s = s + jnp.where(k_pos > q_pos, jnp.float32(-1e30), jnp.float32(0.0))

        m = jnp.max(s, axis=-1, keepdims=True)
        p = jnp.exp(s - m)
        denom = jnp.sum(p, axis=-1, keepdims=True)
        inv = pl.reciprocal(denom, approx=True)
        inv = inv * (2.0 - denom * inv)          # one Newton step -> ~f32 accuracy
        p = (p * inv).astype(compute_dtype)

        o = jnp.einsum('hqk,hkd->hqd', p, Vh,
                       preferred_element_type=jnp.float32)        # (H, tq, hd)

        # Output projection: heads-batched against the (H, hd, D) weight, then a tiny
        # static reduction over heads (plain vector adds; no relayout / concat).
        proj = jnp.einsum('hqd,hdn->hqn', o.astype(compute_dtype), wo_ref[...],
                          preferred_element_type=jnp.float32)     # (H, tq, D)
        attn = proj[0]
        for h in range(1, n_heads):
            attn = attn + proj[h]
        attn = attn + bo_ref[...]

        # Residual adds the *layer-normed* query (matches the PyTorch module).
        out_ref[0] = (qn_f32 + attn).astype(out_ref.dtype)

    return kernel


def transformer_block(q, k, v, params, n_heads, *, q_tile=128):
    """params (PyTorch layout): gamma/beta (D,), wq/wk/wv/wo (D, D) [out, in],
    bq/bk/bv/bo (D,)."""
    B, Sq, D = q.shape
    Sk = k.shape[1]
    assert D % n_heads == 0
    hd = D // n_heads
    cd = q.dtype          # MXU operand dtype follows the activations (bf16-ready)

    tq = min(q_tile, Sq)
    if Sq % tq != 0:
        tq = Sq           # fall back to a single query tile
    n_qt = Sq // tq

    scale = 1.0 / math.sqrt(hd)

    def split_in(w):      # (D_out, D_in) -> (H, D_in, hd) so that x @ w_h == (x @ W.T)[:, h]
        return jnp.transpose(w.reshape(n_heads, hd, D), (0, 2, 1))

    wq_h = split_in(params["wq"] * scale).astype(cd)   # softmax scale folded into Wq / bq
    wk_h = split_in(params["wk"]).astype(cd)
    wv_h = split_in(params["wv"]).astype(cd)
    wo_h = params["wo"].T.reshape(n_heads, hd, D).astype(cd)

    bq_h = (params["bq"] * scale).reshape(n_heads, 1, hd).astype(jnp.float32)
    bk_h = params["bk"].reshape(n_heads, 1, hd).astype(jnp.float32)
    bv_h = params["bv"].reshape(n_heads, 1, hd).astype(jnp.float32)
    bo = params["bo"].reshape(1, D).astype(jnp.float32)
    gamma = params["gamma"].reshape(1, D).astype(jnp.float32)
    beta = params["beta"].reshape(1, D).astype(jnp.float32)

    kernel = _make_kernel(n_heads, hd, tq, Sk, cd)

    itemsize = q.dtype.itemsize
    flops = 2 * B * D * D * (2 * Sq + 2 * Sk) + 4 * B * Sq * Sk * D
    transcendentals = B * n_heads * Sq * Sk
    bytes_accessed = itemsize * (B * (Sq + 2 * Sk) * D + B * Sq * D + 4 * D * D + 8 * D)

    const3 = lambda shape: pl.BlockSpec(shape, lambda b, t: (0, 0, 0))
    const2 = lambda shape: pl.BlockSpec(shape, lambda b, t: (0, 0))

    return pl.pallas_call(
        kernel,
        out_shape=jax.ShapeDtypeStruct((B, Sq, D), q.dtype),
        grid_spec=pltpu.PrefetchScalarGridSpec(
            num_scalar_prefetch=0,
            grid=(B, n_qt),
            in_specs=[
                pl.BlockSpec((1, tq, D), lambda b, t: (b, t, 0)),   # q tile
                pl.BlockSpec((1, Sk, D), lambda b, t: (b, 0, 0)),   # k (full, per batch)
                pl.BlockSpec((1, Sk, D), lambda b, t: (b, 0, 0)),   # v (full, per batch)
                const2((1, D)),                                     # gamma
                const2((1, D)),                                     # beta
                const3((n_heads, D, hd)),                           # Wq per head (scaled)
                const3((n_heads, D, hd)),                           # Wk per head
                const3((n_heads, D, hd)),                           # Wv per head
                const3((n_heads, 1, hd)),                           # bq (scaled)
                const3((n_heads, 1, hd)),                           # bk
                const3((n_heads, 1, hd)),                           # bv
                const3((n_heads, hd, D)),                           # Wo per head
                const2((1, D)),                                     # bo
            ],
            out_specs=pl.BlockSpec((1, tq, D), lambda b, t: (b, t, 0)),
            scratch_shapes=[
                pltpu.VMEM((n_heads, tq, hd), cd),   # Q heads (current tile)
                pltpu.VMEM((n_heads, Sk, hd), cd),   # K heads (cached across q tiles)
                pltpu.VMEM((n_heads, Sk, hd), cd),   # V heads (cached across q tiles)
            ],
        ),
        compiler_params=pltpu.CompilerParams(
            # batch is independent -> parallel (megacore); q-tile axis must stay
            # sequential because K/V scratch is filled at q-tile 0 and reused.
            dimension_semantics=("parallel", "arbitrary"),
            vmem_limit_bytes=32 * 1024 * 1024,
        ),
        cost_estimate=pl.CostEstimate(
            flops=int(flops),
            transcendentals=int(transcendentals),
            bytes_accessed=int(bytes_accessed),
        ),
    )(q, k, v, gamma, beta, wq_h, wk_h, wv_h, bq_h, bk_h, bv_h, wo_h, bo)


def _reference(q, k, v, params, n_heads):
    """Pure-JAX reference mirroring the PyTorch forward (eval mode)."""
    D = q.shape[-1]
    hd = D // n_heads
    gamma, beta = params["gamma"], params["beta"]

    def ln(x):
        mu = jnp.mean(x, axis=-1, keepdims=True)
        var = jnp.mean((x - mu) ** 2, axis=-1, keepdims=True)
        return (x - mu) / jnp.sqrt(var + LN_EPS) * gamma + beta

    qn, kn, vn = ln(q), ln(k), ln(v)
    Q = qn @ params["wq"].T + params["bq"]
    K = kn @ params["wk"].T + params["bk"]
    V = vn @ params["wv"].T + params["bv"]

    B, Sq, _ = Q.shape
    Sk = K.shape[1]
    Qh = Q.reshape(B, Sq, n_heads, hd).transpose(0, 2, 1, 3)
    Kh = K.reshape(B, Sk, n_heads, hd).transpose(0, 2, 1, 3)
    Vh = V.reshape(B, Sk, n_heads, hd).transpose(0, 2, 1, 3)

    tri = jnp.triu(jnp.ones((Sq, Sk), jnp.float32), k=1)
    mask = jnp.where(tri > 0, -jnp.inf, 0.0)

    scores = jnp.einsum("bhqd,bhkd->bhqk", Qh, Kh) / math.sqrt(hd) + mask
    p = jax.nn.softmax(scores, axis=-1)
    o = jnp.einsum("bhqk,bhkd->bhqd", p, Vh)
    o = o.transpose(0, 2, 1, 3).reshape(B, Sq, D)
    o = o @ params["wo"].T + params["bo"]
    return qn + o


if __name__ == "__main__":
    # TPU-friendly small shapes: lane-dense D (multiple of 128), 2 query tiles.
    B, S, D, H = 2, 256, 256, 4

    key = jax.random.PRNGKey(0)
    ks = jax.random.split(key, 10)

    q = jax.random.normal(ks[0], (B, S, D), jnp.float32)
    k = jax.random.normal(ks[1], (B, S, D), jnp.float32)
    v = jax.random.normal(ks[2], (B, S, D), jnp.float32)

    # Deterministic synthetic parameters (PyTorch shapes: Linear weight is [out, in]).
    w_scale = 1.0 / math.sqrt(D)
    params = {
        "gamma": jnp.ones((D,), jnp.float32),
        "beta": jnp.zeros((D,), jnp.float32),
        "wq": jax.random.normal(ks[3], (D, D), jnp.float32) * w_scale,
        "wk": jax.random.normal(ks[4], (D, D), jnp.float32) * w_scale,
        "wv": jax.random.normal(ks[5], (D, D), jnp.float32) * w_scale,
        "bq": jax.random.normal(ks[6], (D,), jnp.float32) * 0.1,
        "bk": jax.random.normal(ks[7], (D,), jnp.float32) * 0.1,
        "bv": jax.random.normal(ks[8], (D,), jnp.float32) * 0.1,
        "wo": jax.random.normal(ks[9], (D, D), jnp.float32) * w_scale,
        "bo": jnp.zeros((D,), jnp.float32),
    }

    out = transformer_block(q, k, v, params, n_heads=H, q_tile=128)
    out = jax.block_until_ready(out)

    ref = _reference(q, k, v, params, n_heads=H)
    assert out.shape == (B, S, D)
    assert bool(jnp.allclose(out, ref, rtol=1e-3, atol=1e-3)), (
        "mismatch vs JAX reference; max abs err = %e" % float(jnp.max(jnp.abs(out - ref))))

    print("KERNEL_OK")
</pallas_src>

<mosaic_0001>
module attributes {stable_mosaic.version = 11 : i64} {
  func.func @kernel(%arg0: i32, %arg1: i32, %arg2: memref<1x128x256xf32, #tpu.memory_space<vmem>>, %arg3: memref<1x256x256xf32, #tpu.memory_space<vmem>>, %arg4: memref<1x256x256xf32, #tpu.memory_space<vmem>>, %arg5: memref<1x256xf32, #tpu.memory_space<vmem>>, %arg6: memref<1x256xf32, #tpu.memory_space<vmem>>, %arg7: memref<4x256x64xf32, #tpu.memory_space<vmem>>, %arg8: memref<4x256x64xf32, #tpu.memory_space<vmem>>, %arg9: memref<4x256x64xf32, #tpu.memory_space<vmem>>, %arg10: memref<4x1x64xf32, #tpu.memory_space<vmem>>, %arg11: memref<4x1x64xf32, #tpu.memory_space<vmem>>, %arg12: memref<4x1x64xf32, #tpu.memory_space<vmem>>, %arg13: memref<4x64x256xf32, #tpu.memory_space<vmem>>, %arg14: memref<1x256xf32, #tpu.memory_space<vmem>>, %arg15: memref<1x128x256xf32, #tpu.memory_space<vmem>>, %arg16: memref<4x128x64xf32, #tpu.memory_space<vmem>>, %arg17: memref<4x256x64xf32, #tpu.memory_space<vmem>>, %arg18: memref<4x256x64xf32, #tpu.memory_space<vmem>>) attributes {dimension_semantics = [#tpu.dimension_semantics<parallel>, #tpu.dimension_semantics<arbitrary>], iteration_bounds = array<i64: 2, 2>, scalar_prefetch = 0 : i64, scratch_operands = 3 : i64, tpu.core_type = #tpu.core_type<tc>, window_params = [{transform_indices = @transform_0, window_bounds = array<i64: 1, 128, 256>}, {transform_indices = @transform_1, window_bounds = array<i64: 1, 256, 256>}, {transform_indices = @transform_2, window_bounds = array<i64: 1, 256, 256>}, {pipeline_mode = #tpu.pipeline_mode<synchronous>, transform_indices = @transform_3, window_bounds = array<i64: 1, 256>}, {pipeline_mode = #tpu.pipeline_mode<synchronous>, transform_indices = @transform_4, window_bounds = array<i64: 1, 256>}, {pipeline_mode = #tpu.pipeline_mode<synchronous>, transform_indices = @transform_5, window_bounds = array<i64: 4, 256, 64>}, {pipeline_mode = #tpu.pipeline_mode<synchronous>, transform_indices = @transform_6, window_bounds = array<i64: 4, 256, 64>}, {pipeline_mode = #tpu.pipeline_mode<synchronous>, transform_indices = @transform_7, window_bounds = array<i64: 4, 256, 64>}, {pipeline_mode = #tpu.pipeline_mode<synchronous>, transform_indices = @transform_8, window_bounds = array<i64: 4, 1, 64>}, {pipeline_mode = #tpu.pipeline_mode<synchronous>, transform_indices = @transform_9, window_bounds = array<i64: 4, 1, 64>}, {pipeline_mode = #tpu.pipeline_mode<synchronous>, transform_indices = @transform_10, window_bounds = array<i64: 4, 1, 64>}, {pipeline_mode = #tpu.pipeline_mode<synchronous>, transform_indices = @transform_11, window_bounds = array<i64: 4, 64, 256>}, {pipeline_mode = #tpu.pipeline_mode<synchronous>, transform_indices = @transform_12, window_bounds = array<i64: 1, 256>}, {transform_indices = @transform_13, window_bounds = array<i64: 1, 128, 256>}]} {
    %c0 = arith.constant 0 : index
    %c0_0 = arith.constant 0 : index
    %0 = vector.load %arg5[%c0, %c0_0] : memref<1x256xf32, #tpu.memory_space<vmem>>, vector<1x256xf32>
    %c0_1 = arith.constant 0 : index
    %c0_2 = arith.constant 0 : index
    %1 = vector.load %arg6[%c0_1, %c0_2] : memref<1x256xf32, #tpu.memory_space<vmem>>, vector<1x256xf32>
    %c0_i32 = arith.constant 0 : i32
    %2 = arith.cmpi eq, %arg1, %c0_i32 : i32
    %3 = arith.extui %2 : i1 to i32
    %c0_i32_3 = arith.constant 0 : i32
    %4 = arith.cmpi ne, %3, %c0_i32_3 : i32
    scf.if %4 {
      %c0_73 = arith.constant 0 : index
      %c0_74 = arith.constant 0 : index
      %c0_75 = arith.constant 0 : index
      %120 = vector.load %arg3[%c0_73, %c0_74, %c0_75] : memref<1x256x256xf32, #tpu.memory_space<vmem>>, vector<1x256x256xf32>
      %121 = vector.shape_cast %120 : vector<1x256x256xf32> to vector<256x256xf32>
      %cst_76 = arith.constant dense<0.000000e+00> : vector<256xf32>
      %122 = vector.multi_reduction <add>, %121, %cst_76 [1] : vector<256x256xf32> to vector<256xf32>
      %123 = vector.shape_cast %122 : vector<256xf32> to vector<256x1xf32>
      %cst_77 = arith.constant 2.560000e+02 : f32
      %124 = vector.broadcast %cst_77 : f32 to vector<256x1xf32>
      %125 = arith.divf %123, %124 : vector<256x1xf32>
      %126 = vector.broadcast %125 : vector<256x1xf32> to vector<256x256xf32>
      %127 = arith.subf %121, %126 : vector<256x256xf32>
      %128 = arith.mulf %127, %127 : vector<256x256xf32>
      %cst_78 = arith.constant dense<0.000000e+00> : vector<256xf32>
      %129 = vector.multi_reduction <add>, %128, %cst_78 [1] : vector<256x256xf32> to vector<256xf32>
      %130 = vector.shape_cast %129 : vector<256xf32> to vector<256x1xf32>
      %cst_79 = arith.constant 2.560000e+02 : f32
      %131 = vector.broadcast %cst_79 : f32 to vector<256x1xf32>
      %132 = arith.divf %130, %131 : vector<256x1xf32>
      %133 = vector.broadcast %125 : vector<256x1xf32> to vector<256x256xf32>
      %134 = arith.subf %121, %133 : vector<256x256xf32>
      %cst_80 = arith.constant 9.99999974E-6 : f32
      %135 = vector.broadcast %cst_80 : f32 to vector<256x1xf32>
      %136 = arith.addf %132, %135 : vector<256x1xf32>
      %137 = math.rsqrt %136 : vector<256x1xf32>
      %138 = vector.broadcast %137 : vector<256x1xf32> to vector<256x256xf32>
      %139 = arith.mulf %134, %138 : vector<256x256xf32>
      %140 = vector.broadcast %0 : vector<1x256xf32> to vector<256x256xf32>
      %141 = arith.mulf %139, %140 : vector<256x256xf32>
      %142 = vector.broadcast %1 : vector<1x256xf32> to vector<256x256xf32>
      %143 = arith.addf %141, %142 : vector<256x256xf32>
      %c0_81 = arith.constant 0 : index
      %c0_82 = arith.constant 0 : index
      %c0_83 = arith.constant 0 : index
      %144 = vector.load %arg4[%c0_81, %c0_82, %c0_83] : memref<1x256x256xf32, #tpu.memory_space<vmem>>, vector<1x256x256xf32>
      %145 = vector.shape_cast %144 : vector<1x256x256xf32> to vector<256x256xf32>
      %cst_84 = arith.constant dense<0.000000e+00> : vector<256xf32>
      %146 = vector.multi_reduction <add>, %145, %cst_84 [1] : vector<256x256xf32> to vector<256xf32>
      %147 = vector.shape_cast %146 : vector<256xf32> to vector<256x1xf32>
      %cst_85 = arith.constant 2.560000e+02 : f32
      %148 = vector.broadcast %cst_85 : f32 to vector<256x1xf32>
      %149 = arith.divf %147, %148 : vector<256x1xf32>
      %150 = vector.broadcast %149 : vector<256x1xf32> to vector<256x256xf32>
      %151 = arith.subf %145, %150 : vector<256x256xf32>
      %152 = arith.mulf %151, %151 : vector<256x256xf32>
      %cst_86 = arith.constant dense<0.000000e+00> : vector<256xf32>
      %153 = vector.multi_reduction <add>, %152, %cst_86 [1] : vector<256x256xf32> to vector<256xf32>
      %154 = vector.shape_cast %153 : vector<256xf32> to vector<256x1xf32>
      %cst_87 = arith.constant 2.560000e+02 : f32
      %155 = vector.broadcast %cst_87 : f32 to vector<256x1xf32>
      %156 = arith.divf %154, %155 : vector<256x1xf32>
      %157 = vector.broadcast %149 : vector<256x1xf32> to vector<256x256xf32>
      %158 = arith.subf %145, %157 : vector<256x256xf32>
      %cst_88 = arith.constant 9.99999974E-6 : f32
      %159 = vector.broadcast %cst_88 : f32 to vector<256x1xf32>
      %160 = arith.addf %156, %159 : vector<256x1xf32>
      %161 = math.rsqrt %160 : vector<256x1xf32>
      %162 = vector.broadcast %161 : vector<256x1xf32> to vector<256x256xf32>
      %163 = arith.mulf %158, %162 : vector<256x256xf32>
      %164 = vector.broadcast %0 : vector<1x256xf32> to vector<256x256xf32>
      %165 = arith.mulf %163, %164 : vector<256x256xf32>
      %166 = vector.broadcast %1 : vector<1x256xf32> to vector<256x256xf32>
      %167 = arith.addf %165, %166 : vector<256x256xf32>
      %c0_89 = arith.constant 0 : index
      %c0_90 = arith.constant 0 : index
      %c0_91 = arith.constant 0 : index
      %168 = vector.load %arg8[%c0_89, %c0_90, %c0_91] : memref<4x256x64xf32, #tpu.memory_space<vmem>>, vector<1x256x64xf32>
      %169 = vector.shape_cast %168 : vector<1x256x64xf32> to vector<256x64xf32>
      %cst_92 = arith.constant dense<0.000000e+00> : vector<256x64xf32>
      %170 = tpu.matmul %143, %169, %cst_92 {dimension_numbers = #tpu.dot_dimension_numbers<[1], [0], [0], [1], [0, 0, 1, 1], [], []>} : vector<256x256xf32>, vector<256x64xf32>, vector<256x64xf32> -> vector<256x64xf32>
      %c0_93 = arith.constant 0 : index
      %c0_94 = arith.constant 0 : index
      %c0_95 = arith.constant 0 : index
      %171 = vector.load %arg11[%c0_93, %c0_94, %c0_95] : memref<4x1x64xf32, #tpu.memory_space<vmem>>, vector<1x1x64xf32>
      %172 = vector.shape_cast %171 : vector<1x1x64xf32> to vector<1x64xf32>
      %173 = vector.broadcast %172 : vector<1x64xf32> to vector<256x64xf32>
      %174 = arith.addf %170, %173 : vector<256x64xf32>
      %c0_96 = arith.constant 0 : index
      %c0_97 = arith.constant 0 : index
      %c0_98 = arith.constant 0 : index
      %175 = vector.load %arg17[%c0_96, %c0_97, %c0_98] : memref<4x256x64xf32, #tpu.memory_space<vmem>>, vector<1x256x64xf32>
      %176 = vector.shape_cast %175 : vector<1x256x64xf32> to vector<256x64xf32>
      %177 = vector.shape_cast %174 : vector<256x64xf32> to vector<1x256x64xf32>
      tpu.vector_store %arg17[%c0_96, %c0_97, %c0_98], %177 {strides = array<i32>} : memref<4x256x64xf32, #tpu.memory_space<vmem>>, vector<1x256x64xf32>,
      %c0_99 = arith.constant 0 : index
      %c0_100 = arith.constant 0 : index
      %c0_101 = arith.constant 0 : index
      %178 = vector.load %arg9[%c0_99, %c0_100, %c0_101] : memref<4x256x64xf32, #tpu.memory_space<vmem>>, vector<1x256x64xf32>
      %179 = vector.shape_cast %178 : vector<1x256x64xf32> to vector<256x64xf32>
      %cst_102 = arith.constant dense<0.000000e+00> : vector<256x64xf32>
      %180 = tpu.matmul %167, %179, %cst_102 {dimension_numbers = #tpu.dot_dimension_numbers<[1], [0], [0], [1], [0, 0, 1, 1], [], []>} : vector<256x256xf32>, vector<256x64xf32>, vector<256x64xf32> -> vector<256x64xf32>
      %c0_103 = arith.constant 0 : index
      %c0_104 = arith.constant 0 : index
      %c0_105 = arith.constant 0 : index
      %181 = vector.load %arg12[%c0_103, %c0_104, %c0_105] : memref<4x1x64xf32, #tpu.memory_space<vmem>>, vector<1x1x64xf32>
      %182 = vector.shape_cast %181 : vector<1x1x64xf32> to vector<1x64xf32>
      %183 = vector.broadcast %182 : vector<1x64xf32> to vector<256x64xf32>
      %184 = arith.addf %180, %183 : vector<256x64xf32>
      %c0_106 = arith.constant 0 : index
      %c0_107 = arith.constant 0 : index
      %c0_108 = arith.constant 0 : index
      %185 = vector.load %arg18[%c0_106, %c0_107, %c0_108] : memref<4x256x64xf32, #tpu.memory_space<vmem>>, vector<1x256x64xf32>
      %186 = vector.shape_cast %185 : vector<1x256x64xf32> to vector<256x64xf32>
      %187 = vector.shape_cast %184 : vector<256x64xf32> to vector<1x256x64xf32>
      tpu.vector_store %arg18[%c0_106, %c0_107, %c0_108], %187 {strides = array<i32>} : memref<4x256x64xf32, #tpu.memory_space<vmem>>, vector<1x256x64xf32>,
      %c1_109 = arith.constant 1 : index
      %c0_110 = arith.constant 0 : index
      %c0_111 = arith.constant 0 : index
      %188 = vector.load %arg8[%c1_109, %c0_110, %c0_111] : memref<4x256x64xf32, #tpu.memory_space<vmem>>, vector<1x256x64xf32>
      %189 = vector.shape_cast %188 : vector<1x256x64xf32> to vector<256x64xf32>
      %cst_112 = arith.constant dense<0.000000e+00> : vector<256x64xf32>
      %190 = tpu.matmul %143, %189, %cst_112 {dimension_numbers = #tpu.dot_dimension_numbers<[1], [0], [0], [1], [0, 0, 1, 1], [], []>} : vector<256x256xf32>, vector<256x64xf32>, vector<256x64xf32> -> vector<256x64xf32>
      %c1_113 = arith.constant 1 : index
      %c0_114 = arith.constant 0 : index
      %c0_115 = arith.constant 0 : index
      %191 = vector.load %arg11[%c1_113, %c0_114, %c0_115] : memref<4x1x64xf32, #tpu.memory_space<vmem>>, vector<1x1x64xf32>
      %192 = vector.shape_cast %191 : vector<1x1x64xf32> to vector<1x64xf32>
      %193 = vector.broadcast %192 : vector<1x64xf32> to vector<256x64xf32>
      %194 = arith.addf %190, %193 : vector<256x64xf32>
      %c1_116 = arith.constant 1 : index
      %c0_117 = arith.constant 0 : index
      %c0_118 = arith.constant 0 : index
      %195 = vector.load %arg17[%c1_116, %c0_117, %c0_118] : memref<4x256x64xf32, #tpu.memory_space<vmem>>, vector<1x256x64xf32>
      %196 = vector.shape_cast %195 : vector<1x256x64xf32> to vector<256x64xf32>
      %197 = vector.shape_cast %194 : vector<256x64xf32> to vector<1x256x64xf32>
      tpu.vector_store %arg17[%c1_116, %c0_117, %c0_118], %197 {strides = array<i32>} : memref<4x256x64xf32, #tpu.memory_space<vmem>>, vector<1x256x64xf32>,
      %c1_119 = arith.constant 1 : index
      %c0_120 = arith.constant 0 : index
      %c0_121 = arith.constant 0 : index
      %198 = vector.load %arg9[%c1_119, %c0_120, %c0_121] : memref<4x256x64xf32, #tpu.memory_space<vmem>>, vector<1x256x64xf32>
      %199 = vector.shape_cast %198 : vector<1x256x64xf32> to vector<256x64xf32>
      %cst_122 = arith.constant dense<0.000000e+00> : vector<256x64xf32>
      %200 = tpu.matmul %167, %199, %cst_122 {dimension_numbers = #tpu.dot_dimension_numbers<[1], [0], [0], [1], [0, 0, 1, 1], [], []>} : vector<256x256xf32>, vector<256x64xf32>, vector<256x64xf32> -> vector<256x64xf32>
      %c1_123 = arith.constant 1 : index
      %c0_124 = arith.constant 0 : index
      %c0_125 = arith.constant 0 : index
      %201 = vector.load %arg12[%c1_123, %c0_124, %c0_125] : memref<4x1x64xf32, #tpu.memory_space<vmem>>, vector<1x1x64xf32>
      %202 = vector.shape_cast %201 : vector<1x1x64xf32> to vector<1x64xf32>
      %203 = vector.broadcast %202 : vector<1x64xf32> to vector<256x64xf32>
      %204 = arith.addf %200, %203 : vector<256x64xf32>
      %c1_126 = arith.constant 1 : index
      %c0_127 = arith.constant 0 : index
      %c0_128 = arith.constant 0 : index
      %205 = vector.load %arg18[%c1_126, %c0_127, %c0_128] : memref<4x256x64xf32, #tpu.memory_space<vmem>>, vector<1x256x64xf32>
      %206 = vector.shape_cast %205 : vector<1x256x64xf32> to vector<256x64xf32>
      %207 = vector.shape_cast %204 : vector<256x64xf32> to vector<1x256x64xf32>
      tpu.vector_store %arg18[%c1_126, %c0_127, %c0_128], %207 {strides = array<i32>} : memref<4x256x64xf32, #tpu.memory_space<vmem>>, vector<1x256x64xf32>,
      %c2_129 = arith.constant 2 : index
      %c0_130 = arith.constant 0 : index
      %c0_131 = arith.constant 0 : index
      %208 = vector.load %arg8[%c2_129, %c0_130, %c0_131] : memref<4x256x64xf32, #tpu.memory_space<vmem>>, vector<1x256x64xf32>
      %209 = vector.shape_cast %208 : vector<1x256x64xf32> to vector<256x64xf32>
      %cst_132 = arith.constant dense<0.000000e+00> : vector<256x64xf32>
      %210 = tpu.matmul %143, %209, %cst_132 {dimension_numbers = #tpu.dot_dimension_numbers<[1], [0], [0], [1], [0, 0, 1, 1], [], []>} : vector<256x256xf32>, vector<256x64xf32>, vector<256x64xf32> -> vector<256x64xf32>
      %c2_133 = arith.constant 2 : index
      %c0_134 = arith.constant 0 : index
      %c0_135 = arith.constant 0 : index
      %211 = vector.load %arg11[%c2_133, %c0_134, %c0_135] : memref<4x1x64xf32, #tpu.memory_space<vmem>>, vector<1x1x64xf32>
      %212 = vector.shape_cast %211 : vector<1x1x64xf32> to vector<1x64xf32>
      %213 = vector.broadcast %212 : vector<1x64xf32> to vector<256x64xf32>
      %214 = arith.addf %210, %213 : vector<256x64xf32>
      %c2_136 = arith.constant 2 : index
      %c0_137 = arith.constant 0 : index
      %c0_138 = arith.constant 0 : index
      %215 = vector.load %arg17[%c2_136, %c0_137, %c0_138] : memref<4x256x64xf32, #tpu.memory_space<vmem>>, vector<1x256x64xf32>
      %216 = vector.shape_cast %215 : vector<1x256x64xf32> to vector<256x64xf32>
      %217 = vector.shape_cast %214 : vector<256x64xf32> to vector<1x256x64xf32>
      tpu.vector_store %arg17[%c2_136, %c0_137, %c0_138], %217 {strides = array<i32>} : memref<4x256x64xf32, #tpu.memory_space<vmem>>, vector<1x256x64xf32>,
      %c2_139 = arith.constant 2 : index
      %c0_140 = arith.constant 0 : index
      %c0_141 = arith.constant 0 : index
      %218 = vector.load %arg9[%c2_139, %c0_140, %c0_141] : memref<4x256x64xf32, #tpu.memory_space<vmem>>, vector<1x256x64xf32>
      %219 = vector.shape_cast %218 : vector<1x256x64xf32> to vector<256x64xf32>
      %cst_142 = arith.constant dense<0.000000e+00> : vector<256x64xf32>
      %220 = tpu.matmul %167, %219, %cst_142 {dimension_numbers = #tpu.dot_dimension_numbers<[1], [0], [0], [1], [0, 0, 1, 1], [], []>} : vector<256x256xf32>, vector<256x64xf32>, vector<256x64xf32> -> vector<256x64xf32>
      %c2_143 = arith.constant 2 : index
      %c0_144 = arith.constant 0 : index
      %c0_145 = arith.constant 0 : index
      %221 = vector.load %arg12[%c2_143, %c0_144, %c0_145] : memref<4x1x64xf32, #tpu.memory_space<vmem>>, vector<1x1x64xf32>
      %222 = vector.shape_cast %221 : vector<1x1x64xf32> to vector<1x64xf32>
      %223 = vector.broadcast %222 : vector<1x64xf32> to vector<256x64xf32>
      %224 = arith.addf %220, %223 : vector<256x64xf32>
      %c2_146 = arith.constant 2 : index
      %c0_147 = arith.constant 0 : index
      %c0_148 = arith.constant 0 : index
      %225 = vector.load %arg18[%c2_146, %c0_147, %c0_148] : memref<4x256x64xf32, #tpu.memory_space<vmem>>, vector<1x256x64xf32>
      %226 = vector.shape_cast %225 : vector<1x256x64xf32> to vector<256x64xf32>
      %227 = vector.shape_cast %224 : vector<256x64xf32> to vector<1x256x64xf32>
      tpu.vector_store %arg18[%c2_146, %c0_147, %c0_148], %227 {strides = array<i32>} : memref<4x256x64xf32, #tpu.memory_space<vmem>>, vector<1x256x64xf32>,
      %c3_149 = arith.constant 3 : index
      %c0_150 = arith.constant 0 : index
      %c0_151 = arith.constant 0 : index
      %228 = vector.load %arg8[%c3_149, %c0_150, %c0_151] : memref<4x256x64xf32, #tpu.memory_space<vmem>>, vector<1x256x64xf32>
      %229 = vector.shape_cast %228 : vector<1x256x64xf32> to vector<256x64xf32>
      %cst_152 = arith.constant dense<0.000000e+00> : vector<256x64xf32>
      %230 = tpu.matmul %143, %229, %cst_152 {dimension_numbers = #tpu.dot_dimension_numbers<[1], [0], [0], [1], [0, 0, 1, 1], [], []>} : vector<256x256xf32>, vector<256x64xf32>, vector<256x64xf32> -> vector<256x64xf32>
      %c3_153 = arith.constant 3 : index
      %c0_154 = arith.constant 0 : index
      %c0_155 = arith.constant 0 : index
      %231 = vector.load %arg11[%c3_153, %c0_154, %c0_155] : memref<4x1x64xf32, #tpu.memory_space<vmem>>, vector<1x1x64xf32>
      %232 = vector.shape_cast %231 : vector<1x1x64xf32> to vector<1x64xf32>
      %233 = vector.broadcast %232 : vector<1x64xf32> to vector<256x64xf32>
      %234 = arith.addf %230, %233 : vector<256x64xf32>
      %c3_156 = arith.constant 3 : index
      %c0_157 = arith.constant 0 : index
      %c0_158 = arith.constant 0 : index
      %235 = vector.load %arg17[%c3_156, %c0_157, %c0_158] : memref<4x256x64xf32, #tpu.memory_space<vmem>>, vector<1x256x64xf32>
      %236 = vector.shape_cast %235 : vector<1x256x64xf32> to vector<256x64xf32>
      %237 = vector.shape_cast %234 : vector<256x64xf32> to vector<1x256x64xf32>
      tpu.vector_store %arg17[%c3_156, %c0_157, %c0_158], %237 {strides = array<i32>} : memref<4x256x64xf32, #tpu.memory_space<vmem>>, vector<1x256x64xf32>,
      %c3_159 = arith.constant 3 : index
      %c0_160 = arith.constant 0 : index
      %c0_161 = arith.constant 0 : index
      %238 = vector.load %arg9[%c3_159, %c0_160, %c0_161] : memref<4x256x64xf32, #tpu.memory_space<vmem>>, vector<1x256x64xf32>
      %239 = vector.shape_cast %238 : vector<1x256x64xf32> to vector<256x64xf32>
      %cst_162 = arith.constant dense<0.000000e+00> : vector<256x64xf32>
      %240 = tpu.matmul %167, %239, %cst_162 {dimension_numbers = #tpu.dot_dimension_numbers<[1], [0], [0], [1], [0, 0, 1, 1], [], []>} : vector<256x256xf32>, vector<256x64xf32>, vector<256x64xf32> -> vector<256x64xf32>
      %c3_163 = arith.constant 3 : index
      %c0_164 = arith.constant 0 : index
      %c0_165 = arith.constant 0 : index
      %241 = vector.load %arg12[%c3_163, %c0_164, %c0_165] : memref<4x1x64xf32, #tpu.memory_space<vmem>>, vector<1x1x64xf32>
      %242 = vector.shape_cast %241 : vector<1x1x64xf32> to vector<1x64xf32>
      %243 = vector.broadcast %242 : vector<1x64xf32> to vector<256x64xf32>
      %244 = arith.addf %240, %243 : vector<256x64xf32>
      %c3_166 = arith.constant 3 : index
      %c0_167 = arith.constant 0 : index
      %c0_168 = arith.constant 0 : index
      %245 = vector.load %arg18[%c3_166, %c0_167, %c0_168] : memref<4x256x64xf32, #tpu.memory_space<vmem>>, vector<1x256x64xf32>
      %246 = vector.shape_cast %245 : vector<1x256x64xf32> to vector<256x64xf32>
      %247 = vector.shape_cast %244 : vector<256x64xf32> to vector<1x256x64xf32>
      tpu.vector_store %arg18[%c3_166, %c0_167, %c0_168], %247 {strides = array<i32>} : memref<4x256x64xf32, #tpu.memory_space<vmem>>, vector<1x256x64xf32>,
    } else {
    }
    %c0_4 = arith.constant 0 : index
    %c0_5 = arith.constant 0 : index
    %c0_6 = arith.constant 0 : index
    %5 = vector.load %arg2[%c0_4, %c0_5, %c0_6] : memref<1x128x256xf32, #tpu.memory_space<vmem>>, vector<1x128x256xf32>
    %6 = vector.shape_cast %5 : vector<1x128x256xf32> to vector<128x256xf32>
    %cst = arith.constant dense<0.000000e+00> : vector<128xf32>
    %7 = vector.multi_reduction <add>, %6, %cst [1] : vector<128x256xf32> to vector<128xf32>
    %8 = vector.shape_cast %7 : vector<128xf32> to vector<128x1xf32>
    %cst_7 = arith.constant 2.560000e+02 : f32
    %9 = vector.broadcast %cst_7 : f32 to vector<128x1xf32>
    %10 = arith.divf %8, %9 : vector<128x1xf32>
    %11 = vector.broadcast %10 : vector<128x1xf32> to vector<128x256xf32>
    %12 = arith.subf %6, %11 : vector<128x256xf32>
    %13 = arith.mulf %12, %12 : vector<128x256xf32>
    %cst_8 = arith.constant dense<0.000000e+00> : vector<128xf32>
    %14 = vector.multi_reduction <add>, %13, %cst_8 [1] : vector<128x256xf32> to vector<128xf32>
    %15 = vector.shape_cast %14 : vector<128xf32> to vector<128x1xf32>
    %cst_9 = arith.constant 2.560000e+02 : f32
    %16 = vector.broadcast %cst_9 : f32 to vector<128x1xf32>
    %17 = arith.divf %15, %16 : vector<128x1xf32>
    %18 = vector.broadcast %10 : vector<128x1xf32> to vector<128x256xf32>
    %19 = arith.subf %6, %18 : vector<128x256xf32>
    %cst_10 = arith.constant 9.99999974E-6 : f32
    %20 = vector.broadcast %cst_10 : f32 to vector<128x1xf32>
    %21 = arith.addf %17, %20 : vector<128x1xf32>
    %22 = math.rsqrt %21 : vector<128x1xf32>
    %23 = vector.broadcast %22 : vector<128x1xf32> to vector<128x256xf32>
    %24 = arith.mulf %19, %23 : vector<128x256xf32>
    %25 = vector.broadcast %0 : vector<1x256xf32> to vector<128x256xf32>
    %26 = arith.mulf %24, %25 : vector<128x256xf32>
    %27 = vector.broadcast %1 : vector<1x256xf32> to vector<128x256xf32>
    %28 = arith.addf %26, %27 : vector<128x256xf32>
    %c0_11 = arith.constant 0 : index
    %c0_12 = arith.constant 0 : index
    %c0_13 = arith.constant 0 : index
    %29 = vector.load %arg7[%c0_11, %c0_12, %c0_13] : memref<4x256x64xf32, #tpu.memory_space<vmem>>, vector<1x256x64xf32>
    %30 = vector.shape_cast %29 : vector<1x256x64xf32> to vector<256x64xf32>
    %cst_14 = arith.constant dense<0.000000e+00> : vector<128x64xf32>
    %31 = tpu.matmul %28, %30, %cst_14 {dimension_numbers = #tpu.dot_dimension_numbers<[1], [0], [0], [1], [0, 0, 1, 1], [], []>} : vector<128x256xf32>, vector<256x64xf32>, vector<128x64xf32> -> vector<128x64xf32>
    %c0_15 = arith.constant 0 : index
    %c0_16 = arith.constant 0 : index
    %c0_17 = arith.constant 0 : index
    %32 = vector.load %arg10[%c0_15, %c0_16, %c0_17] : memref<4x1x64xf32, #tpu.memory_space<vmem>>, vector<1x1x64xf32>
    %33 = vector.shape_cast %32 : vector<1x1x64xf32> to vector<1x64xf32>
    %34 = vector.broadcast %33 : vector<1x64xf32> to vector<128x64xf32>
    %35 = arith.addf %31, %34 : vector<128x64xf32>
    %c0_18 = arith.constant 0 : index
    %c0_19 = arith.constant 0 : index
    %c0_20 = arith.constant 0 : index
    %36 = vector.load %arg16[%c0_18, %c0_19, %c0_20] : memref<4x128x64xf32, #tpu.memory_space<vmem>>, vector<1x128x64xf32>
    %37 = vector.shape_cast %36 : vector<1x128x64xf32> to vector<128x64xf32>
    %38 = vector.shape_cast %35 : vector<128x64xf32> to vector<1x128x64xf32>
    tpu.vector_store %arg16[%c0_18, %c0_19, %c0_20], %38 {strides = array<i32>} : memref<4x128x64xf32, #tpu.memory_space<vmem>>, vector<1x128x64xf32>,
    %c1 = arith.constant 1 : index
    %c0_21 = arith.constant 0 : index
    %c0_22 = arith.constant 0 : index
    %39 = vector.load %arg7[%c1, %c0_21, %c0_22] : memref<4x256x64xf32, #tpu.memory_space<vmem>>, vector<1x256x64xf32>
    %40 = vector.shape_cast %39 : vector<1x256x64xf32> to vector<256x64xf32>
    %cst_23 = arith.constant dense<0.000000e+00> : vector<128x64xf32>
    %41 = tpu.matmul %28, %40, %cst_23 {dimension_numbers = #tpu.dot_dimension_numbers<[1], [0], [0], [1], [0, 0, 1, 1], [], []>} : vector<128x256xf32>, vector<256x64xf32>, vector<128x64xf32> -> vector<128x64xf32>
    %c1_24 = arith.constant 1 : index
    %c0_25 = arith.constant 0 : index
    %c0_26 = arith.constant 0 : index
    %42 = vector.load %arg10[%c1_24, %c0_25, %c0_26] : memref<4x1x64xf32, #tpu.memory_space<vmem>>, vector<1x1x64xf32>
    %43 = vector.shape_cast %42 : vector<1x1x64xf32> to vector<1x64xf32>
    %44 = vector.broadcast %43 : vector<1x64xf32> to vector<128x64xf32>
    %45 = arith.addf %41, %44 : vector<128x64xf32>
    %c1_27 = arith.constant 1 : index
    %c0_28 = arith.constant 0 : index
    %c0_29 = arith.constant 0 : index
    %46 = vector.load %arg16[%c1_27, %c0_28, %c0_29] : memref<4x128x64xf32, #tpu.memory_space<vmem>>, vector<1x128x64xf32>
    %47 = vector.shape_cast %46 : vector<1x128x64xf32> to vector<128x64xf32>
    %48 = vector.shape_cast %45 : vector<128x64xf32> to vector<1x128x64xf32>
    tpu.vector_store %arg16[%c1_27, %c0_28, %c0_29], %48 {strides = array<i32>} : memref<4x128x64xf32, #tpu.memory_space<vmem>>, vector<1x128x64xf32>,
    %c2 = arith.constant 2 : index
    %c0_30 = arith.constant 0 : index
    %c0_31 = arith.constant 0 : index
    %49 = vector.load %arg7[%c2, %c0_30, %c0_31] : memref<4x256x64xf32, #tpu.memory_space<vmem>>, vector<1x256x64xf32>
    %50 = vector.shape_cast %49 : vector<1x256x64xf32> to vector<256x64xf32>
    %cst_32 = arith.constant dense<0.000000e+00> : vector<128x64xf32>
    %51 = tpu.matmul %28, %50, %cst_32 {dimension_numbers = #tpu.dot_dimension_numbers<[1], [0], [0], [1], [0, 0, 1, 1], [], []>} : vector<128x256xf32>, vector<256x64xf32>, vector<128x64xf32> -> vector<128x64xf32>
    %c2_33 = arith.constant 2 : index
    %c0_34 = arith.constant 0 : index
    %c0_35 = arith.constant 0 : index
    %52 = vector.load %arg10[%c2_33, %c0_34, %c0_35] : memref<4x1x64xf32, #tpu.memory_space<vmem>>, vector<1x1x64xf32>
    %53 = vector.shape_cast %52 : vector<1x1x64xf32> to vector<1x64xf32>
    %54 = vector.broadcast %53 : vector<1x64xf32> to vector<128x64xf32>
    %55 = arith.addf %51, %54 : vector<128x64xf32>
    %c2_36 = arith.constant 2 : index
    %c0_37 = arith.constant 0 : index
    %c0_38 = arith.constant 0 : index
    %56 = vector.load %arg16[%c2_36, %c0_37, %c0_38] : memref<4x128x64xf32, #tpu.memory_space<vmem>>, vector<1x128x64xf32>
    %57 = vector.shape_cast %56 : vector<1x128x64xf32> to vector<128x64xf32>
    %58 = vector.shape_cast %55 : vector<128x64xf32> to vector<1x128x64xf32>
    tpu.vector_store %arg16[%c2_36, %c0_37, %c0_38], %58 {strides = array<i32>} : memref<4x128x64xf32, #tpu.memory_space<vmem>>, vector<1x128x64xf32>,
    %c3 = arith.constant 3 : index
    %c0_39 = arith.constant 0 : index
    %c0_40 = arith.constant 0 : index
    %59 = vector.load %arg7[%c3, %c0_39, %c0_40] : memref<4x256x64xf32, #tpu.memory_space<vmem>>, vector<1x256x64xf32>
    %60 = vector.shape_cast %59 : vector<1x256x64xf32> to vector<256x64xf32>
    %cst_41 = arith.constant dense<0.000000e+00> : vector<128x64xf32>
    %61 = tpu.matmul %28, %60, %cst_41 {dimension_numbers = #tpu.dot_dimension_numbers<[1], [0], [0], [1], [0, 0, 1, 1], [], []>} : vector<128x256xf32>, vector<256x64xf32>, vector<128x64xf32> -> vector<128x64xf32>
    %c3_42 = arith.constant 3 : index
    %c0_43 = arith.constant 0 : index
    %c0_44 = arith.constant 0 : index
    %62 = vector.load %arg10[%c3_42, %c0_43, %c0_44] : memref<4x1x64xf32, #tpu.memory_space<vmem>>, vector<1x1x64xf32>
    %63 = vector.shape_cast %62 : vector<1x1x64xf32> to vector<1x64xf32>
    %64 = vector.broadcast %63 : vector<1x64xf32> to vector<128x64xf32>
    %65 = arith.addf %61, %64 : vector<128x64xf32>
    %c3_45 = arith.constant 3 : index
    %c0_46 = arith.constant 0 : index
    %c0_47 = arith.constant 0 : index
    %66 = vector.load %arg16[%c3_45, %c0_46, %c0_47] : memref<4x128x64xf32, #tpu.memory_space<vmem>>, vector<1x128x64xf32>
    %67 = vector.shape_cast %66 : vector<1x128x64xf32> to vector<128x64xf32>
    %68 = vector.shape_cast %65 : vector<128x64xf32> to vector<1x128x64xf32>
    tpu.vector_store %arg16[%c3_45, %c0_46, %c0_47], %68 {strides = array<i32>} : memref<4x128x64xf32, #tpu.memory_space<vmem>>, vector<1x128x64xf32>,
    %c0_48 = arith.constant 0 : index
    %c0_49 = arith.constant 0 : index
    %c0_50 = arith.constant 0 : index
    %69 = vector.load %arg16[%c0_48, %c0_49, %c0_50] : memref<4x128x64xf32, #tpu.memory_space<vmem>>, vector<4x128x64xf32>
    %c0_51 = arith.constant 0 : index
    %c0_52 = arith.constant 0 : index
    %c0_53 = arith.constant 0 : index
    %70 = vector.load %arg17[%c0_51, %c0_52, %c0_53] : memref<4x256x64xf32, #tpu.memory_space<vmem>>, vector<4x256x64xf32>
    %c0_54 = arith.constant 0 : index
    %c0_55 = arith.constant 0 : index
    %c0_56 = arith.constant 0 : index
    %71 = vector.load %arg18[%c0_54, %c0_55, %c0_56] : memref<4x256x64xf32, #tpu.memory_space<vmem>>, vector<4x256x64xf32>
    "tpu.trace_start"() <{level = 10 : i32, message = "hqd,hkd->hqk"}> : () -> ()
    %cst_57 = arith.constant dense<0.000000e+00> : vector<4x128x256xf32>
    %72 = tpu.matmul %69, %70, %cst_57 {dimension_numbers = #tpu.dot_dimension_numbers<[2], [2], [1], [1], [0, 0, 0, 1, 1, 1], [0], [0]>} : vector<4x128x64xf32>, vector<4x256x64xf32>, vector<4x128x256xf32> -> vector<4x128x256xf32>
    "tpu.trace_stop"() : () -> ()
    %c128_i32 = arith.constant 128 : i32
    %73 = arith.muli %arg1, %c128_i32 : i32
    %74 = tpu.iota {dimensions = array<i32: 0>} : vector<128x256xi32>
    %75 = vector.broadcast %73 : i32 to vector<128x256xi32>
    %76 = arith.addi %75, %74 : vector<128x256xi32>
    %77 = tpu.iota {dimensions = array<i32: 1>} : vector<128x256xi32>
    %78 = arith.cmpi sgt, %77, %76 : vector<128x256xi32>
    %cst_58 = arith.constant -1.000000e+30 : f32
    %cst_59 = arith.constant 0.000000e+00 : f32
    %79 = vector.broadcast %cst_58 : f32 to vector<128x256xf32>
    %80 = vector.broadcast %cst_59 : f32 to vector<128x256xf32>
    %81 = arith.select %78, %79, %80 : vector<128x256xi1>, vector<128x256xf32>
    %82 = vector.shape_cast %81 : vector<128x256xf32> to vector<1x128x256xf32>
    %83 = vector.broadcast %82 : vector<1x128x256xf32> to vector<4x128x256xf32>
    %84 = arith.addf %72, %83 : vector<4x128x256xf32>
    %cst_60 = arith.constant dense<0xFF800000> : vector<4x128xf32>
    %85 = vector.multi_reduction <maximumf>, %84, %cst_60 [2] : vector<4x128x256xf32> to vector<4x128xf32>
    %86 = vector.shape_cast %85 : vector<4x128xf32> to vector<4x128x1xf32>
    %87 = vector.broadcast %86 : vector<4x128x1xf32> to vector<4x128x256xf32>
    %88 = arith.subf %84, %87 : vector<4x128x256xf32>
    %89 = math.exp %88 : vector<4x128x256xf32>
    %cst_61 = arith.constant dense<0.000000e+00> : vector<4x128xf32>
    %90 = vector.multi_reduction <add>, %89, %cst_61 [2] : vector<4x128x256xf32> to vector<4x128xf32>
    %91 = vector.shape_cast %90 : vector<4x128xf32> to vector<4x128x1xf32>
    %92 = tpu.reciprocal %91 {approx = true} : vector<4x128x1xf32> -> vector<4x128x1xf32>
    %93 = arith.mulf %91, %92 : vector<4x128x1xf32>
    %cst_62 = arith.constant 2.000000e+00 : f32
    %94 = vector.broadcast %cst_62 : f32 to vector<4x128x1xf32>
    %95 = arith.subf %94, %93 : vector<4x128x1xf32>
    %96 = arith.mulf %92, %95 : vector<4x128x1xf32>
    %97 = vector.broadcast %96 : vector<4x128x1xf32> to vector<4x128x256xf32>
    %98 = arith.mulf %89, %97 : vector<4x128x256xf32>
    "tpu.trace_start"() <{level = 10 : i32, message = "hqk,hkd->hqd"}> : () -> ()
    %cst_63 = arith.constant dense<0.000000e+00> : vector<4x128x64xf32>
    %99 = tpu.matmul %98, %71, %cst_63 {dimension_numbers = #tpu.dot_dimension_numbers<[2], [1], [1], [2], [0, 0, 0, 1, 1, 2], [0], [0]>} : vector<4x128x256xf32>, vector<4x256x64xf32>, vector<4x128x64xf32> -> vector<4x128x64xf32>
    "tpu.trace_stop"() : () -> ()
    %c0_64 = arith.constant 0 : index
    %c0_65 = arith.constant 0 : index
    %c0_66 = arith.constant 0 : index
    %100 = vector.load %arg13[%c0_64, %c0_65, %c0_66] : memref<4x64x256xf32, #tpu.memory_space<vmem>>, vector<4x64x256xf32>
    "tpu.trace_start"() <{level = 10 : i32, message = "hqd,hdn->hqn"}> : () -> ()
    %cst_67 = arith.constant dense<0.000000e+00> : vector<4x128x256xf32>
    %101 = tpu.matmul %99, %100, %cst_67 {dimension_numbers = #tpu.dot_dimension_numbers<[2], [1], [1], [2], [0, 0, 0, 1, 1, 2], [0], [0]>} : vector<4x128x64xf32>, vector<4x64x256xf32>, vector<4x128x256xf32> -> vector<4x128x256xf32>
    "tpu.trace_stop"() : () -> ()
    %102 = vector.extract_strided_slice %101 {offsets = [0, 0, 0], sizes = [1, 128, 256], strides = [1, 1, 1]} : vector<4x128x256xf32> to vector<1x128x256xf32>
    %103 = vector.shape_cast %102 : vector<1x128x256xf32> to vector<128x256xf32>
    %104 = vector.extract_strided_slice %101 {offsets = [1, 0, 0], sizes = [1, 128, 256], strides = [1, 1, 1]} : vector<4x128x256xf32> to vector<1x128x256xf32>
    %105 = vector.shape_cast %104 : vector<1x128x256xf32> to vector<128x256xf32>
    %106 = arith.addf %103, %105 : vector<128x256xf32>
    %107 = vector.extract_strided_slice %101 {offsets = [2, 0, 0], sizes = [1, 128, 256], strides = [1, 1, 1]} : vector<4x128x256xf32> to vector<1x128x256xf32>
    %108 = vector.shape_cast %107 : vector<1x128x256xf32> to vector<128x256xf32>
    %109 = arith.addf %106, %108 : vector<128x256xf32>
    %110 = vector.extract_strided_slice %101 {offsets = [3, 0, 0], sizes = [1, 128, 256], strides = [1, 1, 1]} : vector<4x128x256xf32> to vector<1x128x256xf32>
    %111 = vector.shape_cast %110 : vector<1x128x256xf32> to vector<128x256xf32>
    %112 = arith.addf %109, %111 : vector<128x256xf32>
    %c0_68 = arith.constant 0 : index
    %c0_69 = arith.constant 0 : index
    %113 = vector.load %arg14[%c0_68, %c0_69] : memref<1x256xf32, #tpu.memory_space<vmem>>, vector<1x256xf32>
    %114 = vector.broadcast %113 : vector<1x256xf32> to vector<128x256xf32>
    %115 = arith.addf %112, %114 : vector<128x256xf32>
    %116 = arith.addf %28, %115 : vector<128x256xf32>
    %c0_70 = arith.constant 0 : index
    %c0_71 = arith.constant 0 : index
    %c0_72 = arith.constant 0 : index
    %117 = vector.load %arg15[%c0_70, %c0_71, %c0_72] : memref<1x128x256xf32, #tpu.memory_space<vmem>>, vector<1x128x256xf32>
    %118 = vector.shape_cast %117 : vector<1x128x256xf32> to vector<128x256xf32>
    %119 = vector.shape_cast %116 : vector<128x256xf32> to vector<1x128x256xf32>
    tpu.vector_store %arg15[%c0_70, %c0_71, %c0_72], %119 {strides = array<i32>} : memref<1x128x256xf32, #tpu.memory_space<vmem>>, vector<1x128x256xf32>,
    return
  }
  func.func @transform_0(%arg0: i32, %arg1: i32) -> (i32, i32, i32) {
    %c0_i32 = arith.constant 0 : i32
    %c0_i32_0 = arith.constant 0 : i32
    return %arg0, %arg1, %c0_i32 : i32, i32, i32
  }
  func.func @transform_1(%arg0: i32, %arg1: i32) -> (i32, i32, i32) {
    %c0_i32 = arith.constant 0 : i32
    %c0_i32_0 = arith.constant 0 : i32
    %c0_i32_1 = arith.constant 0 : i32
    return %arg0, %c0_i32, %c0_i32_0 : i32, i32, i32
  }
  func.func @transform_2(%arg0: i32, %arg1: i32) -> (i32, i32, i32) {
    %c0_i32 = arith.constant 0 : i32
    %c0_i32_0 = arith.constant 0 : i32
    %c0_i32_1 = arith.constant 0 : i32
    return %arg0, %c0_i32, %c0_i32_0 : i32, i32, i32
  }
  func.func @transform_3(%arg0: i32, %arg1: i32) -> (i32, i32) {
    %c0_i32 = arith.constant 0 : i32
    %c0_i32_0 = arith.constant 0 : i32
    %c0_i32_1 = arith.constant 0 : i32
    return %c0_i32, %c0_i32_0 : i32, i32
  }
  func.func @transform_4(%arg0: i32, %arg1: i32) -> (i32, i32) {
    %c0_i32 = arith.constant 0 : i32
    %c0_i32_0 = arith.constant 0 : i32
    %c0_i32_1 = arith.constant 0 : i32
    return %c0_i32, %c0_i32_0 : i32, i32
  }
  func.func @transform_5(%arg0: i32, %arg1: i32) -> (i32, i32, i32) {
    %c0_i32 = arith.constant 0 : i32
    %c0_i32_0 = arith.constant 0 : i32
    %c0_i32_1 = arith.constant 0 : i32
    %c0_i32_2 = arith.constant 0 : i32
    return %c0_i32, %c0_i32_0, %c0_i32_1 : i32, i32, i32
  }
  func.func @transform_6(%arg0: i32, %arg1: i32) -> (i32, i32, i32) {
    %c0_i32 = arith.constant 0 : i32
    %c0_i32_0 = arith.constant 0 : i32
    %c0_i32_1 = arith.constant 0 : i32
    %c0_i32_2 = arith.constant 0 : i32
    return %c0_i32, %c0_i32_0, %c0_i32_1 : i32, i32, i32
  }
  func.func @transform_7(%arg0: i32, %arg1: i32) -> (i32, i32, i32) {
    %c0_i32 = arith.constant 0 : i32
    %c0_i32_0 = arith.constant 0 : i32
    %c0_i32_1 = arith.constant 0 : i32
    %c0_i32_2 = arith.constant 0 : i32
    return %c0_i32, %c0_i32_0, %c0_i32_1 : i32, i32, i32
  }
  func.func @transform_8(%arg0: i32, %arg1: i32) -> (i32, i32, i32) {
    %c0_i32 = arith.constant 0 : i32
    %c0_i32_0 = arith.constant 0 : i32
    %c0_i32_1 = arith.constant 0 : i32
    %c0_i32_2 = arith.constant 0 : i32
    return %c0_i32, %c0_i32_0, %c0_i32_1 : i32, i32, i32
  }
  func.func @transform_9(%arg0: i32, %arg1: i32) -> (i32, i32, i32) {
    %c0_i32 = arith.constant 0 : i32
    %c0_i32_0 = arith.constant 0 : i32
    %c0_i32_1 = arith.constant 0 : i32
    %c0_i32_2 = arith.constant 0 : i32
    return %c0_i32, %c0_i32_0, %c0_i32_1 : i32, i32, i32
  }
  func.func @transform_10(%arg0: i32, %arg1: i32) -> (i32, i32, i32) {
    %c0_i32 = arith.constant 0 : i32
    %c0_i32_0 = arith.constant 0 : i32
    %c0_i32_1 = arith.constant 0 : i32
    %c0_i32_2 = arith.constant 0 : i32
    return %c0_i32, %c0_i32_0, %c0_i32_1 : i32, i32, i32
  }
  func.func @transform_11(%arg0: i32, %arg1: i32) -> (i32, i32, i32) {
    %c0_i32 = arith.constant 0 : i32
    %c0_i32_0 = arith.constant 0 : i32
    %c0_i32_1 = arith.constant 0 : i32
    %c0_i32_2 = arith.constant 0 : i32
    return %c0_i32, %c0_i32_0, %c0_i32_1 : i32, i32, i32
  }
  func.func @transform_12(%arg0: i32, %arg1: i32) -> (i32, i32) {
    %c0_i32 = arith.constant 0 : i32
    %c0_i32_0 = arith.constant 0 : i32
    %c0_i32_1 = arith.constant 0 : i32
    return %c0_i32, %c0_i32_0 : i32, i32
  }
  func.func @transform_13(%arg0: i32, %arg1: i32) -> (i32, i32, i32) {
    %c0_i32 = arith.constant 0 : i32
    %c0_i32_0 = arith.constant 0 : i32
    return %arg0, %arg1, %c0_i32 : i32, i32, i32
  }
}

</mosaic_0001>

<llo_original>
// kernel: tpu_custom_call.1
$region0: #{tpu_custom_call.1}
  #allocation0 [shape = 'u32[]', space=smem, size = 0x4, offset = 0x4, fixed_abs, tag = 'smem constant byte address 0x4 - core index']
  #allocation1 [shape = 'u32[144,128]{1,0:T(1,128)}', space=vmem, size = 0x12000, scoped, tag = 'internal scratch']
  #allocation2 [shape = 'f32[4,128,64]{2,1,0:T(8,128)}', space=vmem, size = 0x40000, scoped, tag = 'scratch operand']
  #allocation3 [shape = 'f32[4,256,64]{2,1,0:T(8,128)}', space=vmem, size = 0x80000, scoped, tag = 'scratch operand']
  #allocation4 [shape = 'f32[4,256,64]{2,1,0:T(8,128)}', space=vmem, size = 0x80000, scoped, tag = 'scratch operand']
  %s0 = inlined_call_operand.vmem [shape: f32[2,256,256], index: 0, kind: input, shape index: {}]
  %s1 = inlined_call_operand.vmem [shape: f32[2,256,256], index: 1, kind: input, shape index: {}]
  %s2 = inlined_call_operand.vmem [shape: f32[2,256,256], index: 2, kind: input, shape index: {}]
  %s3 = inlined_call_operand.hbm [shape: f32[1,256], index: 3, kind: input, shape index: {}]
  %s4 = inlined_call_operand.hbm [shape: f32[1,256], index: 4, kind: input, shape index: {}]
  %s5 = inlined_call_operand.vmem [shape: f32[4,256,64], index: 5, kind: input, shape index: {}]
  %s6 = inlined_call_operand.vmem [shape: f32[4,256,64], index: 6, kind: input, shape index: {}]
  %s7 = inlined_call_operand.vmem [shape: f32[4,256,64], index: 7, kind: input, shape index: {}]
  %s8 = inlined_call_operand.hbm [shape: f32[4,1,64], index: 8, kind: input, shape index: {}]
  %s9 = inlined_call_operand.hbm [shape: f32[4,1,64], index: 9, kind: input, shape index: {}]
  %s10 = inlined_call_operand.hbm [shape: f32[4,1,64], index: 10, kind: input, shape index: {}]
  %s11 = inlined_call_operand.vmem [shape: f32[4,64,256], index: 11, kind: input, shape index: {}]
  %s12 = inlined_call_operand.hbm [shape: f32[1,256], index: 12, kind: input, shape index: {}]
  %s13 = inlined_call_operand.hbm [shape: f32[2,256,256], index: 13, kind: output, shape index: {}]
  %s14 = sld [smem:[#allocation0]]
  $region113: #{tpu_custom_call.1} parent=0
    _
  %s16 = ssub.s32 1, %s14
  %s17 = scalar_select 0, %s16, %s14
  $region1: #{tpu_custom_call.1} parent=0
    #allocation5 [shape = 'u8[1024]{0}', space=vmem, size = 0x400, scoped, tag = 'input window, operand 3, single buffered']
    #allocation6 [shape = 's32[2]{0}', space=sflag, size = 0x8, scoped, tag = 'scoped memory for tpu_custom_call.1']
    #allocation7 [shape = 's32[2]{0}', space=sflag, size = 0x8, scoped, tag = 'scoped memory for tpu_custom_call.1']
    #allocation8 [shape = 'u8[1024]{0}', space=vmem, size = 0x400, scoped, tag = 'input window, operand 4, single buffered']
    #allocation9 [shape = 's32[1]{0}', space=sflag, size = 0x4, scoped, tag = 'scoped memory for tpu_custom_call.1']
    #allocation10 [shape = 'u8[2048]{0}', space=vmem, size = 0x800, scoped, tag = 'input window, operand 8, single buffered']
    #allocation11 [shape = 'u8[2048]{0}', space=vmem, size = 0x800, scoped, tag = 'input window, operand 9, single buffered']
    #allocation12 [shape = 's32[1]{0}', space=sflag, size = 0x4, scoped, tag = 'scoped memory for tpu_custom_call.1']
    #allocation13 [shape = 'u8[2048]{0}', space=vmem, size = 0x800, scoped, tag = 'input window, operand 10, single buffered']
    #allocation14 [shape = 'u8[1024]{0}', space=vmem, size = 0x400, scoped, tag = 'input window, operand 12, single buffered']
    #allocation15 [shape = 's32[1]{0}', space=sflag, size = 0x4, scoped, tag = 'scoped memory for tpu_custom_call.1']
    #allocation16 [shape = 'u8[262144]{0}', space=vmem, size = 0x40000, scoped, tag = 'output window, operand 0']
    %18 = vsyncpa [#allocation6], 0
    %19 = vsyncpa [#allocation9], 0
    %20 = vsyncpa [#allocation12], 0
    %21 = vsyncpa [#allocation15], 0
    %22 = vsyncpa [#allocation7], 0
    %s23 = scalar_lea.sflag [#allocation7], 1
    %24 = vsyncpa %s23, 0
    loop: start=0, step=1, limit=6
    $region2: #{tpu_custom_call.1} parent=1 // loop_pre_header
      _
    $region3: #{tpu_custom_call.1} parent=1 // loop_header
      %s26 = sphi 0, %s30
      %p27 = scmp.ge.s32.totalorder %s26, 6
      %s33 = sphi 0, %s45
      %s34 = sphi 0, %s41
      %s35 = sphi 0, %s33
      %s36 = sphi 0, %s34
      %s37 = sphi 0, %s35
      %s38 = sphi 0, %s36
      %s50 = sphi 0, %s52
      %s53 = sphi 0, %s50
      %s54 = sphi 0, %s53
      %s70 = sphi 0, %s54
      %s76 = sphi 0, %s78
      %s79 = sphi 0, %s76
      %s80 = sphi 0, %s79
      %s96 = sphi 0, %s80
      %s102 = sphi 0, %s104
      %s105 = sphi 0, %s102
      %s106 = sphi 0, %s105
      %s122 = sphi 0, %s106
      %s126 = sphi 0, %s126
      %s128 = sphi 0, %s126
      %s129 = sphi 0, %s128
      %s143 = sphi 0, %s129
      %s147 = sphi 0, %s147
      %s149 = sphi 0, %s147
      %s150 = sphi 0, %s149
      %s164 = sphi 0, %s150
      %s168 = sphi 0, %s168
      %s170 = sphi 0, %s168
      %s171 = sphi 0, %s170
      %s185 = sphi 0, %s171
      %s189 = sphi 0, %s189
      %s191 = sphi 0, %s189
      %s192 = sphi 0, %s191
      %s206 = sphi 0, %s192
      %s210 = sphi 0, %s210
      %s212 = sphi 0, %s210
      %s213 = sphi 0, %s212
      %s227 = sphi 0, %s213
      %s231 = sphi 0, %s231
      %s233 = sphi 0, %s231
      %s234 = sphi 0, %s233
      %s248 = sphi 0, %s234
      %s252 = sphi 0, %s252
      %s254 = sphi 0, %s252
      %s255 = sphi 0, %s254
      %s269 = sphi 0, %s255
      %s273 = sphi 0, %s273
      %s275 = sphi 0, %s273
      %s276 = sphi 0, %s275
      %s290 = sphi 0, %s276
      %s294 = sphi 0, %s294
      %s296 = sphi 0, %s294
      %s297 = sphi 0, %s296
      %s311 = sphi 0, %s297
      %s315 = sphi 0, %s315
      %s317 = sphi 0, %s315
      %s318 = sphi 0, %s317
      %s332 = sphi 0, %s318
      %s340 = sphi 0, %s342
      %s343 = sphi 0, %s340
      %s344 = sphi 0, %s343
      %s360 = sphi 0, %s344
    $region4: #{tpu_custom_call.1} parent=1 // loop_header_branch
      %29 = sbr.rel (%p27) target = $region8
    $region5: #{tpu_custom_call.1} parent=1 // loop_body
      %s31 = ssub.s32 %s26, 1
      %s32 = ssub.s32 %s26, 2
      %s39 = sadd.s32 1, %s34
      %p40 = scmp.ge.s32.totalorder %s39, 2
      %s41 = scalar_select %p40, 0, %s39
      %s42 = sadd.s32 1, %s33
      %s43 = scalar_select %p40, %s42, %s33
      %p44 = scmp.ge.s32.totalorder %s43, 2
      %s45 = scalar_select %p44, 0, %s43
      %s46 = ssub.s32 %s33, %s45
      %s47 = ssub.s32 %s34, %s41
      %s48 = sor.u32 %s46, %s47
      %p49 = scmp.eq.s32.totalorder %s48, 0
      %s51 = sadd.s32 %s50, 1
      %s52 = scalar_select %p49, %s50, %s51
      %p55 = pneg %p49
      %p56 = scmp.eq.s32.totalorder %s26, 3
      %p57 = por %p55, %p56
      %p58 = scmp.ne.s32.totalorder %s50, %s53
      %p59 = scmp.eq.s32.totalorder %s26, 0
      %p60 = por %p58, %p59
      %p61 = scmp.ne.s32.totalorder %s50, %s53
      %p62 = scmp.eq.s32.totalorder %s31, 3
      %p63 = por %p61, %p62
      %p64 = scmp.ne.s32.totalorder %s53, %s54
      %p65 = scmp.eq.s32.totalorder %s31, 0
      %p66 = por %p64, %p65
      %p67 = scmp.ne.s32.totalorder %s53, %s54
      %p68 = scmp.eq.s32.totalorder %s32, 3
      %p69 = por %p67, %p68
      %p71 = scmp.ne.s32.totalorder %s54, %s70
      %p72 = scmp.eq.s32.totalorder %s32, 0
      %p73 = por %p71, %p72
      %s74 = ssub.s32 %s33, %s45
      %p75 = scmp.eq.s32.totalorder %s74, 0
      %s77 = sadd.s32 %s76, 1
      %s78 = scalar_select %p75, %s76, %s77
      %p81 = pneg %p75
      %p82 = scmp.eq.s32.totalorder %s26, 3
      %p83 = por %p81, %p82
      %p84 = scmp.ne.s32.totalorder %s76, %s79
      %p85 = scmp.eq.s32.totalorder %s26, 0
      %p86 = por %p84, %p85
      %p87 = scmp.ne.s32.totalorder %s76, %s79
      %p88 = scmp.eq.s32.totalorder %s31, 3
      %p89 = por %p87, %p88
      %p90 = scmp.ne.s32.totalorder %s79, %s80
      %p91 = scmp.eq.s32.totalorder %s31, 0
      %p92 = por %p90, %p91
      %p93 = scmp.ne.s32.totalorder %s79, %s80
      %p94 = scmp.eq.s32.totalorder %s32, 3
      %p95 = por %p93, %p94
      %p97 = scmp.ne.s32.totalorder %s80, %s96
      %p98 = scmp.eq.s32.totalorder %s32, 0
      %p99 = por %p97, %p98
      %s100 = ssub.s32 %s33, %s45
      %p101 = scmp.eq.s32.totalorder %s100, 0
      %s103 = sadd.s32 %s102, 1
      %s104 = scalar_select %p101, %s102, %s103
      %p107 = pneg %p101
      %p108 = scmp.eq.s32.totalorder %s26, 3
      %p109 = por %p107, %p108
      %p110 = scmp.ne.s32.totalorder %s102, %s105
      %p111 = scmp.eq.s32.totalorder %s26, 0
      %p112 = por %p110, %p111
      %p113 = scmp.ne.s32.totalorder %s102, %s105
      %p114 = scmp.eq.s32.totalorder %s31, 3
      %p115 = por %p113, %p114
      %p116 = scmp.ne.s32.totalorder %s105, %s106
      %p117 = scmp.eq.s32.totalorder %s31, 0
      %p118 = por %p116, %p117
      %p119 = scmp.ne.s32.totalorder %s105, %s106
      %p120 = scmp.eq.s32.totalorder %s32, 3
      %p121 = por %p119, %p120
      %p123 = scmp.ne.s32.totalorder %s106, %s122
      %p124 = scmp.eq.s32.totalorder %s32, 0
      %p125 = por %p123, %p124
      %s127 = sadd.s32 %s126, 1
      %p130 = scmp.eq.s32.totalorder %s26, 3
      %p131 = scmp.ne.s32.totalorder %s126, %s128
      %p132 = scmp.eq.s32.totalorder %s26, 0
      %p133 = por %p131, %p132
      %p134 = scmp.ne.s32.totalorder %s126, %s128
      %p135 = scmp.eq.s32.totalorder %s31, 3
      %p136 = por %p134, %p135
      %p137 = scmp.ne.s32.totalorder %s128, %s129
      %p138 = scmp.eq.s32.totalorder %s31, 0
      %p139 = por %p137, %p138
      %p140 = scmp.ne.s32.totalorder %s128, %s129
      %p141 = scmp.eq.s32.totalorder %s32, 3
      %p142 = por %p140, %p141
      %p144 = scmp.ne.s32.totalorder %s129, %s143
      %p145 = scmp.eq.s32.totalorder %s32, 0
      %p146 = por %p144, %p145
      %s148 = sadd.s32 %s147, 1
      %p151 = scmp.eq.s32.totalorder %s26, 3
      %p152 = scmp.ne.s32.totalorder %s147, %s149
      %p153 = scmp.eq.s32.totalorder %s26, 0
      %p154 = por %p152, %p153
      %p155 = scmp.ne.s32.totalorder %s147, %s149
      %p156 = scmp.eq.s32.totalorder %s31, 3
      %p157 = por %p155, %p156
      %p158 = scmp.ne.s32.totalorder %s149, %s150
      %p159 = scmp.eq.s32.totalorder %s31, 0
      %p160 = por %p158, %p159
      %p161 = scmp.ne.s32.totalorder %s149, %s150
      %p162 = scmp.eq.s32.totalorder %s32, 3
      %p163 = por %p161, %p162
      %p165 = scmp.ne.s32.totalorder %s150, %s164
      %p166 = scmp.eq.s32.totalorder %s32, 0
      %p167 = por %p165, %p166
      %s169 = sadd.s32 %s168, 1
      %p172 = scmp.eq.s32.totalorder %s26, 3
      %p173 = scmp.ne.s32.totalorder %s168, %s170
      %p174 = scmp.eq.s32.totalorder %s26, 0
      %p175 = por %p173, %p174
      %p176 = scmp.ne.s32.totalorder %s168, %s170
      %p177 = scmp.eq.s32.totalorder %s31, 3
      %p178 = por %p176, %p177
      %p179 = scmp.ne.s32.totalorder %s170, %s171
      %p180 = scmp.eq.s32.totalorder %s31, 0
      %p181 = por %p179, %p180
      %p182 = scmp.ne.s32.totalorder %s170, %s171
      %p183 = scmp.eq.s32.totalorder %s32, 3
      %p184 = por %p182, %p183
      %p186 = scmp.ne.s32.totalorder %s171, %s185
      %p187 = scmp.eq.s32.totalorder %s32, 0
      %p188 = por %p186, %p187
      %s190 = sadd.s32 %s189, 1
      %p193 = scmp.eq.s32.totalorder %s26, 3
      %p194 = scmp.ne.s32.totalorder %s189, %s191
      %p195 = scmp.eq.s32.totalorder %s26, 0
      %p196 = por %p194, %p195
      %p197 = scmp.ne.s32.totalorder %s189, %s191
      %p198 = scmp.eq.s32.totalorder %s31, 3
      %p199 = por %p197, %p198
      %p200 = scmp.ne.s32.totalorder %s191, %s192
      %p201 = scmp.eq.s32.totalorder %s31, 0
      %p202 = por %p200, %p201
      %p203 = scmp.ne.s32.totalorder %s191, %s192
      %p204 = scmp.eq.s32.totalorder %s32, 3
      %p205 = por %p203, %p204
      %p207 = scmp.ne.s32.totalorder %s192, %s206
      %p208 = scmp.eq.s32.totalorder %s32, 0
      %p209 = por %p207, %p208
      %s211 = sadd.s32 %s210, 1
      %p214 = scmp.eq.s32.totalorder %s26, 3
      %p215 = scmp.ne.s32.totalorder %s210, %s212
      %p216 = scmp.eq.s32.totalorder %s26, 0
      %p217 = por %p215, %p216
      %p218 = scmp.ne.s32.totalorder %s210, %s212
      %p219 = scmp.eq.s32.totalorder %s31, 3
      %p220 = por %p218, %p219
      %p221 = scmp.ne.s32.totalorder %s212, %s213
      %p222 = scmp.eq.s32.totalorder %s31, 0
      %p223 = por %p221, %p222
      %p224 = scmp.ne.s32.totalorder %s212, %s213
      %p225 = scmp.eq.s32.totalorder %s32, 3
      %p226 = por %p224, %p225
      %p228 = scmp.ne.s32.totalorder %s213, %s227
      %p229 = scmp.eq.s32.totalorder %s32, 0
      %p230 = por %p228, %p229
      %s232 = sadd.s32 %s231, 1
      %p235 = scmp.eq.s32.totalorder %s26, 3
      %p236 = scmp.ne.s32.totalorder %s231, %s233
      %p237 = scmp.eq.s32.totalorder %s26, 0
      %p238 = por %p236, %p237
      %p239 = scmp.ne.s32.totalorder %s231, %s233
      %p240 = scmp.eq.s32.totalorder %s31, 3
      %p241 = por %p239, %p240
      %p242 = scmp.ne.s32.totalorder %s233, %s234
      %p243 = scmp.eq.s32.totalorder %s31, 0
      %p244 = por %p242, %p243
      %p245 = scmp.ne.s32.totalorder %s233, %s234
      %p246 = scmp.eq.s32.totalorder %s32, 3
      %p247 = por %p245, %p246
      %p249 = scmp.ne.s32.totalorder %s234, %s248
      %p250 = scmp.eq.s32.totalorder %s32, 0
      %p251 = por %p249, %p250
      %s253 = sadd.s32 %s252, 1
      %p256 = scmp.eq.s32.totalorder %s26, 3
      %p257 = scmp.ne.s32.totalorder %s252, %s254
      %p258 = scmp.eq.s32.totalorder %s26, 0
      %p259 = por %p257, %p258
      %p260 = scmp.ne.s32.totalorder %s252, %s254
      %p261 = scmp.eq.s32.totalorder %s31, 3
      %p262 = por %p260, %p261
      %p263 = scmp.ne.s32.totalorder %s254, %s255
      %p264 = scmp.eq.s32.totalorder %s31, 0
      %p265 = por %p263, %p264
      %p266 = scmp.ne.s32.totalorder %s254, %s255
      %p267 = scmp.eq.s32.totalorder %s32, 3
      %p268 = por %p266, %p267
      %p270 = scmp.ne.s32.totalorder %s255, %s269
      %p271 = scmp.eq.s32.totalorder %s32, 0
      %p272 = por %p270, %p271
      %s274 = sadd.s32 %s273, 1
      %p277 = scmp.eq.s32.totalorder %s26, 3
      %p278 = scmp.ne.s32.totalorder %s273, %s275
      %p279 = scmp.eq.s32.totalorder %s26, 0
      %p280 = por %p278, %p279
      %p281 = scmp.ne.s32.totalorder %s273, %s275
      %p282 = scmp.eq.s32.totalorder %s31, 3
      %p283 = por %p281, %p282
      %p284 = scmp.ne.s32.totalorder %s275, %s276
      %p285 = scmp.eq.s32.totalorder %s31, 0
      %p286 = por %p284, %p285
      %p287 = scmp.ne.s32.totalorder %s275, %s276
      %p288 = scmp.eq.s32.totalorder %s32, 3
      %p289 = por %p287, %p288
      %p291 = scmp.ne.s32.totalorder %s276, %s290
      %p292 = scmp.eq.s32.totalorder %s32, 0
      %p293 = por %p291, %p292
      %s295 = sadd.s32 %s294, 1
      %p298 = scmp.eq.s32.totalorder %s26, 3
      %p299 = scmp.ne.s32.totalorder %s294, %s296
      %p300 = scmp.eq.s32.totalorder %s26, 0
      %p301 = por %p299, %p300
      %p302 = scmp.ne.s32.totalorder %s294, %s296
      %p303 = scmp.eq.s32.totalorder %s31, 3
      %p304 = por %p302, %p303
      %p305 = scmp.ne.s32.totalorder %s296, %s297
      %p306 = scmp.eq.s32.totalorder %s31, 0
      %p307 = por %p305, %p306
      %p308 = scmp.ne.s32.totalorder %s296, %s297
      %p309 = scmp.eq.s32.totalorder %s32, 3
      %p310 = por %p308, %p309
      %p312 = scmp.ne.s32.totalorder %s297, %s311
      %p313 = scmp.eq.s32.totalorder %s32, 0
      %p314 = por %p312, %p313
      %s316 = sadd.s32 %s315, 1
      %p319 = scmp.eq.s32.totalorder %s26, 3
      %p320 = scmp.ne.s32.totalorder %s315, %s317
      %p321 = scmp.eq.s32.totalorder %s26, 0
      %p322 = por %p320, %p321
      %p323 = scmp.ne.s32.totalorder %s315, %s317
      %p324 = scmp.eq.s32.totalorder %s31, 3
      %p325 = por %p323, %p324
      %p326 = scmp.ne.s32.totalorder %s317, %s318
      %p327 = scmp.eq.s32.totalorder %s31, 0
      %p328 = por %p326, %p327
      %p329 = scmp.ne.s32.totalorder %s317, %s318
      %p330 = scmp.eq.s32.totalorder %s32, 3
      %p331 = por %p329, %p330
      %p333 = scmp.ne.s32.totalorder %s318, %s332
      %p334 = scmp.eq.s32.totalorder %s32, 0
      %p335 = por %p333, %p334
      %s336 = ssub.s32 %s33, %s45
      %s337 = ssub.s32 %s34, %s41
      %s338 = sor.u32 %s336, %s337
      %p339 = scmp.eq.s32.totalorder %s338, 0
      %s341 = sadd.s32 %s340, 1
      %s342 = scalar_select %p339, %s340, %s341
      %p345 = pneg %p339
      %p346 = scmp.eq.s32.totalorder %s26, 3
      %p347 = por %p345, %p346
      %p348 = scmp.ne.s32.totalorder %s340, %s343
      %p349 = scmp.eq.s32.totalorder %s26, 0
      %p350 = por %p348, %p349
      %p351 = scmp.ne.s32.totalorder %s340, %s343
      %p352 = scmp.eq.s32.totalorder %s31, 3
      %p353 = por %p351, %p352
      %p354 = scmp.ne.s32.totalorder %s343, %s344
      %p355 = scmp.eq.s32.totalorder %s31, 0
      %p356 = por %p354, %p355
      %p357 = scmp.ne.s32.totalorder %s343, %s344
      %p358 = scmp.eq.s32.totalorder %s32, 3
      %p359 = por %p357, %p358
      %p361 = scmp.ne.s32.totalorder %s344, %s360
      %p362 = scmp.eq.s32.totalorder %s32, 0
      %p363 = por %p361, %p362
      %p364 = scmp.le.s32.totalorder 1, %s26
      %p365 = scmp.lt.s32.totalorder %s26, 5
      %p366 = pnand %p364, %p365
      %p367 = pneg %p366
      // Predicated region
      $region9: #{tpu_custom_call.1} parent=5 // pred_check
        _
      $region10: #{tpu_custom_call.1} parent=5 // pred_check_branch
        %369 = sbr.rel (%p366) target = $region12
      $region11: #{tpu_custom_call.1} parent=5 // pred_region
        %s370 = ssub.s32 %s26, 1
        // Predicated region
        $region13: #{tpu_custom_call.1} parent=11 // pred_check
          %p371 = pneg %p139
        $region14: #{tpu_custom_call.1} parent=11 // pred_check_branch
          %373 = sbr.rel (%p371) target = $region16
        $region15: #{tpu_custom_call.1} parent=11 // pred_region
          %s375 = ssub.s32 32, 32
          %376 = vsyncadd [#allocation6], %s375
          %s378 = sshll.u32 [#allocation5], 4
          %s379 = int_to_ptr.vmem [resolvable:$true] %s378
          %381 = dma.hbm_to_vmem [thread:$0]  %s3, 32, %s379, [#allocation6]
        $region16: #{tpu_custom_call.1} parent=11 // pred_fallthru
          _
        // Predicated region
        $region17: #{tpu_custom_call.1} parent=11 // pred_check
          %p382 = pneg %p160
        $region18: #{tpu_custom_call.1} parent=11 // pred_check_branch
          %384 = sbr.rel (%p382) target = $region20
        $region19: #{tpu_custom_call.1} parent=11 // pred_region
          %s386 = ssub.s32 32, 32
          %387 = vsyncadd [#allocation9], %s386
          %s389 = sshll.u32 [#allocation8], 4
          %s390 = int_to_ptr.vmem [resolvable:$true] %s389
          %392 = dma.hbm_to_vmem [thread:$0]  %s4, 32, %s390, [#allocation9]
        $region20: #{tpu_custom_call.1} parent=11 // pred_fallthru
          _
        // Predicated region
        $region21: #{tpu_custom_call.1} parent=11 // pred_check
          %p393 = pneg %p181
        $region22: #{tpu_custom_call.1} parent=11 // pred_check_branch
          %395 = sbr.rel (%p393) target = $region24
        $region23: #{tpu_custom_call.1} parent=11 // pred_region
          _
        $region24: #{tpu_custom_call.1} parent=11 // pred_fallthru
          _
        // Predicated region
        $region25: #{tpu_custom_call.1} parent=11 // pred_check
          %p396 = pneg %p202
        $region26: #{tpu_custom_call.1} parent=11 // pred_check_branch
          %398 = sbr.rel (%p396) target = $region28
        $region27: #{tpu_custom_call.1} parent=11 // pred_region
          _
        $region28: #{tpu_custom_call.1} parent=11 // pred_fallthru
          _
        // Predicated region
        $region29: #{tpu_custom_call.1} parent=11 // pred_check
          %p399 = pneg %p223
        $region30: #{tpu_custom_call.1} parent=11 // pred_check_branch
          %401 = sbr.rel (%p399) target = $region32
        $region31: #{tpu_custom_call.1} parent=11 // pred_region
          _
        $region32: #{tpu_custom_call.1} parent=11 // pred_fallthru
          _
        // Predicated region
        $region33: #{tpu_custom_call.1} parent=11 // pred_check
          %p402 = pneg %p244
        $region34: #{tpu_custom_call.1} parent=11 // pred_check_branch
          %404 = sbr.rel (%p402) target = $region36
        $region35: #{tpu_custom_call.1} parent=11 // pred_region
          %s406 = ssub.s32 64, 64
          %407 = vsyncadd [#allocation9], %s406
          %s408 = sshll.u32 [#allocation10], 4
          %s409 = int_to_ptr.vmem [resolvable:$true] %s408
          %414 = dma.hbm_to_vmem [thread:$0]  %s8, 64, %s409, [#allocation9], 16, 16, 1
        $region36: #{tpu_custom_call.1} parent=11 // pred_fallthru
          _
        // Predicated region
        $region37: #{tpu_custom_call.1} parent=11 // pred_check
          %p415 = pneg %p265
        $region38: #{tpu_custom_call.1} parent=11 // pred_check_branch
          %417 = sbr.rel (%p415) target = $region40
        $region39: #{tpu_custom_call.1} parent=11 // pred_region
          %s419 = ssub.s32 64, 64
          %420 = vsyncadd [#allocation12], %s419
          %s421 = sshll.u32 [#allocation11], 4
          %s422 = int_to_ptr.vmem [resolvable:$true] %s421
          %427 = dma.hbm_to_vmem [thread:$0]  %s9, 64, %s422, [#allocation12], 16, 16, 1
        $region40: #{tpu_custom_call.1} parent=11 // pred_fallthru
          _
        // Predicated region
        $region41: #{tpu_custom_call.1} parent=11 // pred_check
          %p428 = pneg %p286
        $region42: #{tpu_custom_call.1} parent=11 // pred_check_branch
          %430 = sbr.rel (%p428) target = $region44
        $region43: #{tpu_custom_call.1} parent=11 // pred_region
          %s432 = ssub.s32 64, 64
          %433 = vsyncadd [#allocation12], %s432
          %s434 = sshll.u32 [#allocation13], 4
          %s435 = int_to_ptr.vmem [resolvable:$true] %s434
          %440 = dma.hbm_to_vmem [thread:$0]  %s10, 64, %s435, [#allocation12], 16, 16, 1
        $region44: #{tpu_custom_call.1} parent=11 // pred_fallthru
          _
        // Predicated region
        $region45: #{tpu_custom_call.1} parent=11 // pred_check
          %p441 = pneg %p307
        $region46: #{tpu_custom_call.1} parent=11 // pred_check_branch
          %443 = sbr.rel (%p441) target = $region48
        $region47: #{tpu_custom_call.1} parent=11 // pred_region
          _
        $region48: #{tpu_custom_call.1} parent=11 // pred_fallthru
          _
        // Predicated region
        $region49: #{tpu_custom_call.1} parent=11 // pred_check
          %p444 = pneg %p328
        $region50: #{tpu_custom_call.1} parent=11 // pred_check_branch
          %446 = sbr.rel (%p444) target = $region52
        $region51: #{tpu_custom_call.1} parent=11 // pred_region
          %s448 = ssub.s32 32, 32
          %449 = vsyncadd [#allocation15], %s448
          %s451 = sshll.u32 [#allocation14], 4
          %s452 = int_to_ptr.vmem [resolvable:$true] %s451
          %454 = dma.hbm_to_vmem [thread:$0]  %s12, 32, %s452, [#allocation15]
        $region52: #{tpu_custom_call.1} parent=11 // pred_fallthru
          _
      $region12: #{tpu_custom_call.1} parent=5 // pred_fallthru
        _
      %p455 = scmp.lt.s32.totalorder %s26, 4
      // Predicated region
      $region53: #{tpu_custom_call.1} parent=5 // pred_check
        %p456 = pneg %p455
      $region54: #{tpu_custom_call.1} parent=5 // pred_check_branch
        %458 = sbr.rel (%p456) target = $region56
      $region55: #{tpu_custom_call.1} parent=5 // pred_region
        // Predicated region
        $region57: #{tpu_custom_call.1} parent=55 // pred_check
          %p459 = pneg %p60
        $region58: #{tpu_custom_call.1} parent=55 // pred_check_branch
          %461 = sbr.rel (%p459) target = $region60
        $region59: #{tpu_custom_call.1} parent=55 // pred_region
          %s462 = smul.u32 16, %s34
          %p463 = scmp.lt.s32.totalorder %s33, 1
          %s464 = scalar_select %p463, %s33, 1
          %p465 = scmp.lt.s32.totalorder %s462, 31
          %s466 = scalar_select %p465, %s462, 31
          %s467 = smul.addr %s466, 2
          %s468 = smul.addr %s464, 64
          %s469 = sadd.s32 %s467, %s468
          %s470 = smul.addr %s469, 8
          %s471 = scalar_lea.vmem %s0, %s470
          %s472 = smul.u32 16, %s34
        $region60: #{tpu_custom_call.1} parent=55 // pred_fallthru
          _
        // Predicated region
        $region61: #{tpu_custom_call.1} parent=55 // pred_check
          %p473 = pneg %p86
        $region62: #{tpu_custom_call.1} parent=55 // pred_check_branch
          %475 = sbr.rel (%p473) target = $region64
        $region63: #{tpu_custom_call.1} parent=55 // pred_region
          %p476 = scmp.lt.s32.totalorder %s33, 1
          %s477 = scalar_select %p476, %s33, 1
          %s478 = smul.addr %s477, 64
          %s479 = smul.addr %s478, 8
          %s480 = scalar_lea.vmem %s1, %s479
        $region64: #{tpu_custom_call.1} parent=55 // pred_fallthru
          _
        // Predicated region
        $region65: #{tpu_custom_call.1} parent=55 // pred_check
          %p481 = pneg %p112
        $region66: #{tpu_custom_call.1} parent=55 // pred_check_branch
          %483 = sbr.rel (%p481) target = $region68
        $region67: #{tpu_custom_call.1} parent=55 // pred_region
          %p484 = scmp.lt.s32.totalorder %s33, 1
          %s485 = scalar_select %p484, %s33, 1
          %s486 = smul.addr %s485, 64
          %s487 = smul.addr %s486, 8
          %s488 = scalar_lea.vmem %s2, %s487
        $region68: #{tpu_custom_call.1} parent=55 // pred_fallthru
          _
      $region56: #{tpu_custom_call.1} parent=5 // pred_fallthru
        _
      %p489 = scmp.le.s32.totalorder 1, %s26
      %p490 = scmp.lt.s32.totalorder %s26, 5
      %p491 = pnand %p489, %p490
      %p492 = pneg %p491
      // Predicated region
      $region69: #{tpu_custom_call.1} parent=5 // pred_check
        _
      $region70: #{tpu_custom_call.1} parent=5 // pred_check_branch
        %494 = sbr.rel (%p491) target = $region72
      $region71: #{tpu_custom_call.1} parent=5 // pred_region
        %s495 = ssub.s32 %s26, 1
        // Predicated region
        $region73: #{tpu_custom_call.1} parent=71 // pred_check
          %p496 = pneg %p139
        $region74: #{tpu_custom_call.1} parent=71 // pred_check_branch
          %498 = sbr.rel (%p496) target = $region76
        $region75: #{tpu_custom_call.1} parent=71 // pred_region
          %499 = dma.done [#allocation6], 32
        $region76: #{tpu_custom_call.1} parent=71 // pred_fallthru
          _
        // Predicated region
        $region77: #{tpu_custom_call.1} parent=71 // pred_check
          %p500 = pneg %p160
        $region78: #{tpu_custom_call.1} parent=71 // pred_check_branch
          %502 = sbr.rel (%p500) target = $region80
        $region79: #{tpu_custom_call.1} parent=71 // pred_region
          %503 = dma.done [#allocation9], 32
        $region80: #{tpu_custom_call.1} parent=71 // pred_fallthru
          _
        // Predicated region
        $region81: #{tpu_custom_call.1} parent=71 // pred_check
          %p504 = pneg %p244
        $region82: #{tpu_custom_call.1} parent=71 // pred_check_branch
          %506 = sbr.rel (%p504) target = $region84
        $region83: #{tpu_custom_call.1} parent=71 // pred_region
          %507 = dma.done [#allocation9], 64
        $region84: #{tpu_custom_call.1} parent=71 // pred_fallthru
          _
        // Predicated region
        $region85: #{tpu_custom_call.1} parent=71 // pred_check
          %p508 = pneg %p265
        $region86: #{tpu_custom_call.1} parent=71 // pred_check_branch
          %510 = sbr.rel (%p508) target = $region88
        $region87: #{tpu_custom_call.1} parent=71 // pred_region
          %511 = dma.done [#allocation12], 64
        $region88: #{tpu_custom_call.1} parent=71 // pred_fallthru
          _
        // Predicated region
        $region89: #{tpu_custom_call.1} parent=71 // pred_check
          %p512 = pneg %p286
        $region90: #{tpu_custom_call.1} parent=71 // pred_check_branch
          %514 = sbr.rel (%p512) target = $region92
        $region91: #{tpu_custom_call.1} parent=71 // pred_region
          %515 = dma.done [#allocation12], 64
        $region92: #{tpu_custom_call.1} parent=71 // pred_fallthru
          _
        // Predicated region
        $region93: #{tpu_custom_call.1} parent=71 // pred_check
          %p516 = pneg %p328
        $region94: #{tpu_custom_call.1} parent=71 // pred_check_branch
          %518 = sbr.rel (%p516) target = $region96
        $region95: #{tpu_custom_call.1} parent=71 // pred_region
          %519 = dma.done [#allocation15], 32
        $region96: #{tpu_custom_call.1} parent=71 // pred_fallthru
          _
        %s520 = smul.u32 16, %s36
        %p521 = scmp.lt.s32.totalorder %s35, 1
        %s522 = scalar_select %p521, %s35, 1
        %p523 = scmp.lt.s32.totalorder %s520, 31
        %s524 = scalar_select %p523, %s520, 31
        %s525 = smul.addr %s524, 2
        %s526 = smul.addr %s522, 64
        %s527 = sadd.s32 %s525, %s526
        %s528 = smul.addr %s527, 8
        %s529 = scalar_lea.vmem %s0, %s528
        %p530 = pneg %p66
        %p531 = pneg %p63
        %p532 = scmp.lt.s32.totalorder %s35, 1
        %s533 = scalar_select %p532, %s35, 1
        %s534 = smul.addr %s533, 64
        %s535 = smul.addr %s534, 8
        %s536 = scalar_lea.vmem %s1, %s535
        %p537 = pneg %p92
        %p538 = pneg %p89
        %p539 = scmp.lt.s32.totalorder %s35, 1
        %s540 = scalar_select %p539, %s35, 1
        %s541 = smul.addr %s540, 64
        %s542 = smul.addr %s541, 8
        %s543 = scalar_lea.vmem %s2, %s542
        %p544 = pneg %p118
        %p545 = pneg %p115
        %p546 = pneg %p139
        %p547 = pneg %p136
        %p548 = pneg %p160
        %p549 = pneg %p157
        %p550 = pneg %p181
        %p551 = pneg %p178
        %p552 = pneg %p202
        %p553 = pneg %p199
        %p554 = pneg %p223
        %p555 = pneg %p220
        %p556 = pneg %p244
        %p557 = pneg %p241
        %p558 = pneg %p265
        %p559 = pneg %p262
        %p560 = pneg %p286
        %p561 = pneg %p283
        %p562 = pneg %p307
        %p563 = pneg %p304
        %p564 = pneg %p328
        %p565 = pneg %p325
        %p566 = pneg %p356
        %p567 = pneg %p353
        %s568 = sand.u32 %s343, 1
        %s569 = scalar_lea.sflag [#allocation7], %s568
        %s570 = sand.u32 %s343, 1
        %s571 = smul.addr %s570, 256
        %s572 = scalar_lea.vmem [#allocation16], %s571
        %s573 = smul.u32 16, %s36
        %p574 = scmp.lt.s32.totalorder %s35, 1
        %s575 = scalar_select %p574, %s35, 1
        %p576 = scmp.lt.s32.totalorder %s573, 31
        %s577 = scalar_select %p576, %s573, 31
        %s578 = smul.addr %s577, 2
        %s579 = smul.addr %s575, 64
        %s580 = sadd.s32 %s578, %s579
        %s581 = smul.addr %s580, 8
        %s582 = scalar_lea.vmem %s0, %s581
        %s583 = smul.u32 16, %s36
        %p584 = scmp.lt.s32.totalorder %s35, 1
        %s585 = scalar_select %p584, %s35, 1
        %s586 = smul.addr %s585, 64
        %s587 = smul.addr %s586, 8
        %s588 = scalar_lea.vmem %s1, %s587
        %p589 = scmp.lt.s32.totalorder %s35, 1
        %s590 = scalar_select %p589, %s35, 1
        %s591 = smul.addr %s590, 64
        %s592 = smul.addr %s591, 8
        %s593 = scalar_lea.vmem %s2, %s592
        %s594 = smul.u32 16, %s36
        %v595 = vld [vmem:[#allocation5] sm:$0x3]
        %v596 = vld [vmem:[#allocation8] sm:$0x3]
        %p597 = scmp.eq.s32.totalorder %s36, 0
        // Predicated region
        $region97: #{tpu_custom_call.1} parent=71 // pred_check
          %p598 = pneg %p597
        $region98: #{tpu_custom_call.1} parent=71 // pred_check_branch
          %600 = sbr.rel (%p598) target = $region100
        $region99: #{tpu_custom_call.1} parent=71 // pred_region
          %v601 = vld [vmem:[%s588] sm:$0xff]
          %v602 = vld [vmem:[%s588 + $0x8] sm:$0xff]
          %v603 = vld [vmem:[%s588 + $0x10] sm:$0xff]
          %v604 = vld [vmem:[%s588 + $0x18] sm:$0xff]
          %v605 = vld [vmem:[%s588 + $0x20] sm:$0xff]
          %v606 = vld [vmem:[%s588 + $0x28] sm:$0xff]
          %v607 = vld [vmem:[%s588 + $0x30] sm:$0xff]
          %v608 = vld [vmem:[%s588 + $0x38] sm:$0xff]
          %v609 = vld [vmem:[%s588 + $0x40] sm:$0xff]
          %v610 = vld [vmem:[%s588 + $0x48] sm:$0xff]
          %v611 = vld [vmem:[%s588 + $0x50] sm:$0xff]
          %v612 = vld [vmem:[%s588 + $0x58] sm:$0xff]
          %v613 = vld [vmem:[%s588 + $0x60] sm:$0xff]
          %v614 = vld [vmem:[%s588 + $0x68] sm:$0xff]
          %v615 = vld [vmem:[%s588 + $0x70] sm:$0xff]
          %v616 = vld [vmem:[%s588 + $0x78] sm:$0xff]
          %v617 = vld [vmem:[%s588 + $0x80] sm:$0xff]
          %v618 = vld [vmem:[%s588 + $0x88] sm:$0xff]
          %v619 = vld [vmem:[%s588 + $0x90] sm:$0xff]
          %v620 = vld [vmem:[%s588 + $0x98] sm:$0xff]
          %v621 = vld [vmem:[%s588 + $0xa0] sm:$0xff]
          %v622 = vld [vmem:[%s588 + $0xa8] sm:$0xff]
          %v623 = vld [vmem:[%s588 + $0xb0] sm:$0xff]
          %v624 = vld [vmem:[%s588 + $0xb8] sm:$0xff]
          %v625 = vld [vmem:[%s588 + $0xc0] sm:$0xff]
          %v626 = vld [vmem:[%s588 + $0xc8] sm:$0xff]
          %v627 = vld [vmem:[%s588 + $0xd0] sm:$0xff]
          %v628 = vld [vmem:[%s588 + $0xd8] sm:$0xff]
          %v629 = vld [vmem:[%s588 + $0xe0] sm:$0xff]
          %v630 = vld [vmem:[%s588 + $0xe8] sm:$0xff]
          %v631 = vld [vmem:[%s588 + $0xf0] sm:$0xff]
          %v632 = vld [vmem:[%s588 + $0xf8] sm:$0xff]
          %v633 = vld [vmem:[%s588 + $0x100] sm:$0xff]
          %v634 = vld [vmem:[%s588 + $0x108] sm:$0xff]
          %v635 = vld [vmem:[%s588 + $0x110] sm:$0xff]
          %v636 = vld [vmem:[%s588 + $0x118] sm:$0xff]
          %v637 = vld [vmem:[%s588 + $0x120] sm:$0xff]
          %v638 = vld [vmem:[%s588 + $0x128] sm:$0xff]
          %v639 = vld [vmem:[%s588 + $0x130] sm:$0xff]
          %v640 = vld [vmem:[%s588 + $0x138] sm:$0xff]
          %v641 = vld [vmem:[%s588 + $0x140] sm:$0xff]
          %v642 = vld [vmem:[%s588 + $0x148] sm:$0xff]
          %v643 = vld [vmem:[%s588 + $0x150] sm:$0xff]
          %v644 = vld [vmem:[%s588 + $0x158] sm:$0xff]
          %v645 = vld [vmem:[%s588 + $0x160] sm:$0xff]
          %v646 = vld [vmem:[%s588 + $0x168] sm:$0xff]
          %v647 = vld [vmem:[%s588 + $0x170] sm:$0xff]
          %v648 = vld [vmem:[%s588 + $0x178] sm:$0xff]
          %v649 = vld [vmem:[%s588 + $0x180] sm:$0xff]
          %v650 = vld [vmem:[%s588 + $0x188] sm:$0xff]
          %v651 = vld [vmem:[%s588 + $0x190] sm:$0xff]
          %v652 = vld [vmem:[%s588 + $0x198] sm:$0xff]
          %v653 = vld [vmem:[%s588 + $0x1a0] sm:$0xff]
          %v654 = vld [vmem:[%s588 + $0x1a8] sm:$0xff]
          %v655 = vld [vmem:[%s588 + $0x1b0] sm:$0xff]
          %v656 = vld [vmem:[%s588 + $0x1b8] sm:$0xff]
          %v657 = vld [vmem:[%s588 + $0x1c0] sm:$0xff]
          %v658 = vld [vmem:[%s588 + $0x1c8] sm:$0xff]
          %v659 = vld [vmem:[%s588 + $0x1d0] sm:$0xff]
          %v660 = vld [vmem:[%s588 + $0x1d8] sm:$0xff]
          %v661 = vld [vmem:[%s588 + $0x1e0] sm:$0xff]
          %v662 = vld [vmem:[%s588 + $0x1e8] sm:$0xff]
          %v663 = vld [vmem:[%s588 + $0x1f0] sm:$0xff]
          %v664 = vld [vmem:[%s588 + $0x1f8] sm:$0xff]
          %v665 = vadd.f32 %v601, %v602
          %666 = vadd.xlane.f32.xlu0 %v665
          %v667 = vpop.xlane.xlu0 %666
          %v668 = vadd.f32 %v603, %v604
          %669 = vadd.xlane.f32.xlu0 %v668
          %v670 = vpop.xlane.xlu0 %669
          %v671 = vadd.f32 %v605, %v606
          %672 = vadd.xlane.f32.xlu0 %v671
          %v673 = vpop.xlane.xlu0 %672
          %v674 = vadd.f32 %v607, %v608
          %675 = vadd.xlane.f32.xlu0 %v674
          %v676 = vpop.xlane.xlu0 %675
          %v677 = vadd.f32 %v609, %v610
          %678 = vadd.xlane.f32.xlu0 %v677
          %v679 = vpop.xlane.xlu0 %678
          %v680 = vadd.f32 %v611, %v612
          %681 = vadd.xlane.f32.xlu0 %v680
          %v682 = vpop.xlane.xlu0 %681
          %v683 = vadd.f32 %v613, %v614
          %684 = vadd.xlane.f32.xlu0 %v683
          %v685 = vpop.xlane.xlu0 %684
          %v686 = vadd.f32 %v615, %v616
          %687 = vadd.xlane.f32.xlu0 %v686
          %v688 = vpop.xlane.xlu0 %687
          %v689 = vadd.f32 %v617, %v618
          %690 = vadd.xlane.f32.xlu0 %v689
          %v691 = vpop.xlane.xlu0 %690
          %v692 = vadd.f32 %v619, %v620
          %693 = vadd.xlane.f32.xlu0 %v692
          %v694 = vpop.xlane.xlu0 %693
          %v695 = vadd.f32 %v621, %v622
          %696 = vadd.xlane.f32.xlu0 %v695
          %v697 = vpop.xlane.xlu0 %696
          %v698 = vadd.f32 %v623, %v624
          %699 = vadd.xlane.f32.xlu0 %v698
          %v700 = vpop.xlane.xlu0 %699
          %v701 = vadd.f32 %v625, %v626
          %702 = vadd.xlane.f32.xlu0 %v701
          %v703 = vpop.xlane.xlu0 %702
          %v704 = vadd.f32 %v627, %v628
          %705 = vadd.xlane.f32.xlu0 %v704
          %v706 = vpop.xlane.xlu0 %705
          %v707 = vadd.f32 %v629, %v630
          %708 = vadd.xlane.f32.xlu0 %v707
          %v709 = vpop.xlane.xlu0 %708
          %v710 = vadd.f32 %v631, %v632
          %711 = vadd.xlane.f32.xlu0 %v710
          %v712 = vpop.xlane.xlu0 %711
          %v713 = vadd.f32 %v633, %v634
          %714 = vadd.xlane.f32.xlu0 %v713
          %v715 = vpop.xlane.xlu0 %714
          %v716 = vadd.f32 %v635, %v636
          %717 = vadd.xlane.f32.xlu0 %v716
          %v718 = vpop.xlane.xlu0 %717
          %v719 = vadd.f32 %v637, %v638
          %720 = vadd.xlane.f32.xlu0 %v719
          %v721 = vpop.xlane.xlu0 %720
          %v722 = vadd.f32 %v639, %v640
          %723 = vadd.xlane.f32.xlu0 %v722
          %v724 = vpop.xlane.xlu0 %723
          %v725 = vadd.f32 %v641, %v642
          %726 = vadd.xlane.f32.xlu0 %v725
          %v727 = vpop.xlane.xlu0 %726
          %v728 = vadd.f32 %v643, %v644
          %729 = vadd.xlane.f32.xlu0 %v728
          %v730 = vpop.xlane.xlu0 %729
          %v731 = vadd.f32 %v645, %v646
          %732 = vadd.xlane.f32.xlu0 %v731
          %v733 = vpop.xlane.xlu0 %732
          %v734 = vadd.f32 %v647, %v648
          %735 = vadd.xlane.f32.xlu0 %v734
          %v736 = vpop.xlane.xlu0 %735
          %v737 = vadd.f32 %v649, %v650
          %738 = vadd.xlane.f32.xlu0 %v737
          %v739 = vpop.xlane.xlu0 %738
          %v740 = vadd.f32 %v651, %v652
          %741 = vadd.xlane.f32.xlu0 %v740
          %v742 = vpop.xlane.xlu0 %741
          %v743 = vadd.f32 %v653, %v654
          %744 = vadd.xlane.f32.xlu0 %v743
          %v745 = vpop.xlane.xlu0 %744
          %v746 = vadd.f32 %v655, %v656
          %747 = vadd.xlane.f32.xlu0 %v746
          %v748 = vpop.xlane.xlu0 %747
          %v749 = vadd.f32 %v657, %v658
          %750 = vadd.xlane.f32.xlu0 %v749
          %v751 = vpop.xlane.xlu0 %750
          %v752 = vadd.f32 %v659, %v660
          %753 = vadd.xlane.f32.xlu0 %v752
          %v754 = vpop.xlane.xlu0 %753
          %v755 = vadd.f32 %v661, %v662
          %756 = vadd.xlane.f32.xlu0 %v755
          %v757 = vpop.xlane.xlu0 %756
          %v758 = vadd.f32 %v663, %v664
          %759 = vadd.xlane.f32.xlu0 %v758
          %v760 = vpop.xlane.xlu0 %759
          %v761 = vrcp.pop 256.0
          %v762 = vmul.f32 %v667, %v761
          %v763 = vmul.f32 %v670, %v761
          %v764 = vmul.f32 %v673, %v761
          %v765 = vmul.f32 %v676, %v761
          %v766 = vmul.f32 %v679, %v761
          %v767 = vmul.f32 %v682, %v761
          %v768 = vmul.f32 %v685, %v761
          %v769 = vmul.f32 %v688, %v761
          %v770 = vmul.f32 %v691, %v761
          %v771 = vmul.f32 %v694, %v761
          %v772 = vmul.f32 %v697, %v761
          %v773 = vmul.f32 %v700, %v761
          %v774 = vmul.f32 %v703, %v761
          %v775 = vmul.f32 %v706, %v761
          %v776 = vmul.f32 %v709, %v761
          %v777 = vmul.f32 %v712, %v761
          %v778 = vmul.f32 %v715, %v761
          %v779 = vmul.f32 %v718, %v761
          %v780 = vmul.f32 %v721, %v761
          %v781 = vmul.f32 %v724, %v761
          %v782 = vmul.f32 %v727, %v761
          %v783 = vmul.f32 %v730, %v761
          %v784 = vmul.f32 %v733, %v761
          %v785 = vmul.f32 %v736, %v761
          %v786 = vmul.f32 %v739, %v761
          %v787 = vmul.f32 %v742, %v761
          %v788 = vmul.f32 %v745, %v761
          %v789 = vmul.f32 %v748, %v761
          %v790 = vmul.f32 %v751, %v761
          %v791 = vmul.f32 %v754, %v761
          %v792 = vmul.f32 %v757, %v761
          %v793 = vmul.f32 %v760, %v761
          %v794 = vsub.f32 %v601, %v762
          %v795 = vsub.f32 %v602, %v762
          %v796 = vsub.f32 %v603, %v763
          %v797 = vsub.f32 %v604, %v763
          %v798 = vsub.f32 %v605, %v764
          %v799 = vsub.f32 %v606, %v764
          %v800 = vsub.f32 %v607, %v765
          %v801 = vsub.f32 %v608, %v765
          %v802 = vsub.f32 %v609, %v766
          %v803 = vsub.f32 %v610, %v766
          %v804 = vsub.f32 %v611, %v767
          %v805 = vsub.f32 %v612, %v767
          %v806 = vsub.f32 %v613, %v768
          %v807 = vsub.f32 %v614, %v768
          %v808 = vsub.f32 %v615, %v769
          %v809 = vsub.f32 %v616, %v769
          %v810 = vsub.f32 %v617, %v770
          %v811 = vsub.f32 %v618, %v770
          %v812 = vsub.f32 %v619, %v771
          %v813 = vsub.f32 %v620, %v771
          %v814 = vsub.f32 %v621, %v772
          %v815 = vsub.f32 %v622, %v772
          %v816 = vsub.f32 %v623, %v773
          %v817 = vsub.f32 %v624, %v773
          %v818 = vsub.f32 %v625, %v774
          %v819 = vsub.f32 %v626, %v774
          %v820 = vsub.f32 %v627, %v775
          %v821 = vsub.f32 %v628, %v775
          %v822 = vsub.f32 %v629, %v776
          %v823 = vsub.f32 %v630, %v776
          %v824 = vsub.f32 %v631, %v777
          %v825 = vsub.f32 %v632, %v777
          %v826 = vsub.f32 %v633, %v778
          %v827 = vsub.f32 %v634, %v778
          %v828 = vsub.f32 %v635, %v779
          %v829 = vsub.f32 %v636, %v779
          %v830 = vsub.f32 %v637, %v780
          %v831 = vsub.f32 %v638, %v780
          %v832 = vsub.f32 %v639, %v781
          %v833 = vsub.f32 %v640, %v781
          %v834 = vsub.f32 %v641, %v782
          %v835 = vsub.f32 %v642, %v782
          %v836 = vsub.f32 %v643, %v783
          %v837 = vsub.f32 %v644, %v783
          %v838 = vsub.f32 %v645, %v784
          %v839 = vsub.f32 %v646, %v784
          %v840 = vsub.f32 %v647, %v785
          %v841 = vsub.f32 %v648, %v785
          %v842 = vsub.f32 %v649, %v786
          %v843 = vsub.f32 %v650, %v786
          %v844 = vsub.f32 %v651, %v787
          %v845 = vsub.f32 %v652, %v787
          %v846 = vsub.f32 %v653, %v788
          %v847 = vsub.f32 %v654, %v788
          %v848 = vsub.f32 %v655, %v789
          %v849 = vsub.f32 %v656, %v789
          %v850 = vsub.f32 %v657, %v790
          %v851 = vsub.f32 %v658, %v790
          %v852 = vsub.f32 %v659, %v791
          %v853 = vsub.f32 %v660, %v791
          %v854 = vsub.f32 %v661, %v792
          %v855 = vsub.f32 %v662, %v792
          %v856 = vsub.f32 %v663, %v793
          %v857 = vsub.f32 %v664, %v793
          %v858 = vmul.f32 %v794, %v794
          %v859 = vmul.f32 %v795, %v795
          %v860 = vmul.f32 %v796, %v796
          %v861 = vmul.f32 %v797, %v797
          %v862 = vmul.f32 %v798, %v798
          %v863 = vmul.f32 %v799, %v799
          %v864 = vmul.f32 %v800, %v800
          %v865 = vmul.f32 %v801, %v801
          %v866 = vmul.f32 %v802, %v802
          %v867 = vmul.f32 %v803, %v803
          %v868 = vmul.f32 %v804, %v804
          %v869 = vmul.f32 %v805, %v805
          %v870 = vmul.f32 %v806, %v806
          %v871 = vmul.f32 %v807, %v807
          %v872 = vmul.f32 %v808, %v808
          %v873 = vmul.f32 %v809, %v809
          %v874 = vmul.f32 %v810, %v810
          %v875 = vmul.f32 %v811, %v811
          %v876 = vmul.f32 %v812, %v812
          %v877 = vmul.f32 %v813, %v813
          %v878 = vmul.f32 %v814, %v814
          %v879 = vmul.f32 %v815, %v815
          %v880 = vmul.f32 %v816, %v816
          %v881 = vmul.f32 %v817, %v817
          %v882 = vmul.f32 %v818, %v818
          %v883 = vmul.f32 %v819, %v819
          %v884 = vmul.f32 %v820, %v820
          %v885 = vmul.f32 %v821, %v821
          %v886 = vmul.f32 %v822, %v822
          %v887 = vmul.f32 %v823, %v823
          %v888 = vmul.f32 %v824, %v824
          %v889 = vmul.f32 %v825, %v825
          %v890 = vmul.f32 %v826, %v826
          %v891 = vmul.f32 %v827, %v827
          %v892 = vmul.f32 %v828, %v828
          %v893 = vmul.f32 %v829, %v829
          %v894 = vmul.f32 %v830, %v830
          %v895 = vmul.f32 %v831, %v831
          %v896 = vmul.f32 %v832, %v832
          %v897 = vmul.f32 %v833, %v833
          %v898 = vmul.f32 %v834, %v834
          %v899 = vmul.f32 %v835, %v835
          %v900 = vmul.f32 %v836, %v836
          %v901 = vmul.f32 %v837, %v837
          %v902 = vmul.f32 %v838, %v838
          %v903 = vmul.f32 %v839, %v839
          %v904 = vmul.f32 %v840, %v840
          %v905 = vmul.f32 %v841, %v841
          %v906 = vmul.f32 %v842, %v842
          %v907 = vmul.f32 %v843, %v843
          %v908 = vmul.f32 %v844, %v844
          %v909 = vmul.f32 %v845, %v845
          %v910 = vmul.f32 %v846, %v846
          %v911 = vmul.f32 %v847, %v847
          %v912 = vmul.f32 %v848, %v848
          %v913 = vmul.f32 %v849, %v849
          %v914 = vmul.f32 %v850, %v850
          %v915 = vmul.f32 %v851, %v851
          %v916 = vmul.f32 %v852, %v852
          %v917 = vmul.f32 %v853, %v853
          %v918 = vmul.f32 %v854, %v854
          %v919 = vmul.f32 %v855, %v855
          %v920 = vmul.f32 %v856, %v856
          %v921 = vmul.f32 %v857, %v857
          %v922 = vadd.f32 %v858, %v859
          %923 = vadd.xlane.f32.xlu0 %v922
          %v924 = vpop.xlane.xlu0 %923
          %v925 = vadd.f32 %v860, %v861
          %926 = vadd.xlane.f32.xlu0 %v925
          %v927 = vpop.xlane.xlu0 %926
          %v928 = vadd.f32 %v862, %v863
          %929 = vadd.xlane.f32.xlu0 %v928
          %v930 = vpop.xlane.xlu0 %929
          %v931 = vadd.f32 %v864, %v865
          %932 = vadd.xlane.f32.xlu0 %v931
          %v933 = vpop.xlane.xlu0 %932
          %v934 = vadd.f32 %v866, %v867
          %935 = vadd.xlane.f32.xlu0 %v934
          %v936 = vpop.xlane.xlu0 %935
          %v937 = vadd.f32 %v868, %v869
          %938 = vadd.xlane.f32.xlu0 %v937
          %v939 = vpop.xlane.xlu0 %938
          %v940 = vadd.f32 %v870, %v871
          %941 = vadd.xlane.f32.xlu0 %v940
          %v942 = vpop.xlane.xlu0 %941
          %v943 = vadd.f32 %v872, %v873
          %944 = vadd.xlane.f32.xlu0 %v943
          %v945 = vpop.xlane.xlu0 %944
          %v946 = vadd.f32 %v874, %v875
          %947 = vadd.xlane.f32.xlu0 %v946
          %v948 = vpop.xlane.xlu0 %947
          %v949 = vadd.f32 %v876, %v877
          %950 = vadd.xlane.f32.xlu0 %v949
          %v951 = vpop.xlane.xlu0 %950
          %v952 = vadd.f32 %v878, %v879
          %953 = vadd.xlane.f32.xlu0 %v952
          %v954 = vpop.xlane.xlu0 %953
          %v955 = vadd.f32 %v880, %v881
          %956 = vadd.xlane.f32.xlu0 %v955
          %v957 = vpop.xlane.xlu0 %956
          %v958 = vadd.f32 %v882, %v883
          %959 = vadd.xlane.f32.xlu0 %v958
          %v960 = vpop.xlane.xlu0 %959
          %v961 = vadd.f32 %v884, %v885
          %962 = vadd.xlane.f32.xlu0 %v961
          %v963 = vpop.xlane.xlu0 %962
          %v964 = vadd.f32 %v886, %v887
          %965 = vadd.xlane.f32.xlu0 %v964
          %v966 = vpop.xlane.xlu0 %965
          %v967 = vadd.f32 %v888, %v889
          %968 = vadd.xlane.f32.xlu0 %v967
          %v969 = vpop.xlane.xlu0 %968
          %v970 = vadd.f32 %v890, %v891
          %971 = vadd.xlane.f32.xlu0 %v970
          %v972 = vpop.xlane.xlu0 %971
          %v973 = vadd.f32 %v892, %v893
          %974 = vadd.xlane.f32.xlu0 %v973
          %v975 = vpop.xlane.xlu0 %974
          %v976 = vadd.f32 %v894, %v895
          %977 = vadd.xlane.f32.xlu0 %v976
          %v978 = vpop.xlane.xlu0 %977
          %v979 = vadd.f32 %v896, %v897
          %980 = vadd.xlane.f32.xlu0 %v979
          %v981 = vpop.xlane.xlu0 %980
          %v982 = vadd.f32 %v898, %v899
          %983 = vadd.xlane.f32.xlu0 %v982
          %v984 = vpop.xlane.xlu0 %983
          %v985 = vadd.f32 %v900, %v901
          %986 = vadd.xlane.f32.xlu0 %v985
          %v987 = vpop.xlane.xlu0 %986
          %v988 = vadd.f32 %v902, %v903
          %989 = vadd.xlane.f32.xlu0 %v988
          %v990 = vpop.xlane.xlu0 %989
          %v991 = vadd.f32 %v904, %v905
          %992 = vadd.xlane.f32.xlu0 %v991
          %v993 = vpop.xlane.xlu0 %992
          %v994 = vadd.f32 %v906, %v907
          %995 = vadd.xlane.f32.xlu0 %v994
          %v996 = vpop.xlane.xlu0 %995
          %v997 = vadd.f32 %v908, %v909
          %998 = vadd.xlane.f32.xlu0 %v997
          %v999 = vpop.xlane.xlu0 %998
          %v1000 = vadd.f32 %v910, %v911
          %1001 = vadd.xlane.f32.xlu0 %v1000
          %v1002 = vpop.xlane.xlu0 %1001
          %v1003 = vadd.f32 %v912, %v913
          %1004 = vadd.xlane.f32.xlu0 %v1003
          %v1005 = vpop.xlane.xlu0 %1004
          %v1006 = vadd.f32 %v914, %v915
          %1007 = vadd.xlane.f32.xlu0 %v1006
          %v1008 = vpop.xlane.xlu0 %1007
          %v1009 = vadd.f32 %v916, %v917
          %1010 = vadd.xlane.f32.xlu0 %v1009
          %v1011 = vpop.xlane.xlu0 %1010
          %v1012 = vadd.f32 %v918, %v919
          %1013 = vadd.xlane.f32.xlu0 %v1012
          %v1014 = vpop.xlane.xlu0 %1013
          %v1015 = vadd.f32 %v920, %v921
          %1016 = vadd.xlane.f32.xlu0 %v1015
          %v1017 = vpop.xlane.xlu0 %1016
          %v1018 = vmul.f32 %v924, %v761
          %v1019 = vmul.f32 %v927, %v761
          %v1020 = vmul.f32 %v930, %v761
          %v1021 = vmul.f32 %v933, %v761
          %v1022 = vmul.f32 %v936, %v761
          %v1023 = vmul.f32 %v939, %v761
          %v1024 = vmul.f32 %v942, %v761
          %v1025 = vmul.f32 %v945, %v761
          %v1026 = vmul.f32 %v948, %v761
          %v1027 = vmul.f32 %v951, %v761
          %v1028 = vmul.f32 %v954, %v761
          %v1029 = vmul.f32 %v957, %v761
          %v1030 = vmul.f32 %v960, %v761
          %v1031 = vmul.f32 %v963, %v761
          %v1032 = vmul.f32 %v966, %v761
          %v1033 = vmul.f32 %v969, %v761
          %v1034 = vmul.f32 %v972, %v761
          %v1035 = vmul.f32 %v975, %v761
          %v1036 = vmul.f32 %v978, %v761
          %v1037 = vmul.f32 %v981, %v761
          %v1038 = vmul.f32 %v984, %v761
          %v1039 = vmul.f32 %v987, %v761
          %v1040 = vmul.f32 %v990, %v761
          %v1041 = vmul.f32 %v993, %v761
          %v1042 = vmul.f32 %v996, %v761
          %v1043 = vmul.f32 %v999, %v761
          %v1044 = vmul.f32 %v1002, %v761
          %v1045 = vmul.f32 %v1005, %v761
          %v1046 = vmul.f32 %v1008, %v761
          %v1047 = vmul.f32 %v1011, %v761
          %v1048 = vmul.f32 %v1014, %v761
          %v1049 = vmul.f32 %v1017, %v761
          %v1050 = vadd.f32 %v1018, 1e-05
          %v1051 = vadd.f32 %v1019, 1e-05
          %v1052 = vadd.f32 %v1020, 1e-05
          %v1053 = vadd.f32 %v1021, 1e-05
          %v1054 = vadd.f32 %v1022, 1e-05
          %v1055 = vadd.f32 %v1023, 1e-05
          %v1056 = vadd.f32 %v1024, 1e-05
          %v1057 = vadd.f32 %v1025, 1e-05
          %v1058 = vadd.f32 %v1026, 1e-05
          %v1059 = vadd.f32 %v1027, 1e-05
          %v1060 = vadd.f32 %v1028, 1e-05
          %v1061 = vadd.f32 %v1029, 1e-05
          %v1062 = vadd.f32 %v1030, 1e-05
          %v1063 = vadd.f32 %v1031, 1e-05
          %v1064 = vadd.f32 %v1032, 1e-05
          %v1065 = vadd.f32 %v1033, 1e-05
          %v1066 = vadd.f32 %v1034, 1e-05
          %v1067 = vadd.f32 %v1035, 1e-05
          %v1068 = vadd.f32 %v1036, 1e-05
          %v1069 = vadd.f32 %v1037, 1e-05
          %v1070 = vadd.f32 %v1038, 1e-05
          %v1071 = vadd.f32 %v1039, 1e-05
          %v1072 = vadd.f32 %v1040, 1e-05
          %v1073 = vadd.f32 %v1041, 1e-05
          %v1074 = vadd.f32 %v1042, 1e-05
          %v1075 = vadd.f32 %v1043, 1e-05
          %v1076 = vadd.f32 %v1044, 1e-05
          %v1077 = vadd.f32 %v1045, 1e-05
          %v1078 = vadd.f32 %v1046, 1e-05
          %v1079 = vadd.f32 %v1047, 1e-05
          %v1080 = vadd.f32 %v1048, 1e-05
          %v1081 = vadd.f32 %v1049, 1e-05
          %v1082 = vrsqrt.pop %v1050
          %v1083 = vrsqrt.pop %v1051
          %v1084 = vrsqrt.pop %v1052
          %v1085 = vrsqrt.pop %v1053
          %v1086 = vrsqrt.pop %v1054
          %v1087 = vrsqrt.pop %v1055
          %v1088 = vrsqrt.pop %v1056
          %v1089 = vrsqrt.pop %v1057
          %v1090 = vrsqrt.pop %v1058
          %v1091 = vrsqrt.pop %v1059
          %v1092 = vrsqrt.pop %v1060
          %v1093 = vrsqrt.pop %v1061
          %v1094 = vrsqrt.pop %v1062
          %v1095 = vrsqrt.pop %v1063
          %v1096 = vrsqrt.pop %v1064
          %v1097 = vrsqrt.pop %v1065
          %v1098 = vrsqrt.pop %v1066
          %v1099 = vrsqrt.pop %v1067
          %v1100 = vrsqrt.pop %v1068
          %v1101 = vrsqrt.pop %v1069
          %v1102 = vrsqrt.pop %v1070
          %v1103 = vrsqrt.pop %v1071
          %v1104 = vrsqrt.pop %v1072
          %v1105 = vrsqrt.pop %v1073
          %v1106 = vrsqrt.pop %v1074
          %v1107 = vrsqrt.pop %v1075
          %v1108 = vrsqrt.pop %v1076
          %v1109 = vrsqrt.pop %v1077
          %v1110 = vrsqrt.pop %v1078
          %v1111 = vrsqrt.pop %v1079
          %v1112 = vrsqrt.pop %v1080
          %v1113 = vrsqrt.pop %v1081
          %v1114 = vmul.f32 %v794, %v1082
          %v1115 = vmul.f32 %v795, %v1082
          %v1116 = vmul.f32 %v796, %v1083
          %v1117 = vmul.f32 %v797, %v1083
          %v1118 = vmul.f32 %v798, %v1084
          %v1119 = vmul.f32 %v799, %v1084
          %v1120 = vmul.f32 %v800, %v1085
          %v1121 = vmul.f32 %v801, %v1085
          %v1122 = vmul.f32 %v802, %v1086
          %v1123 = vmul.f32 %v803, %v1086
          %v1124 = vmul.f32 %v804, %v1087
          %v1125 = vmul.f32 %v805, %v1087
          %v1126 = vmul.f32 %v806, %v1088
          %v1127 = vmul.f32 %v807, %v1088
          %v1128 = vmul.f32 %v808, %v1089
          %v1129 = vmul.f32 %v809, %v1089
          %v1130 = vmul.f32 %v810, %v1090
          %v1131 = vmul.f32 %v811, %v1090
          %v1132 = vmul.f32 %v812, %v1091
          %v1133 = vmul.f32 %v813, %v1091
          %v1134 = vmul.f32 %v814, %v1092
          %v1135 = vmul.f32 %v815, %v1092
          %v1136 = vmul.f32 %v816, %v1093
          %v1137 = vmul.f32 %v817, %v1093
          %v1138 = vmul.f32 %v818, %v1094
          %v1139 = vmul.f32 %v819, %v1094
          %v1140 = vmul.f32 %v820, %v1095
          %v1141 = vmul.f32 %v821, %v1095
          %v1142 = vmul.f32 %v822, %v1096
          %v1143 = vmul.f32 %v823, %v1096
          %v1144 = vmul.f32 %v824, %v1097
          %v1145 = vmul.f32 %v825, %v1097
          %v1146 = vmul.f32 %v826, %v1098
          %v1147 = vmul.f32 %v827, %v1098
          %v1148 = vmul.f32 %v828, %v1099
          %v1149 = vmul.f32 %v829, %v1099
          %v1150 = vmul.f32 %v830, %v1100
          %v1151 = vmul.f32 %v831, %v1100
          %v1152 = vmul.f32 %v832, %v1101
          %v1153 = vmul.f32 %v833, %v1101
          %v1154 = vmul.f32 %v834, %v1102
          %v1155 = vmul.f32 %v835, %v1102
          %v1156 = vmul.f32 %v836, %v1103
          %v1157 = vmul.f32 %v837, %v1103
          %v1158 = vmul.f32 %v838, %v1104
          %v1159 = vmul.f32 %v839, %v1104
          %v1160 = vmul.f32 %v840, %v1105
          %v1161 = vmul.f32 %v841, %v1105
          %v1162 = vmul.f32 %v842, %v1106
          %v1163 = vmul.f32 %v843, %v1106
          %v1164 = vmul.f32 %v844, %v1107
          %v1165 = vmul.f32 %v845, %v1107
          %v1166 = vmul.f32 %v846, %v1108
          %v1167 = vmul.f32 %v847, %v1108
          %v1168 = vmul.f32 %v848, %v1109
          %v1169 = vmul.f32 %v849, %v1109
          %v1170 = vmul.f32 %v850, %v1110
          %v1171 = vmul.f32 %v851, %v1110
          %v1172 = vmul.f32 %v852, %v1111
          %v1173 = vmul.f32 %v853, %v1111
          %v1174 = vmul.f32 %v854, %v1112
          %v1175 = vmul.f32 %v855, %v1112
          %v1176 = vmul.f32 %v856, %v1113
          %v1177 = vmul.f32 %v857, %v1113
          %v1179 = vlaneseq
          %v1180 = vshrl.u32 %v1179, 7
          %v1181 = vsub.s32 0, %v1180
          %v1182 = vrot.slane %v595, %v1181
          %v1183 = vlaneseq
          %v1184 = vshrl.u32 %v1183, 7
          %v1185 = vsub.s32 1, %v1184
          %v1186 = vrot.slane %v595, %v1185
          %v1189 = vmul.f32 %v1114, %v1182
          %v1190 = vmul.f32 %v1115, %v1186
          %v1191 = vmul.f32 %v1116, %v1182
          %v1192 = vmul.f32 %v1117, %v1186
          %v1193 = vmul.f32 %v1118, %v1182
          %v1194 = vmul.f32 %v1119, %v1186
          %v1195 = vmul.f32 %v1120, %v1182
          %v1196 = vmul.f32 %v1121, %v1186
          %v1197 = vmul.f32 %v1122, %v1182
          %v1198 = vmul.f32 %v1123, %v1186
          %v1199 = vmul.f32 %v1124, %v1182
          %v1200 = vmul.f32 %v1125, %v1186
          %v1201 = vmul.f32 %v1126, %v1182
          %v1202 = vmul.f32 %v1127, %v1186
          %v1203 = vmul.f32 %v1128, %v1182
          %v1204 = vmul.f32 %v1129, %v1186
          %v1205 = vmul.f32 %v1130, %v1182
          %v1206 = vmul.f32 %v1131, %v1186
          %v1207 = vmul.f32 %v1132, %v1182
          %v1208 = vmul.f32 %v1133, %v1186
          %v1209 = vmul.f32 %v1134, %v1182
          %v1210 = vmul.f32 %v1135, %v1186
          %v1211 = vmul.f32 %v1136, %v1182
          %v1212 = vmul.f32 %v1137, %v1186
          %v1213 = vmul.f32 %v1138, %v1182
          %v1214 = vmul.f32 %v1139, %v1186
          %v1215 = vmul.f32 %v1140, %v1182
          %v1216 = vmul.f32 %v1141, %v1186
          %v1217 = vmul.f32 %v1142, %v1182
          %v1218 = vmul.f32 %v1143, %v1186
          %v1219 = vmul.f32 %v1144, %v1182
          %v1220 = vmul.f32 %v1145, %v1186
          %v1221 = vmul.f32 %v1146, %v1182
          %v1222 = vmul.f32 %v1147, %v1186
          %v1223 = vmul.f32 %v1148, %v1182
          %v1224 = vmul.f32 %v1149, %v1186
          %v1225 = vmul.f32 %v1150, %v1182
          %v1226 = vmul.f32 %v1151, %v1186
          %v1227 = vmul.f32 %v1152, %v1182
          %v1228 = vmul.f32 %v1153, %v1186
          %v1229 = vmul.f32 %v1154, %v1182
          %v1230 = vmul.f32 %v1155, %v1186
          %v1231 = vmul.f32 %v1156, %v1182
          %v1232 = vmul.f32 %v1157, %v1186
          %v1233 = vmul.f32 %v1158, %v1182
          %v1234 = vmul.f32 %v1159, %v1186
          %v1235 = vmul.f32 %v1160, %v1182
          %v1236 = vmul.f32 %v1161, %v1186
          %v1237 = vmul.f32 %v1162, %v1182
          %v1238 = vmul.f32 %v1163, %v1186
          %v1239 = vmul.f32 %v1164, %v1182
          %v1240 = vmul.f32 %v1165, %v1186
          %v1241 = vmul.f32 %v1166, %v1182
          %v1242 = vmul.f32 %v1167, %v1186
          %v1243 = vmul.f32 %v1168, %v1182
          %v1244 = vmul.f32 %v1169, %v1186
          %v1245 = vmul.f32 %v1170, %v1182
          %v1246 = vmul.f32 %v1171, %v1186
          %v1247 = vmul.f32 %v1172, %v1182
          %v1248 = vmul.f32 %v1173, %v1186
          %v1249 = vmul.f32 %v1174, %v1182
          %v1250 = vmul.f32 %v1175, %v1186
          %v1251 = vmul.f32 %v1176, %v1182
          %v1252 = vmul.f32 %v1177, %v1186
          %v1254 = vlaneseq
          %v1255 = vshrl.u32 %v1254, 7
          %v1256 = vsub.s32 0, %v1255
          %v1257 = vrot.slane %v596, %v1256
          %v1258 = vlaneseq
          %v1259 = vshrl.u32 %v1258, 7
          %v1260 = vsub.s32 1, %v1259
          %v1261 = vrot.slane %v596, %v1260
          %v1264 = vadd.f32 %v1189, %v1257
          %v1265 = vadd.f32 %v1190, %v1261
          %v1266 = vadd.f32 %v1191, %v1257
          %v1267 = vadd.f32 %v1192, %v1261
          %v1268 = vadd.f32 %v1193, %v1257
          %v1269 = vadd.f32 %v1194, %v1261
          %v1270 = vadd.f32 %v1195, %v1257
          %v1271 = vadd.f32 %v1196, %v1261
          %v1272 = vadd.f32 %v1197, %v1257
          %v1273 = vadd.f32 %v1198, %v1261
          %v1274 = vadd.f32 %v1199, %v1257
          %v1275 = vadd.f32 %v1200, %v1261
          %v1276 = vadd.f32 %v1201, %v1257
          %v1277 = vadd.f32 %v1202, %v1261
          %v1278 = vadd.f32 %v1203, %v1257
          %v1279 = vadd.f32 %v1204, %v1261
          %v1280 = vadd.f32 %v1205, %v1257
          %v1281 = vadd.f32 %v1206, %v1261
          %v1282 = vadd.f32 %v1207, %v1257
          %v1283 = vadd.f32 %v1208, %v1261
          %v1284 = vadd.f32 %v1209, %v1257
          %v1285 = vadd.f32 %v1210, %v1261
          %v1286 = vadd.f32 %v1211, %v1257
          %v1287 = vadd.f32 %v1212, %v1261
          %v1288 = vadd.f32 %v1213, %v1257
          %v1289 = vadd.f32 %v1214, %v1261
          %v1290 = vadd.f32 %v1215, %v1257
          %v1291 = vadd.f32 %v1216, %v1261
          %v1292 = vadd.f32 %v1217, %v1257
          %v1293 = vadd.f32 %v1218, %v1261
          %v1294 = vadd.f32 %v1219, %v1257
          %v1295 = vadd.f32 %v1220, %v1261
          %v1296 = vadd.f32 %v1221, %v1257
          %v1297 = vadd.f32 %v1222, %v1261
          %v1298 = vadd.f32 %v1223, %v1257
          %v1299 = vadd.f32 %v1224, %v1261
          %v1300 = vadd.f32 %v1225, %v1257
          %v1301 = vadd.f32 %v1226, %v1261
          %v1302 = vadd.f32 %v1227, %v1257
          %v1303 = vadd.f32 %v1228, %v1261
          %v1304 = vadd.f32 %v1229, %v1257
          %v1305 = vadd.f32 %v1230, %v1261
          %v1306 = vadd.f32 %v1231, %v1257
          %v1307 = vadd.f32 %v1232, %v1261
          %v1308 = vadd.f32 %v1233, %v1257
          %v1309 = vadd.f32 %v1234, %v1261
          %v1310 = vadd.f32 %v1235, %v1257
          %v1311 = vadd.f32 %v1236, %v1261
          %v1312 = vadd.f32 %v1237, %v1257
          %v1313 = vadd.f32 %v1238, %v1261
          %v1314 = vadd.f32 %v1239, %v1257
          %v1315 = vadd.f32 %v1240, %v1261
          %v1316 = vadd.f32 %v1241, %v1257
          %v1317 = vadd.f32 %v1242, %v1261
          %v1318 = vadd.f32 %v1243, %v1257
          %v1319 = vadd.f32 %v1244, %v1261
          %v1320 = vadd.f32 %v1245, %v1257
          %v1321 = vadd.f32 %v1246, %v1261
          %v1322 = vadd.f32 %v1247, %v1257
          %v1323 = vadd.f32 %v1248, %v1261
          %v1324 = vadd.f32 %v1249, %v1257
          %v1325 = vadd.f32 %v1250, %v1261
          %v1326 = vadd.f32 %v1251, %v1257
          %v1327 = vadd.f32 %v1252, %v1261
          %v1328 = vld [vmem:[%s593] sm:$0xff]
          %v1329 = vld [vmem:[%s593 + $0x8] sm:$0xff]
          %v1330 = vld [vmem:[%s593 + $0x10] sm:$0xff]
          %v1331 = vld [vmem:[%s593 + $0x18] sm:$0xff]
          %v1332 = vld [vmem:[%s593 + $0x20] sm:$0xff]
          %v1333 = vld [vmem:[%s593 + $0x28] sm:$0xff]
          %v1334 = vld [vmem:[%s593 + $0x30] sm:$0xff]
          %v1335 = vld [vmem:[%s593 + $0x38] sm:$0xff]
          %v1336 = vld [vmem:[%s593 + $0x40] sm:$0xff]
          %v1337 = vld [vmem:[%s593 + $0x48] sm:$0xff]
          %v1338 = vld [vmem:[%s593 + $0x50] sm:$0xff]
          %v1339 = vld [vmem:[%s593 + $0x58] sm:$0xff]
          %v1340 = vld [vmem:[%s593 + $0x60] sm:$0xff]
          %v1341 = vld [vmem:[%s593 + $0x68] sm:$0xff]
          %v1342 = vld [vmem:[%s593 + $0x70] sm:$0xff]
          %v1343 = vld [vmem:[%s593 + $0x78] sm:$0xff]
          %v1344 = vld [vmem:[%s593 + $0x80] sm:$0xff]
          %v1345 = vld [vmem:[%s593 + $0x88] sm:$0xff]
          %v1346 = vld [vmem:[%s593 + $0x90] sm:$0xff]
          %v1347 = vld [vmem:[%s593 + $0x98] sm:$0xff]
          %v1348 = vld [vmem:[%s593 + $0xa0] sm:$0xff]
          %v1349 = vld [vmem:[%s593 + $0xa8] sm:$0xff]
          %v1350 = vld [vmem:[%s593 + $0xb0] sm:$0xff]
          %v1351 = vld [vmem:[%s593 + $0xb8] sm:$0xff]
          %v1352 = vld [vmem:[%s593 + $0xc0] sm:$0xff]
          %v1353 = vld [vmem:[%s593 + $0xc8] sm:$0xff]
          %v1354 = vld [vmem:[%s593 + $0xd0] sm:$0xff]
          %v1355 = vld [vmem:[%s593 + $0xd8] sm:$0xff]
          %v1356 = vld [vmem:[%s593 + $0xe0] sm:$0xff]
          %v1357 = vld [vmem:[%s593 + $0xe8] sm:$0xff]
          %v1358 = vld [vmem:[%s593 + $0xf0] sm:$0xff]
          %v1359 = vld [vmem:[%s593 + $0xf8] sm:$0xff]
          %v1360 = vld [vmem:[%s593 + $0x100] sm:$0xff]
          %v1361 = vld [vmem:[%s593 + $0x108] sm:$0xff]
          %v1362 = vld [vmem:[%s593 + $0x110] sm:$0xff]
          %v1363 = vld [vmem:[%s593 + $0x118] sm:$0xff]
          %v1364 = vld [vmem:[%s593 + $0x120] sm:$0xff]
          %v1365 = vld [vmem:[%s593 + $0x128] sm:$0xff]
          %v1366 = vld [vmem:[%s593 + $0x130] sm:$0xff]
          %v1367 = vld [vmem:[%s593 + $0x138] sm:$0xff]
          %v1368 = vld [vmem:[%s593 + $0x140] sm:$0xff]
          %v1369 = vld [vmem:[%s593 + $0x148] sm:$0xff]
          %v1370 = vld [vmem:[%s593 + $0x150] sm:$0xff]
          %v1371 = vld [vmem:[%s593 + $0x158] sm:$0xff]
          %v1372 = vld [vmem:[%s593 + $0x160] sm:$0xff]
          %v1373 = vld [vmem:[%s593 + $0x168] sm:$0xff]
          %v1374 = vld [vmem:[%s593 + $0x170] sm:$0xff]
          %v1375 = vld [vmem:[%s593 + $0x178] sm:$0xff]
          %v1376 = vld [vmem:[%s593 + $0x180] sm:$0xff]
          %v1377 = vld [vmem:[%s593 + $0x188] sm:$0xff]
          %v1378 = vld [vmem:[%s593 + $0x190] sm:$0xff]
          %v1379 = vld [vmem:[%s593 + $0x198] sm:$0xff]
          %v1380 = vld [vmem:[%s593 + $0x1a0] sm:$0xff]
          %v1381 = vld [vmem:[%s593 + $0x1a8] sm:$0xff]
          %v1382 = vld [vmem:[%s593 + $0x1b0] sm:$0xff]
          %v1383 = vld [vmem:[%s593 + $0x1b8] sm:$0xff]
          %v1384 = vld [vmem:[%s593 + $0x1c0] sm:$0xff]
          %v1385 = vld [vmem:[%s593 + $0x1c8] sm:$0xff]
          %v1386 = vld [vmem:[%s593 + $0x1d0] sm:$0xff]
          %v1387 = vld [vmem:[%s593 + $0x1d8] sm:$0xff]
          %v1388 = vld [vmem:[%s593 + $0x1e0] sm:$0xff]
          %v1389 = vld [vmem:[%s593 + $0x1e8] sm:$0xff]
          %v1390 = vld [vmem:[%s593 + $0x1f0] sm:$0xff]
          %v1391 = vld [vmem:[%s593 + $0x1f8] sm:$0xff]
          %v1392 = vadd.f32 %v1328, %v1329
          %1393 = vadd.xlane.f32.xlu0 %v1392
          %v1394 = vpop.xlane.xlu0 %1393
          %v1395 = vadd.f32 %v1330, %v1331
          %1396 = vadd.xlane.f32.xlu0 %v1395
          %v1397 = vpop.xlane.xlu0 %1396
          %v1398 = vadd.f32 %v1332, %v1333
          %1399 = vadd.xlane.f32.xlu0 %v1398
          %v1400 = vpop.xlane.xlu0 %1399
          %v1401 = vadd.f32 %v1334, %v1335
          %1402 = vadd.xlane.f32.xlu0 %v1401
          %v1403 = vpop.xlane.xlu0 %1402
          %v1404 = vadd.f32 %v1336, %v1337
          %1405 = vadd.xlane.f32.xlu0 %v1404
          %v1406 = vpop.xlane.xlu0 %1405
          %v1407 = vadd.f32 %v1338, %v1339
          %1408 = vadd.xlane.f32.xlu0 %v1407
          %v1409 = vpop.xlane.xlu0 %1408
          %v1410 = vadd.f32 %v1340, %v1341
          %1411 = vadd.xlane.f32.xlu0 %v1410
          %v1412 = vpop.xlane.xlu0 %1411
          %v1413 = vadd.f32 %v1342, %v1343
          %1414 = vadd.xlane.f32.xlu0 %v1413
          %v1415 = vpop.xlane.xlu0 %1414
          %v1416 = vadd.f32 %v1344, %v1345
          %1417 = vadd.xlane.f32.xlu0 %v1416
          %v1418 = vpop.xlane.xlu0 %1417
          %v1419 = vadd.f32 %v1346, %v1347
          %1420 = vadd.xlane.f32.xlu0 %v1419
          %v1421 = vpop.xlane.xlu0 %1420
          %v1422 = vadd.f32 %v1348, %v1349
          %1423 = vadd.xlane.f32.xlu0 %v1422
          %v1424 = vpop.xlane.xlu0 %1423
          %v1425 = vadd.f32 %v1350, %v1351
          %1426 = vadd.xlane.f32.xlu0 %v1425
          %v1427 = vpop.xlane.xlu0 %1426
          %v1428 = vadd.f32 %v1352, %v1353
          %1429 = vadd.xlane.f32.xlu0 %v1428
          %v1430 = vpop.xlane.xlu0 %1429
          %v1431 = vadd.f32 %v1354, %v1355
          %1432 = vadd.xlane.f32.xlu0 %v1431
          %v1433 = vpop.xlane.xlu0 %1432
          %v1434 = vadd.f32 %v1356, %v1357
          %1435 = vadd.xlane.f32.xlu0 %v1434
          %v1436 = vpop.xlane.xlu0 %1435
          %v1437 = vadd.f32 %v1358, %v1359
          %1438 = vadd.xlane.f32.xlu0 %v1437
          %v1439 = vpop.xlane.xlu0 %1438
          %v1440 = vadd.f32 %v1360, %v1361
          %1441 = vadd.xlane.f32.xlu0 %v1440
          %v1442 = vpop.xlane.xlu0 %1441
          %v1443 = vadd.f32 %v1362, %v1363
          %1444 = vadd.xlane.f32.xlu0 %v1443
          %v1445 = vpop.xlane.xlu0 %1444
          %v1446 = vadd.f32 %v1364, %v1365
          %1447 = vadd.xlane.f32.xlu0 %v1446
          %v1448 = vpop.xlane.xlu0 %1447
          %v1449 = vadd.f32 %v1366, %v1367
          %1450 = vadd.xlane.f32.xlu0 %v1449
          %v1451 = vpop.xlane.xlu0 %1450
          %v1452 = vadd.f32 %v1368, %v1369
          %1453 = vadd.xlane.f32.xlu0 %v1452
          %v1454 = vpop.xlane.xlu0 %1453
          %v1455 = vadd.f32 %v1370, %v1371
          %1456 = vadd.xlane.f32.xlu0 %v1455
          %v1457 = vpop.xlane.xlu0 %1456
          %v1458 = vadd.f32 %v1372, %v1373
          %1459 = vadd.xlane.f32.xlu0 %v1458
          %v1460 = vpop.xlane.xlu0 %1459
          %v1461 = vadd.f32 %v1374, %v1375
          %1462 = vadd.xlane.f32.xlu0 %v1461
          %v1463 = vpop.xlane.xlu0 %1462
          %v1464 = vadd.f32 %v1376, %v1377
          %1465 = vadd.xlane.f32.xlu0 %v1464
          %v1466 = vpop.xlane.xlu0 %1465
          %v1467 = vadd.f32 %v1378, %v1379
          %1468 = vadd.xlane.f32.xlu0 %v1467
          %v1469 = vpop.xlane.xlu0 %1468
          %v1470 = vadd.f32 %v1380, %v1381
          %1471 = vadd.xlane.f32.xlu0 %v1470
          %v1472 = vpop.xlane.xlu0 %1471
          %v1473 = vadd.f32 %v1382, %v1383
          %1474 = vadd.xlane.f32.xlu0 %v1473
          %v1475 = vpop.xlane.xlu0 %1474
          %v1476 = vadd.f32 %v1384, %v1385
          %1477 = vadd.xlane.f32.xlu0 %v1476
          %v1478 = vpop.xlane.xlu0 %1477
          %v1479 = vadd.f32 %v1386, %v1387
          %1480 = vadd.xlane.f32.xlu0 %v1479
          %v1481 = vpop.xlane.xlu0 %1480
          %v1482 = vadd.f32 %v1388, %v1389
          %1483 = vadd.xlane.f32.xlu0 %v1482
          %v1484 = vpop.xlane.xlu0 %1483
          %v1485 = vadd.f32 %v1390, %v1391
          %1486 = vadd.xlane.f32.xlu0 %v1485
          %v1487 = vpop.xlane.xlu0 %1486
          %v1488 = vmul.f32 %v1394, %v761
          %v1489 = vmul.f32 %v1397, %v761
          %v1490 = vmul.f32 %v1400, %v761
          %v1491 = vmul.f32 %v1403, %v761
          %v1492 = vmul.f32 %v1406, %v761
          %v1493 = vmul.f32 %v1409, %v761
          %v1494 = vmul.f32 %v1412, %v761
          %v1495 = vmul.f32 %v1415, %v761
          %v1496 = vmul.f32 %v1418, %v761
          %v1497 = vmul.f32 %v1421, %v761
          %v1498 = vmul.f32 %v1424, %v761
          %v1499 = vmul.f32 %v1427, %v761
          %v1500 = vmul.f32 %v1430, %v761
          %v1501 = vmul.f32 %v1433, %v761
          %v1502 = vmul.f32 %v1436, %v761
          %v1503 = vmul.f32 %v1439, %v761
          %v1504 = vmul.f32 %v1442, %v761
          %v1505 = vmul.f32 %v1445, %v761
          %v1506 = vmul.f32 %v1448, %v761
          %v1507 = vmul.f32 %v1451, %v761
          %v1508 = vmul.f32 %v1454, %v761
          %v1509 = vmul.f32 %v1457, %v761
          %v1510 = vmul.f32 %v1460, %v761
          %v1511 = vmul.f32 %v1463, %v761
          %v1512 = vmul.f32 %v1466, %v761
          %v1513 = vmul.f32 %v1469, %v761
          %v1514 = vmul.f32 %v1472, %v761
          %v1515 = vmul.f32 %v1475, %v761
          %v1516 = vmul.f32 %v1478, %v761
          %v1517 = vmul.f32 %v1481, %v761
          %v1518 = vmul.f32 %v1484, %v761
          %v1519 = vmul.f32 %v1487, %v761
          %v1520 = vsub.f32 %v1328, %v1488
          %v1521 = vsub.f32 %v1329, %v1488
          %v1522 = vsub.f32 %v1330, %v1489
          %v1523 = vsub.f32 %v1331, %v1489
          %v1524 = vsub.f32 %v1332, %v1490
          %v1525 = vsub.f32 %v1333, %v1490
          %v1526 = vsub.f32 %v1334, %v1491
          %v1527 = vsub.f32 %v1335, %v1491
          %v1528 = vsub.f32 %v1336, %v1492
          %v1529 = vsub.f32 %v1337, %v1492
          %v1530 = vsub.f32 %v1338, %v1493
          %v1531 = vsub.f32 %v1339, %v1493
          %v1532 = vsub.f32 %v1340, %v1494
          %v1533 = vsub.f32 %v1341, %v1494
          %v1534 = vsub.f32 %v1342, %v1495
          %v1535 = vsub.f32 %v1343, %v1495
          %v1536 = vsub.f32 %v1344, %v1496
          %v1537 = vsub.f32 %v1345, %v1496
          %v1538 = vsub.f32 %v1346, %v1497
          %v1539 = vsub.f32 %v1347, %v1497
          %v1540 = vsub.f32 %v1348, %v1498
          %v1541 = vsub.f32 %v1349, %v1498
          %v1542 = vsub.f32 %v1350, %v1499
          %v1543 = vsub.f32 %v1351, %v1499
          %v1544 = vsub.f32 %v1352, %v1500
          %v1545 = vsub.f32 %v1353, %v1500
          %v1546 = vsub.f32 %v1354, %v1501
          %v1547 = vsub.f32 %v1355, %v1501
          %v1548 = vsub.f32 %v1356, %v1502
          %v1549 = vsub.f32 %v1357, %v1502
          %v1550 = vsub.f32 %v1358, %v1503
          %v1551 = vsub.f32 %v1359, %v1503
          %v1552 = vsub.f32 %v1360, %v1504
          %v1553 = vsub.f32 %v1361, %v1504
          %v1554 = vsub.f32 %v1362, %v1505
          %v1555 = vsub.f32 %v1363, %v1505
          %v1556 = vsub.f32 %v1364, %v1506
          %v1557 = vsub.f32 %v1365, %v1506
          %v1558 = vsub.f32 %v1366, %v1507
          %v1559 = vsub.f32 %v1367, %v1507
          %v1560 = vsub.f32 %v1368, %v1508
          %v1561 = vsub.f32 %v1369, %v1508
          %v1562 = vsub.f32 %v1370, %v1509
          %v1563 = vsub.f32 %v1371, %v1509
          %v1564 = vsub.f32 %v1372, %v1510
          %v1565 = vsub.f32 %v1373, %v1510
          %v1566 = vsub.f32 %v1374, %v1511
          %v1567 = vsub.f32 %v1375, %v1511
          %v1568 = vsub.f32 %v1376, %v1512
          %v1569 = vsub.f32 %v1377, %v1512
          %v1570 = vsub.f32 %v1378, %v1513
          %v1571 = vsub.f32 %v1379, %v1513
          %v1572 = vsub.f32 %v1380, %v1514
          %v1573 = vsub.f32 %v1381, %v1514
          %v1574 = vsub.f32 %v1382, %v1515
          %v1575 = vsub.f32 %v1383, %v1515
          %v1576 = vsub.f32 %v1384, %v1516
          %v1577 = vsub.f32 %v1385, %v1516
          %v1578 = vsub.f32 %v1386, %v1517
          %v1579 = vsub.f32 %v1387, %v1517
          %v1580 = vsub.f32 %v1388, %v1518
          %v1581 = vsub.f32 %v1389, %v1518
          %v1582 = vsub.f32 %v1390, %v1519
          %v1583 = vsub.f32 %v1391, %v1519
          %v1584 = vmul.f32 %v1520, %v1520
          %v1585 = vmul.f32 %v1521, %v1521
          %v1586 = vmul.f32 %v1522, %v1522
          %v1587 = vmul.f32 %v1523, %v1523
          %v1588 = vmul.f32 %v1524, %v1524
          %v1589 = vmul.f32 %v1525, %v1525
          %v1590 = vmul.f32 %v1526, %v1526
          %v1591 = vmul.f32 %v1527, %v1527
          %v1592 = vmul.f32 %v1528, %v1528
          %v1593 = vmul.f32 %v1529, %v1529
          %v1594 = vmul.f32 %v1530, %v1530
          %v1595 = vmul.f32 %v1531, %v1531
          %v1596 = vmul.f32 %v1532, %v1532
          %v1597 = vmul.f32 %v1533, %v1533
          %v1598 = vmul.f32 %v1534, %v1534
          %v1599 = vmul.f32 %v1535, %v1535
          %v1600 = vmul.f32 %v1536, %v1536
          %v1601 = vmul.f32 %v1537, %v1537
          %v1602 = vmul.f32 %v1538, %v1538
          %v1603 = vmul.f32 %v1539, %v1539
          %v1604 = vmul.f32 %v1540, %v1540
          %v1605 = vmul.f32 %v1541, %v1541
          %v1606 = vmul.f32 %v1542, %v1542
          %v1607 = vmul.f32 %v1543, %v1543
          %v1608 = vmul.f32 %v1544, %v1544
          %v1609 = vmul.f32 %v1545, %v1545
          %v1610 = vmul.f32 %v1546, %v1546
          %v1611 = vmul.f32 %v1547, %v1547
          %v1612 = vmul.f32 %v1548, %v1548
          %v1613 = vmul.f32 %v1549, %v1549
          %v1614 = vmul.f32 %v1550, %v1550
          %v1615 = vmul.f32 %v1551, %v1551
          %v1616 = vmul.f32 %v1552, %v1552
          %v1617 = vmul.f32 %v1553, %v1553
          %v1618 = vmul.f32 %v1554, %v1554
          %v1619 = vmul.f32 %v1555, %v1555
          %v1620 = vmul.f32 %v1556, %v1556
          %v1621 = vmul.f32 %v1557, %v1557
          %v1622 = vmul.f32 %v1558, %v1558
          %v1623 = vmul.f32 %v1559, %v1559
          %v1624 = vmul.f32 %v1560, %v1560
          %v1625 = vmul.f32 %v1561, %v1561
          %v1626 = vmul.f32 %v1562, %v1562
          %v1627 = vmul.f32 %v1563, %v1563
          %v1628 = vmul.f32 %v1564, %v1564
          %v1629 = vmul.f32 %v1565, %v1565
          %v1630 = vmul.f32 %v1566, %v1566
          %v1631 = vmul.f32 %v1567, %v1567
          %v1632 = vmul.f32 %v1568, %v1568
          %v1633 = vmul.f32 %v1569, %v1569
          %v1634 = vmul.f32 %v1570, %v1570
          %v1635 = vmul.f32 %v1571, %v1571
          %v1636 = vmul.f32 %v1572, %v1572
          %v1637 = vmul.f32 %v1573, %v1573
          %v1638 = vmul.f32 %v1574, %v1574
          %v1639 = vmul.f32 %v1575, %v1575
          %v1640 = vmul.f32 %v1576, %v1576
          %v1641 = vmul.f32 %v1577, %v1577
          %v1642 = vmul.f32 %v1578, %v1578
          %v1643 = vmul.f32 %v1579, %v1579
          %v1644 = vmul.f32 %v1580, %v1580
          %v1645 = vmul.f32 %v1581, %v1581
          %v1646 = vmul.f32 %v1582, %v1582
          %v1647 = vmul.f32 %v1583, %v1583
          %v1648 = vadd.f32 %v1584, %v1585
          %1649 = vadd.xlane.f32.xlu0 %v1648
          %v1650 = vpop.xlane.xlu0 %1649
          %v1651 = vadd.f32 %v1586, %v1587
          %1652 = vadd.xlane.f32.xlu0 %v1651
          %v1653 = vpop.xlane.xlu0 %1652
          %v1654 = vadd.f32 %v1588, %v1589
          %1655 = vadd.xlane.f32.xlu0 %v1654
          %v1656 = vpop.xlane.xlu0 %1655
          %v1657 = vadd.f32 %v1590, %v1591
          %1658 = vadd.xlane.f32.xlu0 %v1657
          %v1659 = vpop.xlane.xlu0 %1658
          %v1660 = vadd.f32 %v1592, %v1593
          %1661 = vadd.xlane.f32.xlu0 %v1660
          %v1662 = vpop.xlane.xlu0 %1661
          %v1663 = vadd.f32 %v1594, %v1595
          %1664 = vadd.xlane.f32.xlu0 %v1663
          %v1665 = vpop.xlane.xlu0 %1664
          %v1666 = vadd.f32 %v1596, %v1597
          %1667 = vadd.xlane.f32.xlu0 %v1666
          %v1668 = vpop.xlane.xlu0 %1667
          %v1669 = vadd.f32 %v1598, %v1599
          %1670 = vadd.xlane.f32.xlu0 %v1669
          %v1671 = vpop.xlane.xlu0 %1670
          %v1672 = vadd.f32 %v1600, %v1601
          %1673 = vadd.xlane.f32.xlu0 %v1672
          %v1674 = vpop.xlane.xlu0 %1673
          %v1675 = vadd.f32 %v1602, %v1603
          %1676 = vadd.xlane.f32.xlu0 %v1675
          %v1677 = vpop.xlane.xlu0 %1676
          %v1678 = vadd.f32 %v1604, %v1605
          %1679 = vadd.xlane.f32.xlu0 %v1678
          %v1680 = vpop.xlane.xlu0 %1679
          %v1681 = vadd.f32 %v1606, %v1607
          %1682 = vadd.xlane.f32.xlu0 %v1681
          %v1683 = vpop.xlane.xlu0 %1682
          %v1684 = vadd.f32 %v1608, %v1609
          %1685 = vadd.xlane.f32.xlu0 %v1684
          %v1686 = vpop.xlane.xlu0 %1685
          %v1687 = vadd.f32 %v1610, %v1611
          %1688 = vadd.xlane.f32.xlu0 %v1687
          %v1689 = vpop.xlane.xlu0 %1688
          %v1690 = vadd.f32 %v1612, %v1613
          %1691 = vadd.xlane.f32.xlu0 %v1690
          %v1692 = vpop.xlane.xlu0 %1691
          %v1693 = vadd.f32 %v1614, %v1615
          %1694 = vadd.xlane.f32.xlu0 %v1693
          %v1695 = vpop.xlane.xlu0 %1694
          %v1696 = vadd.f32 %v1616, %v1617
          %1697 = vadd.xlane.f32.xlu0 %v1696
          %v1698 = vpop.xlane.xlu0 %1697
          %v1699 = vadd.f32 %v1618, %v1619
          %1700 = vadd.xlane.f32.xlu0 %v1699
          %v1701 = vpop.xlane.xlu0 %1700
          %v1702 = vadd.f32 %v1620, %v1621
          %1703 = vadd.xlane.f32.xlu0 %v1702
          %v1704 = vpop.xlane.xlu0 %1703
          %v1705 = vadd.f32 %v1622, %v1623
          %1706 = vadd.xlane.f32.xlu0 %v1705
          %v1707 = vpop.xlane.xlu0 %1706
          %v1708 = vadd.f32 %v1624, %v1625
          %1709 = vadd.xlane.f32.xlu0 %v1708
          %v1710 = vpop.xlane.xlu0 %1709
          %v1711 = vadd.f32 %v1626, %v1627
          %1712 = vadd.xlane.f32.xlu0 %v1711
          %v1713 = vpop.xlane.xlu0 %1712
          %v1714 = vadd.f32 %v1628, %v1629
          %1715 = vadd.xlane.f32.xlu0 %v1714
          %v1716 = vpop.xlane.xlu0 %1715
          %v1717 = vadd.f32 %v1630, %v1631
          %1718 = vadd.xlane.f32.xlu0 %v1717
          %v1719 = vpop.xlane.xlu0 %1718
          %v1720 = vadd.f32 %v1632, %v1633
          %1721 = vadd.xlane.f32.xlu0 %v1720
          %v1722 = vpop.xlane.xlu0 %1721
          %v1723 = vadd.f32 %v1634, %v1635
          %1724 = vadd.xlane.f32.xlu0 %v1723
          %v1725 = vpop.xlane.xlu0 %1724
          %v1726 = vadd.f32 %v1636, %v1637
          %1727 = vadd.xlane.f32.xlu0 %v1726
          %v1728 = vpop.xlane.xlu0 %1727
          %v1729 = vadd.f32 %v1638, %v1639
          %1730 = vadd.xlane.f32.xlu0 %v1729
          %v1731 = vpop.xlane.xlu0 %1730
          %v1732 = vadd.f32 %v1640, %v1641
          %1733 = vadd.xlane.f32.xlu0 %v1732
          %v1734 = vpop.xlane.xlu0 %1733
          %v1735 = vadd.f32 %v1642, %v1643
          %1736 = vadd.xlane.f32.xlu0 %v1735
          %v1737 = vpop.xlane.xlu0 %1736
          %v1738 = vadd.f32 %v1644, %v1645
          %1739 = vadd.xlane.f32.xlu0 %v1738
          %v1740 = vpop.xlane.xlu0 %1739
          %v1741 = vadd.f32 %v1646, %v1647
          %1742 = vadd.xlane.f32.xlu0 %v1741
          %v1743 = vpop.xlane.xlu0 %1742
          %v1744 = vmul.f32 %v1650, %v761
          %v1745 = vmul.f32 %v1653, %v761
          %v1746 = vmul.f32 %v1656, %v761
          %v1747 = vmul.f32 %v1659, %v761
          %v1748 = vmul.f32 %v1662, %v761
          %v1749 = vmul.f32 %v1665, %v761
          %v1750 = vmul.f32 %v1668, %v761
          %v1751 = vmul.f32 %v1671, %v761
          %v1752 = vmul.f32 %v1674, %v761
          %v1753 = vmul.f32 %v1677, %v761
          %v1754 = vmul.f32 %v1680, %v761
          %v1755 = vmul.f32 %v1683, %v761
          %v1756 = vmul.f32 %v1686, %v761
          %v1757 = vmul.f32 %v1689, %v761
          %v1758 = vmul.f32 %v1692, %v761
          %v1759 = vmul.f32 %v1695, %v761
          %v1760 = vmul.f32 %v1698, %v761
          %v1761 = vmul.f32 %v1701, %v761
          %v1762 = vmul.f32 %v1704, %v761
          %v1763 = vmul.f32 %v1707, %v761
          %v1764 = vmul.f32 %v1710, %v761
          %v1765 = vmul.f32 %v1713, %v761
          %v1766 = vmul.f32 %v1716, %v761
          %v1767 = vmul.f32 %v1719, %v761
          %v1768 = vmul.f32 %v1722, %v761
          %v1769 = vmul.f32 %v1725, %v761
          %v1770 = vmul.f32 %v1728, %v761
          %v1771 = vmul.f32 %v1731, %v761
          %v1772 = vmul.f32 %v1734, %v761
          %v1773 = vmul.f32 %v1737, %v761
          %v1774 = vmul.f32 %v1740, %v761
          %v1775 = vmul.f32 %v1743, %v761
          %v1776 = vadd.f32 %v1744, 1e-05
          %v1777 = vadd.f32 %v1745, 1e-05
          %v1778 = vadd.f32 %v1746, 1e-05
          %v1779 = vadd.f32 %v1747, 1e-05
          %v1780 = vadd.f32 %v1748, 1e-05
          %v1781 = vadd.f32 %v1749, 1e-05
          %v1782 = vadd.f32 %v1750, 1e-05
          %v1783 = vadd.f32 %v1751, 1e-05
          %v1784 = vadd.f32 %v1752, 1e-05
          %v1785 = vadd.f32 %v1753, 1e-05
          %v1786 = vadd.f32 %v1754, 1e-05
          %v1787 = vadd.f32 %v1755, 1e-05
          %v1788 = vadd.f32 %v1756, 1e-05
          %v1789 = vadd.f32 %v1757, 1e-05
          %v1790 = vadd.f32 %v1758, 1e-05
          %v1791 = vadd.f32 %v1759, 1e-05
          %v1792 = vadd.f32 %v1760, 1e-05
          %v1793 = vadd.f32 %v1761, 1e-05
          %v1794 = vadd.f32 %v1762, 1e-05
          %v1795 = vadd.f32 %v1763, 1e-05
          %v1796 = vadd.f32 %v1764, 1e-05
          %v1797 = vadd.f32 %v1765, 1e-05
          %v1798 = vadd.f32 %v1766, 1e-05
          %v1799 = vadd.f32 %v1767, 1e-05
          %v1800 = vadd.f32 %v1768, 1e-05
          %v1801 = vadd.f32 %v1769, 1e-05
          %v1802 = vadd.f32 %v1770, 1e-05
          %v1803 = vadd.f32 %v1771, 1e-05
          %v1804 = vadd.f32 %v1772, 1e-05
          %v1805 = vadd.f32 %v1773, 1e-05
          %v1806 = vadd.f32 %v1774, 1e-05
          %v1807 = vadd.f32 %v1775, 1e-05
          %v1808 = vrsqrt.pop %v1776
          %v1809 = vrsqrt.pop %v1777
          %v1810 = vrsqrt.pop %v1778
          %v1811 = vrsqrt.pop %v1779
          %v1812 = vrsqrt.pop %v1780
          %v1813 = vrsqrt.pop %v1781
          %v1814 = vrsqrt.pop %v1782
          %v1815 = vrsqrt.pop %v1783
          %v1816 = vrsqrt.pop %v1784
          %v1817 = vrsqrt.pop %v1785
          %v1818 = vrsqrt.pop %v1786
          %v1819 = vrsqrt.pop %v1787
          %v1820 = vrsqrt.pop %v1788
          %v1821 = vrsqrt.pop %v1789
          %v1822 = vrsqrt.pop %v1790
          %v1823 = vrsqrt.pop %v1791
          %v1824 = vrsqrt.pop %v1792
          %v1825 = vrsqrt.pop %v1793
          %v1826 = vrsqrt.pop %v1794
          %v1827 = vrsqrt.pop %v1795
          %v1828 = vrsqrt.pop %v1796
          %v1829 = vrsqrt.pop %v1797
          %v1830 = vrsqrt.pop %v1798
          %v1831 = vrsqrt.pop %v1799
          %v1832 = vrsqrt.pop %v1800
          %v1833 = vrsqrt.pop %v1801
          %v1834 = vrsqrt.pop %v1802
          %v1835 = vrsqrt.pop %v1803
          %v1836 = vrsqrt.pop %v1804
          %v1837 = vrsqrt.pop %v1805
          %v1838 = vrsqrt.pop %v1806
          %v1839 = vrsqrt.pop %v1807
          %v1840 = vmul.f32 %v1520, %v1808
          %v1841 = vmul.f32 %v1521, %v1808
          %v1842 = vmul.f32 %v1522, %v1809
          %v1843 = vmul.f32 %v1523, %v1809
          %v1844 = vmul.f32 %v1524, %v1810
          %v1845 = vmul.f32 %v1525, %v1810
          %v1846 = vmul.f32 %v1526, %v1811
          %v1847 = vmul.f32 %v1527, %v1811
          %v1848 = vmul.f32 %v1528, %v1812
          %v1849 = vmul.f32 %v1529, %v1812
          %v1850 = vmul.f32 %v1530, %v1813
          %v1851 = vmul.f32 %v1531, %v1813
          %v1852 = vmul.f32 %v1532, %v1814
          %v1853 = vmul.f32 %v1533, %v1814
          %v1854 = vmul.f32 %v1534, %v1815
          %v1855 = vmul.f32 %v1535, %v1815
          %v1856 = vmul.f32 %v1536, %v1816
          %v1857 = vmul.f32 %v1537, %v1816
          %v1858 = vmul.f32 %v1538, %v1817
          %v1859 = vmul.f32 %v1539, %v1817
          %v1860 = vmul.f32 %v1540, %v1818
          %v1861 = vmul.f32 %v1541, %v1818
          %v1862 = vmul.f32 %v1542, %v1819
          %v1863 = vmul.f32 %v1543, %v1819
          %v1864 = vmul.f32 %v1544, %v1820
          %v1865 = vmul.f32 %v1545, %v1820
          %v1866 = vmul.f32 %v1546, %v1821
          %v1867 = vmul.f32 %v1547, %v1821
          %v1868 = vmul.f32 %v1548, %v1822
          %v1869 = vmul.f32 %v1549, %v1822
          %v1870 = vmul.f32 %v1550, %v1823
          %v1871 = vmul.f32 %v1551, %v1823
          %v1872 = vmul.f32 %v1552, %v1824
          %v1873 = vmul.f32 %v1553, %v1824
          %v1874 = vmul.f32 %v1554, %v1825
          %v1875 = vmul.f32 %v1555, %v1825
          %v1876 = vmul.f32 %v1556, %v1826
          %v1877 = vmul.f32 %v1557, %v1826
          %v1878 = vmul.f32 %v1558, %v1827
          %v1879 = vmul.f32 %v1559, %v1827
          %v1880 = vmul.f32 %v1560, %v1828
          %v1881 = vmul.f32 %v1561, %v1828
          %v1882 = vmul.f32 %v1562, %v1829
          %v1883 = vmul.f32 %v1563, %v1829
          %v1884 = vmul.f32 %v1564, %v1830
          %v1885 = vmul.f32 %v1565, %v1830
          %v1886 = vmul.f32 %v1566, %v1831
          %v1887 = vmul.f32 %v1567, %v1831
          %v1888 = vmul.f32 %v1568, %v1832
          %v1889 = vmul.f32 %v1569, %v1832
          %v1890 = vmul.f32 %v1570, %v1833
          %v1891 = vmul.f32 %v1571, %v1833
          %v1892 = vmul.f32 %v1572, %v1834
          %v1893 = vmul.f32 %v1573, %v1834
          %v1894 = vmul.f32 %v1574, %v1835
          %v1895 = vmul.f32 %v1575, %v1835
          %v1896 = vmul.f32 %v1576, %v1836
          %v1897 = vmul.f32 %v1577, %v1836
          %v1898 = vmul.f32 %v1578, %v1837
          %v1899 = vmul.f32 %v1579, %v1837
          %v1900 = vmul.f32 %v1580, %v1838
          %v1901 = vmul.f32 %v1581, %v1838
          %v1902 = vmul.f32 %v1582, %v1839
          %v1903 = vmul.f32 %v1583, %v1839
          %v1904 = vmul.f32 %v1840, %v1182
          %v1905 = vmul.f32 %v1841, %v1186
          %v1906 = vmul.f32 %v1842, %v1182
          %v1907 = vmul.f32 %v1843, %v1186
          %v1908 = vmul.f32 %v1844, %v1182
          %v1909 = vmul.f32 %v1845, %v1186
          %v1910 = vmul.f32 %v1846, %v1182
          %v1911 = vmul.f32 %v1847, %v1186
          %v1912 = vmul.f32 %v1848, %v1182
          %v1913 = vmul.f32 %v1849, %v1186
          %v1914 = vmul.f32 %v1850, %v1182
          %v1915 = vmul.f32 %v1851, %v1186
          %v1916 = vmul.f32 %v1852, %v1182
          %v1917 = vmul.f32 %v1853, %v1186
          %v1918 = vmul.f32 %v1854, %v1182
          %v1919 = vmul.f32 %v1855, %v1186
          %v1920 = vmul.f32 %v1856, %v1182
          %v1921 = vmul.f32 %v1857, %v1186
          %v1922 = vmul.f32 %v1858, %v1182
          %v1923 = vmul.f32 %v1859, %v1186
          %v1924 = vmul.f32 %v1860, %v1182
          %v1925 = vmul.f32 %v1861, %v1186
          %v1926 = vmul.f32 %v1862, %v1182
          %v1927 = vmul.f32 %v1863, %v1186
          %v1928 = vmul.f32 %v1864, %v1182
          %v1929 = vmul.f32 %v1865, %v1186
          %v1930 = vmul.f32 %v1866, %v1182
          %v1931 = vmul.f32 %v1867, %v1186
          %v1932 = vmul.f32 %v1868, %v1182
          %v1933 = vmul.f32 %v1869, %v1186
          %v1934 = vmul.f32 %v1870, %v1182
          %v1935 = vmul.f32 %v1871, %v1186
          %v1936 = vmul.f32 %v1872, %v1182
          %v1937 = vmul.f32 %v1873, %v1186
          %v1938 = vmul.f32 %v1874, %v1182
          %v1939 = vmul.f32 %v1875, %v1186
          %v1940 = vmul.f32 %v1876, %v1182
          %v1941 = vmul.f32 %v1877, %v1186
          %v1942 = vmul.f32 %v1878, %v1182
          %v1943 = vmul.f32 %v1879, %v1186
          %v1944 = vmul.f32 %v1880, %v1182
          %v1945 = vmul.f32 %v1881, %v1186
          %v1946 = vmul.f32 %v1882, %v1182
          %v1947 = vmul.f32 %v1883, %v1186
          %v1948 = vmul.f32 %v1884, %v1182
          %v1949 = vmul.f32 %v1885, %v1186
          %v1950 = vmul.f32 %v1886, %v1182
          %v1951 = vmul.f32 %v1887, %v1186
          %v1952 = vmul.f32 %v1888, %v1182
          %v1953 = vmul.f32 %v1889, %v1186
          %v1954 = vmul.f32 %v1890, %v1182
          %v1955 = vmul.f32 %v1891, %v1186
          %v1956 = vmul.f32 %v1892, %v1182
          %v1957 = vmul.f32 %v1893, %v1186
          %v1958 = vmul.f32 %v1894, %v1182
          %v1959 = vmul.f32 %v1895, %v1186
          %v1960 = vmul.f32 %v1896, %v1182
          %v1961 = vmul.f32 %v1897, %v1186
          %v1962 = vmul.f32 %v1898, %v1182
          %v1963 = vmul.f32 %v1899, %v1186
          %v1964 = vmul.f32 %v1900, %v1182
          %v1965 = vmul.f32 %v1901, %v1186
          %v1966 = vmul.f32 %v1902, %v1182
          %v1967 = vmul.f32 %v1903, %v1186
          %v1968 = vadd.f32 %v1904, %v1257
          %v1969 = vadd.f32 %v1905, %v1261
          %v1970 = vadd.f32 %v1906, %v1257
          %v1971 = vadd.f32 %v1907, %v1261
          %v1972 = vadd.f32 %v1908, %v1257
          %v1973 = vadd.f32 %v1909, %v1261
          %v1974 = vadd.f32 %v1910, %v1257
          %v1975 = vadd.f32 %v1911, %v1261
          %v1976 = vadd.f32 %v1912, %v1257
          %v1977 = vadd.f32 %v1913, %v1261
          %v1978 = vadd.f32 %v1914, %v1257
          %v1979 = vadd.f32 %v1915, %v1261
          %v1980 = vadd.f32 %v1916, %v1257
          %v1981 = vadd.f32 %v1917, %v1261
          %v1982 = vadd.f32 %v1918, %v1257
          %v1983 = vadd.f32 %v1919, %v1261
          %v1984 = vadd.f32 %v1920, %v1257
          %v1985 = vadd.f32 %v1921, %v1261
          %v1986 = vadd.f32 %v1922, %v1257
          %v1987 = vadd.f32 %v1923, %v1261
          %v1988 = vadd.f32 %v1924, %v1257
          %v1989 = vadd.f32 %v1925, %v1261
          %v1990 = vadd.f32 %v1926, %v1257
          %v1991 = vadd.f32 %v1927, %v1261
          %v1992 = vadd.f32 %v1928, %v1257
          %v1993 = vadd.f32 %v1929, %v1261
          %v1994 = vadd.f32 %v1930, %v1257
          %v1995 = vadd.f32 %v1931, %v1261
          %v1996 = vadd.f32 %v1932, %v1257
          %v1997 = vadd.f32 %v1933, %v1261
          %v1998 = vadd.f32 %v1934, %v1257
          %v1999 = vadd.f32 %v1935, %v1261
          %v2000 = vadd.f32 %v1936, %v1257
          %v2001 = vadd.f32 %v1937, %v1261
          %v2002 = vadd.f32 %v1938, %v1257
          %v2003 = vadd.f32 %v1939, %v1261
          %v2004 = vadd.f32 %v1940, %v1257
          %v2005 = vadd.f32 %v1941, %v1261
          %v2006 = vadd.f32 %v1942, %v1257
          %v2007 = vadd.f32 %v1943, %v1261
          %v2008 = vadd.f32 %v1944, %v1257
          %v2009 = vadd.f32 %v1945, %v1261
          %v2010 = vadd.f32 %v1946, %v1257
          %v2011 = vadd.f32 %v1947, %v1261
          %v2012 = vadd.f32 %v1948, %v1257
          %v2013 = vadd.f32 %v1949, %v1261
          %v2014 = vadd.f32 %v1950, %v1257
          %v2015 = vadd.f32 %v1951, %v1261
          %v2016 = vadd.f32 %v1952, %v1257
          %v2017 = vadd.f32 %v1953, %v1261
          %v2018 = vadd.f32 %v1954, %v1257
          %v2019 = vadd.f32 %v1955, %v1261
          %v2020 = vadd.f32 %v1956, %v1257
          %v2021 = vadd.f32 %v1957, %v1261
          %v2022 = vadd.f32 %v1958, %v1257
          %v2023 = vadd.f32 %v1959, %v1261
          %v2024 = vadd.f32 %v1960, %v1257
          %v2025 = vadd.f32 %v1961, %v1261
          %v2026 = vadd.f32 %v1962, %v1257
          %v2027 = vadd.f32 %v1963, %v1261
          %v2028 = vadd.f32 %v1964, %v1257
          %v2029 = vadd.f32 %v1965, %v1261
          %v2030 = vadd.f32 %v1966, %v1257
          %v2031 = vadd.f32 %v1967, %v1261
          %v2032 = vld [vmem:[%s6] sm:$0xff]
          %v2033 = vld [vmem:[%s6 + $0x8] sm:$0xff]
          %v2034 = vld [vmem:[%s6 + $0x10] sm:$0xff]
          %v2035 = vld [vmem:[%s6 + $0x18] sm:$0xff]
          %v2036 = vld [vmem:[%s6 + $0x20] sm:$0xff]
          %v2037 = vld [vmem:[%s6 + $0x28] sm:$0xff]
          %v2038 = vld [vmem:[%s6 + $0x30] sm:$0xff]
          %v2039 = vld [vmem:[%s6 + $0x38] sm:$0xff]
          %v2040 = vld [vmem:[%s6 + $0x40] sm:$0xff]
          %v2041 = vld [vmem:[%s6 + $0x48] sm:$0xff]
          %v2042 = vld [vmem:[%s6 + $0x50] sm:$0xff]
          %v2043 = vld [vmem:[%s6 + $0x58] sm:$0xff]
          %v2044 = vld [vmem:[%s6 + $0x60] sm:$0xff]
          %v2045 = vld [vmem:[%s6 + $0x68] sm:$0xff]
          %v2046 = vld [vmem:[%s6 + $0x70] sm:$0xff]
          %v2047 = vld [vmem:[%s6 + $0x78] sm:$0xff]
          %v2048 = vld [vmem:[%s6 + $0x80] sm:$0xff]
          %v2049 = vld [vmem:[%s6 + $0x88] sm:$0xff]
          %v2050 = vld [vmem:[%s6 + $0x90] sm:$0xff]
          %v2051 = vld [vmem:[%s6 + $0x98] sm:$0xff]
          %v2052 = vld [vmem:[%s6 + $0xa0] sm:$0xff]
          %v2053 = vld [vmem:[%s6 + $0xa8] sm:$0xff]
          %v2054 = vld [vmem:[%s6 + $0xb0] sm:$0xff]
          %v2055 = vld [vmem:[%s6 + $0xb8] sm:$0xff]
          %v2056 = vld [vmem:[%s6 + $0xc0] sm:$0xff]
          %v2057 = vld [vmem:[%s6 + $0xc8] sm:$0xff]
          %v2058 = vld [vmem:[%s6 + $0xd0] sm:$0xff]
          %v2059 = vld [vmem:[%s6 + $0xd8] sm:$0xff]
          %v2060 = vld [vmem:[%s6 + $0xe0] sm:$0xff]
          %v2061 = vld [vmem:[%s6 + $0xe8] sm:$0xff]
          %v2062 = vld [vmem:[%s6 + $0xf0] sm:$0xff]
          %v2063 = vld [vmem:[%s6 + $0xf8] sm:$0xff]
          %v2064 = vld [vmem:[#allocation11] sm:$0x1]
          %v2066 = vlaneseq
          %v2067 = vshrl.u32 %v2066, 7
          %v2068 = vsub.s32 0, %v2067
          %v2069 = vrot.slane %v2064, %v2068
          %2071 = vmatprep.subr.mxu0 0.0
          %2072 = vmatpush1.msra.mxu0 %v2032
          %2073 = vmatprep.subr.mxu0 0.0
          %2074 = vmatpush1.msra.mxu0 %v2033
          %2075 = vmatprep.subr.mxu0 0.0
          %2076 = vmatpush1.msra.mxu0 %v2034
          %2077 = vmatprep.subr.mxu0 0.0
          %2078 = vmatpush1.msra.mxu0 %v2035
          %2079 = vmatprep.subr.mxu0 0.0
          %2080 = vmatpush1.msra.mxu0 %v2036
          %2081 = vmatprep.subr.mxu0 0.0
          %2082 = vmatpush1.msra.mxu0 %v2037
          %2083 = vmatprep.subr.mxu0 0.0
          %2084 = vmatpush1.msra.mxu0 %v2038
          %2085 = vmatprep.subr.mxu0 0.0
          %2086 = vmatpush1.msra.mxu0 %v2039
          %2087 = vmatprep.subr.mxu0 0.0
          %2088 = vmatpush1.msra.mxu0 %v2040
          %2089 = vmatprep.subr.mxu0 0.0
          %2090 = vmatpush1.msra.mxu0 %v2041
          %2091 = vmatprep.subr.mxu0 0.0
          %2092 = vmatpush1.msra.mxu0 %v2042
          %2093 = vmatprep.subr.mxu0 0.0
          %2094 = vmatpush1.msra.mxu0 %v2043
          %2095 = vmatprep.subr.mxu0 0.0
          %2096 = vmatpush1.msra.mxu0 %v2044
          %2097 = vmatprep.subr.mxu0 0.0
          %2098 = vmatpush1.msra.mxu0 %v2045
          %2099 = vmatprep.subr.mxu0 0.0
          %2100 = vmatpush1.msra.mxu0 %v2046
          %2101 = vmatprep.subr.mxu0 0.0
          %2102 = vmatpush1.msra.mxu0 %v2047
          %2103 = vmatprep.subr.mxu0 0.0
          %2104 = vmatpush1.msra.mxu0 %v2048
          %2105 = vmatprep.subr.mxu0 0.0
          %2106 = vmatpush1.msra.mxu0 %v2049
          %2107 = vmatprep.subr.mxu0 0.0
          %2108 = vmatpush1.msra.mxu0 %v2050
          %2109 = vmatprep.subr.mxu0 0.0
          %2110 = vmatpush1.msra.mxu0 %v2051
          %2111 = vmatprep.subr.mxu0 0.0
          %2112 = vmatpush1.msra.mxu0 %v2052
          %2113 = vmatprep.subr.mxu0 0.0
          %2114 = vmatpush1.msra.mxu0 %v2053
          %2115 = vmatprep.subr.mxu0 0.0
          %2116 = vmatpush1.msra.mxu0 %v2054
          %2117 = vmatprep.subr.mxu0 0.0
          %2118 = vmatpush1.msra.mxu0 %v2055
          %2119 = vmatprep.subr.mxu0 0.0
          %2120 = vmatpush1.msra.mxu0 %v2056
          %2121 = vmatprep.subr.mxu0 0.0
          %2122 = vmatpush1.msra.mxu0 %v2057
          %2123 = vmatprep.subr.mxu0 0.0
          %2124 = vmatpush1.msra.mxu0 %v2058
          %2125 = vmatprep.subr.mxu0 0.0
          %2126 = vmatpush1.msra.mxu0 %v2059
          %2127 = vmatprep.subr.mxu0 0.0
          %2128 = vmatpush1.msra.mxu0 %v2060
          %2129 = vmatprep.subr.mxu0 0.0
          %2130 = vmatpush1.msra.mxu0 %v2061
          %2131 = vmatprep.subr.mxu0 0.0
          %2132 = vmatpush1.msra.mxu0 %v2062
          %2133 = vmatprep.subr.mxu0 0.0
          %2134 = vmatpush1.msra.mxu0 %v2063
          %2135 = vmatprep.mubr.f32.mxu0 %v1265
          %2136 = vmatmul.mubr.f32.gmra.mrb[0].mxu0 %v1264
          %v2137 = vpop.f32.mrb[0].mxu0
          %v2138 = vadd.f32 %v2069, %v2137
          %v2139 = vpop.f32.mrb[0].mxu0
          %2140 = vmatprep.mubr.f32.mxu0 %v1267
          %2141 = vmatmul.mubr.f32.gmra.mrb[0].mxu0 %v1266
          %v2142 = vpop.f32.mrb[0].mxu0
          %v2143 = vadd.f32 %v2069, %v2142
          %v2144 = vpop.f32.mrb[0].mxu0
          %2145 = vmatprep.mubr.f32.mxu0 %v1269
          %2146 = vmatmul.mubr.f32.gmra.mrb[0].mxu0 %v1268
          %v2147 = vpop.f32.mrb[0].mxu0
          %v2148 = vadd.f32 %v2069, %v2147
          %v2149 = vpop.f32.mrb[0].mxu0
          %2150 = vmatprep.mubr.f32.mxu0 %v1271
          %2151 = vmatmul.mubr.f32.gmra.mrb[0].mxu0 %v1270
          %v2152 = vpop.f32.mrb[0].mxu0
          %v2153 = vadd.f32 %v2069, %v2152
          %v2154 = vpop.f32.mrb[0].mxu0
          %2155 = vmatprep.mubr.f32.mxu0 %v1273
          %2156 = vmatmul.mubr.f32.gmra.mrb[0].mxu0 %v1272
          %v2157 = vpop.f32.mrb[0].mxu0
          %v2158 = vadd.f32 %v2069, %v2157
          %v2159 = vpop.f32.mrb[0].mxu0
          %2160 = vmatprep.mubr.f32.mxu0 %v1275
          %2161 = vmatmul.mubr.f32.gmra.mrb[0].mxu0 %v1274
          %v2162 = vpop.f32.mrb[0].mxu0
          %v2163 = vadd.f32 %v2069, %v2162
          %v2164 = vpop.f32.mrb[0].mxu0
          %2165 = vmatprep.mubr.f32.mxu0 %v1277
          %2166 = vmatmul.mubr.f32.gmra.mrb[0].mxu0 %v1276
          %v2167 = vpop.f32.mrb[0].mxu0
          %v2168 = vadd.f32 %v2069, %v2167
          %v2169 = vpop.f32.mrb[0].mxu0
          %2170 = vmatprep.mubr.f32.mxu0 %v1279
          %2171 = vmatmul.mubr.f32.gmra.mrb[0].mxu0 %v1278
          %v2172 = vpop.f32.mrb[0].mxu0
          %v2173 = vadd.f32 %v2069, %v2172
          %v2174 = vpop.f32.mrb[0].mxu0
          %2175 = vmatprep.mubr.f32.mxu0 %v1281
          %2176 = vmatmul.mubr.f32.gmra.mrb[0].mxu0 %v1280
          %v2177 = vpop.f32.mrb[0].mxu0
          %v2178 = vadd.f32 %v2069, %v2177
          %v2179 = vpop.f32.mrb[0].mxu0
          %2180 = vmatprep.mubr.f32.mxu0 %v1283
          %2181 = vmatmul.mubr.f32.gmra.mrb[0].mxu0 %v1282
          %v2182 = vpop.f32.mrb[0].mxu0
          %v2183 = vadd.f32 %v2069, %v2182
          %v2184 = vpop.f32.mrb[0].mxu0
          %2185 = vmatprep.mubr.f32.mxu0 %v1285
          %2186 = vmatmul.mubr.f32.gmra.mrb[0].mxu0 %v1284
          %v2187 = vpop.f32.mrb[0].mxu0
          %v2188 = vadd.f32 %v2069, %v2187
          %v2189 = vpop.f32.mrb[0].mxu0
          %2190 = vmatprep.mubr.f32.mxu0 %v1287
          %2191 = vmatmul.mubr.f32.gmra.mrb[0].mxu0 %v1286
          %v2192 = vpop.f32.mrb[0].mxu0
          %v2193 = vadd.f32 %v2069, %v2192
          %v2194 = vpop.f32.mrb[0].mxu0
          %2195 = vmatprep.mubr.f32.mxu0 %v1289
          %2196 = vmatmul.mubr.f32.gmra.mrb[0].mxu0 %v1288
          %v2197 = vpop.f32.mrb[0].mxu0
          %v2198 = vadd.f32 %v2069, %v2197
          %v2199 = vpop.f32.mrb[0].mxu0
          %2200 = vmatprep.mubr.f32.mxu0 %v1291
          %2201 = vmatmul.mubr.f32.gmra.mrb[0].mxu0 %v1290
          %v2202 = vpop.f32.mrb[0].mxu0
          %v2203 = vadd.f32 %v2069, %v2202
          %v2204 = vpop.f32.mrb[0].mxu0
          %2205 = vmatprep.mubr.f32.mxu0 %v1293
          %2206 = vmatmul.mubr.f32.gmra.mrb[0].mxu0 %v1292
          %v2207 = vpop.f32.mrb[0].mxu0
          %v2208 = vadd.f32 %v2069, %v2207
          %v2209 = vpop.f32.mrb[0].mxu0
          %2210 = vmatprep.mubr.f32.mxu0 %v1295
          %2211 = vmatmul.mubr.f32.gmra.mrb[0].mxu0 %v1294
          %v2212 = vpop.f32.mrb[0].mxu0
          %v2213 = vadd.f32 %v2069, %v2212
          %v2214 = vpop.f32.mrb[0].mxu0
          %2215 = vmatprep.mubr.f32.mxu0 %v1297
          %2216 = vmatmul.mubr.f32.gmra.mrb[0].mxu0 %v1296
          %v2217 = vpop.f32.mrb[0].mxu0
          %v2218 = vadd.f32 %v2069, %v2217
          %v2219 = vpop.f32.mrb[0].mxu0
          %2220 = vmatprep.mubr.f32.mxu0 %v1299
          %2221 = vmatmul.mubr.f32.gmra.mrb[0].mxu0 %v1298
          %v2222 = vpop.f32.mrb[0].mxu0
          %v2223 = vadd.f32 %v2069, %v2222
          %v2224 = vpop.f32.mrb[0].mxu0
          %2225 = vmatprep.mubr.f32.mxu0 %v1301
          %2226 = vmatmul.mubr.f32.gmra.mrb[0].mxu0 %v1300
          %v2227 = vpop.f32.mrb[0].mxu0
          %v2228 = vadd.f32 %v2069, %v2227
          %v2229 = vpop.f32.mrb[0].mxu0
          %2230 = vmatprep.mubr.f32.mxu0 %v1303
          %2231 = vmatmul.mubr.f32.gmra.mrb[0].mxu0 %v1302
          %v2232 = vpop.f32.mrb[0].mxu0
          %v2233 = vadd.f32 %v2069, %v2232
          %v2234 = vpop.f32.mrb[0].mxu0
          %2235 = vmatprep.mubr.f32.mxu0 %v1305
          %2236 = vmatmul.mubr.f32.gmra.mrb[0].mxu0 %v1304
          %v2237 = vpop.f32.mrb[0].mxu0
          %v2238 = vadd.f32 %v2069, %v2237
          %v2239 = vpop.f32.mrb[0].mxu0
          %2240 = vmatprep.mubr.f32.mxu0 %v1307
          %2241 = vmatmul.mubr.f32.gmra.mrb[0].mxu0 %v1306
          %v2242 = vpop.f32.mrb[0].mxu0
          %v2243 = vadd.f32 %v2069, %v2242
          %v2244 = vpop.f32.mrb[0].mxu0
          %2245 = vmatprep.mubr.f32.mxu0 %v1309
          %2246 = vmatmul.mubr.f32.gmra.mrb[0].mxu0 %v1308
          %v2247 = vpop.f32.mrb[0].mxu0
          %v2248 = vadd.f32 %v2069, %v2247
          %v2249 = vpop.f32.mrb[0].mxu0
          %2250 = vmatprep.mubr.f32.mxu0 %v1311
          %2251 = vmatmul.mubr.f32.gmra.mrb[0].mxu0 %v1310
          %v2252 = vpop.f32.mrb[0].mxu0
          %v2253 = vadd.f32 %v2069, %v2252
          %v2254 = vpop.f32.mrb[0].mxu0
          %2255 = vmatprep.mubr.f32.mxu0 %v1313
          %2256 = vmatmul.mubr.f32.gmra.mrb[0].mxu0 %v1312
          %v2257 = vpop.f32.mrb[0].mxu0
          %v2258 = vadd.f32 %v2069, %v2257
          %v2259 = vpop.f32.mrb[0].mxu0
          %2260 = vmatprep.mubr.f32.mxu0 %v1315
          %2261 = vmatmul.mubr.f32.gmra.mrb[0].mxu0 %v1314
          %v2262 = vpop.f32.mrb[0].mxu0
          %v2263 = vadd.f32 %v2069, %v2262
          %v2264 = vpop.f32.mrb[0].mxu0
          %2265 = vmatprep.mubr.f32.mxu0 %v1317
          %2266 = vmatmul.mubr.f32.gmra.mrb[0].mxu0 %v1316
          %v2267 = vpop.f32.mrb[0].mxu0
          %v2268 = vadd.f32 %v2069, %v2267
          %v2269 = vpop.f32.mrb[0].mxu0
          %2270 = vmatprep.mubr.f32.mxu0 %v1319
          %2271 = vmatmul.mubr.f32.gmra.mrb[0].mxu0 %v1318
          %v2272 = vpop.f32.mrb[0].mxu0
          %v2273 = vadd.f32 %v2069, %v2272
          %v2274 = vpop.f32.mrb[0].mxu0
          %2275 = vmatprep.mubr.f32.mxu0 %v1321
          %2276 = vmatmul.mubr.f32.gmra.mrb[0].mxu0 %v1320
          %v2277 = vpop.f32.mrb[0].mxu0
          %v2278 = vadd.f32 %v2069, %v2277
          %v2279 = vpop.f32.mrb[0].mxu0
          %2280 = vmatprep.mubr.f32.mxu0 %v1323
          %2281 = vmatmul.mubr.f32.gmra.mrb[0].mxu0 %v1322
          %v2282 = vpop.f32.mrb[0].mxu0
          %v2283 = vadd.f32 %v2069, %v2282
          %v2284 = vpop.f32.mrb[0].mxu0
          %2285 = vmatprep.mubr.f32.mxu0 %v1325
          %2286 = vmatmul.mubr.f32.gmra.mrb[0].mxu0 %v1324
          %v2287 = vpop.f32.mrb[0].mxu0
          %v2288 = vadd.f32 %v2069, %v2287
          %v2289 = vpop.f32.mrb[0].mxu0
          %2290 = vmatprep.mubr.f32.mxu0 %v1327
          %2291 = vmatmul.mubr.f32.gmra.mrb[0].mxu0 %v1326
          %v2292 = vpop.f32.mrb[0].mxu0
          %v2293 = vadd.f32 %v2069, %v2292
          %v2294 = vpop.f32.mrb[0].mxu0
          %2295 = vdwg.mxu0
          %vm2296 = vcmask 523264
          %2297 = vst.msk [vmem:[#allocation3] sm:$0xff] %vm2296, %v2138
          %2298 = vst.msk [vmem:[#allocation3 + $0x8] sm:$0xff] %vm2296, %v2143
          %2299 = vst.msk [vmem:[#allocation3 + $0x10] sm:$0xff] %vm2296, %v2148
          %2300 = vst.msk [vmem:[#allocation3 + $0x18] sm:$0xff] %vm2296, %v2153
          %2301 = vst.msk [vmem:[#allocation3 + $0x20] sm:$0xff] %vm2296, %v2158
          %2302 = vst.msk [vmem:[#allocation3 + $0x28] sm:$0xff] %vm2296, %v2163
          %2303 = vst.msk [vmem:[#allocation3 + $0x30] sm:$0xff] %vm2296, %v2168
          %2304 = vst.msk [vmem:[#allocation3 + $0x38] sm:$0xff] %vm2296, %v2173
          %2305 = vst.msk [vmem:[#allocation3 + $0x40] sm:$0xff] %vm2296, %v2178
          %2306 = vst.msk [vmem:[#allocation3 + $0x48] sm:$0xff] %vm2296, %v2183
          %2307 = vst.msk [vmem:[#allocation3 + $0x50] sm:$0xff] %vm2296, %v2188
          %2308 = vst.msk [vmem:[#allocation3 + $0x58] sm:$0xff] %vm2296, %v2193
          %2309 = vst.msk [vmem:[#allocation3 + $0x60] sm:$0xff] %vm2296, %v2198
          %2310 = vst.msk [vmem:[#allocation3 + $0x68] sm:$0xff] %vm2296, %v2203
          %2311 = vst.msk [vmem:[#allocation3 + $0x70] sm:$0xff] %vm2296, %v2208
          %2312 = vst.msk [vmem:[#allocation3 + $0x78] sm:$0xff] %vm2296, %v2213
          %2313 = vst.msk [vmem:[#allocation3 + $0x80] sm:$0xff] %vm2296, %v2218
          %2314 = vst.msk [vmem:[#allocation3 + $0x88] sm:$0xff] %vm2296, %v2223
          %2315 = vst.msk [vmem:[#allocation3 + $0x90] sm:$0xff] %vm2296, %v2228
          %2316 = vst.msk [vmem:[#allocation3 + $0x98] sm:$0xff] %vm2296, %v2233
          %2317 = vst.msk [vmem:[#allocation3 + $0xa0] sm:$0xff] %vm2296, %v2238
          %2318 = vst.msk [vmem:[#allocation3 + $0xa8] sm:$0xff] %vm2296, %v2243
          %2319 = vst.msk [vmem:[#allocation3 + $0xb0] sm:$0xff] %vm2296, %v2248
          %2320 = vst.msk [vmem:[#allocation3 + $0xb8] sm:$0xff] %vm2296, %v2253
          %2321 = vst.msk [vmem:[#allocation3 + $0xc0] sm:$0xff] %vm2296, %v2258
          %2322 = vst.msk [vmem:[#allocation3 + $0xc8] sm:$0xff] %vm2296, %v2263
          %2323 = vst.msk [vmem:[#allocation3 + $0xd0] sm:$0xff] %vm2296, %v2268
          %2324 = vst.msk [vmem:[#allocation3 + $0xd8] sm:$0xff] %vm2296, %v2273
          %2325 = vst.msk [vmem:[#allocation3 + $0xe0] sm:$0xff] %vm2296, %v2278
          %2326 = vst.msk [vmem:[#allocation3 + $0xe8] sm:$0xff] %vm2296, %v2283
          %2327 = vst.msk [vmem:[#allocation3 + $0xf0] sm:$0xff] %vm2296, %v2288
          %2328 = vst.msk [vmem:[#allocation3 + $0xf8] sm:$0xff] %vm2296, %v2293
          %v2329 = vld [vmem:[%s7] sm:$0xff]
          %v2330 = vld [vmem:[%s7 + $0x8] sm:$0xff]
          %v2331 = vld [vmem:[%s7 + $0x10] sm:$0xff]
          %v2332 = vld [vmem:[%s7 + $0x18] sm:$0xff]
          %v2333 = vld [vmem:[%s7 + $0x20] sm:$0xff]
          %v2334 = vld [vmem:[%s7 + $0x28] sm:$0xff]
          %v2335 = vld [vmem:[%s7 + $0x30] sm:$0xff]
          %v2336 = vld [vmem:[%s7 + $0x38] sm:$0xff]
          %v2337 = vld [vmem:[%s7 + $0x40] sm:$0xff]
          %v2338 = vld [vmem:[%s7 + $0x48] sm:$0xff]
          %v2339 = vld [vmem:[%s7 + $0x50] sm:$0xff]
          %v2340 = vld [vmem:[%s7 + $0x58] sm:$0xff]
          %v2341 = vld [vmem:[%s7 + $0x60] sm:$0xff]
          %v2342 = vld [vmem:[%s7 + $0x68] sm:$0xff]
          %v2343 = vld [vmem:[%s7 + $0x70] sm:$0xff]
          %v2344 = vld [vmem:[%s7 + $0x78] sm:$0xff]
          %v2345 = vld [vmem:[%s7 + $0x80] sm:$0xff]
          %v2346 = vld [vmem:[%s7 + $0x88] sm:$0xff]
          %v2347 = vld [vmem:[%s7 + $0x90] sm:$0xff]
          %v2348 = vld [vmem:[%s7 + $0x98] sm:$0xff]
          %v2349 = vld [vmem:[%s7 + $0xa0] sm:$0xff]
          %v2350 = vld [vmem:[%s7 + $0xa8] sm:$0xff]
          %v2351 = vld [vmem:[%s7 + $0xb0] sm:$0xff]
          %v2352 = vld [vmem:[%s7 + $0xb8] sm:$0xff]
          %v2353 = vld [vmem:[%s7 + $0xc0] sm:$0xff]
          %v2354 = vld [vmem:[%s7 + $0xc8] sm:$0xff]
          %v2355 = vld [vmem:[%s7 + $0xd0] sm:$0xff]
          %v2356 = vld [vmem:[%s7 + $0xd8] sm:$0xff]
          %v2357 = vld [vmem:[%s7 + $0xe0] sm:$0xff]
          %v2358 = vld [vmem:[%s7 + $0xe8] sm:$0xff]
          %v2359 = vld [vmem:[%s7 + $0xf0] sm:$0xff]
          %v2360 = vld [vmem:[%s7 + $0xf8] sm:$0xff]
          %v2361 = vld [vmem:[#allocation13] sm:$0x1]
          %v2363 = vlaneseq
          %v2364 = vshrl.u32 %v2363, 7
          %v2365 = vsub.s32 0, %v2364
          %v2366 = vrot.slane %v2361, %v2365
          %2368 = vmatprep.subr.mxu0 0.0
          %2369 = vmatpush1.msra.mxu0 %v2329
          %2370 = vmatprep.subr.mxu0 0.0
          %2371 = vmatpush1.msra.mxu0 %v2330
          %2372 = vmatprep.subr.mxu0 0.0
          %2373 = vmatpush1.msra.mxu0 %v2331
          %2374 = vmatprep.subr.mxu0 0.0
          %2375 = vmatpush1.msra.mxu0 %v2332
          %2376 = vmatprep.subr.mxu0 0.0
          %2377 = vmatpush1.msra.mxu0 %v2333
          %2378 = vmatprep.subr.mxu0 0.0
          %2379 = vmatpush1.msra.mxu0 %v2334
          %2380 = vmatprep.subr.mxu0 0.0
          %2381 = vmatpush1.msra.mxu0 %v2335
          %2382 = vmatprep.subr.mxu0 0.0
          %2383 = vmatpush1.msra.mxu0 %v2336
          %2384 = vmatprep.subr.mxu0 0.0
          %2385 = vmatpush1.msra.mxu0 %v2337
          %2386 = vmatprep.subr.mxu0 0.0
          %2387 = vmatpush1.msra.mxu0 %v2338
          %2388 = vmatprep.subr.mxu0 0.0
          %2389 = vmatpush1.msra.mxu0 %v2339
          %2390 = vmatprep.subr.mxu0 0.0
          %2391 = vmatpush1.msra.mxu0 %v2340
          %2392 = vmatprep.subr.mxu0 0.0
          %2393 = vmatpush1.msra.mxu0 %v2341
          %2394 = vmatprep.subr.mxu0 0.0
          %2395 = vmatpush1.msra.mxu0 %v2342
          %2396 = vmatprep.subr.mxu0 0.0
          %2397 = vmatpush1.msra.mxu0 %v2343
          %2398 = vmatprep.subr.mxu0 0.0
          %2399 = vmatpush1.msra.mxu0 %v2344
          %2400 = vmatprep.subr.mxu0 0.0
          %2401 = vmatpush1.msra.mxu0 %v2345
          %2402 = vmatprep.subr.mxu0 0.0
          %2403 = vmatpush1.msra.mxu0 %v2346
          %2404 = vmatprep.subr.mxu0 0.0
          %2405 = vmatpush1.msra.mxu0 %v2347
          %2406 = vmatprep.subr.mxu0 0.0
          %2407 = vmatpush1.msra.mxu0 %v2348
          %2408 = vmatprep.subr.mxu0 0.0
          %2409 = vmatpush1.msra.mxu0 %v2349
          %2410 = vmatprep.subr.mxu0 0.0
          %2411 = vmatpush1.msra.mxu0 %v2350
          %2412 = vmatprep.subr.mxu0 0.0
          %2413 = vmatpush1.msra.mxu0 %v2351
          %2414 = vmatprep.subr.mxu0 0.0
          %2415 = vmatpush1.msra.mxu0 %v2352
          %2416 = vmatprep.subr.mxu0 0.0
          %2417 = vmatpush1.msra.mxu0 %v2353
          %2418 = vmatprep.subr.mxu0 0.0
          %2419 = vmatpush1.msra.mxu0 %v2354
          %2420 = vmatprep.subr.mxu0 0.0
          %2421 = vmatpush1.msra.mxu0 %v2355
          %2422 = vmatprep.subr.mxu0 0.0
          %2423 = vmatpush1.msra.mxu0 %v2356
          %2424 = vmatprep.subr.mxu0 0.0
          %2425 = vmatpush1.msra.mxu0 %v2357
          %2426 = vmatprep.subr.mxu0 0.0
          %2427 = vmatpush1.msra.mxu0 %v2358
          %2428 = vmatprep.subr.mxu0 0.0
          %2429 = vmatpush1.msra.mxu0 %v2359
          %2430 = vmatprep.subr.mxu0 0.0
          %2431 = vmatpush1.msra.mxu0 %v2360
          %2432 = vmatprep.mubr.f32.mxu0 %v1969
          %2433 = vmatmul.mubr.f32.gmra.mrb[0].mxu0 %v1968
          %v2434 = vpop.f32.mrb[0].mxu0
          %v2435 = vadd.f32 %v2366, %v2434
          %v2436 = vpop.f32.mrb[0].mxu0
          %2437 = vmatprep.mubr.f32.mxu0 %v1971
          %2438 = vmatmul.mubr.f32.gmra.mrb[0].mxu0 %v1970
          %v2439 = vpop.f32.mrb[0].mxu0
          %v2440 = vadd.f32 %v2366, %v2439
          %v2441 = vpop.f32.mrb[0].mxu0
          %2442 = vmatprep.mubr.f32.mxu0 %v1973
          %2443 = vmatmul.mubr.f32.gmra.mrb[0].mxu0 %v1972
          %v2444 = vpop.f32.mrb[0].mxu0
          %v2445 = vadd.f32 %v2366, %v2444
          %v2446 = vpop.f32.mrb[0].mxu0
          %2447 = vmatprep.mubr.f32.mxu0 %v1975
          %2448 = vmatmul.mubr.f32.gmra.mrb[0].mxu0 %v1974
          %v2449 = vpop.f32.mrb[0].mxu0
          %v2450 = vadd.f32 %v2366, %v2449
          %v2451 = vpop.f32.mrb[0].mxu0
          %2452 = vmatprep.mubr.f32.mxu0 %v1977
          %2453 = vmatmul.mubr.f32.gmra.mrb[0].mxu0 %v1976
          %v2454 = vpop.f32.mrb[0].mxu0
          %v2455 = vadd.f32 %v2366, %v2454
          %v2456 = vpop.f32.mrb[0].mxu0
          %2457 = vmatprep.mubr.f32.mxu0 %v1979
          %2458 = vmatmul.mubr.f32.gmra.mrb[0].mxu0 %v1978
          %v2459 = vpop.f32.mrb[0].mxu0
          %v2460 = vadd.f32 %v2366, %v2459
          %v2461 = vpop.f32.mrb[0].mxu0
          %2462 = vmatprep.mubr.f32.mxu0 %v1981
          %2463 = vmatmul.mubr.f32.gmra.mrb[0].mxu0 %v1980
          %v2464 = vpop.f32.mrb[0].mxu0
          %v2465 = vadd.f32 %v2366, %v2464
          %v2466 = vpop.f32.mrb[0].mxu0
          %2467 = vmatprep.mubr.f32.mxu0 %v1983
          %2468 = vmatmul.mubr.f32.gmra.mrb[0].mxu0 %v1982
          %v2469 = vpop.f32.mrb[0].mxu0
          %v2470 = vadd.f32 %v2366, %v2469
          %v2471 = vpop.f32.mrb[0].mxu0
          %2472 = vmatprep.mubr.f32.mxu0 %v1985
          %2473 = vmatmul.mubr.f32.gmra.mrb[0].mxu0 %v1984
          %v2474 = vpop.f32.mrb[0].mxu0
          %v2475 = vadd.f32 %v2366, %v2474
          %v2476 = vpop.f32.mrb[0].mxu0
          %2477 = vmatprep.mubr.f32.mxu0 %v1987
          %2478 = vmatmul.mubr.f32.gmra.mrb[0].mxu0 %v1986
          %v2479 = vpop.f32.mrb[0].mxu0
          %v2480 = vadd.f32 %v2366, %v2479
          %v2481 = vpop.f32.mrb[0].mxu0
          %2482 = vmatprep.mubr.f32.mxu0 %v1989
          %2483 = vmatmul.mubr.f32.gmra.mrb[0].mxu0 %v1988
          %v2484 = vpop.f32.mrb[0].mxu0
          %v2485 = vadd.f32 %v2366, %v2484
          %v2486 = vpop.f32.mrb[0].mxu0
          %2487 = vmatprep.mubr.f32.mxu0 %v1991
          %2488 = vmatmul.mubr.f32.gmra.mrb[0].mxu0 %v1990
          %v2489 = vpop.f32.mrb[0].mxu0
          %v2490 = vadd.f32 %v2366, %v2489
          %v2491 = vpop.f32.mrb[0].mxu0
          %2492 = vmatprep.mubr.f32.mxu0 %v1993
          %2493 = vmatmul.mubr.f32.gmra.mrb[0].mxu0 %v1992
          %v2494 = vpop.f32.mrb[0].mxu0
          %v2495 = vadd.f32 %v2366, %v2494
          %v2496 = vpop.f32.mrb[0].mxu0
          %2497 = vmatprep.mubr.f32.mxu0 %v1995
          %2498 = vmatmul.mubr.f32.gmra.mrb[0].mxu0 %v1994
          %v2499 = vpop.f32.mrb[0].mxu0
          %v2500 = vadd.f32 %v2366, %v2499
          %v2501 = vpop.f32.mrb[0].mxu0
          %2502 = vmatprep.mubr.f32.mxu0 %v1997
          %2503 = vmatmul.mubr.f32.gmra.mrb[0].mxu0 %v1996
          %v2504 = vpop.f32.mrb[0].mxu0
          %v2505 = vadd.f32 %v2366, %v2504
          %v2506 = vpop.f32.mrb[0].mxu0
          %2507 = vmatprep.mubr.f32.mxu0 %v1999
          %2508 = vmatmul.mubr.f32.gmra.mrb[0].mxu0 %v1998
          %v2509 = vpop.f32.mrb[0].mxu0
          %v2510 = vadd.f32 %v2366, %v2509
          %v2511 = vpop.f32.mrb[0].mxu0
          %2512 = vmatprep.mubr.f32.mxu0 %v2001
          %2513 = vmatmul.mubr.f32.gmra.mrb[0].mxu0 %v2000
          %v2514 = vpop.f32.mrb[0].mxu0
          %v2515 = vadd.f32 %v2366, %v2514
          %v2516 = vpop.f32.mrb[0].mxu0
          %2517 = vmatprep.mubr.f32.mxu0 %v2003
          %2518 = vmatmul.mubr.f32.gmra.mrb[0].mxu0 %v2002
          %v2519 = vpop.f32.mrb[0].mxu0
          %v2520 = vadd.f32 %v2366, %v2519
          %v2521 = vpop.f32.mrb[0].mxu0
          %2522 = vmatprep.mubr.f32.mxu0 %v2005
          %2523 = vmatmul.mubr.f32.gmra.mrb[0].mxu0 %v2004
          %v2524 = vpop.f32.mrb[0].mxu0
          %v2525 = vadd.f32 %v2366, %v2524
          %v2526 = vpop.f32.mrb[0].mxu0
          %2527 = vmatprep.mubr.f32.mxu0 %v2007
          %2528 = vmatmul.mubr.f32.gmra.mrb[0].mxu0 %v2006
          %v2529 = vpop.f32.mrb[0].mxu0
          %v2530 = vadd.f32 %v2366, %v2529
          %v2531 = vpop.f32.mrb[0].mxu0
          %2532 = vmatprep.mubr.f32.mxu0 %v2009
          %2533 = vmatmul.mubr.f32.gmra.mrb[0].mxu0 %v2008
          %v2534 = vpop.f32.mrb[0].mxu0
          %v2535 = vadd.f32 %v2366, %v2534
          %v2536 = vpop.f32.mrb[0].mxu0
          %2537 = vmatprep.mubr.f32.mxu0 %v2011
          %2538 = vmatmul.mubr.f32.gmra.mrb[0].mxu0 %v2010
          %v2539 = vpop.f32.mrb[0].mxu0
          %v2540 = vadd.f32 %v2366, %v2539
          %v2541 = vpop.f32.mrb[0].mxu0
          %2542 = vmatprep.mubr.f32.mxu0 %v2013
          %2543 = vmatmul.mubr.f32.gmra.mrb[0].mxu0 %v2012
          %v2544 = vpop.f32.mrb[0].mxu0
          %v2545 = vadd.f32 %v2366, %v2544
          %v2546 = vpop.f32.mrb[0].mxu0
          %2547 = vmatprep.mubr.f32.mxu0 %v2015
          %2548 = vmatmul.mubr.f32.gmra.mrb[0].mxu0 %v2014
          %v2549 = vpop.f32.mrb[0].mxu0
          %v2550 = vadd.f32 %v2366, %v2549
          %v2551 = vpop.f32.mrb[0].mxu0
          %2552 = vmatprep.mubr.f32.mxu0 %v2017
          %2553 = vmatmul.mubr.f32.gmra.mrb[0].mxu0 %v2016
          %v2554 = vpop.f32.mrb[0].mxu0
          %v2555 = vadd.f32 %v2366, %v2554
          %v2556 = vpop.f32.mrb[0].mxu0
          %2557 = vmatprep.mubr.f32.mxu0 %v2019
          %2558 = vmatmul.mubr.f32.gmra.mrb[0].mxu0 %v2018
          %v2559 = vpop.f32.mrb[0].mxu0
          %v2560 = vadd.f32 %v2366, %v2559
          %v2561 = vpop.f32.mrb[0].mxu0
          %2562 = vmatprep.mubr.f32.mxu0 %v2021
          %2563 = vmatmul.mubr.f32.gmra.mrb[0].mxu0 %v2020
          %v2564 = vpop.f32.mrb[0].mxu0
          %v2565 = vadd.f32 %v2366, %v2564
          %v2566 = vpop.f32.mrb[0].mxu0
          %2567 = vmatprep.mubr.f32.mxu0 %v2023
          %2568 = vmatmul.mubr.f32.gmra.mrb[0].mxu0 %v2022
          %v2569 = vpop.f32.mrb[0].mxu0
          %v2570 = vadd.f32 %v2366, %v2569
          %v2571 = vpop.f32.mrb[0].mxu0
          %2572 = vmatprep.mubr.f32.mxu0 %v2025
          %2573 = vmatmul.mubr.f32.gmra.mrb[0].mxu0 %v2024
          %v2574 = vpop.f32.mrb[0].mxu0
          %v2575 = vadd.f32 %v2366, %v2574
          %v2576 = vpop.f32.mrb[0].mxu0
          %2577 = vmatprep.mubr.f32.mxu0 %v2027
          %2578 = vmatmul.mubr.f32.gmra.mrb[0].mxu0 %v2026
          %v2579 = vpop.f32.mrb[0].mxu0
          %v2580 = vadd.f32 %v2366, %v2579
          %v2581 = vpop.f32.mrb[0].mxu0
          %2582 = vmatprep.mubr.f32.mxu0 %v2029
          %2583 = vmatmul.mubr.f32.gmra.mrb[0].mxu0 %v2028
          %v2584 = vpop.f32.mrb[0].mxu0
          %v2585 = vadd.f32 %v2366, %v2584
          %v2586 = vpop.f32.mrb[0].mxu0
          %2587 = vmatprep.mubr.f32.mxu0 %v2031
          %2588 = vmatmul.mubr.f32.gmra.mrb[0].mxu0 %v2030
          %v2589 = vpop.f32.mrb[0].mxu0
          %v2590 = vadd.f32 %v2366, %v2589
          %v2591 = vpop.f32.mrb[0].mxu0
          %2592 = vdwg.mxu0
          %2593 = vst.msk [vmem:[#allocation4] sm:$0xff] %vm2296, %v2435
          %2594 = vst.msk [vmem:[#allocation4 + $0x8] sm:$0xff] %vm2296, %v2440
          %2595 = vst.msk [vmem:[#allocation4 + $0x10] sm:$0xff] %vm2296, %v2445
          %2596 = vst.msk [vmem:[#allocation4 + $0x18] sm:$0xff] %vm2296, %v2450
          %2597 = vst.msk [vmem:[#allocation4 + $0x20] sm:$0xff] %vm2296, %v2455
          %2598 = vst.msk [vmem:[#allocation4 + $0x28] sm:$0xff] %vm2296, %v2460
          %2599 = vst.msk [vmem:[#allocation4 + $0x30] sm:$0xff] %vm2296, %v2465
          %2600 = vst.msk [vmem:[#allocation4 + $0x38] sm:$0xff] %vm2296, %v2470
          %2601 = vst.msk [vmem:[#allocation4 + $0x40] sm:$0xff] %vm2296, %v2475
          %2602 = vst.msk [vmem:[#allocation4 + $0x48] sm:$0xff] %vm2296, %v2480
          %2603 = vst.msk [vmem:[#allocation4 + $0x50] sm:$0xff] %vm2296, %v2485
          %2604 = vst.msk [vmem:[#allocation4 + $0x58] sm:$0xff] %vm2296, %v2490
          %2605 = vst.msk [vmem:[#allocation4 + $0x60] sm:$0xff] %vm2296, %v2495
          %2606 = vst.msk [vmem:[#allocation4 + $0x68] sm:$0xff] %vm2296, %v2500
          %2607 = vst.msk [vmem:[#allocation4 + $0x70] sm:$0xff] %vm2296, %v2505
          %2608 = vst.msk [vmem:[#allocation4 + $0x78] sm:$0xff] %vm2296, %v2510
          %2609 = vst.msk [vmem:[#allocation4 + $0x80] sm:$0xff] %vm2296, %v2515
          %2610 = vst.msk [vmem:[#allocation4 + $0x88] sm:$0xff] %vm2296, %v2520
          %2611 = vst.msk [vmem:[#allocation4 + $0x90] sm:$0xff] %vm2296, %v2525
          %2612 = vst.msk [vmem:[#allocation4 + $0x98] sm:$0xff] %vm2296, %v2530
          %2613 = vst.msk [vmem:[#allocation4 + $0xa0] sm:$0xff] %vm2296, %v2535
          %2614 = vst.msk [vmem:[#allocation4 + $0xa8] sm:$0xff] %vm2296, %v2540
          %2615 = vst.msk [vmem:[#allocation4 + $0xb0] sm:$0xff] %vm2296, %v2545
          %2616 = vst.msk [vmem:[#allocation4 + $0xb8] sm:$0xff] %vm2296, %v2550
          %2617 = vst.msk [vmem:[#allocation4 + $0xc0] sm:$0xff] %vm2296, %v2555
          %2618 = vst.msk [vmem:[#allocation4 + $0xc8] sm:$0xff] %vm2296, %v2560
          %2619 = vst.msk [vmem:[#allocation4 + $0xd0] sm:$0xff] %vm2296, %v2565
          %2620 = vst.msk [vmem:[#allocation4 + $0xd8] sm:$0xff] %vm2296, %v2570
          %2621 = vst.msk [vmem:[#allocation4 + $0xe0] sm:$0xff] %vm2296, %v2575
          %2622 = vst.msk [vmem:[#allocation4 + $0xe8] sm:$0xff] %vm2296, %v2580
          %2623 = vst.msk [vmem:[#allocation4 + $0xf0] sm:$0xff] %vm2296, %v2585
          %2624 = vst.msk [vmem:[#allocation4 + $0xf8] sm:$0xff] %vm2296, %v2590
          %s2625 = scalar_lea.vmem %s6, 256
          %v2626 = vld [vmem:[%s2625] sm:$0xff]
          %v2627 = vld [vmem:[%s2625 + $0x8] sm:$0xff]
          %v2628 = vld [vmem:[%s2625 + $0x10] sm:$0xff]
          %v2629 = vld [vmem:[%s2625 + $0x18] sm:$0xff]
          %v2630 = vld [vmem:[%s2625 + $0x20] sm:$0xff]
          %v2631 = vld [vmem:[%s2625 + $0x28] sm:$0xff]
          %v2632 = vld [vmem:[%s2625 + $0x30] sm:$0xff]
          %v2633 = vld [vmem:[%s2625 + $0x38] sm:$0xff]
          %v2634 = vld [vmem:[%s2625 + $0x40] sm:$0xff]
          %v2635 = vld [vmem:[%s2625 + $0x48] sm:$0xff]
          %v2636 = vld [vmem:[%s2625 + $0x50] sm:$0xff]
          %v2637 = vld [vmem:[%s2625 + $0x58] sm:$0xff]
          %v2638 = vld [vmem:[%s2625 + $0x60] sm:$0xff]
          %v2639 = vld [vmem:[%s2625 + $0x68] sm:$0xff]
          %v2640 = vld [vmem:[%s2625 + $0x70] sm:$0xff]
          %v2641 = vld [vmem:[%s2625 + $0x78] sm:$0xff]
          %v2642 = vld [vmem:[%s2625 + $0x80] sm:$0xff]
          %v2643 = vld [vmem:[%s2625 + $0x88] sm:$0xff]
          %v2644 = vld [vmem:[%s2625 + $0x90] sm:$0xff]
          %v2645 = vld [vmem:[%s2625 + $0x98] sm:$0xff]
          %v2646 = vld [vmem:[%s2625 + $0xa0] sm:$0xff]
          %v2647 = vld [vmem:[%s2625 + $0xa8] sm:$0xff]
          %v2648 = vld [vmem:[%s2625 + $0xb0] sm:$0xff]
          %v2649 = vld [vmem:[%s2625 + $0xb8] sm:$0xff]
          %v2650 = vld [vmem:[%s2625 + $0xc0] sm:$0xff]
          %v2651 = vld [vmem:[%s2625 + $0xc8] sm:$0xff]
          %v2652 = vld [vmem:[%s2625 + $0xd0] sm:$0xff]
          %v2653 = vld [vmem:[%s2625 + $0xd8] sm:$0xff]
          %v2654 = vld [vmem:[%s2625 + $0xe0] sm:$0xff]
          %v2655 = vld [vmem:[%s2625 + $0xe8] sm:$0xff]
          %v2656 = vld [vmem:[%s2625 + $0xf0] sm:$0xff]
          %v2657 = vld [vmem:[%s2625 + $0xf8] sm:$0xff]
          %s2658 = scalar_lea.vmem [#allocation11], 1
          %v2659 = vld [vmem:[%s2658] sm:$0x1]
          %v2661 = vlaneseq
          %v2662 = vshrl.u32 %v2661, 7
          %v2663 = vsub.s32 0, %v2662
          %v2664 = vrot.slane %v2659, %v2663
          %2666 = vmatprep.subr.mxu0 0.0
          %2667 = vmatpush1.msra.mxu0 %v2626
          %2668 = vmatprep.subr.mxu0 0.0
          %2669 = vmatpush1.msra.mxu0 %v2627
          %2670 = vmatprep.subr.mxu0 0.0
          %2671 = vmatpush1.msra.mxu0 %v2628
          %2672 = vmatprep.subr.mxu0 0.0
          %2673 = vmatpush1.msra.mxu0 %v2629
          %2674 = vmatprep.subr.mxu0 0.0
          %2675 = vmatpush1.msra.mxu0 %v2630
          %2676 = vmatprep.subr.mxu0 0.0
          %2677 = vmatpush1.msra.mxu0 %v2631
          %2678 = vmatprep.subr.mxu0 0.0
          %2679 = vmatpush1.msra.mxu0 %v2632
          %2680 = vmatprep.subr.mxu0 0.0
          %2681 = vmatpush1.msra.mxu0 %v2633
          %2682 = vmatprep.subr.mxu0 0.0
          %2683 = vmatpush1.msra.mxu0 %v2634
          %2684 = vmatprep.subr.mxu0 0.0
          %2685 = vmatpush1.msra.mxu0 %v2635
          %2686 = vmatprep.subr.mxu0 0.0
          %2687 = vmatpush1.msra.mxu0 %v2636
          %2688 = vmatprep.subr.mxu0 0.0
          %2689 = vmatpush1.msra.mxu0 %v2637
          %2690 = vmatprep.subr.mxu0 0.0
          %2691 = vmatpush1.msra.mxu0 %v2638
          %2692 = vmatprep.subr.mxu0 0.0
          %2693 = vmatpush1.msra.mxu0 %v2639
          %2694 = vmatprep.subr.mxu0 0.0
          %2695 = vmatpush1.msra.mxu0 %v2640
          %2696 = vmatprep.subr.mxu0 0.0
          %2697 = vmatpush1.msra.mxu0 %v2641
          %2698 = vmatprep.subr.mxu0 0.0
          %2699 = vmatpush1.msra.mxu0 %v2642
          %2700 = vmatprep.subr.mxu0 0.0
          %2701 = vmatpush1.msra.mxu0 %v2643
          %2702 = vmatprep.subr.mxu0 0.0
          %2703 = vmatpush1.msra.mxu0 %v2644
          %2704 = vmatprep.subr.mxu0 0.0
          %2705 = vmatpush1.msra.mxu0 %v2645
          %2706 = vmatprep.subr.mxu0 0.0
          %2707 = vmatpush1.msra.mxu0 %v2646
          %2708 = vmatprep.subr.mxu0 0.0
          %2709 = vmatpush1.msra.mxu0 %v2647
          %2710 = vmatprep.subr.mxu0 0.0
          %2711 = vmatpush1.msra.mxu0 %v2648
          %2712 = vmatprep.subr.mxu0 0.0
          %2713 = vmatpush1.msra.mxu0 %v2649
          %2714 = vmatprep.subr.mxu0 0.0
          %2715 = vmatpush1.msra.mxu0 %v2650
          %2716 = vmatprep.subr.mxu0 0.0
          %2717 = vmatpush1.msra.mxu0 %v2651
          %2718 = vmatprep.subr.mxu0 0.0
          %2719 = vmatpush1.msra.mxu0 %v2652
          %2720 = vmatprep.subr.mxu0 0.0
          %2721 = vmatpush1.msra.mxu0 %v2653
          %2722 = vmatprep.subr.mxu0 0.0
          %2723 = vmatpush1.msra.mxu0 %v2654
          %2724 = vmatprep.subr.mxu0 0.0
          %2725 = vmatpush1.msra.mxu0 %v2655
          %2726 = vmatprep.subr.mxu0 0.0
          %2727 = vmatpush1.msra.mxu0 %v2656
          %2728 = vmatprep.subr.mxu0 0.0
          %2729 = vmatpush1.msra.mxu0 %v2657
          %2730 = vmatprep.mubr.f32.mxu0 %v1265
          %2731 = vmatmul.mubr.f32.gmra.mrb[0].mxu0 %v1264
          %v2732 = vpop.f32.mrb[0].mxu0
          %v2733 = vadd.f32 %v2664, %v2732
          %v2734 = vpop.f32.mrb[0].mxu0
          %2735 = vmatprep.mubr.f32.mxu0 %v1267
          %2736 = vmatmul.mubr.f32.gmra.mrb[0].mxu0 %v1266
          %v2737 = vpop.f32.mrb[0].mxu0
          %v2738 = vadd.f32 %v2664, %v2737
          %v2739 = vpop.f32.mrb[0].mxu0
          %2740 = vmatprep.mubr.f32.mxu0 %v1269
          %2741 = vmatmul.mubr.f32.gmra.mrb[0].mxu0 %v1268
          %v2742 = vpop.f32.mrb[0].mxu0
          %v2743 = vadd.f32 %v2664, %v2742
          %v2744 = vpop.f32.mrb[0].mxu0
          %2745 = vmatprep.mubr.f32.mxu0 %v1271
          %2746 = vmatmul.mubr.f32.gmra.mrb[0].mxu0 %v1270
          %v2747 = vpop.f32.mrb[0].mxu0
          %v2748 = vadd.f32 %v2664, %v2747
          %v2749 = vpop.f32.mrb[0].mxu0
          %2750 = vmatprep.mubr.f32.mxu0 %v1273
          %2751 = vmatmul.mubr.f32.gmra.mrb[0].mxu0 %v1272
          %v2752 = vpop.f32.mrb[0].mxu0
          %v2753 = vadd.f32 %v2664, %v2752
          %v2754 = vpop.f32.mrb[0].mxu0
          %2755 = vmatprep.mubr.f32.mxu0 %v1275
          %2756 = vmatmul.mubr.f32.gmra.mrb[0].mxu0 %v1274
          %v2757 = vpop.f32.mrb[0].mxu0
          %v2758 = vadd.f32 %v2664, %v2757
          %v2759 = vpop.f32.mrb[0].mxu0
          %2760 = vmatprep.mubr.f32.mxu0 %v1277
          %2761 = vmatmul.mubr.f32.gmra.mrb[0].mxu0 %v1276
          %v2762 = vpop.f32.mrb[0].mxu0
          %v2763 = vadd.f32 %v2664, %v2762
          %v2764 = vpop.f32.mrb[0].mxu0
          %2765 = vmatprep.mubr.f32.mxu0 %v1279
          %2766 = vmatmul.mubr.f32.gmra.mrb[0].mxu0 %v1278
          %v2767 = vpop.f32.mrb[0].mxu0
          %v2768 = vadd.f32 %v2664, %v2767
          %v2769 = vpop.f32.mrb[0].mxu0
          %2770 = vmatprep.mubr.f32.mxu0 %v1281
          %2771 = vmatmul.mubr.f32.gmra.mrb[0].mxu0 %v1280
          %v2772 = vpop.f32.mrb[0].mxu0
          %v2773 = vadd.f32 %v2664, %v2772
          %v2774 = vpop.f32.mrb[0].mxu0
          %2775 = vmatprep.mubr.f32.mxu0 %v1283
          %2776 = vmatmul.mubr.f32.gmra.mrb[0].mxu0 %v1282
          %v2777 = vpop.f32.mrb[0].mxu0
          %v2778 = vadd.f32 %v2664, %v2777
          %v2779 = vpop.f32.mrb[0].mxu0
          %2780 = vmatprep.mubr.f32.mxu0 %v1285
          %2781 = vmatmul.mubr.f32.gmra.mrb[0].mxu0 %v1284
          %v2782 = vpop.f32.mrb[0].mxu0
          %v2783 = vadd.f32 %v2664, %v2782
          %v2784 = vpop.f32.mrb[0].mxu0
          %2785 = vmatprep.mubr.f32.mxu0 %v1287
          %2786 = vmatmul.mubr.f32.gmra.mrb[0].mxu0 %v1286
          %v2787 = vpop.f32.mrb[0].mxu0
          %v2788 = vadd.f32 %v2664, %v2787
          %v2789 = vpop.f32.mrb[0].mxu0
          %2790 = vmatprep.mubr.f32.mxu0 %v1289
          %2791 = vmatmul.mubr.f32.gmra.mrb[0].mxu0 %v1288
          %v2792 = vpop.f32.mrb[0].mxu0
          %v2793 = vadd.f32 %v2664, %v2792
          %v2794 = vpop.f32.mrb[0].mxu0
          %2795 = vmatprep.mubr.f32.mxu0 %v1291
          %2796 = vmatmul.mubr.f32.gmra.mrb[0].mxu0 %v1290
          %v2797 = vpop.f32.mrb[0].mxu0
          %v2798 = vadd.f32 %v2664, %v2797
          %v2799 = vpop.f32.mrb[0].mxu0
          %2800 = vmatprep.mubr.f32.mxu0 %v1293
          %2801 = vmatmul.mubr.f32.gmra.mrb[0].mxu0 %v1292
          %v2802 = vpop.f32.mrb[0].mxu0
          %v2803 = vadd.f32 %v2664, %v2802
          %v2804 = vpop.f32.mrb[0].mxu0
          %2805 = vmatprep.mubr.f32.mxu0 %v1295
          %2806 = vmatmul.mubr.f32.gmra.mrb[0].mxu0 %v1294
          %v2807 = vpop.f32.mrb[0].mxu0
          %v2808 = vadd.f32 %v2664, %v2807
          %v2809 = vpop.f32.mrb[0].mxu0
          %2810 = vmatprep.mubr.f32.mxu0 %v1297
          %2811 = vmatmul.mubr.f32.gmra.mrb[0].mxu0 %v1296
          %v2812 = vpop.f32.mrb[0].mxu0
          %v2813 = vadd.f32 %v2664, %v2812
          %v2814 = vpop.f32.mrb[0].mxu0
          %2815 = vmatprep.mubr.f32.mxu0 %v1299
          %2816 = vmatmul.mubr.f32.gmra.mrb[0].mxu0 %v1298
          %v2817 = vpop.f32.mrb[0].mxu0
          %v2818 = vadd.f32 %v2664, %v2817
          %v2819 = vpop.f32.mrb[0].mxu0
          %2820 = vmatprep.mubr.f32.mxu0 %v1301
          %2821 = vmatmul.mubr.f32.gmra.mrb[0].mxu0 %v1300
          %v2822 = vpop.f32.mrb[0].mxu0
          %v2823 = vadd.f32 %v2664, %v2822
          %v2824 = vpop.f32.mrb[0].mxu0
          %2825 = vmatprep.mubr.f32.mxu0 %v1303
          %2826 = vmatmul.mubr.f32.gmra.mrb[0].mxu0 %v1302
          %v2827 = vpop.f32.mrb[0].mxu0
          %v2828 = vadd.f32 %v2664, %v2827
          %v2829 = vpop.f32.mrb[0].mxu0
          %2830 = vmatprep.mubr.f32.mxu0 %v1305
          %2831 = vmatmul.mubr.f32.gmra.mrb[0].mxu0 %v1304
          %v2832 = vpop.f32.mrb[0].mxu0
          %v2833 = vadd.f32 %v2664, %v2832
          %v2834 = vpop.f32.mrb[0].mxu0
          %2835 = vmatprep.mubr.f32.mxu0 %v1307
          %2836 = vmatmul.mubr.f32.gmra.mrb[0].mxu0 %v1306
          %v2837 = vpop.f32.mrb[0].mxu0
          %v2838 = vadd.f32 %v2664, %v2837
          %v2839 = vpop.f32.mrb[0].mxu0
          %2840 = vmatprep.mubr.f32.mxu0 %v1309
          %2841 = vmatmul.mubr.f32.gmra.mrb[0].mxu0 %v1308
          %v2842 = vpop.f32.mrb[0].mxu0
          %v2843 = vadd.f32 %v2664, %v2842
          %v2844 = vpop.f32.mrb[0].mxu0
          %2845 = vmatprep.mubr.f32.mxu0 %v1311
          %2846 = vmatmul.mubr.f32.gmra.mrb[0].mxu0 %v1310
          %v2847 = vpop.f32.mrb[0].mxu0
          %v2848 = vadd.f32 %v2664, %v2847
          %v2849 = vpop.f32.mrb[0].mxu0
          %2850 = vmatprep.mubr.f32.mxu0 %v1313
          %2851 = vmatmul.mubr.f32.gmra.mrb[0].mxu0 %v1312
          %v2852 = vpop.f32.mrb[0].mxu0
          %v2853 = vadd.f32 %v2664, %v2852
          %v2854 = vpop.f32.mrb[0].mxu0
          %2855 = vmatprep.mubr.f32.mxu0 %v1315
          %2856 = vmatmul.mubr.f32.gmra.mrb[0].mxu0 %v1314
          %v2857 = vpop.f32.mrb[0].mxu0
          %v2858 = vadd.f32 %v2664, %v2857
          %v2859 = vpop.f32.mrb[0].mxu0
          %2860 = vmatprep.mubr.f32.mxu0 %v1317
          %2861 = vmatmul.mubr.f32.gmra.mrb[0].mxu0 %v1316
          %v2862 = vpop.f32.mrb[0].mxu0
          %v2863 = vadd.f32 %v2664, %v2862
          %v2864 = vpop.f32.mrb[0].mxu0
          %2865 = vmatprep.mubr.f32.mxu0 %v1319
          %2866 = vmatmul.mubr.f32.gmra.mrb[0].mxu0 %v1318
          %v2867 = vpop.f32.mrb[0].mxu0
          %v2868 = vadd.f32 %v2664, %v2867
          %v2869 = vpop.f32.mrb[0].mxu0
          %2870 = vmatprep.mubr.f32.mxu0 %v1321
          %2871 = vmatmul.mubr.f32.gmra.mrb[0].mxu0 %v1320
          %v2872 = vpop.f32.mrb[0].mxu0
          %v2873 = vadd.f32 %v2664, %v2872
          %v2874 = vpop.f32.mrb[0].mxu0
          %2875 = vmatprep.mubr.f32.mxu0 %v1323
          %2876 = vmatmul.mubr.f32.gmra.mrb[0].mxu0 %v1322
          %v2877 = vpop.f32.mrb[0].mxu0
          %v2878 = vadd.f32 %v2664, %v2877
          %v2879 = vpop.f32.mrb[0].mxu0
          %2880 = vmatprep.mubr.f32.mxu0 %v1325
          %2881 = vmatmul.mubr.f32.gmra.mrb[0].mxu0 %v1324
          %v2882 = vpop.f32.mrb[0].mxu0
          %v2883 = vadd.f32 %v2664, %v2882
          %v2884 = vpop.f32.mrb[0].mxu0
          %2885 = vmatprep.mubr.f32.mxu0 %v1327
          %2886 = vmatmul.mubr.f32.gmra.mrb[0].mxu0 %v1326
          %v2887 = vpop.f32.mrb[0].mxu0
          %v2888 = vadd.f32 %v2664, %v2887
          %v2889 = vpop.f32.mrb[0].mxu0
          %2890 = vdwg.mxu0
          %s2891 = scalar_lea.vmem [#allocation3], 256
          %2892 = vst.msk [vmem:[%s2891] sm:$0xff] %vm2296, %v2733
          %2893 = vst.msk [vmem:[%s2891 + $0x8] sm:$0xff] %vm2296, %v2738
          %2894 = vst.msk [vmem:[%s2891 + $0x10] sm:$0xff] %vm2296, %v2743
          %2895 = vst.msk [vmem:[%s2891 + $0x18] sm:$0xff] %vm2296, %v2748
          %2896 = vst.msk [vmem:[%s2891 + $0x20] sm:$0xff] %vm2296, %v2753
          %2897 = vst.msk [vmem:[%s2891 + $0x28] sm:$0xff] %vm2296, %v2758
          %2898 = vst.msk [vmem:[%s2891 + $0x30] sm:$0xff] %vm2296, %v2763
          %2899 = vst.msk [vmem:[%s2891 + $0x38] sm:$0xff] %vm2296, %v2768
          %2900 = vst.msk [vmem:[%s2891 + $0x40] sm:$0xff] %vm2296, %v2773
          %2901 = vst.msk [vmem:[%s2891 + $0x48] sm:$0xff] %vm2296, %v2778
          %2902 = vst.msk [vmem:[%s2891 + $0x50] sm:$0xff] %vm2296, %v2783
          %2903 = vst.msk [vmem:[%s2891 + $0x58] sm:$0xff] %vm2296, %v2788
          %2904 = vst.msk [vmem:[%s2891 + $0x60] sm:$0xff] %vm2296, %v2793
          %2905 = vst.msk [vmem:[%s2891 + $0x68] sm:$0xff] %vm2296, %v2798
          %2906 = vst.msk [vmem:[%s2891 + $0x70] sm:$0xff] %vm2296, %v2803
          %2907 = vst.msk [vmem:[%s2891 + $0x78] sm:$0xff] %vm2296, %v2808
          %2908 = vst.msk [vmem:[%s2891 + $0x80] sm:$0xff] %vm2296, %v2813
          %2909 = vst.msk [vmem:[%s2891 + $0x88] sm:$0xff] %vm2296, %v2818
          %2910 = vst.msk [vmem:[%s2891 + $0x90] sm:$0xff] %vm2296, %v2823
          %2911 = vst.msk [vmem:[%s2891 + $0x98] sm:$0xff] %vm2296, %v2828
          %2912 = vst.msk [vmem:[%s2891 + $0xa0] sm:$0xff] %vm2296, %v2833
          %2913 = vst.msk [vmem:[%s2891 + $0xa8] sm:$0xff] %vm2296, %v2838
          %2914 = vst.msk [vmem:[%s2891 + $0xb0] sm:$0xff] %vm2296, %v2843
          %2915 = vst.msk [vmem:[%s2891 + $0xb8] sm:$0xff] %vm2296, %v2848
          %2916 = vst.msk [vmem:[%s2891 + $0xc0] sm:$0xff] %vm2296, %v2853
          %2917 = vst.msk [vmem:[%s2891 + $0xc8] sm:$0xff] %vm2296, %v2858
          %2918 = vst.msk [vmem:[%s2891 + $0xd0] sm:$0xff] %vm2296, %v2863
          %2919 = vst.msk [vmem:[%s2891 + $0xd8] sm:$0xff] %vm2296, %v2868
          %2920 = vst.msk [vmem:[%s2891 + $0xe0] sm:$0xff] %vm2296, %v2873
          %2921 = vst.msk [vmem:[%s2891 + $0xe8] sm:$0xff] %vm2296, %v2878
          %2922 = vst.msk [vmem:[%s2891 + $0xf0] sm:$0xff] %vm2296, %v2883
          %2923 = vst.msk [vmem:[%s2891 + $0xf8] sm:$0xff] %vm2296, %v2888
          %s2924 = scalar_lea.vmem %s7, 256
          %v2925 = vld [vmem:[%s2924] sm:$0xff]
          %v2926 = vld [vmem:[%s2924 + $0x8] sm:$0xff]
          %v2927 = vld [vmem:[%s2924 + $0x10] sm:$0xff]
          %v2928 = vld [vmem:[%s2924 + $0x18] sm:$0xff]
          %v2929 = vld [vmem:[%s2924 + $0x20] sm:$0xff]
          %v2930 = vld [vmem:[%s2924 + $0x28] sm:$0xff]
          %v2931 = vld [vmem:[%s2924 + $0x30] sm:$0xff]
          %v2932 = vld [vmem:[%s2924 + $0x38] sm:$0xff]
          %v2933 = vld [vmem:[%s2924 + $0x40] sm:$0xff]
          %v2934 = vld [vmem:[%s2924 + $0x48] sm:$0xff]
          %v2935 = vld [vmem:[%s2924 + $0x50] sm:$0xff]
          %v2936 = vld [vmem:[%s2924 + $0x58] sm:$0xff]
          %v2937 = vld [vmem:[%s2924 + $0x60] sm:$0xff]
          %v2938 = vld [vmem:[%s2924 + $0x68] sm:$0xff]
          %v2939 = vld [vmem:[%s2924 + $0x70] sm:$0xff]
          %v2940 = vld [vmem:[%s2924 + $0x78] sm:$0xff]
          %v2941 = vld [vmem:[%s2924 + $0x80] sm:$0xff]
          %v2942 = vld [vmem:[%s2924 + $0x88] sm:$0xff]
          %v2943 = vld [vmem:[%s2924 + $0x90] sm:$0xff]
          %v2944 = vld [vmem:[%s2924 + $0x98] sm:$0xff]
          %v2945 = vld [vmem:[%s2924 + $0xa0] sm:$0xff]
          %v2946 = vld [vmem:[%s2924 + $0xa8] sm:$0xff]
          %v2947 = vld [vmem:[%s2924 + $0xb0] sm:$0xff]
          %v2948 = vld [vmem:[%s2924 + $0xb8] sm:$0xff]
          %v2949 = vld [vmem:[%s2924 + $0xc0] sm:$0xff]
          %v2950 = vld [vmem:[%s2924 + $0xc8] sm:$0xff]
          %v2951 = vld [vmem:[%s2924 + $0xd0] sm:$0xff]
          %v2952 = vld [vmem:[%s2924 + $0xd8] sm:$0xff]
          %v2953 = vld [vmem:[%s2924 + $0xe0] sm:$0xff]
          %v2954 = vld [vmem:[%s2924 + $0xe8] sm:$0xff]
          %v2955 = vld [vmem:[%s2924 + $0xf0] sm:$0xff]
          %v2956 = vld [vmem:[%s2924 + $0xf8] sm:$0xff]
          %s2957 = scalar_lea.vmem [#allocation13], 1
          %v2958 = vld [vmem:[%s2957] sm:$0x1]
          %v2960 = vlaneseq
          %v2961 = vshrl.u32 %v2960, 7
          %v2962 = vsub.s32 0, %v2961
          %v2963 = vrot.slane %v2958, %v2962
          %2965 = vmatprep.subr.mxu0 0.0
          %2966 = vmatpush1.msra.mxu0 %v2925
          %2967 = vmatprep.subr.mxu0 0.0
          %2968 = vmatpush1.msra.mxu0 %v2926
          %2969 = vmatprep.subr.mxu0 0.0
          %2970 = vmatpush1.msra.mxu0 %v2927
          %2971 = vmatprep.subr.mxu0 0.0
          %2972 = vmatpush1.msra.mxu0 %v2928
          %2973 = vmatprep.subr.mxu0 0.0
          %2974 = vmatpush1.msra.mxu0 %v2929
          %2975 = vmatprep.subr.mxu0 0.0
          %2976 = vmatpush1.msra.mxu0 %v2930
          %2977 = vmatprep.subr.mxu0 0.0
          %2978 = vmatpush1.msra.mxu0 %v2931
          %2979 = vmatprep.subr.mxu0 0.0
          %2980 = vmatpush1.msra.mxu0 %v2932
          %2981 = vmatprep.subr.mxu0 0.0
          %2982 = vmatpush1.msra.mxu0 %v2933
          %2983 = vmatprep.subr.mxu0 0.0
          %2984 = vmatpush1.msra.mxu0 %v2934
          %2985 = vmatprep.subr.mxu0 0.0
          %2986 = vmatpush1.msra.mxu0 %v2935
          %2987 = vmatprep.subr.mxu0 0.0
          %2988 = vmatpush1.msra.mxu0 %v2936
          %2989 = vmatprep.subr.mxu0 0.0
          %2990 = vmatpush1.msra.mxu0 %v2937
          %2991 = vmatprep.subr.mxu0 0.0
          %2992 = vmatpush1.msra.mxu0 %v2938
          %2993 = vmatprep.subr.mxu0 0.0
          %2994 = vmatpush1.msra.mxu0 %v2939
          %2995 = vmatprep.subr.mxu0 0.0
          %2996 = vmatpush1.msra.mxu0 %v2940
          %2997 = vmatprep.subr.mxu0 0.0
          %2998 = vmatpush1.msra.mxu0 %v2941
          %2999 = vmatprep.subr.mxu0 0.0
          %3000 = vmatpush1.msra.mxu0 %v2942
          %3001 = vmatprep.subr.mxu0 0.0
          %3002 = vmatpush1.msra.mxu0 %v2943
          %3003 = vmatprep.subr.mxu0 0.0
          %3004 = vmatpush1.msra.mxu0 %v2944
          %3005 = vmatprep.subr.mxu0 0.0
          %3006 = vmatpush1.msra.mxu0 %v2945
          %3007 = vmatprep.subr.mxu0 0.0
          %3008 = vmatpush1.msra.mxu0 %v2946
          %3009 = vmatprep.subr.mxu0 0.0
          %3010 = vmatpush1.msra.mxu0 %v2947
          %3011 = vmatprep.subr.mxu0 0.0
          %3012 = vmatpush1.msra.mxu0 %v2948
          %3013 = vmatprep.subr.mxu0 0.0
          %3014 = vmatpush1.msra.mxu0 %v2949
          %3015 = vmatprep.subr.mxu0 0.0
          %3016 = vmatpush1.msra.mxu0 %v2950
          %3017 = vmatprep.subr.mxu0 0.0
          %3018 = vmatpush1.msra.mxu0 %v2951
          %3019 = vmatprep.subr.mxu0 0.0
          %3020 = vmatpush1.msra.mxu0 %v2952
          %3021 = vmatprep.subr.mxu0 0.0
          %3022 = vmatpush1.msra.mxu0 %v2953
          %3023 = vmatprep.subr.mxu0 0.0
          %3024 = vmatpush1.msra.mxu0 %v2954
          %3025 = vmatprep.subr.mxu0 0.0
          %3026 = vmatpush1.msra.mxu0 %v2955
          %3027 = vmatprep.subr.mxu0 0.0
          %3028 = vmatpush1.msra.mxu0 %v2956
          %3029 = vmatprep.mubr.f32.mxu0 %v1969
          %3030 = vmatmul.mubr.f32.gmra.mrb[0].mxu0 %v1968
          %v3031 = vpop.f32.mrb[0].mxu0
          %v3032 = vadd.f32 %v2963, %v3031
          %v3033 = vpop.f32.mrb[0].mxu0
          %3034 = vmatprep.mubr.f32.mxu0 %v1971
          %3035 = vmatmul.mubr.f32.gmra.mrb[0].mxu0 %v1970
          %v3036 = vpop.f32.mrb[0].mxu0
          %v3037 = vadd.f32 %v2963, %v3036
          %v3038 = vpop.f32.mrb[0].mxu0
          %3039 = vmatprep.mubr.f32.mxu0 %v1973
          %3040 = vmatmul.mubr.f32.gmra.mrb[0].mxu0 %v1972
          %v3041 = vpop.f32.mrb[0].mxu0
          %v3042 = vadd.f32 %v2963, %v3041
          %v3043 = vpop.f32.mrb[0].mxu0
          %3044 = vmatprep.mubr.f32.mxu0 %v1975
          %3045 = vmatmul.mubr.f32.gmra.mrb[0].mxu0 %v1974
          %v3046 = vpop.f32.mrb[0].mxu0
          %v3047 = vadd.f32 %v2963, %v3046
          %v3048 = vpop.f32.mrb[0].mxu0
          %3049 = vmatprep.mubr.f32.mxu0 %v1977
          %3050 = vmatmul.mubr.f32.gmra.mrb[0].mxu0 %v1976
          %v3051 = vpop.f32.mrb[0].mxu0
          %v3052 = vadd.f32 %v2963, %v3051
          %v3053 = vpop.f32.mrb[0].mxu0
          %3054 = vmatprep.mubr.f32.mxu0 %v1979
          %3055 = vmatmul.mubr.f32.gmra.mrb[0].mxu0 %v1978
          %v3056 = vpop.f32.mrb[0].mxu0
          %v3057 = vadd.f32 %v2963, %v3056
          %v3058 = vpop.f32.mrb[0].mxu0
          %3059 = vmatprep.mubr.f32.mxu0 %v1981
          %3060 = vmatmul.mubr.f32.gmra.mrb[0].mxu0 %v1980
          %v3061 = vpop.f32.mrb[0].mxu0
          %v3062 = vadd.f32 %v2963, %v3061
          %v3063 = vpop.f32.mrb[0].mxu0
          %3064 = vmatprep.mubr.f32.mxu0 %v1983
          %3065 = vmatmul.mubr.f32.gmra.mrb[0].mxu0 %v1982
          %v3066 = vpop.f32.mrb[0].mxu0
          %v3067 = vadd.f32 %v2963, %v3066
          %v3068 = vpop.f32.mrb[0].mxu0
          %3069 = vmatprep.mubr.f32.mxu0 %v1985
          %3070 = vmatmul.mubr.f32.gmra.mrb[0].mxu0 %v1984
          %v3071 = vpop.f32.mrb[0].mxu0
          %v3072 = vadd.f32 %v2963, %v3071
          %v3073 = vpop.f32.mrb[0].mxu0
          %3074 = vmatprep.mubr.f32.mxu0 %v1987
          %3075 = vmatmul.mubr.f32.gmra.mrb[0].mxu0 %v1986
          %v3076 = vpop.f32.mrb[0].mxu0
          %v3077 = vadd.f32 %v2963, %v3076
          %v3078 = vpop.f32.mrb[0].mxu0
          %3079 = vmatprep.mubr.f32.mxu0 %v1989
          %3080 = vmatmul.mubr.f32.gmra.mrb[0].mxu0 %v1988
          %v3081 = vpop.f32.mrb[0].mxu0
          %v3082 = vadd.f32 %v2963, %v3081
          %v3083 = vpop.f32.mrb[0].mxu0
          %3084 = vmatprep.mubr.f32.mxu0 %v1991
          %3085 = vmatmul.mubr.f32.gmra.mrb[0].mxu0 %v1990
          %v3086 = vpop.f32.mrb[0].mxu0
          %v3087 = vadd.f32 %v2963, %v3086
          %v3088 = vpop.f32.mrb[0].mxu0
          %3089 = vmatprep.mubr.f32.mxu0 %v1993
          %3090 = vmatmul.mubr.f32.gmra.mrb[0].mxu0 %v1992
          %v3091 = vpop.f32.mrb[0].mxu0
          %v3092 = vadd.f32 %v2963, %v3091
          %v3093 = vpop.f32.mrb[0].mxu0
          %3094 = vmatprep.mubr.f32.mxu0 %v1995
          %3095 = vmatmul.mubr.f32.gmra.mrb[0].mxu0 %v1994
          %v3096 = vpop.f32.mrb[0].mxu0
          %v3097 = vadd.f32 %v2963, %v3096
          %v3098 = vpop.f32.mrb[0].mxu0
          %3099 = vmatprep.mubr.f32.mxu0 %v1997
          %3100 = vmatmul.mubr.f32.gmra.mrb[0].mxu0 %v1996
          %v3101 = vpop.f32.mrb[0].mxu0
          %v3102 = vadd.f32 %v2963, %v3101
          %v3103 = vpop.f32.mrb[0].mxu0
          %3104 = vmatprep.mubr.f32.mxu0 %v1999
          %3105 = vmatmul.mubr.f32.gmra.mrb[0].mxu0 %v1998
          %v3106 = vpop.f32.mrb[0].mxu0
          %v3107 = vadd.f32 %v2963, %v3106
          %v3108 = vpop.f32.mrb[0].mxu0
          %3109 = vmatprep.mubr.f32.mxu0 %v2001
          %3110 = vmatmul.mubr.f32.gmra.mrb[0].mxu0 %v2000
          %v3111 = vpop.f32.mrb[0].mxu0
          %v3112 = vadd.f32 %v2963, %v3111
          %v3113 = vpop.f32.mrb[0].mxu0
          %3114 = vmatprep.mubr.f32.mxu0 %v2003
          %3115 = vmatmul.mubr.f32.gmra.mrb[0].mxu0 %v2002
          %v3116 = vpop.f32.mrb[0].mxu0
          %v3117 = vadd.f32 %v2963, %v3116
          %v3118 = vpop.f32.mrb[0].mxu0
          %3119 = vmatprep.mubr.f32.mxu0 %v2005
          %3120 = vmatmul.mubr.f32.gmra.mrb[0].mxu0 %v2004
          %v3121 = vpop.f32.mrb[0].mxu0
          %v3122 = vadd.f32 %v2963, %v3121
          %v3123 = vpop.f32.mrb[0].mxu0
          %3124 = vmatprep.mubr.f32.mxu0 %v2007
          %3125 = vmatmul.mubr.f32.gmra.mrb[0].mxu0 %v2006
          %v3126 = vpop.f32.mrb[0].mxu0
          %v3127 = vadd.f32 %v2963, %v3126
          %v3128 = vpop.f32.mrb[0].mxu0
          %3129 = vmatprep.mubr.f32.mxu0 %v2009
          %3130 = vmatmul.mubr.f32.gmra.mrb[0].mxu0 %v2008
          %v3131 = vpop.f32.mrb[0].mxu0
          %v3132 = vadd.f32 %v2963, %v3131
          %v3133 = vpop.f32.mrb[0].mxu0
          %3134 = vmatprep.mubr.f32.mxu0 %v2011
          %3135 = vmatmul.mubr.f32.gmra.mrb[0].mxu0 %v2010
          %v3136 = vpop.f32.mrb[0].mxu0
          %v3137 = vadd.f32 %v2963, %v3136
          %v3138 = vpop.f32.mrb[0].mxu0
          %3139 = vmatprep.mubr.f32.mxu0 %v2013
          %3140 = vmatmul.mubr.f32.gmra.mrb[0].mxu0 %v2012
          %v3141 = vpop.f32.mrb[0].mxu0
          %v3142 = vadd.f32 %v2963, %v3141
          %v3143 = vpop.f32.mrb[0].mxu0
          %3144 = vmatprep.mubr.f32.mxu0 %v2015
          %3145 = vmatmul.mubr.f32.gmra.mrb[0].mxu0 %v2014
          %v3146 = vpop.f32.mrb[0].mxu0
          %v3147 = vadd.f32 %v2963, %v3146
          %v3148 = vpop.f32.mrb[0].mxu0
          %3149 = vmatprep.mubr.f32.mxu0 %v2017
          %3150 = vmatmul.mubr.f32.gmra.mrb[0].mxu0 %v2016
          %v3151 = vpop.f32.mrb[0].mxu0
          %v3152 = vadd.f32 %v2963, %v3151
          %v3153 = vpop.f32.mrb[0].mxu0
          %3154 = vmatprep.mubr.f32.mxu0 %v2019
          %3155 = vmatmul.mubr.f32.gmra.mrb[0].mxu0 %v2018
          %v3156 = vpop.f32.mrb[0].mxu0
          %v3157 = vadd.f32 %v2963, %v3156
          %v3158 = vpop.f32.mrb[0].mxu0
          %3159 = vmatprep.mubr.f32.mxu0 %v2021
          %3160 = vmatmul.mubr.f32.gmra.mrb[0].mxu0 %v2020
          %v3161 = vpop.f32.mrb[0].mxu0
          %v3162 = vadd.f32 %v2963, %v3161
          %v3163 = vpop.f32.mrb[0].mxu0
          %3164 = vmatprep.mubr.f32.mxu0 %v2023
          %3165 = vmatmul.mubr.f32.gmra.mrb[0].mxu0 %v2022
          %v3166 = vpop.f32.mrb[0].mxu0
          %v3167 = vadd.f32 %v2963, %v3166
          %v3168 = vpop.f32.mrb[0].mxu0
          %3169 = vmatprep.mubr.f32.mxu0 %v2025
          %3170 = vmatmul.mubr.f32.gmra.mrb[0].mxu0 %v2024
          %v3171 = vpop.f32.mrb[0].mxu0
          %v3172 = vadd.f32 %v2963, %v3171
          %v3173 = vpop.f32.mrb[0].mxu0
          %3174 = vmatprep.mubr.f32.mxu0 %v2027
          %3175 = vmatmul.mubr.f32.gmra.mrb[0].mxu0 %v2026
          %v3176 = vpop.f32.mrb[0].mxu0
          %v3177 = vadd.f32 %v2963, %v3176
          %v3178 = vpop.f32.mrb[0].mxu0
          %3179 = vmatprep.mubr.f32.mxu0 %v2029
          %3180 = vmatmul.mubr.f32.gmra.mrb[0].mxu0 %v2028
          %v3181 = vpop.f32.mrb[0].mxu0
          %v3182 = vadd.f32 %v2963, %v3181
          %v3183 = vpop.f32.mrb[0].mxu0
          %3184 = vmatprep.mubr.f32.mxu0 %v2031
          %3185 = vmatmul.mubr.f32.gmra.mrb[0].mxu0 %v2030
          %v3186 = vpop.f32.mrb[0].mxu0
          %v3187 = vadd.f32 %v2963, %v3186
          %v3188 = vpop.f32.mrb[0].mxu0
          %3189 = vdwg.mxu0
          %s3190 = scalar_lea.vmem [#allocation4], 256
          %3191 = vst.msk [vmem:[%s3190] sm:$0xff] %vm2296, %v3032
          %3192 = vst.msk [vmem:[%s3190 + $0x8] sm:$0xff] %vm2296, %v3037
          %3193 = vst.msk [vmem:[%s3190 + $0x10] sm:$0xff] %vm2296, %v3042
          %3194 = vst.msk [vmem:[%s3190 + $0x18] sm:$0xff] %vm2296, %v3047
          %3195 = vst.msk [vmem:[%s3190 + $0x20] sm:$0xff] %vm2296, %v3052
          %3196 = vst.msk [vmem:[%s3190 + $0x28] sm:$0xff] %vm2296, %v3057
          %3197 = vst.msk [vmem:[%s3190 + $0x30] sm:$0xff] %vm2296, %v3062
          %3198 = vst.msk [vmem:[%s3190 + $0x38] sm:$0xff] %vm2296, %v3067
          %3199 = vst.msk [vmem:[%s3190 + $0x40] sm:$0xff] %vm2296, %v3072
          %3200 = vst.msk [vmem:[%s3190 + $0x48] sm:$0xff] %vm2296, %v3077
          %3201 = vst.msk [vmem:[%s3190 + $0x50] sm:$0xff] %vm2296, %v3082
          %3202 = vst.msk [vmem:[%s3190 + $0x58] sm:$0xff] %vm2296, %v3087
          %3203 = vst.msk [vmem:[%s3190 + $0x60] sm:$0xff] %vm2296, %v3092
          %3204 = vst.msk [vmem:[%s3190 + $0x68] sm:$0xff] %vm2296, %v3097
          %3205 = vst.msk [vmem:[%s3190 + $0x70] sm:$0xff] %vm2296, %v3102
          %3206 = vst.msk [vmem:[%s3190 + $0x78] sm:$0xff] %vm2296, %v3107
          %3207 = vst.msk [vmem:[%s3190 + $0x80] sm:$0xff] %vm2296, %v3112
          %3208 = vst.msk [vmem:[%s3190 + $0x88] sm:$0xff] %vm2296, %v3117
          %3209 = vst.msk [vmem:[%s3190 + $0x90] sm:$0xff] %vm2296, %v3122
          %3210 = vst.msk [vmem:[%s3190 + $0x98] sm:$0xff] %vm2296, %v3127
          %3211 = vst.msk [vmem:[%s3190 + $0xa0] sm:$0xff] %vm2296, %v3132
          %3212 = vst.msk [vmem:[%s3190 + $0xa8] sm:$0xff] %vm2296, %v3137
          %3213 = vst.msk [vmem:[%s3190 + $0xb0] sm:$0xff] %vm2296, %v3142
          %3214 = vst.msk [vmem:[%s3190 + $0xb8] sm:$0xff] %vm2296, %v3147
          %3215 = vst.msk [vmem:[%s3190 + $0xc0] sm:$0xff] %vm2296, %v3152
          %3216 = vst.msk [vmem:[%s3190 + $0xc8] sm:$0xff] %vm2296, %v3157
          %3217 = vst.msk [vmem:[%s3190 + $0xd0] sm:$0xff] %vm2296, %v3162
          %3218 = vst.msk [vmem:[%s3190 + $0xd8] sm:$0xff] %vm2296, %v3167
          %3219 = vst.msk [vmem:[%s3190 + $0xe0] sm:$0xff] %vm2296, %v3172
          %3220 = vst.msk [vmem:[%s3190 + $0xe8] sm:$0xff] %vm2296, %v3177
          %3221 = vst.msk [vmem:[%s3190 + $0xf0] sm:$0xff] %vm2296, %v3182
          %3222 = vst.msk [vmem:[%s3190 + $0xf8] sm:$0xff] %vm2296, %v3187
          %s3223 = scalar_lea.vmem %s6, 512
          %v3224 = vld [vmem:[%s3223] sm:$0xff]
          %v3225 = vld [vmem:[%s3223 + $0x8] sm:$0xff]
          %v3226 = vld [vmem:[%s3223 + $0x10] sm:$0xff]
          %v3227 = vld [vmem:[%s3223 + $0x18] sm:$0xff]
          %v3228 = vld [vmem:[%s3223 + $0x20] sm:$0xff]
          %v3229 = vld [vmem:[%s3223 + $0x28] sm:$0xff]
          %v3230 = vld [vmem:[%s3223 + $0x30] sm:$0xff]
          %v3231 = vld [vmem:[%s3223 + $0x38] sm:$0xff]
          %v3232 = vld [vmem:[%s3223 + $0x40] sm:$0xff]
          %v3233 = vld [vmem:[%s3223 + $0x48] sm:$0xff]
          %v3234 = vld [vmem:[%s3223 + $0x50] sm:$0xff]
          %v3235 = vld [vmem:[%s3223 + $0x58] sm:$0xff]
          %v3236 = vld [vmem:[%s3223 + $0x60] sm:$0xff]
          %v3237 = vld [vmem:[%s3223 + $0x68] sm:$0xff]
          %v3238 = vld [vmem:[%s3223 + $0x70] sm:$0xff]
          %v3239 = vld [vmem:[%s3223 + $0x78] sm:$0xff]
          %v3240 = vld [vmem:[%s3223 + $0x80] sm:$0xff]
          %v3241 = vld [vmem:[%s3223 + $0x88] sm:$0xff]
          %v3242 = vld [vmem:[%s3223 + $0x90] sm:$0xff]
          %v3243 = vld [vmem:[%s3223 + $0x98] sm:$0xff]
          %v3244 = vld [vmem:[%s3223 + $0xa0] sm:$0xff]
          %v3245 = vld [vmem:[%s3223 + $0xa8] sm:$0xff]
          %v3246 = vld [vmem:[%s3223 + $0xb0] sm:$0xff]
          %v3247 = vld [vmem:[%s3223 + $0xb8] sm:$0xff]
          %v3248 = vld [vmem:[%s3223 + $0xc0] sm:$0xff]
          %v3249 = vld [vmem:[%s3223 + $0xc8] sm:$0xff]
          %v3250 = vld [vmem:[%s3223 + $0xd0] sm:$0xff]
          %v3251 = vld [vmem:[%s3223 + $0xd8] sm:$0xff]
          %v3252 = vld [vmem:[%s3223 + $0xe0] sm:$0xff]
          %v3253 = vld [vmem:[%s3223 + $0xe8] sm:$0xff]
          %v3254 = vld [vmem:[%s3223 + $0xf0] sm:$0xff]
          %v3255 = vld [vmem:[%s3223 + $0xf8] sm:$0xff]
          %s3256 = scalar_lea.vmem [#allocation11], 2
          %v3257 = vld [vmem:[%s3256] sm:$0x1]
          %v3259 = vlaneseq
          %v3260 = vshrl.u32 %v3259, 7
          %v3261 = vsub.s32 0, %v3260
          %v3262 = vrot.slane %v3257, %v3261
          %3264 = vmatprep.subr.mxu0 0.0
          %3265 = vmatpush1.msra.mxu0 %v3224
          %3266 = vmatprep.subr.mxu0 0.0
          %3267 = vmatpush1.msra.mxu0 %v3225
          %3268 = vmatprep.subr.mxu0 0.0
          %3269 = vmatpush1.msra.mxu0 %v3226
          %3270 = vmatprep.subr.mxu0 0.0
          %3271 = vmatpush1.msra.mxu0 %v3227
          %3272 = vmatprep.subr.mxu0 0.0
          %3273 = vmatpush1.msra.mxu0 %v3228
          %3274 = vmatprep.subr.mxu0 0.0
          %3275 = vmatpush1.msra.mxu0 %v3229
          %3276 = vmatprep.subr.mxu0 0.0
          %3277 = vmatpush1.msra.mxu0 %v3230
          %3278 = vmatprep.subr.mxu0 0.0
          %3279 = vmatpush1.msra.mxu0 %v3231
          %3280 = vmatprep.subr.mxu0 0.0
          %3281 = vmatpush1.msra.mxu0 %v3232
          %3282 = vmatprep.subr.mxu0 0.0
          %3283 = vmatpush1.msra.mxu0 %v3233
          %3284 = vmatprep.subr.mxu0 0.0
          %3285 = vmatpush1.msra.mxu0 %v3234
          %3286 = vmatprep.subr.mxu0 0.0
          %3287 = vmatpush1.msra.mxu0 %v3235
          %3288 = vmatprep.subr.mxu0 0.0
          %3289 = vmatpush1.msra.mxu0 %v3236
          %3290 = vmatprep.subr.mxu0 0.0
          %3291 = vmatpush1.msra.mxu0 %v3237
          %3292 = vmatprep.subr.mxu0 0.0
          %3293 = vmatpush1.msra.mxu0 %v3238
          %3294 = vmatprep.subr.mxu0 0.0
          %3295 = vmatpush1.msra.mxu0 %v3239
          %3296 = vmatprep.subr.mxu0 0.0
          %3297 = vmatpush1.msra.mxu0 %v3240
          %3298 = vmatprep.subr.mxu0 0.0
          %3299 = vmatpush1.msra.mxu0 %v3241
          %3300 = vmatprep.subr.mxu0 0.0
          %3301 = vmatpush1.msra.mxu0 %v3242
          %3302 = vmatprep.subr.mxu0 0.0
          %3303 = vmatpush1.msra.mxu0 %v3243
          %3304 = vmatprep.subr.mxu0 0.0
          %3305 = vmatpush1.msra.mxu0 %v3244
          %3306 = vmatprep.subr.mxu0 0.0
          %3307 = vmatpush1.msra.mxu0 %v3245
          %3308 = vmatprep.subr.mxu0 0.0
          %3309 = vmatpush1.msra.mxu0 %v3246
          %3310 = vmatprep.subr.mxu0 0.0
          %3311 = vmatpush1.msra.mxu0 %v3247
          %3312 = vmatprep.subr.mxu0 0.0
          %3313 = vmatpush1.msra.mxu0 %v3248
          %3314 = vmatprep.subr.mxu0 0.0
          %3315 = vmatpush1.msra.mxu0 %v3249
          %3316 = vmatprep.subr.mxu0 0.0
          %3317 = vmatpush1.msra.mxu0 %v3250
          %3318 = vmatprep.subr.mxu0 0.0
          %3319 = vmatpush1.msra.mxu0 %v3251
          %3320 = vmatprep.subr.mxu0 0.0
          %3321 = vmatpush1.msra.mxu0 %v3252
          %3322 = vmatprep.subr.mxu0 0.0
          %3323 = vmatpush1.msra.mxu0 %v3253
          %3324 = vmatprep.subr.mxu0 0.0
          %3325 = vmatpush1.msra.mxu0 %v3254
          %3326 = vmatprep.subr.mxu0 0.0
          %3327 = vmatpush1.msra.mxu0 %v3255
          %3328 = vmatprep.mubr.f32.mxu0 %v1265
          %3329 = vmatmul.mubr.f32.gmra.mrb[0].mxu0 %v1264
          %v3330 = vpop.f32.mrb[0].mxu0
          %v3331 = vadd.f32 %v3262, %v3330
          %v3332 = vpop.f32.mrb[0].mxu0
          %3333 = vmatprep.mubr.f32.mxu0 %v1267
          %3334 = vmatmul.mubr.f32.gmra.mrb[0].mxu0 %v1266
          %v3335 = vpop.f32.mrb[0].mxu0
          %v3336 = vadd.f32 %v3262, %v3335
          %v3337 = vpop.f32.mrb[0].mxu0
          %3338 = vmatprep.mubr.f32.mxu0 %v1269
          %3339 = vmatmul.mubr.f32.gmra.mrb[0].mxu0 %v1268
          %v3340 = vpop.f32.mrb[0].mxu0
          %v3341 = vadd.f32 %v3262, %v3340
          %v3342 = vpop.f32.mrb[0].mxu0
          %3343 = vmatprep.mubr.f32.mxu0 %v1271
          %3344 = vmatmul.mubr.f32.gmra.mrb[0].mxu0 %v1270
          %v3345 = vpop.f32.mrb[0].mxu0
          %v3346 = vadd.f32 %v3262, %v3345
          %v3347 = vpop.f32.mrb[0].mxu0
          %3348 = vmatprep.mubr.f32.mxu0 %v1273
          %3349 = vmatmul.mubr.f32.gmra.mrb[0].mxu0 %v1272
          %v3350 = vpop.f32.mrb[0].mxu0
          %v3351 = vadd.f32 %v3262, %v3350
          %v3352 = vpop.f32.mrb[0].mxu0
          %3353 = vmatprep.mubr.f32.mxu0 %v1275
          %3354 = vmatmul.mubr.f32.gmra.mrb[0].mxu0 %v1274
          %v3355 = vpop.f32.mrb[0].mxu0
          %v3356 = vadd.f32 %v3262, %v3355
          %v3357 = vpop.f32.mrb[0].mxu0
          %3358 = vmatprep.mubr.f32.mxu0 %v1277
          %3359 = vmatmul.mubr.f32.gmra.mrb[0].mxu0 %v1276
          %v3360 = vpop.f32.mrb[0].mxu0
          %v3361 = vadd.f32 %v3262, %v3360
          %v3362 = vpop.f32.mrb[0].mxu0
          %3363 = vmatprep.mubr.f32.mxu0 %v1279
          %3364 = vmatmul.mubr.f32.gmra.mrb[0].mxu0 %v1278
          %v3365 = vpop.f32.mrb[0].mxu0
          %v3366 = vadd.f32 %v3262, %v3365
          %v3367 = vpop.f32.mrb[0].mxu0
          %3368 = vmatprep.mubr.f32.mxu0 %v1281
          %3369 = vmatmul.mubr.f32.gmra.mrb[0].mxu0 %v1280
          %v3370 = vpop.f32.mrb[0].mxu0
          %v3371 = vadd.f32 %v3262, %v3370
          %v3372 = vpop.f32.mrb[0].mxu0
          %3373 = vmatprep.mubr.f32.mxu0 %v1283
          %3374 = vmatmul.mubr.f32.gmra.mrb[0].mxu0 %v1282
          %v3375 = vpop.f32.mrb[0].mxu0
          %v3376 = vadd.f32 %v3262, %v3375
          %v3377 = vpop.f32.mrb[0].mxu0
          %3378 = vmatprep.mubr.f32.mxu0 %v1285
          %3379 = vmatmul.mubr.f32.gmra.mrb[0].mxu0 %v1284
          %v3380 = vpop.f32.mrb[0].mxu0
          %v3381 = vadd.f32 %v3262, %v3380
          %v3382 = vpop.f32.mrb[0].mxu0
          %3383 = vmatprep.mubr.f32.mxu0 %v1287
          %3384 = vmatmul.mubr.f32.gmra.mrb[0].mxu0 %v1286
          %v3385 = vpop.f32.mrb[0].mxu0
          %v3386 = vadd.f32 %v3262, %v3385
          %v3387 = vpop.f32.mrb[0].mxu0
          %3388 = vmatprep.mubr.f32.mxu0 %v1289
          %3389 = vmatmul.mubr.f32.gmra.mrb[0].mxu0 %v1288
          %v3390 = vpop.f32.mrb[0].mxu0
          %v3391 = vadd.f32 %v3262, %v3390
          %v3392 = vpop.f32.mrb[0].mxu0
          %3393 = vmatprep.mubr.f32.mxu0 %v1291
          %3394 = vmatmul.mubr.f32.gmra.mrb[0].mxu0 %v1290
          %v3395 = vpop.f32.mrb[0].mxu0
          %v3396 = vadd.f32 %v3262, %v3395
          %v3397 = vpop.f32.mrb[0].mxu0
          %3398 = vmatprep.mubr.f32.mxu0 %v1293
          %3399 = vmatmul.mubr.f32.gmra.mrb[0].mxu0 %v1292
          %v3400 = vpop.f32.mrb[0].mxu0
          %v3401 = vadd.f32 %v3262, %v3400
          %v3402 = vpop.f32.mrb[0].mxu0
          %3403 = vmatprep.mubr.f32.mxu0 %v1295
          %3404 = vmatmul.mubr.f32.gmra.mrb[0].mxu0 %v1294
          %v3405 = vpop.f32.mrb[0].mxu0
          %v3406 = vadd.f32 %v3262, %v3405
          %v3407 = vpop.f32.mrb[0].mxu0
          %3408 = vmatprep.mubr.f32.mxu0 %v1297
          %3409 = vmatmul.mubr.f32.gmra.mrb[0].mxu0 %v1296
          %v3410 = vpop.f32.mrb[0].mxu0
          %v3411 = vadd.f32 %v3262, %v3410
          %v3412 = vpop.f32.mrb[0].mxu0
          %3413 = vmatprep.mubr.f32.mxu0 %v1299
          %3414 = vmatmul.mubr.f32.gmra.mrb[0].mxu0 %v1298
          %v3415 = vpop.f32.mrb[0].mxu0
          %v3416 = vadd.f32 %v3262, %v3415
          %v3417 = vpop.f32.mrb[0].mxu0
          %3418 = vmatprep.mubr.f32.mxu0 %v1301
          %3419 = vmatmul.mubr.f32.gmra.mrb[0].mxu0 %v1300
          %v3420 = vpop.f32.mrb[0].mxu0
          %v3421 = vadd.f32 %v3262, %v3420
          %v3422 = vpop.f32.mrb[0].mxu0
          %3423 = vmatprep.mubr.f32.mxu0 %v1303
          %3424 = vmatmul.mubr.f32.gmra.mrb[0].mxu0 %v1302
          %v3425 = vpop.f32.mrb[0].mxu0
          %v3426 = vadd.f32 %v3262, %v3425
          %v3427 = vpop.f32.mrb[0].mxu0
          %3428 = vmatprep.mubr.f32.mxu0 %v1305
          %3429 = vmatmul.mubr.f32.gmra.mrb[0].mxu0 %v1304
          %v3430 = vpop.f32.mrb[0].mxu0
          %v3431 = vadd.f32 %v3262, %v3430
          %v3432 = vpop.f32.mrb[0].mxu0
          %3433 = vmatprep.mubr.f32.mxu0 %v1307
          %3434 = vmatmul.mubr.f32.gmra.mrb[0].mxu0 %v1306
          %v3435 = vpop.f32.mrb[0].mxu0
          %v3436 = vadd.f32 %v3262, %v3435
          %v3437 = vpop.f32.mrb[0].mxu0
          %3438 = vmatprep.mubr.f32.mxu0 %v1309
          %3439 = vmatmul.mubr.f32.gmra.mrb[0].mxu0 %v1308
          %v3440 = vpop.f32.mrb[0].mxu0
          %v3441 = vadd.f32 %v3262, %v3440
          %v3442 = vpop.f32.mrb[0].mxu0
          %3443 = vmatprep.mubr.f32.mxu0 %v1311
          %3444 = vmatmul.mubr.f32.gmra.mrb[0].mxu0 %v1310
          %v3445 = vpop.f32.mrb[0].mxu0
          %v3446 = vadd.f32 %v3262, %v3445
          %v3447 = vpop.f32.mrb[0].mxu0
          %3448 = vmatprep.mubr.f32.mxu0 %v1313
          %3449 = vmatmul.mubr.f32.gmra.mrb[0].mxu0 %v1312
          %v3450 = vpop.f32.mrb[0].mxu0
          %v3451 = vadd.f32 %v3262, %v3450
          %v3452 = vpop.f32.mrb[0].mxu0
          %3453 = vmatprep.mubr.f32.mxu0 %v1315
          %3454 = vmatmul.mubr.f32.gmra.mrb[0].mxu0 %v1314
          %v3455 = vpop.f32.mrb[0].mxu0
          %v3456 = vadd.f32 %v3262, %v3455
          %v3457 = vpop.f32.mrb[0].mxu0
          %3458 = vmatprep.mubr.f32.mxu0 %v1317
          %3459 = vmatmul.mubr.f32.gmra.mrb[0].mxu0 %v1316
          %v3460 = vpop.f32.mrb[0].mxu0
          %v3461 = vadd.f32 %v3262, %v3460
          %v3462 = vpop.f32.mrb[0].mxu0
          %3463 = vmatprep.mubr.f32.mxu0 %v1319
          %3464 = vmatmul.mubr.f32.gmra.mrb[0].mxu0 %v1318
          %v3465 = vpop.f32.mrb[0].mxu0
          %v3466 = vadd.f32 %v3262, %v3465
          %v3467 = vpop.f32.mrb[0].mxu0
          %3468 = vmatprep.mubr.f32.mxu0 %v1321
          %3469 = vmatmul.mubr.f32.gmra.mrb[0].mxu0 %v1320
          %v3470 = vpop.f32.mrb[0].mxu0
          %v3471 = vadd.f32 %v3262, %v3470
          %v3472 = vpop.f32.mrb[0].mxu0
          %3473 = vmatprep.mubr.f32.mxu0 %v1323
          %3474 = vmatmul.mubr.f32.gmra.mrb[0].mxu0 %v1322
          %v3475 = vpop.f32.mrb[0].mxu0
          %v3476 = vadd.f32 %v3262, %v3475
          %v3477 = vpop.f32.mrb[0].mxu0
          %3478 = vmatprep.mubr.f32.mxu0 %v1325
          %3479 = vmatmul.mubr.f32.gmra.mrb[0].mxu0 %v1324
          %v3480 = vpop.f32.mrb[0].mxu0
          %v3481 = vadd.f32 %v3262, %v3480
          %v3482 = vpop.f32.mrb[0].mxu0
          %3483 = vmatprep.mubr.f32.mxu0 %v1327
          %3484 = vmatmul.mubr.f32.gmra.mrb[0].mxu0 %v1326
          %v3485 = vpop.f32.mrb[0].mxu0
          %v3486 = vadd.f32 %v3262, %v3485
          %v3487 = vpop.f32.mrb[0].mxu0
          %3488 = vdwg.mxu0
          %s3489 = scalar_lea.vmem [#allocation3], 512
          %3490 = vst.msk [vmem:[%s3489] sm:$0xff] %vm2296, %v3331
          %3491 = vst.msk [vmem:[%s3489 + $0x8] sm:$0xff] %vm2296, %v3336
          %3492 = vst.msk [vmem:[%s3489 + $0x10] sm:$0xff] %vm2296, %v3341
          %3493 = vst.msk [vmem:[%s3489 + $0x18] sm:$0xff] %vm2296, %v3346
          %3494 = vst.msk [vmem:[%s3489 + $0x20] sm:$0xff] %vm2296, %v3351
          %3495 = vst.msk [vmem:[%s3489 + $0x28] sm:$0xff] %vm2296, %v3356
          %3496 = vst.msk [vmem:[%s3489 + $0x30] sm:$0xff] %vm2296, %v3361
          %3497 = vst.msk [vmem:[%s3489 + $0x38] sm:$0xff] %vm2296, %v3366
          %3498 = vst.msk [vmem:[%s3489 + $0x40] sm:$0xff] %vm2296, %v3371
          %3499 = vst.msk [vmem:[%s3489 + $0x48] sm:$0xff] %vm2296, %v3376
          %3500 = vst.msk [vmem:[%s3489 + $0x50] sm:$0xff] %vm2296, %v3381
          %3501 = vst.msk [vmem:[%s3489 + $0x58] sm:$0xff] %vm2296, %v3386
          %3502 = vst.msk [vmem:[%s3489 + $0x60] sm:$0xff] %vm2296, %v3391
          %3503 = vst.msk [vmem:[%s3489 + $0x68] sm:$0xff] %vm2296, %v3396
          %3504 = vst.msk [vmem:[%s3489 + $0x70] sm:$0xff] %vm2296, %v3401
          %3505 = vst.msk [vmem:[%s3489 + $0x78] sm:$0xff] %vm2296, %v3406
          %3506 = vst.msk [vmem:[%s3489 + $0x80] sm:$0xff] %vm2296, %v3411
          %3507 = vst.msk [vmem:[%s3489 + $0x88] sm:$0xff] %vm2296, %v3416
          %3508 = vst.msk [vmem:[%s3489 + $0x90] sm:$0xff] %vm2296, %v3421
          %3509 = vst.msk [vmem:[%s3489 + $0x98] sm:$0xff] %vm2296, %v3426
          %3510 = vst.msk [vmem:[%s3489 + $0xa0] sm:$0xff] %vm2296, %v3431
          %3511 = vst.msk [vmem:[%s3489 + $0xa8] sm:$0xff] %vm2296, %v3436
          %3512 = vst.msk [vmem:[%s3489 + $0xb0] sm:$0xff] %vm2296, %v3441
          %3513 = vst.msk [vmem:[%s3489 + $0xb8] sm:$0xff] %vm2296, %v3446
          %3514 = vst.msk [vmem:[%s3489 + $0xc0] sm:$0xff] %vm2296, %v3451
          %3515 = vst.msk [vmem:[%s3489 + $0xc8] sm:$0xff] %vm2296, %v3456
          %3516 = vst.msk [vmem:[%s3489 + $0xd0] sm:$0xff] %vm2296, %v3461
          %3517 = vst.msk [vmem:[%s3489 + $0xd8] sm:$0xff] %vm2296, %v3466
          %3518 = vst.msk [vmem:[%s3489 + $0xe0] sm:$0xff] %vm2296, %v3471
          %3519 = vst.msk [vmem:[%s3489 + $0xe8] sm:$0xff] %vm2296, %v3476
          %3520 = vst.msk [vmem:[%s3489 + $0xf0] sm:$0xff] %vm2296, %v3481
          %3521 = vst.msk [vmem:[%s3489 + $0xf8] sm:$0xff] %vm2296, %v3486
          %s3522 = scalar_lea.vmem %s7, 512
          %v3523 = vld [vmem:[%s3522] sm:$0xff]
          %v3524 = vld [vmem:[%s3522 + $0x8] sm:$0xff]
          %v3525 = vld [vmem:[%s3522 + $0x10] sm:$0xff]
          %v3526 = vld [vmem:[%s3522 + $0x18] sm:$0xff]
          %v3527 = vld [vmem:[%s3522 + $0x20] sm:$0xff]
          %v3528 = vld [vmem:[%s3522 + $0x28] sm:$0xff]
          %v3529 = vld [vmem:[%s3522 + $0x30] sm:$0xff]
          %v3530 = vld [vmem:[%s3522 + $0x38] sm:$0xff]
          %v3531 = vld [vmem:[%s3522 + $0x40] sm:$0xff]
          %v3532 = vld [vmem:[%s3522 + $0x48] sm:$0xff]
          %v3533 = vld [vmem:[%s3522 + $0x50] sm:$0xff]
          %v3534 = vld [vmem:[%s3522 + $0x58] sm:$0xff]
          %v3535 = vld [vmem:[%s3522 + $0x60] sm:$0xff]
          %v3536 = vld [vmem:[%s3522 + $0x68] sm:$0xff]
          %v3537 = vld [vmem:[%s3522 + $0x70] sm:$0xff]
          %v3538 = vld [vmem:[%s3522 + $0x78] sm:$0xff]
          %v3539 = vld [vmem:[%s3522 + $0x80] sm:$0xff]
          %v3540 = vld [vmem:[%s3522 + $0x88] sm:$0xff]
          %v3541 = vld [vmem:[%s3522 + $0x90] sm:$0xff]
          %v3542 = vld [vmem:[%s3522 + $0x98] sm:$0xff]
          %v3543 = vld [vmem:[%s3522 + $0xa0] sm:$0xff]
          %v3544 = vld [vmem:[%s3522 + $0xa8] sm:$0xff]
          %v3545 = vld [vmem:[%s3522 + $0xb0] sm:$0xff]
          %v3546 = vld [vmem:[%s3522 + $0xb8] sm:$0xff]
          %v3547 = vld [vmem:[%s3522 + $0xc0] sm:$0xff]
          %v3548 = vld [vmem:[%s3522 + $0xc8] sm:$0xff]
          %v3549 = vld [vmem:[%s3522 + $0xd0] sm:$0xff]
          %v3550 = vld [vmem:[%s3522 + $0xd8] sm:$0xff]
          %v3551 = vld [vmem:[%s3522 + $0xe0] sm:$0xff]
          %v3552 = vld [vmem:[%s3522 + $0xe8] sm:$0xff]
          %v3553 = vld [vmem:[%s3522 + $0xf0] sm:$0xff]
          %v3554 = vld [vmem:[%s3522 + $0xf8] sm:$0xff]
          %s3555 = scalar_lea.vmem [#allocation13], 2
          %v3556 = vld [vmem:[%s3555] sm:$0x1]
          %v3558 = vlaneseq
          %v3559 = vshrl.u32 %v3558, 7
          %v3560 = vsub.s32 0, %v3559
          %v3561 = vrot.slane %v3556, %v3560
          %3563 = vmatprep.subr.mxu0 0.0
          %3564 = vmatpush1.msra.mxu0 %v3523
          %3565 = vmatprep.subr.mxu0 0.0
          %3566 = vmatpush1.msra.mxu0 %v3524
          %3567 = vmatprep.subr.mxu0 0.0
          %3568 = vmatpush1.msra.mxu0 %v3525
          %3569 = vmatprep.subr.mxu0 0.0
          %3570 = vmatpush1.msra.mxu0 %v3526
          %3571 = vmatprep.subr.mxu0 0.0
          %3572 = vmatpush1.msra.mxu0 %v3527
          %3573 = vmatprep.subr.mxu0 0.0
          %3574 = vmatpush1.msra.mxu0 %v3528
          %3575 = vmatprep.subr.mxu0 0.0
          %3576 = vmatpush1.msra.mxu0 %v3529
          %3577 = vmatprep.subr.mxu0 0.0
          %3578 = vmatpush1.msra.mxu0 %v3530
          %3579 = vmatprep.subr.mxu0 0.0
          %3580 = vmatpush1.msra.mxu0 %v3531
          %3581 = vmatprep.subr.mxu0 0.0
          %3582 = vmatpush1.msra.mxu0 %v3532
          %3583 = vmatprep.subr.mxu0 0.0
          %3584 = vmatpush1.msra.mxu0 %v3533
          %3585 = vmatprep.subr.mxu0 0.0
          %3586 = vmatpush1.msra.mxu0 %v3534
          %3587 = vmatprep.subr.mxu0 0.0
          %3588 = vmatpush1.msra.mxu0 %v3535
          %3589 = vmatprep.subr.mxu0 0.0
          %3590 = vmatpush1.msra.mxu0 %v3536
          %3591 = vmatprep.subr.mxu0 0.0
          %3592 = vmatpush1.msra.mxu0 %v3537
          %3593 = vmatprep.subr.mxu0 0.0
          %3594 = vmatpush1.msra.mxu0 %v3538
          %3595 = vmatprep.subr.mxu0 0.0
          %3596 = vmatpush1.msra.mxu0 %v3539
          %3597 = vmatprep.subr.mxu0 0.0
          %3598 = vmatpush1.msra.mxu0 %v3540
          %3599 = vmatprep.subr.mxu0 0.0
          %3600 = vmatpush1.msra.mxu0 %v3541
          %3601 = vmatprep.subr.mxu0 0.0
          %3602 = vmatpush1.msra.mxu0 %v3542
          %3603 = vmatprep.subr.mxu0 0.0
          %3604 = vmatpush1.msra.mxu0 %v3543
          %3605 = vmatprep.subr.mxu0 0.0
          %3606 = vmatpush1.msra.mxu0 %v3544
          %3607 = vmatprep.subr.mxu0 0.0
          %3608 = vmatpush1.msra.mxu0 %v3545
          %3609 = vmatprep.subr.mxu0 0.0
          %3610 = vmatpush1.msra.mxu0 %v3546
          %3611 = vmatprep.subr.mxu0 0.0
          %3612 = vmatpush1.msra.mxu0 %v3547
          %3613 = vmatprep.subr.mxu0 0.0
          %3614 = vmatpush1.msra.mxu0 %v3548
          %3615 = vmatprep.subr.mxu0 0.0
          %3616 = vmatpush1.msra.mxu0 %v3549
          %3617 = vmatprep.subr.mxu0 0.0
          %3618 = vmatpush1.msra.mxu0 %v3550
          %3619 = vmatprep.subr.mxu0 0.0
          %3620 = vmatpush1.msra.mxu0 %v3551
          %3621 = vmatprep.subr.mxu0 0.0
          %3622 = vmatpush1.msra.mxu0 %v3552
          %3623 = vmatprep.subr.mxu0 0.0
          %3624 = vmatpush1.msra.mxu0 %v3553
          %3625 = vmatprep.subr.mxu0 0.0
          %3626 = vmatpush1.msra.mxu0 %v3554
          %3627 = vmatprep.mubr.f32.mxu0 %v1969
          %3628 = vmatmul.mubr.f32.gmra.mrb[0].mxu0 %v1968
          %v3629 = vpop.f32.mrb[0].mxu0
          %v3630 = vadd.f32 %v3561, %v3629
          %v3631 = vpop.f32.mrb[0].mxu0
          %3632 = vmatprep.mubr.f32.mxu0 %v1971
          %3633 = vmatmul.mubr.f32.gmra.mrb[0].mxu0 %v1970
          %v3634 = vpop.f32.mrb[0].mxu0
          %v3635 = vadd.f32 %v3561, %v3634
          %v3636 = vpop.f32.mrb[0].mxu0
          %3637 = vmatprep.mubr.f32.mxu0 %v1973
          %3638 = vmatmul.mubr.f32.gmra.mrb[0].mxu0 %v1972
          %v3639 = vpop.f32.mrb[0].mxu0
          %v3640 = vadd.f32 %v3561, %v3639
          %v3641 = vpop.f32.mrb[0].mxu0
          %3642 = vmatprep.mubr.f32.mxu0 %v1975
          %3643 = vmatmul.mubr.f32.gmra.mrb[0].mxu0 %v1974
          %v3644 = vpop.f32.mrb[0].mxu0
          %v3645 = vadd.f32 %v3561, %v3644
          %v3646 = vpop.f32.mrb[0].mxu0
          %3647 = vmatprep.mubr.f32.mxu0 %v1977
          %3648 = vmatmul.mubr.f32.gmra.mrb[0].mxu0 %v1976
          %v3649 = vpop.f32.mrb[0].mxu0
          %v3650 = vadd.f32 %v3561, %v3649
          %v3651 = vpop.f32.mrb[0].mxu0
          %3652 = vmatprep.mubr.f32.mxu0 %v1979
          %3653 = vmatmul.mubr.f32.gmra.mrb[0].mxu0 %v1978
          %v3654 = vpop.f32.mrb[0].mxu0
          %v3655 = vadd.f32 %v3561, %v3654
          %v3656 = vpop.f32.mrb[0].mxu0
          %3657 = vmatprep.mubr.f32.mxu0 %v1981
          %3658 = vmatmul.mubr.f32.gmra.mrb[0].mxu0 %v1980
          %v3659 = vpop.f32.mrb[0].mxu0
          %v3660 = vadd.f32 %v3561, %v3659
          %v3661 = vpop.f32.mrb[0].mxu0
          %3662 = vmatprep.mubr.f32.mxu0 %v1983
          %3663 = vmatmul.mubr.f32.gmra.mrb[0].mxu0 %v1982
          %v3664 = vpop.f32.mrb[0].mxu0
          %v3665 = vadd.f32 %v3561, %v3664
          %v3666 = vpop.f32.mrb[0].mxu0
          %3667 = vmatprep.mubr.f32.mxu0 %v1985
          %3668 = vmatmul.mubr.f32.gmra.mrb[0].mxu0 %v1984
          %v3669 = vpop.f32.mrb[0].mxu0
          %v3670 = vadd.f32 %v3561, %v3669
          %v3671 = vpop.f32.mrb[0].mxu0
          %3672 = vmatprep.mubr.f32.mxu0 %v1987
          %3673 = vmatmul.mubr.f32.gmra.mrb[0].mxu0 %v1986
          %v3674 = vpop.f32.mrb[0].mxu0
          %v3675 = vadd.f32 %v3561, %v3674
          %v3676 = vpop.f32.mrb[0].mxu0
          %3677 = vmatprep.mubr.f32.mxu0 %v1989
          %3678 = vmatmul.mubr.f32.gmra.mrb[0].mxu0 %v1988
          %v3679 = vpop.f32.mrb[0].mxu0
          %v3680 = vadd.f32 %v3561, %v3679
          %v3681 = vpop.f32.mrb[0].mxu0
          %3682 = vmatprep.mubr.f32.mxu0 %v1991
          %3683 = vmatmul.mubr.f32.gmra.mrb[0].mxu0 %v1990
          %v3684 = vpop.f32.mrb[0].mxu0
          %v3685 = vadd.f32 %v3561, %v3684
          %v3686 = vpop.f32.mrb[0].mxu0
          %3687 = vmatprep.mubr.f32.mxu0 %v1993
          %3688 = vmatmul.mubr.f32.gmra.mrb[0].mxu0 %v1992
          %v3689 = vpop.f32.mrb[0].mxu0
          %v3690 = vadd.f32 %v3561, %v3689
          %v3691 = vpop.f32.mrb[0].mxu0
          %3692 = vmatprep.mubr.f32.mxu0 %v1995
          %3693 = vmatmul.mubr.f32.gmra.mrb[0].mxu0 %v1994
          %v3694 = vpop.f32.mrb[0].mxu0
          %v3695 = vadd.f32 %v3561, %v3694
          %v3696 = vpop.f32.mrb[0].mxu0
          %3697 = vmatprep.mubr.f32.mxu0 %v1997
          %3698 = vmatmul.mubr.f32.gmra.mrb[0].mxu0 %v1996
          %v3699 = vpop.f32.mrb[0].mxu0
          %v3700 = vadd.f32 %v3561, %v3699
          %v3701 = vpop.f32.mrb[0].mxu0
          %3702 = vmatprep.mubr.f32.mxu0 %v1999
          %3703 = vmatmul.mubr.f32.gmra.mrb[0].mxu0 %v1998
          %v3704 = vpop.f32.mrb[0].mxu0
          %v3705 = vadd.f32 %v3561, %v3704
          %v3706 = vpop.f32.mrb[0].mxu0
          %3707 = vmatprep.mubr.f32.mxu0 %v2001
          %3708 = vmatmul.mubr.f32.gmra.mrb[0].mxu0 %v2000
          %v3709 = vpop.f32.mrb[0].mxu0
          %v3710 = vadd.f32 %v3561, %v3709
          %v3711 = vpop.f32.mrb[0].mxu0
          %3712 = vmatprep.mubr.f32.mxu0 %v2003
          %3713 = vmatmul.mubr.f32.gmra.mrb[0].mxu0 %v2002
          %v3714 = vpop.f32.mrb[0].mxu0
          %v3715 = vadd.f32 %v3561, %v3714
          %v3716 = vpop.f32.mrb[0].mxu0
          %3717 = vmatprep.mubr.f32.mxu0 %v2005
          %3718 = vmatmul.mubr.f32.gmra.mrb[0].mxu0 %v2004
          %v3719 = vpop.f32.mrb[0].mxu0
          %v3720 = vadd.f32 %v3561, %v3719
          %v3721 = vpop.f32.mrb[0].mxu0
          %3722 = vmatprep.mubr.f32.mxu0 %v2007
          %3723 = vmatmul.mubr.f32.gmra.mrb[0].mxu0 %v2006
          %v3724 = vpop.f32.mrb[0].mxu0
          %v3725 = vadd.f32 %v3561, %v3724
          %v3726 = vpop.f32.mrb[0].mxu0
          %3727 = vmatprep.mubr.f32.mxu0 %v2009
          %3728 = vmatmul.mubr.f32.gmra.mrb[0].mxu0 %v2008
          %v3729 = vpop.f32.mrb[0].mxu0
          %v3730 = vadd.f32 %v3561, %v3729
          %v3731 = vpop.f32.mrb[0].mxu0
          %3732 = vmatprep.mubr.f32.mxu0 %v2011
          %3733 = vmatmul.mubr.f32.gmra.mrb[0].mxu0 %v2010
          %v3734 = vpop.f32.mrb[0].mxu0
          %v3735 = vadd.f32 %v3561, %v3734
          %v3736 = vpop.f32.mrb[0].mxu0
          %3737 = vmatprep.mubr.f32.mxu0 %v2013
          %3738 = vmatmul.mubr.f32.gmra.mrb[0].mxu0 %v2012
          %v3739 = vpop.f32.mrb[0].mxu0
          %v3740 = vadd.f32 %v3561, %v3739
          %v3741 = vpop.f32.mrb[0].mxu0
          %3742 = vmatprep.mubr.f32.mxu0 %v2015
          %3743 = vmatmul.mubr.f32.gmra.mrb[0].mxu0 %v2014
          %v3744 = vpop.f32.mrb[0].mxu0
          %v3745 = vadd.f32 %v3561, %v3744
          %v3746 = vpop.f32.mrb[0].mxu0
          %3747 = vmatprep.mubr.f32.mxu0 %v2017
          %3748 = vmatmul.mubr.f32.gmra.mrb[0].mxu0 %v2016
          %v3749 = vpop.f32.mrb[0].mxu0
          %v3750 = vadd.f32 %v3561, %v3749
          %v3751 = vpop.f32.mrb[0].mxu0
          %3752 = vmatprep.mubr.f32.mxu0 %v2019
          %3753 = vmatmul.mubr.f32.gmra.mrb[0].mxu0 %v2018
          %v3754 = vpop.f32.mrb[0].mxu0
          %v3755 = vadd.f32 %v3561, %v3754
          %v3756 = vpop.f32.mrb[0].mxu0
          %3757 = vmatprep.mubr.f32.mxu0 %v2021
          %3758 = vmatmul.mubr.f32.gmra.mrb[0].mxu0 %v2020
          %v3759 = vpop.f32.mrb[0].mxu0
          %v3760 = vadd.f32 %v3561, %v3759
          %v3761 = vpop.f32.mrb[0].mxu0
          %3762 = vmatprep.mubr.f32.mxu0 %v2023
          %3763 = vmatmul.mubr.f32.gmra.mrb[0].mxu0 %v2022
          %v3764 = vpop.f32.mrb[0].mxu0
          %v3765 = vadd.f32 %v3561, %v3764
          %v3766 = vpop.f32.mrb[0].mxu0
          %3767 = vmatprep.mubr.f32.mxu0 %v2025
          %3768 = vmatmul.mubr.f32.gmra.mrb[0].mxu0 %v2024
          %v3769 = vpop.f32.mrb[0].mxu0
          %v3770 = vadd.f32 %v3561, %v3769
          %v3771 = vpop.f32.mrb[0].mxu0
          %3772 = vmatprep.mubr.f32.mxu0 %v2027
          %3773 = vmatmul.mubr.f32.gmra.mrb[0].mxu0 %v2026
          %v3774 = vpop.f32.mrb[0].mxu0
          %v3775 = vadd.f32 %v3561, %v3774
          %v3776 = vpop.f32.mrb[0].mxu0
          %3777 = vmatprep.mubr.f32.mxu0 %v2029
          %3778 = vmatmul.mubr.f32.gmra.mrb[0].mxu0 %v2028
          %v3779 = vpop.f32.mrb[0].mxu0
          %v3780 = vadd.f32 %v3561, %v3779
          %v3781 = vpop.f32.mrb[0].mxu0
          %3782 = vmatprep.mubr.f32.mxu0 %v2031
          %3783 = vmatmul.mubr.f32.gmra.mrb[0].mxu0 %v2030
          %v3784 = vpop.f32.mrb[0].mxu0
          %v3785 = vadd.f32 %v3561, %v3784
          %v3786 = vpop.f32.mrb[0].mxu0
          %3787 = vdwg.mxu0
          %s3788 = scalar_lea.vmem [#allocation4], 512
          %3789 = vst.msk [vmem:[%s3788] sm:$0xff] %vm2296, %v3630
          %3790 = vst.msk [vmem:[%s3788 + $0x8] sm:$0xff] %vm2296, %v3635
          %3791 = vst.msk [vmem:[%s3788 + $0x10] sm:$0xff] %vm2296, %v3640
          %3792 = vst.msk [vmem:[%s3788 + $0x18] sm:$0xff] %vm2296, %v3645
          %3793 = vst.msk [vmem:[%s3788 + $0x20] sm:$0xff] %vm2296, %v3650
          %3794 = vst.msk [vmem:[%s3788 + $0x28] sm:$0xff] %vm2296, %v3655
          %3795 = vst.msk [vmem:[%s3788 + $0x30] sm:$0xff] %vm2296, %v3660
          %3796 = vst.msk [vmem:[%s3788 + $0x38] sm:$0xff] %vm2296, %v3665
          %3797 = vst.msk [vmem:[%s3788 + $0x40] sm:$0xff] %vm2296, %v3670
          %3798 = vst.msk [vmem:[%s3788 + $0x48] sm:$0xff] %vm2296, %v3675
          %3799 = vst.msk [vmem:[%s3788 + $0x50] sm:$0xff] %vm2296, %v3680
          %3800 = vst.msk [vmem:[%s3788 + $0x58] sm:$0xff] %vm2296, %v3685
          %3801 = vst.msk [vmem:[%s3788 + $0x60] sm:$0xff] %vm2296, %v3690
          %3802 = vst.msk [vmem:[%s3788 + $0x68] sm:$0xff] %vm2296, %v3695
          %3803 = vst.msk [vmem:[%s3788 + $0x70] sm:$0xff] %vm2296, %v3700
          %3804 = vst.msk [vmem:[%s3788 + $0x78] sm:$0xff] %vm2296, %v3705
          %3805 = vst.msk [vmem:[%s3788 + $0x80] sm:$0xff] %vm2296, %v3710
          %3806 = vst.msk [vmem:[%s3788 + $0x88] sm:$0xff] %vm2296, %v3715
          %3807 = vst.msk [vmem:[%s3788 + $0x90] sm:$0xff] %vm2296, %v3720
          %3808 = vst.msk [vmem:[%s3788 + $0x98] sm:$0xff] %vm2296, %v3725
          %3809 = vst.msk [vmem:[%s3788 + $0xa0] sm:$0xff] %vm2296, %v3730
          %3810 = vst.msk [vmem:[%s3788 + $0xa8] sm:$0xff] %vm2296, %v3735
          %3811 = vst.msk [vmem:[%s3788 + $0xb0] sm:$0xff] %vm2296, %v3740
          %3812 = vst.msk [vmem:[%s3788 + $0xb8] sm:$0xff] %vm2296, %v3745
          %3813 = vst.msk [vmem:[%s3788 + $0xc0] sm:$0xff] %vm2296, %v3750
          %3814 = vst.msk [vmem:[%s3788 + $0xc8] sm:$0xff] %vm2296, %v3755
          %3815 = vst.msk [vmem:[%s3788 + $0xd0] sm:$0xff] %vm2296, %v3760
          %3816 = vst.msk [vmem:[%s3788 + $0xd8] sm:$0xff] %vm2296, %v3765
          %3817 = vst.msk [vmem:[%s3788 + $0xe0] sm:$0xff] %vm2296, %v3770
          %3818 = vst.msk [vmem:[%s3788 + $0xe8] sm:$0xff] %vm2296, %v3775
          %3819 = vst.msk [vmem:[%s3788 + $0xf0] sm:$0xff] %vm2296, %v3780
          %3820 = vst.msk [vmem:[%s3788 + $0xf8] sm:$0xff] %vm2296, %v3785
          %s3821 = scalar_lea.vmem %s6, 768
          %v3822 = vld [vmem:[%s3821] sm:$0xff]
          %v3823 = vld [vmem:[%s3821 + $0x8] sm:$0xff]
          %v3824 = vld [vmem:[%s3821 + $0x10] sm:$0xff]
          %v3825 = vld [vmem:[%s3821 + $0x18] sm:$0xff]
          %v3826 = vld [vmem:[%s3821 + $0x20] sm:$0xff]
          %v3827 = vld [vmem:[%s3821 + $0x28] sm:$0xff]
          %v3828 = vld [vmem:[%s3821 + $0x30] sm:$0xff]
          %v3829 = vld [vmem:[%s3821 + $0x38] sm:$0xff]
          %v3830 = vld [vmem:[%s3821 + $0x40] sm:$0xff]
          %v3831 = vld [vmem:[%s3821 + $0x48] sm:$0xff]
          %v3832 = vld [vmem:[%s3821 + $0x50] sm:$0xff]
          %v3833 = vld [vmem:[%s3821 + $0x58] sm:$0xff]
          %v3834 = vld [vmem:[%s3821 + $0x60] sm:$0xff]
          %v3835 = vld [vmem:[%s3821 + $0x68] sm:$0xff]
          %v3836 = vld [vmem:[%s3821 + $0x70] sm:$0xff]
          %v3837 = vld [vmem:[%s3821 + $0x78] sm:$0xff]
          %v3838 = vld [vmem:[%s3821 + $0x80] sm:$0xff]
          %v3839 = vld [vmem:[%s3821 + $0x88] sm:$0xff]
          %v3840 = vld [vmem:[%s3821 + $0x90] sm:$0xff]
          %v3841 = vld [vmem:[%s3821 + $0x98] sm:$0xff]
          %v3842 = vld [vmem:[%s3821 + $0xa0] sm:$0xff]
          %v3843 = vld [vmem:[%s3821 + $0xa8] sm:$0xff]
          %v3844 = vld [vmem:[%s3821 + $0xb0] sm:$0xff]
          %v3845 = vld [vmem:[%s3821 + $0xb8] sm:$0xff]
          %v3846 = vld [vmem:[%s3821 + $0xc0] sm:$0xff]
          %v3847 = vld [vmem:[%s3821 + $0xc8] sm:$0xff]
          %v3848 = vld [vmem:[%s3821 + $0xd0] sm:$0xff]
          %v3849 = vld [vmem:[%s3821 + $0xd8] sm:$0xff]
          %v3850 = vld [vmem:[%s3821 + $0xe0] sm:$0xff]
          %v3851 = vld [vmem:[%s3821 + $0xe8] sm:$0xff]
          %v3852 = vld [vmem:[%s3821 + $0xf0] sm:$0xff]
          %v3853 = vld [vmem:[%s3821 + $0xf8] sm:$0xff]
          %s3854 = scalar_lea.vmem [#allocation11], 3
          %v3855 = vld [vmem:[%s3854] sm:$0x1]
          %v3857 = vlaneseq
          %v3858 = vshrl.u32 %v3857, 7
          %v3859 = vsub.s32 0, %v3858
          %v3860 = vrot.slane %v3855, %v3859
          %3862 = vmatprep.subr.mxu0 0.0
          %3863 = vmatpush1.msra.mxu0 %v3822
          %3864 = vmatprep.subr.mxu0 0.0
          %3865 = vmatpush1.msra.mxu0 %v3823
          %3866 = vmatprep.subr.mxu0 0.0
          %3867 = vmatpush1.msra.mxu0 %v3824
          %3868 = vmatprep.subr.mxu0 0.0
          %3869 = vmatpush1.msra.mxu0 %v3825
          %3870 = vmatprep.subr.mxu0 0.0
          %3871 = vmatpush1.msra.mxu0 %v3826
          %3872 = vmatprep.subr.mxu0 0.0
          %3873 = vmatpush1.msra.mxu0 %v3827
          %3874 = vmatprep.subr.mxu0 0.0
          %3875 = vmatpush1.msra.mxu0 %v3828
          %3876 = vmatprep.subr.mxu0 0.0
          %3877 = vmatpush1.msra.mxu0 %v3829
          %3878 = vmatprep.subr.mxu0 0.0
          %3879 = vmatpush1.msra.mxu0 %v3830
          %3880 = vmatprep.subr.mxu0 0.0
          %3881 = vmatpush1.msra.mxu0 %v3831
          %3882 = vmatprep.subr.mxu0 0.0
          %3883 = vmatpush1.msra.mxu0 %v3832
          %3884 = vmatprep.subr.mxu0 0.0
          %3885 = vmatpush1.msra.mxu0 %v3833
          %3886 = vmatprep.subr.mxu0 0.0
          %3887 = vmatpush1.msra.mxu0 %v3834
          %3888 = vmatprep.subr.mxu0 0.0
          %3889 = vmatpush1.msra.mxu0 %v3835
          %3890 = vmatprep.subr.mxu0 0.0
          %3891 = vmatpush1.msra.mxu0 %v3836
          %3892 = vmatprep.subr.mxu0 0.0
          %3893 = vmatpush1.msra.mxu0 %v3837
          %3894 = vmatprep.subr.mxu0 0.0
          %3895 = vmatpush1.msra.mxu0 %v3838
          %3896 = vmatprep.subr.mxu0 0.0
          %3897 = vmatpush1.msra.mxu0 %v3839
          %3898 = vmatprep.subr.mxu0 0.0
          %3899 = vmatpush1.msra.mxu0 %v3840
          %3900 = vmatprep.subr.mxu0 0.0
          %3901 = vmatpush1.msra.mxu0 %v3841
          %3902 = vmatprep.subr.mxu0 0.0
          %3903 = vmatpush1.msra.mxu0 %v3842
          %3904 = vmatprep.subr.mxu0 0.0
          %3905 = vmatpush1.msra.mxu0 %v3843
          %3906 = vmatprep.subr.mxu0 0.0
          %3907 = vmatpush1.msra.mxu0 %v3844
          %3908 = vmatprep.subr.mxu0 0.0
          %3909 = vmatpush1.msra.mxu0 %v3845
          %3910 = vmatprep.subr.mxu0 0.0
          %3911 = vmatpush1.msra.mxu0 %v3846
          %3912 = vmatprep.subr.mxu0 0.0
          %3913 = vmatpush1.msra.mxu0 %v3847
          %3914 = vmatprep.subr.mxu0 0.0
          %3915 = vmatpush1.msra.mxu0 %v3848
          %3916 = vmatprep.subr.mxu0 0.0
          %3917 = vmatpush1.msra.mxu0 %v3849
          %3918 = vmatprep.subr.mxu0 0.0
          %3919 = vmatpush1.msra.mxu0 %v3850
          %3920 = vmatprep.subr.mxu0 0.0
          %3921 = vmatpush1.msra.mxu0 %v3851
          %3922 = vmatprep.subr.mxu0 0.0
          %3923 = vmatpush1.msra.mxu0 %v3852
          %3924 = vmatprep.subr.mxu0 0.0
          %3925 = vmatpush1.msra.mxu0 %v3853
          %3926 = vmatprep.mubr.f32.mxu0 %v1265
          %3927 = vmatmul.mubr.f32.gmra.mrb[0].mxu0 %v1264
          %v3928 = vpop.f32.mrb[0].mxu0
          %v3929 = vadd.f32 %v3860, %v3928
          %v3930 = vpop.f32.mrb[0].mxu0
          %3931 = vmatprep.mubr.f32.mxu0 %v1267
          %3932 = vmatmul.mubr.f32.gmra.mrb[0].mxu0 %v1266
          %v3933 = vpop.f32.mrb[0].mxu0
          %v3934 = vadd.f32 %v3860, %v3933
          %v3935 = vpop.f32.mrb[0].mxu0
          %3936 = vmatprep.mubr.f32.mxu0 %v1269
          %3937 = vmatmul.mubr.f32.gmra.mrb[0].mxu0 %v1268
          %v3938 = vpop.f32.mrb[0].mxu0
          %v3939 = vadd.f32 %v3860, %v3938
          %v3940 = vpop.f32.mrb[0].mxu0
          %3941 = vmatprep.mubr.f32.mxu0 %v1271
          %3942 = vmatmul.mubr.f32.gmra.mrb[0].mxu0 %v1270
          %v3943 = vpop.f32.mrb[0].mxu0
          %v3944 = vadd.f32 %v3860, %v3943
          %v3945 = vpop.f32.mrb[0].mxu0
          %3946 = vmatprep.mubr.f32.mxu0 %v1273
          %3947 = vmatmul.mubr.f32.gmra.mrb[0].mxu0 %v1272
          %v3948 = vpop.f32.mrb[0].mxu0
          %v3949 = vadd.f32 %v3860, %v3948
          %v3950 = vpop.f32.mrb[0].mxu0
          %3951 = vmatprep.mubr.f32.mxu0 %v1275
          %3952 = vmatmul.mubr.f32.gmra.mrb[0].mxu0 %v1274
          %v3953 = vpop.f32.mrb[0].mxu0
          %v3954 = vadd.f32 %v3860, %v3953
          %v3955 = vpop.f32.mrb[0].mxu0
          %3956 = vmatprep.mubr.f32.mxu0 %v1277
          %3957 = vmatmul.mubr.f32.gmra.mrb[0].mxu0 %v1276
          %v3958 = vpop.f32.mrb[0].mxu0
          %v3959 = vadd.f32 %v3860, %v3958
          %v3960 = vpop.f32.mrb[0].mxu0
          %3961 = vmatprep.mubr.f32.mxu0 %v1279
          %3962 = vmatmul.mubr.f32.gmra.mrb[0].mxu0 %v1278
          %v3963 = vpop.f32.mrb[0].mxu0
          %v3964 = vadd.f32 %v3860, %v3963
          %v3965 = vpop.f32.mrb[0].mxu0
          %3966 = vmatprep.mubr.f32.mxu0 %v1281
          %3967 = vmatmul.mubr.f32.gmra.mrb[0].mxu0 %v1280
          %v3968 = vpop.f32.mrb[0].mxu0
          %v3969 = vadd.f32 %v3860, %v3968
          %v3970 = vpop.f32.mrb[0].mxu0
          %3971 = vmatprep.mubr.f32.mxu0 %v1283
          %3972 = vmatmul.mubr.f32.gmra.mrb[0].mxu0 %v1282
          %v3973 = vpop.f32.mrb[0].mxu0
          %v3974 = vadd.f32 %v3860, %v3973
          %v3975 = vpop.f32.mrb[0].mxu0
          %3976 = vmatprep.mubr.f32.mxu0 %v1285
          %3977 = vmatmul.mubr.f32.gmra.mrb[0].mxu0 %v1284
          %v3978 = vpop.f32.mrb[0].mxu0
          %v3979 = vadd.f32 %v3860, %v3978
          %v3980 = vpop.f32.mrb[0].mxu0
          %3981 = vmatprep.mubr.f32.mxu0 %v1287
          %3982 = vmatmul.mubr.f32.gmra.mrb[0].mxu0 %v1286
          %v3983 = vpop.f32.mrb[0].mxu0
          %v3984 = vadd.f32 %v3860, %v3983
          %v3985 = vpop.f32.mrb[0].mxu0
          %3986 = vmatprep.mubr.f32.mxu0 %v1289
          %3987 = vmatmul.mubr.f32.gmra.mrb[0].mxu0 %v1288
          %v3988 = vpop.f32.mrb[0].mxu0
          %v3989 = vadd.f32 %v3860, %v3988
          %v3990 = vpop.f32.mrb[0].mxu0
          %3991 = vmatprep.mubr.f32.mxu0 %v1291
          %3992 = vmatmul.mubr.f32.gmra.mrb[0].mxu0 %v1290
          %v3993 = vpop.f32.mrb[0].mxu0
          %v3994 = vadd.f32 %v3860, %v3993
          %v3995 = vpop.f32.mrb[0].mxu0
          %3996 = vmatprep.mubr.f32.mxu0 %v1293
          %3997 = vmatmul.mubr.f32.gmra.mrb[0].mxu0 %v1292
          %v3998 = vpop.f32.mrb[0].mxu0
          %v3999 = vadd.f32 %v3860, %v3998
          %v4000 = vpop.f32.mrb[0].mxu0
          %4001 = vmatprep.mubr.f32.mxu0 %v1295
          %4002 = vmatmul.mubr.f32.gmra.mrb[0].mxu0 %v1294
          %v4003 = vpop.f32.mrb[0].mxu0
          %v4004 = vadd.f32 %v3860, %v4003
          %v4005 = vpop.f32.mrb[0].mxu0
          %4006 = vmatprep.mubr.f32.mxu0 %v1297
          %4007 = vmatmul.mubr.f32.gmra.mrb[0].mxu0 %v1296
          %v4008 = vpop.f32.mrb[0].mxu0
          %v4009 = vadd.f32 %v3860, %v4008
          %v4010 = vpop.f32.mrb[0].mxu0
          %4011 = vmatprep.mubr.f32.mxu0 %v1299
          %4012 = vmatmul.mubr.f32.gmra.mrb[0].mxu0 %v1298
          %v4013 = vpop.f32.mrb[0].mxu0
          %v4014 = vadd.f32 %v3860, %v4013
          %v4015 = vpop.f32.mrb[0].mxu0
          %4016 = vmatprep.mubr.f32.mxu0 %v1301
          %4017 = vmatmul.mubr.f32.gmra.mrb[0].mxu0 %v1300
          %v4018 = vpop.f32.mrb[0].mxu0
          %v4019 = vadd.f32 %v3860, %v4018
          %v4020 = vpop.f32.mrb[0].mxu0
          %4021 = vmatprep.mubr.f32.mxu0 %v1303
          %4022 = vmatmul.mubr.f32.gmra.mrb[0].mxu0 %v1302
          %v4023 = vpop.f32.mrb[0].mxu0
          %v4024 = vadd.f32 %v3860, %v4023
          %v4025 = vpop.f32.mrb[0].mxu0
          %4026 = vmatprep.mubr.f32.mxu0 %v1305
          %4027 = vmatmul.mubr.f32.gmra.mrb[0].mxu0 %v1304
          %v4028 = vpop.f32.mrb[0].mxu0
          %v4029 = vadd.f32 %v3860, %v4028
          %v4030 = vpop.f32.mrb[0].mxu0
          %4031 = vmatprep.mubr.f32.mxu0 %v1307
          %4032 = vmatmul.mubr.f32.gmra.mrb[0].mxu0 %v1306
          %v4033 = vpop.f32.mrb[0].mxu0
          %v4034 = vadd.f32 %v3860, %v4033
          %v4035 = vpop.f32.mrb[0].mxu0
          %4036 = vmatprep.mubr.f32.mxu0 %v1309
          %4037 = vmatmul.mubr.f32.gmra.mrb[0].mxu0 %v1308
          %v4038 = vpop.f32.mrb[0].mxu0
          %v4039 = vadd.f32 %v3860, %v4038
          %v4040 = vpop.f32.mrb[0].mxu0
          %4041 = vmatprep.mubr.f32.mxu0 %v1311
          %4042 = vmatmul.mubr.f32.gmra.mrb[0].mxu0 %v1310
          %v4043 = vpop.f32.mrb[0].mxu0
          %v4044 = vadd.f32 %v3860, %v4043
          %v4045 = vpop.f32.mrb[0].mxu0
          %4046 = vmatprep.mubr.f32.mxu0 %v1313
          %4047 = vmatmul.mubr.f32.gmra.mrb[0].mxu0 %v1312
          %v4048 = vpop.f32.mrb[0].mxu0
          %v4049 = vadd.f32 %v3860, %v4048
          %v4050 = vpop.f32.mrb[0].mxu0
          %4051 = vmatprep.mubr.f32.mxu0 %v1315
          %4052 = vmatmul.mubr.f32.gmra.mrb[0].mxu0 %v1314
          %v4053 = vpop.f32.mrb[0].mxu0
          %v4054 = vadd.f32 %v3860, %v4053
          %v4055 = vpop.f32.mrb[0].mxu0
          %4056 = vmatprep.mubr.f32.mxu0 %v1317
          %4057 = vmatmul.mubr.f32.gmra.mrb[0].mxu0 %v1316
          %v4058 = vpop.f32.mrb[0].mxu0
          %v4059 = vadd.f32 %v3860, %v4058
          %v4060 = vpop.f32.mrb[0].mxu0
          %4061 = vmatprep.mubr.f32.mxu0 %v1319
          %4062 = vmatmul.mubr.f32.gmra.mrb[0].mxu0 %v1318
          %v4063 = vpop.f32.mrb[0].mxu0
          %v4064 = vadd.f32 %v3860, %v4063
          %v4065 = vpop.f32.mrb[0].mxu0
          %4066 = vmatprep.mubr.f32.mxu0 %v1321
          %4067 = vmatmul.mubr.f32.gmra.mrb[0].mxu0 %v1320
          %v4068 = vpop.f32.mrb[0].mxu0
          %v4069 = vadd.f32 %v3860, %v4068
          %v4070 = vpop.f32.mrb[0].mxu0
          %4071 = vmatprep.mubr.f32.mxu0 %v1323
          %4072 = vmatmul.mubr.f32.gmra.mrb[0].mxu0 %v1322
          %v4073 = vpop.f32.mrb[0].mxu0
          %v4074 = vadd.f32 %v3860, %v4073
          %v4075 = vpop.f32.mrb[0].mxu0
          %4076 = vmatprep.mubr.f32.mxu0 %v1325
          %4077 = vmatmul.mubr.f32.gmra.mrb[0].mxu0 %v1324
          %v4078 = vpop.f32.mrb[0].mxu0
          %v4079 = vadd.f32 %v3860, %v4078
          %v4080 = vpop.f32.mrb[0].mxu0
          %4081 = vmatprep.mubr.f32.mxu0 %v1327
          %4082 = vmatmul.mubr.f32.gmra.mrb[0].mxu0 %v1326
          %v4083 = vpop.f32.mrb[0].mxu0
          %v4084 = vadd.f32 %v3860, %v4083
          %v4085 = vpop.f32.mrb[0].mxu0
          %4086 = vdwg.mxu0
          %s4087 = scalar_lea.vmem [#allocation3], 768
          %4088 = vst.msk [vmem:[%s4087] sm:$0xff] %vm2296, %v3929
          %4089 = vst.msk [vmem:[%s4087 + $0x8] sm:$0xff] %vm2296, %v3934
          %4090 = vst.msk [vmem:[%s4087 + $0x10] sm:$0xff] %vm2296, %v3939
          %4091 = vst.msk [vmem:[%s4087 + $0x18] sm:$0xff] %vm2296, %v3944
          %4092 = vst.msk [vmem:[%s4087 + $0x20] sm:$0xff] %vm2296, %v3949
          %4093 = vst.msk [vmem:[%s4087 + $0x28] sm:$0xff] %vm2296, %v3954
          %4094 = vst.msk [vmem:[%s4087 + $0x30] sm:$0xff] %vm2296, %v3959
          %4095 = vst.msk [vmem:[%s4087 + $0x38] sm:$0xff] %vm2296, %v3964
          %4096 = vst.msk [vmem:[%s4087 + $0x40] sm:$0xff] %vm2296, %v3969
          %4097 = vst.msk [vmem:[%s4087 + $0x48] sm:$0xff] %vm2296, %v3974
          %4098 = vst.msk [vmem:[%s4087 + $0x50] sm:$0xff] %vm2296, %v3979
          %4099 = vst.msk [vmem:[%s4087 + $0x58] sm:$0xff] %vm2296, %v3984
          %4100 = vst.msk [vmem:[%s4087 + $0x60] sm:$0xff] %vm2296, %v3989
          %4101 = vst.msk [vmem:[%s4087 + $0x68] sm:$0xff] %vm2296, %v3994
          %4102 = vst.msk [vmem:[%s4087 + $0x70] sm:$0xff] %vm2296, %v3999
          %4103 = vst.msk [vmem:[%s4087 + $0x78] sm:$0xff] %vm2296, %v4004
          %4104 = vst.msk [vmem:[%s4087 + $0x80] sm:$0xff] %vm2296, %v4009
          %4105 = vst.msk [vmem:[%s4087 + $0x88] sm:$0xff] %vm2296, %v4014
          %4106 = vst.msk [vmem:[%s4087 + $0x90] sm:$0xff] %vm2296, %v4019
          %4107 = vst.msk [vmem:[%s4087 + $0x98] sm:$0xff] %vm2296, %v4024
          %4108 = vst.msk [vmem:[%s4087 + $0xa0] sm:$0xff] %vm2296, %v4029
          %4109 = vst.msk [vmem:[%s4087 + $0xa8] sm:$0xff] %vm2296, %v4034
          %4110 = vst.msk [vmem:[%s4087 + $0xb0] sm:$0xff] %vm2296, %v4039
          %4111 = vst.msk [vmem:[%s4087 + $0xb8] sm:$0xff] %vm2296, %v4044
          %4112 = vst.msk [vmem:[%s4087 + $0xc0] sm:$0xff] %vm2296, %v4049
          %4113 = vst.msk [vmem:[%s4087 + $0xc8] sm:$0xff] %vm2296, %v4054
          %4114 = vst.msk [vmem:[%s4087 + $0xd0] sm:$0xff] %vm2296, %v4059
          %4115 = vst.msk [vmem:[%s4087 + $0xd8] sm:$0xff] %vm2296, %v4064
          %4116 = vst.msk [vmem:[%s4087 + $0xe0] sm:$0xff] %vm2296, %v4069
          %4117 = vst.msk [vmem:[%s4087 + $0xe8] sm:$0xff] %vm2296, %v4074
          %4118 = vst.msk [vmem:[%s4087 + $0xf0] sm:$0xff] %vm2296, %v4079
          %4119 = vst.msk [vmem:[%s4087 + $0xf8] sm:$0xff] %vm2296, %v4084
          %s4120 = scalar_lea.vmem %s7, 768
          %v4121 = vld [vmem:[%s4120] sm:$0xff]
          %v4122 = vld [vmem:[%s4120 + $0x8] sm:$0xff]
          %v4123 = vld [vmem:[%s4120 + $0x10] sm:$0xff]
          %v4124 = vld [vmem:[%s4120 + $0x18] sm:$0xff]
          %v4125 = vld [vmem:[%s4120 + $0x20] sm:$0xff]
          %v4126 = vld [vmem:[%s4120 + $0x28] sm:$0xff]
          %v4127 = vld [vmem:[%s4120 + $0x30] sm:$0xff]
          %v4128 = vld [vmem:[%s4120 + $0x38] sm:$0xff]
          %v4129 = vld [vmem:[%s4120 + $0x40] sm:$0xff]
          %v4130 = vld [vmem:[%s4120 + $0x48] sm:$0xff]
          %v4131 = vld [vmem:[%s4120 + $0x50] sm:$0xff]
          %v4132 = vld [vmem:[%s4120 + $0x58] sm:$0xff]
          %v4133 = vld [vmem:[%s4120 + $0x60] sm:$0xff]
          %v4134 = vld [vmem:[%s4120 + $0x68] sm:$0xff]
          %v4135 = vld [vmem:[%s4120 + $0x70] sm:$0xff]
          %v4136 = vld [vmem:[%s4120 + $0x78] sm:$0xff]
          %v4137 = vld [vmem:[%s4120 + $0x80] sm:$0xff]
          %v4138 = vld [vmem:[%s4120 + $0x88] sm:$0xff]
          %v4139 = vld [vmem:[%s4120 + $0x90] sm:$0xff]
          %v4140 = vld [vmem:[%s4120 + $0x98] sm:$0xff]
          %v4141 = vld [vmem:[%s4120 + $0xa0] sm:$0xff]
          %v4142 = vld [vmem:[%s4120 + $0xa8] sm:$0xff]
          %v4143 = vld [vmem:[%s4120 + $0xb0] sm:$0xff]
          %v4144 = vld [vmem:[%s4120 + $0xb8] sm:$0xff]
          %v4145 = vld [vmem:[%s4120 + $0xc0] sm:$0xff]
          %v4146 = vld [vmem:[%s4120 + $0xc8] sm:$0xff]
          %v4147 = vld [vmem:[%s4120 + $0xd0] sm:$0xff]
          %v4148 = vld [vmem:[%s4120 + $0xd8] sm:$0xff]
          %v4149 = vld [vmem:[%s4120 + $0xe0] sm:$0xff]
          %v4150 = vld [vmem:[%s4120 + $0xe8] sm:$0xff]
          %v4151 = vld [vmem:[%s4120 + $0xf0] sm:$0xff]
          %v4152 = vld [vmem:[%s4120 + $0xf8] sm:$0xff]
          %s4153 = scalar_lea.vmem [#allocation13], 3
          %v4154 = vld [vmem:[%s4153] sm:$0x1]
          %v4156 = vlaneseq
          %v4157 = vshrl.u32 %v4156, 7
          %v4158 = vsub.s32 0, %v4157
          %v4159 = vrot.slane %v4154, %v4158
          %4161 = vmatprep.subr.mxu0 0.0
          %4162 = vmatpush1.msra.mxu0 %v4121
          %4163 = vmatprep.subr.mxu0 0.0
          %4164 = vmatpush1.msra.mxu0 %v4122
          %4165 = vmatprep.subr.mxu0 0.0
          %4166 = vmatpush1.msra.mxu0 %v4123
          %4167 = vmatprep.subr.mxu0 0.0
          %4168 = vmatpush1.msra.mxu0 %v4124
          %4169 = vmatprep.subr.mxu0 0.0
          %4170 = vmatpush1.msra.mxu0 %v4125
          %4171 = vmatprep.subr.mxu0 0.0
          %4172 = vmatpush1.msra.mxu0 %v4126
          %4173 = vmatprep.subr.mxu0 0.0
          %4174 = vmatpush1.msra.mxu0 %v4127
          %4175 = vmatprep.subr.mxu0 0.0
          %4176 = vmatpush1.msra.mxu0 %v4128
          %4177 = vmatprep.subr.mxu0 0.0
          %4178 = vmatpush1.msra.mxu0 %v4129
          %4179 = vmatprep.subr.mxu0 0.0
          %4180 = vmatpush1.msra.mxu0 %v4130
          %4181 = vmatprep.subr.mxu0 0.0
          %4182 = vmatpush1.msra.mxu0 %v4131
          %4183 = vmatprep.subr.mxu0 0.0
          %4184 = vmatpush1.msra.mxu0 %v4132
          %4185 = vmatprep.subr.mxu0 0.0
          %4186 = vmatpush1.msra.mxu0 %v4133
          %4187 = vmatprep.subr.mxu0 0.0
          %4188 = vmatpush1.msra.mxu0 %v4134
          %4189 = vmatprep.subr.mxu0 0.0
          %4190 = vmatpush1.msra.mxu0 %v4135
          %4191 = vmatprep.subr.mxu0 0.0
          %4192 = vmatpush1.msra.mxu0 %v4136
          %4193 = vmatprep.subr.mxu0 0.0
          %4194 = vmatpush1.msra.mxu0 %v4137
          %4195 = vmatprep.subr.mxu0 0.0
          %4196 = vmatpush1.msra.mxu0 %v4138
          %4197 = vmatprep.subr.mxu0 0.0
          %4198 = vmatpush1.msra.mxu0 %v4139
          %4199 = vmatprep.subr.mxu0 0.0
          %4200 = vmatpush1.msra.mxu0 %v4140
          %4201 = vmatprep.subr.mxu0 0.0
          %4202 = vmatpush1.msra.mxu0 %v4141
          %4203 = vmatprep.subr.mxu0 0.0
          %4204 = vmatpush1.msra.mxu0 %v4142
          %4205 = vmatprep.subr.mxu0 0.0
          %4206 = vmatpush1.msra.mxu0 %v4143
          %4207 = vmatprep.subr.mxu0 0.0
          %4208 = vmatpush1.msra.mxu0 %v4144
          %4209 = vmatprep.subr.mxu0 0.0
          %4210 = vmatpush1.msra.mxu0 %v4145
          %4211 = vmatprep.subr.mxu0 0.0
          %4212 = vmatpush1.msra.mxu0 %v4146
          %4213 = vmatprep.subr.mxu0 0.0
          %4214 = vmatpush1.msra.mxu0 %v4147
          %4215 = vmatprep.subr.mxu0 0.0
          %4216 = vmatpush1.msra.mxu0 %v4148
          %4217 = vmatprep.subr.mxu0 0.0
          %4218 = vmatpush1.msra.mxu0 %v4149
          %4219 = vmatprep.subr.mxu0 0.0
          %4220 = vmatpush1.msra.mxu0 %v4150
          %4221 = vmatprep.subr.mxu0 0.0
          %4222 = vmatpush1.msra.mxu0 %v4151
          %4223 = vmatprep.subr.mxu0 0.0
          %4224 = vmatpush1.msra.mxu0 %v4152
          %4225 = vmatprep.mubr.f32.mxu0 %v1969
          %4226 = vmatmul.mubr.f32.gmra.mrb[0].mxu0 %v1968
          %v4227 = vpop.f32.mrb[0].mxu0
          %v4228 = vadd.f32 %v4159, %v4227
          %v4229 = vpop.f32.mrb[0].mxu0
          %4230 = vmatprep.mubr.f32.mxu0 %v1971
          %4231 = vmatmul.mubr.f32.gmra.mrb[0].mxu0 %v1970
          %v4232 = vpop.f32.mrb[0].mxu0
          %v4233 = vadd.f32 %v4159, %v4232
          %v4234 = vpop.f32.mrb[0].mxu0
          %4235 = vmatprep.mubr.f32.mxu0 %v1973
          %4236 = vmatmul.mubr.f32.gmra.mrb[0].mxu0 %v1972
          %v4237 = vpop.f32.mrb[0].mxu0
          %v4238 = vadd.f32 %v4159, %v4237
          %v4239 = vpop.f32.mrb[0].mxu0
          %4240 = vmatprep.mubr.f32.mxu0 %v1975
          %4241 = vmatmul.mubr.f32.gmra.mrb[0].mxu0 %v1974
          %v4242 = vpop.f32.mrb[0].mxu0
          %v4243 = vadd.f32 %v4159, %v4242
          %v4244 = vpop.f32.mrb[0].mxu0
          %4245 = vmatprep.mubr.f32.mxu0 %v1977
          %4246 = vmatmul.mubr.f32.gmra.mrb[0].mxu0 %v1976
          %v4247 = vpop.f32.mrb[0].mxu0
          %v4248 = vadd.f32 %v4159, %v4247
          %v4249 = vpop.f32.mrb[0].mxu0
          %4250 = vmatprep.mubr.f32.mxu0 %v1979
          %4251 = vmatmul.mubr.f32.gmra.mrb[0].mxu0 %v1978
          %v4252 = vpop.f32.mrb[0].mxu0
          %v4253 = vadd.f32 %v4159, %v4252
          %v4254 = vpop.f32.mrb[0].mxu0
          %4255 = vmatprep.mubr.f32.mxu0 %v1981
          %4256 = vmatmul.mubr.f32.gmra.mrb[0].mxu0 %v1980
          %v4257 = vpop.f32.mrb[0].mxu0
          %v4258 = vadd.f32 %v4159, %v4257
          %v4259 = vpop.f32.mrb[0].mxu0
          %4260 = vmatprep.mubr.f32.mxu0 %v1983
          %4261 = vmatmul.mubr.f32.gmra.mrb[0].mxu0 %v1982
          %v4262 = vpop.f32.mrb[0].mxu0
          %v4263 = vadd.f32 %v4159, %v4262
          %v4264 = vpop.f32.mrb[0].mxu0
          %4265 = vmatprep.mubr.f32.mxu0 %v1985
          %4266 = vmatmul.mubr.f32.gmra.mrb[0].mxu0 %v1984
          %v4267 = vpop.f32.mrb[0].mxu0
          %v4268 = vadd.f32 %v4159, %v4267
          %v4269 = vpop.f32.mrb[0].mxu0
          %4270 = vmatprep.mubr.f32.mxu0 %v1987
          %4271 = vmatmul.mubr.f32.gmra.mrb[0].mxu0 %v1986
          %v4272 = vpop.f32.mrb[0].mxu0
          %v4273 = vadd.f32 %v4159, %v4272
          %v4274 = vpop.f32.mrb[0].mxu0
          %4275 = vmatprep.mubr.f32.mxu0 %v1989
          %4276 = vmatmul.mubr.f32.gmra.mrb[0].mxu0 %v1988
          %v4277 = vpop.f32.mrb[0].mxu0
          %v4278 = vadd.f32 %v4159, %v4277
          %v4279 = vpop.f32.mrb[0].mxu0
          %4280 = vmatprep.mubr.f32.mxu0 %v1991
          %4281 = vmatmul.mubr.f32.gmra.mrb[0].mxu0 %v1990
          %v4282 = vpop.f32.mrb[0].mxu0
          %v4283 = vadd.f32 %v4159, %v4282
          %v4284 = vpop.f32.mrb[0].mxu0
          %4285 = vmatprep.mubr.f32.mxu0 %v1993
          %4286 = vmatmul.mubr.f32.gmra.mrb[0].mxu0 %v1992
          %v4287 = vpop.f32.mrb[0].mxu0
          %v4288 = vadd.f32 %v4159, %v4287
          %v4289 = vpop.f32.mrb[0].mxu0
          %4290 = vmatprep.mubr.f32.mxu0 %v1995
          %4291 = vmatmul.mubr.f32.gmra.mrb[0].mxu0 %v1994
          %v4292 = vpop.f32.mrb[0].mxu0
          %v4293 = vadd.f32 %v4159, %v4292
          %v4294 = vpop.f32.mrb[0].mxu0
          %4295 = vmatprep.mubr.f32.mxu0 %v1997
          %4296 = vmatmul.mubr.f32.gmra.mrb[0].mxu0 %v1996
          %v4297 = vpop.f32.mrb[0].mxu0
          %v4298 = vadd.f32 %v4159, %v4297
          %v4299 = vpop.f32.mrb[0].mxu0
          %4300 = vmatprep.mubr.f32.mxu0 %v1999
          %4301 = vmatmul.mubr.f32.gmra.mrb[0].mxu0 %v1998
          %v4302 = vpop.f32.mrb[0].mxu0
          %v4303 = vadd.f32 %v4159, %v4302
          %v4304 = vpop.f32.mrb[0].mxu0
          %4305 = vmatprep.mubr.f32.mxu0 %v2001
          %4306 = vmatmul.mubr.f32.gmra.mrb[0].mxu0 %v2000
          %v4307 = vpop.f32.mrb[0].mxu0
          %v4308 = vadd.f32 %v4159, %v4307
          %v4309 = vpop.f32.mrb[0].mxu0
          %4310 = vmatprep.mubr.f32.mxu0 %v2003
          %4311 = vmatmul.mubr.f32.gmra.mrb[0].mxu0 %v2002
          %v4312 = vpop.f32.mrb[0].mxu0
          %v4313 = vadd.f32 %v4159, %v4312
          %v4314 = vpop.f32.mrb[0].mxu0
          %4315 = vmatprep.mubr.f32.mxu0 %v2005
          %4316 = vmatmul.mubr.f32.gmra.mrb[0].mxu0 %v2004
          %v4317 = vpop.f32.mrb[0].mxu0
          %v4318 = vadd.f32 %v4159, %v4317
          %v4319 = vpop.f32.mrb[0].mxu0
          %4320 = vmatprep.mubr.f32.mxu0 %v2007
          %4321 = vmatmul.mubr.f32.gmra.mrb[0].mxu0 %v2006
          %v4322 = vpop.f32.mrb[0].mxu0
          %v4323 = vadd.f32 %v4159, %v4322
          %v4324 = vpop.f32.mrb[0].mxu0
          %4325 = vmatprep.mubr.f32.mxu0 %v2009
          %4326 = vmatmul.mubr.f32.gmra.mrb[0].mxu0 %v2008
          %v4327 = vpop.f32.mrb[0].mxu0
          %v4328 = vadd.f32 %v4159, %v4327
          %v4329 = vpop.f32.mrb[0].mxu0
          %4330 = vmatprep.mubr.f32.mxu0 %v2011
          %4331 = vmatmul.mubr.f32.gmra.mrb[0].mxu0 %v2010
          %v4332 = vpop.f32.mrb[0].mxu0
          %v4333 = vadd.f32 %v4159, %v4332
          %v4334 = vpop.f32.mrb[0].mxu0
          %4335 = vmatprep.mubr.f32.mxu0 %v2013
          %4336 = vmatmul.mubr.f32.gmra.mrb[0].mxu0 %v2012
          %v4337 = vpop.f32.mrb[0].mxu0
          %v4338 = vadd.f32 %v4159, %v4337
          %v4339 = vpop.f32.mrb[0].mxu0
          %4340 = vmatprep.mubr.f32.mxu0 %v2015
          %4341 = vmatmul.mubr.f32.gmra.mrb[0].mxu0 %v2014
          %v4342 = vpop.f32.mrb[0].mxu0
          %v4343 = vadd.f32 %v4159, %v4342
          %v4344 = vpop.f32.mrb[0].mxu0
          %4345 = vmatprep.mubr.f32.mxu0 %v2017
          %4346 = vmatmul.mubr.f32.gmra.mrb[0].mxu0 %v2016
          %v4347 = vpop.f32.mrb[0].mxu0
          %v4348 = vadd.f32 %v4159, %v4347
          %v4349 = vpop.f32.mrb[0].mxu0
          %4350 = vmatprep.mubr.f32.mxu0 %v2019
          %4351 = vmatmul.mubr.f32.gmra.mrb[0].mxu0 %v2018
          %v4352 = vpop.f32.mrb[0].mxu0
          %v4353 = vadd.f32 %v4159, %v4352
          %v4354 = vpop.f32.mrb[0].mxu0
          %4355 = vmatprep.mubr.f32.mxu0 %v2021
          %4356 = vmatmul.mubr.f32.gmra.mrb[0].mxu0 %v2020
          %v4357 = vpop.f32.mrb[0].mxu0
          %v4358 = vadd.f32 %v4159, %v4357
          %v4359 = vpop.f32.mrb[0].mxu0
          %4360 = vmatprep.mubr.f32.mxu0 %v2023
          %4361 = vmatmul.mubr.f32.gmra.mrb[0].mxu0 %v2022
          %v4362 = vpop.f32.mrb[0].mxu0
          %v4363 = vadd.f32 %v4159, %v4362
          %v4364 = vpop.f32.mrb[0].mxu0
          %4365 = vmatprep.mubr.f32.mxu0 %v2025
          %4366 = vmatmul.mubr.f32.gmra.mrb[0].mxu0 %v2024
          %v4367 = vpop.f32.mrb[0].mxu0
          %v4368 = vadd.f32 %v4159, %v4367
          %v4369 = vpop.f32.mrb[0].mxu0
          %4370 = vmatprep.mubr.f32.mxu0 %v2027
          %4371 = vmatmul.mubr.f32.gmra.mrb[0].mxu0 %v2026
          %v4372 = vpop.f32.mrb[0].mxu0
          %v4373 = vadd.f32 %v4159, %v4372
          %v4374 = vpop.f32.mrb[0].mxu0
          %4375 = vmatprep.mubr.f32.mxu0 %v2029
          %4376 = vmatmul.mubr.f32.gmra.mrb[0].mxu0 %v2028
          %v4377 = vpop.f32.mrb[0].mxu0
          %v4378 = vadd.f32 %v4159, %v4377
          %v4379 = vpop.f32.mrb[0].mxu0
          %4380 = vmatprep.mubr.f32.mxu0 %v2031
          %4381 = vmatmul.mubr.f32.gmra.mrb[0].mxu0 %v2030
          %v4382 = vpop.f32.mrb[0].mxu0
          %v4383 = vadd.f32 %v4159, %v4382
          %v4384 = vpop.f32.mrb[0].mxu0
          %4385 = vdwg.mxu0
          %s4386 = scalar_lea.vmem [#allocation4], 768
          %4387 = vst.msk [vmem:[%s4386] sm:$0xff] %vm2296, %v4228
          %4388 = vst.msk [vmem:[%s4386 + $0x8] sm:$0xff] %vm2296, %v4233
          %4389 = vst.msk [vmem:[%s4386 + $0x10] sm:$0xff] %vm2296, %v4238
          %4390 = vst.msk [vmem:[%s4386 + $0x18] sm:$0xff] %vm2296, %v4243
          %4391 = vst.msk [vmem:[%s4386 + $0x20] sm:$0xff] %vm2296, %v4248
          %4392 = vst.msk [vmem:[%s4386 + $0x28] sm:$0xff] %vm2296, %v4253
          %4393 = vst.msk [vmem:[%s4386 + $0x30] sm:$0xff] %vm2296, %v4258
          %4394 = vst.msk [vmem:[%s4386 + $0x38] sm:$0xff] %vm2296, %v4263
          %4395 = vst.msk [vmem:[%s4386 + $0x40] sm:$0xff] %vm2296, %v4268
          %4396 = vst.msk [vmem:[%s4386 + $0x48] sm:$0xff] %vm2296, %v4273
          %4397 = vst.msk [vmem:[%s4386 + $0x50] sm:$0xff] %vm2296, %v4278
          %4398 = vst.msk [vmem:[%s4386 + $0x58] sm:$0xff] %vm2296, %v4283
          %4399 = vst.msk [vmem:[%s4386 + $0x60] sm:$0xff] %vm2296, %v4288
          %4400 = vst.msk [vmem:[%s4386 + $0x68] sm:$0xff] %vm2296, %v4293
          %4401 = vst.msk [vmem:[%s4386 + $0x70] sm:$0xff] %vm2296, %v4298
          %4402 = vst.msk [vmem:[%s4386 + $0x78] sm:$0xff] %vm2296, %v4303
          %4403 = vst.msk [vmem:[%s4386 + $0x80] sm:$0xff] %vm2296, %v4308
          %4404 = vst.msk [vmem:[%s4386 + $0x88] sm:$0xff] %vm2296, %v4313
          %4405 = vst.msk [vmem:[%s4386 + $0x90] sm:$0xff] %vm2296, %v4318
          %4406 = vst.msk [vmem:[%s4386 + $0x98] sm:$0xff] %vm2296, %v4323
          %4407 = vst.msk [vmem:[%s4386 + $0xa0] sm:$0xff] %vm2296, %v4328
          %4408 = vst.msk [vmem:[%s4386 + $0xa8] sm:$0xff] %vm2296, %v4333
          %4409 = vst.msk [vmem:[%s4386 + $0xb0] sm:$0xff] %vm2296, %v4338
          %4410 = vst.msk [vmem:[%s4386 + $0xb8] sm:$0xff] %vm2296, %v4343
          %4411 = vst.msk [vmem:[%s4386 + $0xc0] sm:$0xff] %vm2296, %v4348
          %4412 = vst.msk [vmem:[%s4386 + $0xc8] sm:$0xff] %vm2296, %v4353
          %4413 = vst.msk [vmem:[%s4386 + $0xd0] sm:$0xff] %vm2296, %v4358
          %4414 = vst.msk [vmem:[%s4386 + $0xd8] sm:$0xff] %vm2296, %v4363
          %4415 = vst.msk [vmem:[%s4386 + $0xe0] sm:$0xff] %vm2296, %v4368
          %4416 = vst.msk [vmem:[%s4386 + $0xe8] sm:$0xff] %vm2296, %v4373
          %4417 = vst.msk [vmem:[%s4386 + $0xf0] sm:$0xff] %vm2296, %v4378
          %4418 = vst.msk [vmem:[%s4386 + $0xf8] sm:$0xff] %vm2296, %v4383
        $region100: #{tpu_custom_call.1} parent=71 // pred_fallthru
          _
        %v4419 = vld [vmem:[%s582] sm:$0xff]
        %v4420 = vld [vmem:[%s582 + $0x8] sm:$0xff]
        %v4421 = vld [vmem:[%s582 + $0x10] sm:$0xff]
        %v4422 = vld [vmem:[%s582 + $0x18] sm:$0xff]
        %v4423 = vld [vmem:[%s582 + $0x20] sm:$0xff]
        %v4424 = vld [vmem:[%s582 + $0x28] sm:$0xff]
        %v4425 = vld [vmem:[%s582 + $0x30] sm:$0xff]
        %v4426 = vld [vmem:[%s582 + $0x38] sm:$0xff]
        %v4427 = vld [vmem:[%s582 + $0x40] sm:$0xff]
        %v4428 = vld [vmem:[%s582 + $0x48] sm:$0xff]
        %v4429 = vld [vmem:[%s582 + $0x50] sm:$0xff]
        %v4430 = vld [vmem:[%s582 + $0x58] sm:$0xff]
        %v4431 = vld [vmem:[%s582 + $0x60] sm:$0xff]
        %v4432 = vld [vmem:[%s582 + $0x68] sm:$0xff]
        %v4433 = vld [vmem:[%s582 + $0x70] sm:$0xff]
        %v4434 = vld [vmem:[%s582 + $0x78] sm:$0xff]
        %v4435 = vld [vmem:[%s582 + $0x80] sm:$0xff]
        %v4436 = vld [vmem:[%s582 + $0x88] sm:$0xff]
        %v4437 = vld [vmem:[%s582 + $0x90] sm:$0xff]
        %v4438 = vld [vmem:[%s582 + $0x98] sm:$0xff]
        %v4439 = vld [vmem:[%s582 + $0xa0] sm:$0xff]
        %v4440 = vld [vmem:[%s582 + $0xa8] sm:$0xff]
        %v4441 = vld [vmem:[%s582 + $0xb0] sm:$0xff]
        %v4442 = vld [vmem:[%s582 + $0xb8] sm:$0xff]
        %v4443 = vld [vmem:[%s582 + $0xc0] sm:$0xff]
        %v4444 = vld [vmem:[%s582 + $0xc8] sm:$0xff]
        %v4445 = vld [vmem:[%s582 + $0xd0] sm:$0xff]
        %v4446 = vld [vmem:[%s582 + $0xd8] sm:$0xff]
        %v4447 = vld [vmem:[%s582 + $0xe0] sm:$0xff]
        %v4448 = vld [vmem:[%s582 + $0xe8] sm:$0xff]
        %v4449 = vld [vmem:[%s582 + $0xf0] sm:$0xff]
        %v4450 = vld [vmem:[%s582 + $0xf8] sm:$0xff]
        %v4451 = vadd.f32 %v4419, %v4420
        %4452 = vadd.xlane.f32.xlu0 %v4451
        %v4453 = vpop.xlane.xlu0 %4452
        %v4454 = vadd.f32 %v4421, %v4422
        %4455 = vadd.xlane.f32.xlu0 %v4454
        %v4456 = vpop.xlane.xlu0 %4455
        %v4457 = vadd.f32 %v4423, %v4424
        %4458 = vadd.xlane.f32.xlu0 %v4457
        %v4459 = vpop.xlane.xlu0 %4458
        %v4460 = vadd.f32 %v4425, %v4426
        %4461 = vadd.xlane.f32.xlu0 %v4460
        %v4462 = vpop.xlane.xlu0 %4461
        %v4463 = vadd.f32 %v4427, %v4428
        %4464 = vadd.xlane.f32.xlu0 %v4463
        %v4465 = vpop.xlane.xlu0 %4464
        %v4466 = vadd.f32 %v4429, %v4430
        %4467 = vadd.xlane.f32.xlu0 %v4466
        %v4468 = vpop.xlane.xlu0 %4467
        %v4469 = vadd.f32 %v4431, %v4432
        %4470 = vadd.xlane.f32.xlu0 %v4469
        %v4471 = vpop.xlane.xlu0 %4470
        %v4472 = vadd.f32 %v4433, %v4434
        %4473 = vadd.xlane.f32.xlu0 %v4472
        %v4474 = vpop.xlane.xlu0 %4473
        %v4475 = vadd.f32 %v4435, %v4436
        %4476 = vadd.xlane.f32.xlu0 %v4475
        %v4477 = vpop.xlane.xlu0 %4476
        %v4478 = vadd.f32 %v4437, %v4438
        %4479 = vadd.xlane.f32.xlu0 %v4478
        %v4480 = vpop.xlane.xlu0 %4479
        %v4481 = vadd.f32 %v4439, %v4440
        %4482 = vadd.xlane.f32.xlu0 %v4481
        %v4483 = vpop.xlane.xlu0 %4482
        %v4484 = vadd.f32 %v4441, %v4442
        %4485 = vadd.xlane.f32.xlu0 %v4484
        %v4486 = vpop.xlane.xlu0 %4485
        %v4487 = vadd.f32 %v4443, %v4444
        %4488 = vadd.xlane.f32.xlu0 %v4487
        %v4489 = vpop.xlane.xlu0 %4488
        %v4490 = vadd.f32 %v4445, %v4446
        %4491 = vadd.xlane.f32.xlu0 %v4490
        %v4492 = vpop.xlane.xlu0 %4491
        %v4493 = vadd.f32 %v4447, %v4448
        %4494 = vadd.xlane.f32.xlu0 %v4493
        %v4495 = vpop.xlane.xlu0 %4494
        %v4496 = vadd.f32 %v4449, %v4450
        %4497 = vadd.xlane.f32.xlu0 %v4496
        %v4498 = vpop.xlane.xlu0 %4497
        %v4499 = vrcp.pop 256.0
        %v4500 = vmul.f32 %v4453, %v4499
        %v4501 = vmul.f32 %v4456, %v4499
        %v4502 = vmul.f32 %v4459, %v4499
        %v4503 = vmul.f32 %v4462, %v4499
        %v4504 = vmul.f32 %v4465, %v4499
        %v4505 = vmul.f32 %v4468, %v4499
        %v4506 = vmul.f32 %v4471, %v4499
        %v4507 = vmul.f32 %v4474, %v4499
        %v4508 = vmul.f32 %v4477, %v4499
        %v4509 = vmul.f32 %v4480, %v4499
        %v4510 = vmul.f32 %v4483, %v4499
        %v4511 = vmul.f32 %v4486, %v4499
        %v4512 = vmul.f32 %v4489, %v4499
        %v4513 = vmul.f32 %v4492, %v4499
        %v4514 = vmul.f32 %v4495, %v4499
        %v4515 = vmul.f32 %v4498, %v4499
        %v4516 = vsub.f32 %v4419, %v4500
        %v4517 = vsub.f32 %v4420, %v4500
        %v4518 = vsub.f32 %v4421, %v4501
        %v4519 = vsub.f32 %v4422, %v4501
        %v4520 = vsub.f32 %v4423, %v4502
        %v4521 = vsub.f32 %v4424, %v4502
        %v4522 = vsub.f32 %v4425, %v4503
        %v4523 = vsub.f32 %v4426, %v4503
        %v4524 = vsub.f32 %v4427, %v4504
        %v4525 = vsub.f32 %v4428, %v4504
        %v4526 = vsub.f32 %v4429, %v4505
        %v4527 = vsub.f32 %v4430, %v4505
        %v4528 = vsub.f32 %v4431, %v4506
        %v4529 = vsub.f32 %v4432, %v4506
        %v4530 = vsub.f32 %v4433, %v4507
        %v4531 = vsub.f32 %v4434, %v4507
        %v4532 = vsub.f32 %v4435, %v4508
        %v4533 = vsub.f32 %v4436, %v4508
        %v4534 = vsub.f32 %v4437, %v4509
        %v4535 = vsub.f32 %v4438, %v4509
        %v4536 = vsub.f32 %v4439, %v4510
        %v4537 = vsub.f32 %v4440, %v4510
        %v4538 = vsub.f32 %v4441, %v4511
        %v4539 = vsub.f32 %v4442, %v4511
        %v4540 = vsub.f32 %v4443, %v4512
        %v4541 = vsub.f32 %v4444, %v4512
        %v4542 = vsub.f32 %v4445, %v4513
        %v4543 = vsub.f32 %v4446, %v4513
        %v4544 = vsub.f32 %v4447, %v4514
        %v4545 = vsub.f32 %v4448, %v4514
        %v4546 = vsub.f32 %v4449, %v4515
        %v4547 = vsub.f32 %v4450, %v4515
        %v4548 = vmul.f32 %v4516, %v4516
        %v4549 = vmul.f32 %v4517, %v4517
        %v4550 = vmul.f32 %v4518, %v4518
        %v4551 = vmul.f32 %v4519, %v4519
        %v4552 = vmul.f32 %v4520, %v4520
        %v4553 = vmul.f32 %v4521, %v4521
        %v4554 = vmul.f32 %v4522, %v4522
        %v4555 = vmul.f32 %v4523, %v4523
        %v4556 = vmul.f32 %v4524, %v4524
        %v4557 = vmul.f32 %v4525, %v4525
        %v4558 = vmul.f32 %v4526, %v4526
        %v4559 = vmul.f32 %v4527, %v4527
        %v4560 = vmul.f32 %v4528, %v4528
        %v4561 = vmul.f32 %v4529, %v4529
        %v4562 = vmul.f32 %v4530, %v4530
        %v4563 = vmul.f32 %v4531, %v4531
        %v4564 = vmul.f32 %v4532, %v4532
        %v4565 = vmul.f32 %v4533, %v4533
        %v4566 = vmul.f32 %v4534, %v4534
        %v4567 = vmul.f32 %v4535, %v4535
        %v4568 = vmul.f32 %v4536, %v4536
        %v4569 = vmul.f32 %v4537, %v4537
        %v4570 = vmul.f32 %v4538, %v4538
        %v4571 = vmul.f32 %v4539, %v4539
        %v4572 = vmul.f32 %v4540, %v4540
        %v4573 = vmul.f32 %v4541, %v4541
        %v4574 = vmul.f32 %v4542, %v4542
        %v4575 = vmul.f32 %v4543, %v4543
        %v4576 = vmul.f32 %v4544, %v4544
        %v4577 = vmul.f32 %v4545, %v4545
        %v4578 = vmul.f32 %v4546, %v4546
        %v4579 = vmul.f32 %v4547, %v4547
        %v4580 = vadd.f32 %v4548, %v4549
        %4581 = vadd.xlane.f32.xlu0 %v4580
        %v4582 = vpop.xlane.xlu0 %4581
        %v4583 = vadd.f32 %v4550, %v4551
        %4584 = vadd.xlane.f32.xlu0 %v4583
        %v4585 = vpop.xlane.xlu0 %4584
        %v4586 = vadd.f32 %v4552, %v4553
        %4587 = vadd.xlane.f32.xlu0 %v4586
        %v4588 = vpop.xlane.xlu0 %4587
        %v4589 = vadd.f32 %v4554, %v4555
        %4590 = vadd.xlane.f32.xlu0 %v4589
        %v4591 = vpop.xlane.xlu0 %4590
        %v4592 = vadd.f32 %v4556, %v4557
        %4593 = vadd.xlane.f32.xlu0 %v4592
        %v4594 = vpop.xlane.xlu0 %4593
        %v4595 = vadd.f32 %v4558, %v4559
        %4596 = vadd.xlane.f32.xlu0 %v4595
        %v4597 = vpop.xlane.xlu0 %4596
        %v4598 = vadd.f32 %v4560, %v4561
        %4599 = vadd.xlane.f32.xlu0 %v4598
        %v4600 = vpop.xlane.xlu0 %4599
        %v4601 = vadd.f32 %v4562, %v4563
        %4602 = vadd.xlane.f32.xlu0 %v4601
        %v4603 = vpop.xlane.xlu0 %4602
        %v4604 = vadd.f32 %v4564, %v4565
        %4605 = vadd.xlane.f32.xlu0 %v4604
        %v4606 = vpop.xlane.xlu0 %4605
        %v4607 = vadd.f32 %v4566, %v4567
        %4608 = vadd.xlane.f32.xlu0 %v4607
        %v4609 = vpop.xlane.xlu0 %4608
        %v4610 = vadd.f32 %v4568, %v4569
        %4611 = vadd.xlane.f32.xlu0 %v4610
        %v4612 = vpop.xlane.xlu0 %4611
        %v4613 = vadd.f32 %v4570, %v4571
        %4614 = vadd.xlane.f32.xlu0 %v4613
        %v4615 = vpop.xlane.xlu0 %4614
        %v4616 = vadd.f32 %v4572, %v4573
        %4617 = vadd.xlane.f32.xlu0 %v4616
        %v4618 = vpop.xlane.xlu0 %4617
        %v4619 = vadd.f32 %v4574, %v4575
        %4620 = vadd.xlane.f32.xlu0 %v4619
        %v4621 = vpop.xlane.xlu0 %4620
        %v4622 = vadd.f32 %v4576, %v4577
        %4623 = vadd.xlane.f32.xlu0 %v4622
        %v4624 = vpop.xlane.xlu0 %4623
        %v4625 = vadd.f32 %v4578, %v4579
        %4626 = vadd.xlane.f32.xlu0 %v4625
        %v4627 = vpop.xlane.xlu0 %4626
        %v4628 = vmul.f32 %v4582, %v4499
        %v4629 = vmul.f32 %v4585, %v4499
        %v4630 = vmul.f32 %v4588, %v4499
        %v4631 = vmul.f32 %v4591, %v4499
        %v4632 = vmul.f32 %v4594, %v4499
        %v4633 = vmul.f32 %v4597, %v4499
        %v4634 = vmul.f32 %v4600, %v4499
        %v4635 = vmul.f32 %v4603, %v4499
        %v4636 = vmul.f32 %v4606, %v4499
        %v4637 = vmul.f32 %v4609, %v4499
        %v4638 = vmul.f32 %v4612, %v4499
        %v4639 = vmul.f32 %v4615, %v4499
        %v4640 = vmul.f32 %v4618, %v4499
        %v4641 = vmul.f32 %v4621, %v4499
        %v4642 = vmul.f32 %v4624, %v4499
        %v4643 = vmul.f32 %v4627, %v4499
        %v4644 = vadd.f32 %v4628, 1e-05
        %v4645 = vadd.f32 %v4629, 1e-05
        %v4646 = vadd.f32 %v4630, 1e-05
        %v4647 = vadd.f32 %v4631, 1e-05
        %v4648 = vadd.f32 %v4632, 1e-05
        %v4649 = vadd.f32 %v4633, 1e-05
        %v4650 = vadd.f32 %v4634, 1e-05
        %v4651 = vadd.f32 %v4635, 1e-05
        %v4652 = vadd.f32 %v4636, 1e-05
        %v4653 = vadd.f32 %v4637, 1e-05
        %v4654 = vadd.f32 %v4638, 1e-05
        %v4655 = vadd.f32 %v4639, 1e-05
        %v4656 = vadd.f32 %v4640, 1e-05
        %v4657 = vadd.f32 %v4641, 1e-05
        %v4658 = vadd.f32 %v4642, 1e-05
        %v4659 = vadd.f32 %v4643, 1e-05
        %v4660 = vrsqrt.pop %v4644
        %v4661 = vrsqrt.pop %v4645
        %v4662 = vrsqrt.pop %v4646
        %v4663 = vrsqrt.pop %v4647
        %v4664 = vrsqrt.pop %v4648
        %v4665 = vrsqrt.pop %v4649
        %v4666 = vrsqrt.pop %v4650
        %v4667 = vrsqrt.pop %v4651
        %v4668 = vrsqrt.pop %v4652
        %v4669 = vrsqrt.pop %v4653
        %v4670 = vrsqrt.pop %v4654
        %v4671 = vrsqrt.pop %v4655
        %v4672 = vrsqrt.pop %v4656
        %v4673 = vrsqrt.pop %v4657
        %v4674 = vrsqrt.pop %v4658
        %v4675 = vrsqrt.pop %v4659
        %v4676 = vmul.f32 %v4516, %v4660
        %v4677 = vmul.f32 %v4517, %v4660
        %v4678 = vmul.f32 %v4518, %v4661
        %v4679 = vmul.f32 %v4519, %v4661
        %v4680 = vmul.f32 %v4520, %v4662
        %v4681 = vmul.f32 %v4521, %v4662
        %v4682 = vmul.f32 %v4522, %v4663
        %v4683 = vmul.f32 %v4523, %v4663
        %v4684 = vmul.f32 %v4524, %v4664
        %v4685 = vmul.f32 %v4525, %v4664
        %v4686 = vmul.f32 %v4526, %v4665
        %v4687 = vmul.f32 %v4527, %v4665
        %v4688 = vmul.f32 %v4528, %v4666
        %v4689 = vmul.f32 %v4529, %v4666
        %v4690 = vmul.f32 %v4530, %v4667
        %v4691 = vmul.f32 %v4531, %v4667
        %v4692 = vmul.f32 %v4532, %v4668
        %v4693 = vmul.f32 %v4533, %v4668
        %v4694 = vmul.f32 %v4534, %v4669
        %v4695 = vmul.f32 %v4535, %v4669
        %v4696 = vmul.f32 %v4536, %v4670
        %v4697 = vmul.f32 %v4537, %v4670
        %v4698 = vmul.f32 %v4538, %v4671
        %v4699 = vmul.f32 %v4539, %v4671
        %v4700 = vmul.f32 %v4540, %v4672
        %v4701 = vmul.f32 %v4541, %v4672
        %v4702 = vmul.f32 %v4542, %v4673
        %v4703 = vmul.f32 %v4543, %v4673
        %v4704 = vmul.f32 %v4544, %v4674
        %v4705 = vmul.f32 %v4545, %v4674
        %v4706 = vmul.f32 %v4546, %v4675
        %v4707 = vmul.f32 %v4547, %v4675
        %v4709 = vlaneseq
        %v4710 = vshrl.u32 %v4709, 7
        %v4711 = vsub.s32 0, %v4710
        %v4712 = vrot.slane %v595, %v4711
        %v4713 = vlaneseq
        %v4714 = vshrl.u32 %v4713, 7
        %v4715 = vsub.s32 1, %v4714
        %v4716 = vrot.slane %v595, %v4715
        %v4719 = vmul.f32 %v4676, %v4712
        %v4720 = vmul.f32 %v4677, %v4716
        %v4721 = vmul.f32 %v4678, %v4712
        %v4722 = vmul.f32 %v4679, %v4716
        %v4723 = vmul.f32 %v4680, %v4712
        %v4724 = vmul.f32 %v4681, %v4716
        %v4725 = vmul.f32 %v4682, %v4712
        %v4726 = vmul.f32 %v4683, %v4716
        %v4727 = vmul.f32 %v4684, %v4712
        %v4728 = vmul.f32 %v4685, %v4716
        %v4729 = vmul.f32 %v4686, %v4712
        %v4730 = vmul.f32 %v4687, %v4716
        %v4731 = vmul.f32 %v4688, %v4712
        %v4732 = vmul.f32 %v4689, %v4716
        %v4733 = vmul.f32 %v4690, %v4712
        %v4734 = vmul.f32 %v4691, %v4716
        %v4735 = vmul.f32 %v4692, %v4712
        %v4736 = vmul.f32 %v4693, %v4716
        %v4737 = vmul.f32 %v4694, %v4712
        %v4738 = vmul.f32 %v4695, %v4716
        %v4739 = vmul.f32 %v4696, %v4712
        %v4740 = vmul.f32 %v4697, %v4716
        %v4741 = vmul.f32 %v4698, %v4712
        %v4742 = vmul.f32 %v4699, %v4716
        %v4743 = vmul.f32 %v4700, %v4712
        %v4744 = vmul.f32 %v4701, %v4716
        %v4745 = vmul.f32 %v4702, %v4712
        %v4746 = vmul.f32 %v4703, %v4716
        %v4747 = vmul.f32 %v4704, %v4712
        %v4748 = vmul.f32 %v4705, %v4716
        %v4749 = vmul.f32 %v4706, %v4712
        %v4750 = vmul.f32 %v4707, %v4716
        %v4752 = vlaneseq
        %v4753 = vshrl.u32 %v4752, 7
        %v4754 = vsub.s32 0, %v4753
        %v4755 = vrot.slane %v596, %v4754
        %v4756 = vlaneseq
        %v4757 = vshrl.u32 %v4756, 7
        %v4758 = vsub.s32 1, %v4757
        %v4759 = vrot.slane %v596, %v4758
        %v4762 = vadd.f32 %v4719, %v4755
        %v4763 = vadd.f32 %v4720, %v4759
        %v4764 = vadd.f32 %v4721, %v4755
        %v4765 = vadd.f32 %v4722, %v4759
        %v4766 = vadd.f32 %v4723, %v4755
        %v4767 = vadd.f32 %v4724, %v4759
        %v4768 = vadd.f32 %v4725, %v4755
        %v4769 = vadd.f32 %v4726, %v4759
        %v4770 = vadd.f32 %v4727, %v4755
        %v4771 = vadd.f32 %v4728, %v4759
        %v4772 = vadd.f32 %v4729, %v4755
        %v4773 = vadd.f32 %v4730, %v4759
        %v4774 = vadd.f32 %v4731, %v4755
        %v4775 = vadd.f32 %v4732, %v4759
        %v4776 = vadd.f32 %v4733, %v4755
        %v4777 = vadd.f32 %v4734, %v4759
        %v4778 = vadd.f32 %v4735, %v4755
        %v4779 = vadd.f32 %v4736, %v4759
        %v4780 = vadd.f32 %v4737, %v4755
        %v4781 = vadd.f32 %v4738, %v4759
        %v4782 = vadd.f32 %v4739, %v4755
        %v4783 = vadd.f32 %v4740, %v4759
        %v4784 = vadd.f32 %v4741, %v4755
        %v4785 = vadd.f32 %v4742, %v4759
        %v4786 = vadd.f32 %v4743, %v4755
        %v4787 = vadd.f32 %v4744, %v4759
        %v4788 = vadd.f32 %v4745, %v4755
        %v4789 = vadd.f32 %v4746, %v4759
        %v4790 = vadd.f32 %v4747, %v4755
        %v4791 = vadd.f32 %v4748, %v4759
        %v4792 = vadd.f32 %v4749, %v4755
        %v4793 = vadd.f32 %v4750, %v4759
        %v4794 = vld [vmem:[%s5] sm:$0xff]
        %v4795 = vld [vmem:[%s5 + $0x8] sm:$0xff]
        %v4796 = vld [vmem:[%s5 + $0x10] sm:$0xff]
        %v4797 = vld [vmem:[%s5 + $0x18] sm:$0xff]
        %v4798 = vld [vmem:[%s5 + $0x20] sm:$0xff]
        %v4799 = vld [vmem:[%s5 + $0x28] sm:$0xff]
        %v4800 = vld [vmem:[%s5 + $0x30] sm:$0xff]
        %v4801 = vld [vmem:[%s5 + $0x38] sm:$0xff]
        %v4802 = vld [vmem:[%s5 + $0x40] sm:$0xff]
        %v4803 = vld [vmem:[%s5 + $0x48] sm:$0xff]
        %v4804 = vld [vmem:[%s5 + $0x50] sm:$0xff]
        %v4805 = vld [vmem:[%s5 + $0x58] sm:$0xff]
        %v4806 = vld [vmem:[%s5 + $0x60] sm:$0xff]
        %v4807 = vld [vmem:[%s5 + $0x68] sm:$0xff]
        %v4808 = vld [vmem:[%s5 + $0x70] sm:$0xff]
        %v4809 = vld [vmem:[%s5 + $0x78] sm:$0xff]
        %v4810 = vld [vmem:[%s5 + $0x80] sm:$0xff]
        %v4811 = vld [vmem:[%s5 + $0x88] sm:$0xff]
        %v4812 = vld [vmem:[%s5 + $0x90] sm:$0xff]
        %v4813 = vld [vmem:[%s5 + $0x98] sm:$0xff]
        %v4814 = vld [vmem:[%s5 + $0xa0] sm:$0xff]
        %v4815 = vld [vmem:[%s5 + $0xa8] sm:$0xff]
        %v4816 = vld [vmem:[%s5 + $0xb0] sm:$0xff]
        %v4817 = vld [vmem:[%s5 + $0xb8] sm:$0xff]
        %v4818 = vld [vmem:[%s5 + $0xc0] sm:$0xff]
        %v4819 = vld [vmem:[%s5 + $0xc8] sm:$0xff]
        %v4820 = vld [vmem:[%s5 + $0xd0] sm:$0xff]
        %v4821 = vld [vmem:[%s5 + $0xd8] sm:$0xff]
        %v4822 = vld [vmem:[%s5 + $0xe0] sm:$0xff]
        %v4823 = vld [vmem:[%s5 + $0xe8] sm:$0xff]
        %v4824 = vld [vmem:[%s5 + $0xf0] sm:$0xff]
        %v4825 = vld [vmem:[%s5 + $0xf8] sm:$0xff]
        %v4826 = vld [vmem:[#allocation10] sm:$0x1]
        %v4828 = vlaneseq
        %v4829 = vshrl.u32 %v4828, 7
        %v4830 = vsub.s32 0, %v4829
        %v4831 = vrot.slane %v4826, %v4830
        %4833 = vmatprep.subr.mxu0 0.0
        %4834 = vmatpush1.msra.mxu0 %v4794
        %4835 = vmatprep.subr.mxu0 0.0
        %4836 = vmatpush1.msra.mxu0 %v4795
        %4837 = vmatprep.subr.mxu0 0.0
        %4838 = vmatpush1.msra.mxu0 %v4796
        %4839 = vmatprep.subr.mxu0 0.0
        %4840 = vmatpush1.msra.mxu0 %v4797
        %4841 = vmatprep.subr.mxu0 0.0
        %4842 = vmatpush1.msra.mxu0 %v4798
        %4843 = vmatprep.subr.mxu0 0.0
        %4844 = vmatpush1.msra.mxu0 %v4799
        %4845 = vmatprep.subr.mxu0 0.0
        %4846 = vmatpush1.msra.mxu0 %v4800
        %4847 = vmatprep.subr.mxu0 0.0
        %4848 = vmatpush1.msra.mxu0 %v4801
        %4849 = vmatprep.subr.mxu0 0.0
        %4850 = vmatpush1.msra.mxu0 %v4802
        %4851 = vmatprep.subr.mxu0 0.0
        %4852 = vmatpush1.msra.mxu0 %v4803
        %4853 = vmatprep.subr.mxu0 0.0
        %4854 = vmatpush1.msra.mxu0 %v4804
        %4855 = vmatprep.subr.mxu0 0.0
        %4856 = vmatpush1.msra.mxu0 %v4805
        %4857 = vmatprep.subr.mxu0 0.0
        %4858 = vmatpush1.msra.mxu0 %v4806
        %4859 = vmatprep.subr.mxu0 0.0
        %4860 = vmatpush1.msra.mxu0 %v4807
        %4861 = vmatprep.subr.mxu0 0.0
        %4862 = vmatpush1.msra.mxu0 %v4808
        %4863 = vmatprep.subr.mxu0 0.0
        %4864 = vmatpush1.msra.mxu0 %v4809
        %4865 = vmatprep.subr.mxu0 0.0
        %4866 = vmatpush1.msra.mxu0 %v4810
        %4867 = vmatprep.subr.mxu0 0.0
        %4868 = vmatpush1.msra.mxu0 %v4811
        %4869 = vmatprep.subr.mxu0 0.0
        %4870 = vmatpush1.msra.mxu0 %v4812
        %4871 = vmatprep.subr.mxu0 0.0
        %4872 = vmatpush1.msra.mxu0 %v4813
        %4873 = vmatprep.subr.mxu0 0.0
        %4874 = vmatpush1.msra.mxu0 %v4814
        %4875 = vmatprep.subr.mxu0 0.0
        %4876 = vmatpush1.msra.mxu0 %v4815
        %4877 = vmatprep.subr.mxu0 0.0
        %4878 = vmatpush1.msra.mxu0 %v4816
        %4879 = vmatprep.subr.mxu0 0.0
        %4880 = vmatpush1.msra.mxu0 %v4817
        %4881 = vmatprep.subr.mxu0 0.0
        %4882 = vmatpush1.msra.mxu0 %v4818
        %4883 = vmatprep.subr.mxu0 0.0
        %4884 = vmatpush1.msra.mxu0 %v4819
        %4885 = vmatprep.subr.mxu0 0.0
        %4886 = vmatpush1.msra.mxu0 %v4820
        %4887 = vmatprep.subr.mxu0 0.0
        %4888 = vmatpush1.msra.mxu0 %v4821
        %4889 = vmatprep.subr.mxu0 0.0
        %4890 = vmatpush1.msra.mxu0 %v4822
        %4891 = vmatprep.subr.mxu0 0.0
        %4892 = vmatpush1.msra.mxu0 %v4823
        %4893 = vmatprep.subr.mxu0 0.0
        %4894 = vmatpush1.msra.mxu0 %v4824
        %4895 = vmatprep.subr.mxu0 0.0
        %4896 = vmatpush1.msra.mxu0 %v4825
        %4897 = vmatprep.mubr.f32.mxu0 %v4763
        %4898 = vmatmul.mubr.f32.gmra.mrb[0].mxu0 %v4762
        %v4899 = vpop.f32.mrb[0].mxu0
        %v4900 = vadd.f32 %v4831, %v4899
        %v4901 = vpop.f32.mrb[0].mxu0
        %4902 = vmatprep.mubr.f32.mxu0 %v4765
        %4903 = vmatmul.mubr.f32.gmra.mrb[0].mxu0 %v4764
        %v4904 = vpop.f32.mrb[0].mxu0
        %v4905 = vadd.f32 %v4831, %v4904
        %v4906 = vpop.f32.mrb[0].mxu0
        %4907 = vmatprep.mubr.f32.mxu0 %v4767
        %4908 = vmatmul.mubr.f32.gmra.mrb[0].mxu0 %v4766
        %v4909 = vpop.f32.mrb[0].mxu0
        %v4910 = vadd.f32 %v4831, %v4909
        %v4911 = vpop.f32.mrb[0].mxu0
        %4912 = vmatprep.mubr.f32.mxu0 %v4769
        %4913 = vmatmul.mubr.f32.gmra.mrb[0].mxu0 %v4768
        %v4914 = vpop.f32.mrb[0].mxu0
        %v4915 = vadd.f32 %v4831, %v4914
        %v4916 = vpop.f32.mrb[0].mxu0
        %4917 = vmatprep.mubr.f32.mxu0 %v4771
        %4918 = vmatmul.mubr.f32.gmra.mrb[0].mxu0 %v4770
        %v4919 = vpop.f32.mrb[0].mxu0
        %v4920 = vadd.f32 %v4831, %v4919
        %v4921 = vpop.f32.mrb[0].mxu0
        %4922 = vmatprep.mubr.f32.mxu0 %v4773
        %4923 = vmatmul.mubr.f32.gmra.mrb[0].mxu0 %v4772
        %v4924 = vpop.f32.mrb[0].mxu0
        %v4925 = vadd.f32 %v4831, %v4924
        %v4926 = vpop.f32.mrb[0].mxu0
        %4927 = vmatprep.mubr.f32.mxu0 %v4775
        %4928 = vmatmul.mubr.f32.gmra.mrb[0].mxu0 %v4774
        %v4929 = vpop.f32.mrb[0].mxu0
        %v4930 = vadd.f32 %v4831, %v4929
        %v4931 = vpop.f32.mrb[0].mxu0
        %4932 = vmatprep.mubr.f32.mxu0 %v4777
        %4933 = vmatmul.mubr.f32.gmra.mrb[0].mxu0 %v4776
        %v4934 = vpop.f32.mrb[0].mxu0
        %v4935 = vadd.f32 %v4831, %v4934
        %v4936 = vpop.f32.mrb[0].mxu0
        %4937 = vmatprep.mubr.f32.mxu0 %v4779
        %4938 = vmatmul.mubr.f32.gmra.mrb[0].mxu0 %v4778
        %v4939 = vpop.f32.mrb[0].mxu0
        %v4940 = vadd.f32 %v4831, %v4939
        %v4941 = vpop.f32.mrb[0].mxu0
        %4942 = vmatprep.mubr.f32.mxu0 %v4781
        %4943 = vmatmul.mubr.f32.gmra.mrb[0].mxu0 %v4780
        %v4944 = vpop.f32.mrb[0].mxu0
        %v4945 = vadd.f32 %v4831, %v4944
        %v4946 = vpop.f32.mrb[0].mxu0
        %4947 = vmatprep.mubr.f32.mxu0 %v4783
        %4948 = vmatmul.mubr.f32.gmra.mrb[0].mxu0 %v4782
        %v4949 = vpop.f32.mrb[0].mxu0
        %v4950 = vadd.f32 %v4831, %v4949
        %v4951 = vpop.f32.mrb[0].mxu0
        %4952 = vmatprep.mubr.f32.mxu0 %v4785
        %4953 = vmatmul.mubr.f32.gmra.mrb[0].mxu0 %v4784
        %v4954 = vpop.f32.mrb[0].mxu0
        %v4955 = vadd.f32 %v4831, %v4954
        %v4956 = vpop.f32.mrb[0].mxu0
        %4957 = vmatprep.mubr.f32.mxu0 %v4787
        %4958 = vmatmul.mubr.f32.gmra.mrb[0].mxu0 %v4786
        %v4959 = vpop.f32.mrb[0].mxu0
        %v4960 = vadd.f32 %v4831, %v4959
        %v4961 = vpop.f32.mrb[0].mxu0
        %4962 = vmatprep.mubr.f32.mxu0 %v4789
        %4963 = vmatmul.mubr.f32.gmra.mrb[0].mxu0 %v4788
        %v4964 = vpop.f32.mrb[0].mxu0
        %v4965 = vadd.f32 %v4831, %v4964
        %v4966 = vpop.f32.mrb[0].mxu0
        %4967 = vmatprep.mubr.f32.mxu0 %v4791
        %4968 = vmatmul.mubr.f32.gmra.mrb[0].mxu0 %v4790
        %v4969 = vpop.f32.mrb[0].mxu0
        %v4970 = vadd.f32 %v4831, %v4969
        %v4971 = vpop.f32.mrb[0].mxu0
        %4972 = vmatprep.mubr.f32.mxu0 %v4793
        %4973 = vmatmul.mubr.f32.gmra.mrb[0].mxu0 %v4792
        %v4974 = vpop.f32.mrb[0].mxu0
        %v4975 = vadd.f32 %v4831, %v4974
        %v4976 = vpop.f32.mrb[0].mxu0
        %4977 = vdwg.mxu0
        %vm4978 = vcmask 523264
        %4979 = vst.msk [vmem:[#allocation2] sm:$0xff] %vm4978, %v4900
        %4980 = vst.msk [vmem:[#allocation2 + $0x8] sm:$0xff] %vm4978, %v4905
        %4981 = vst.msk [vmem:[#allocation2 + $0x10] sm:$0xff] %vm4978, %v4910
        %4982 = vst.msk [vmem:[#allocation2 + $0x18] sm:$0xff] %vm4978, %v4915
        %4983 = vst.msk [vmem:[#allocation2 + $0x20] sm:$0xff] %vm4978, %v4920
        %4984 = vst.msk [vmem:[#allocation2 + $0x28] sm:$0xff] %vm4978, %v4925
        %4985 = vst.msk [vmem:[#allocation2 + $0x30] sm:$0xff] %vm4978, %v4930
        %4986 = vst.msk [vmem:[#allocation2 + $0x38] sm:$0xff] %vm4978, %v4935
        %4987 = vst.msk [vmem:[#allocation2 + $0x40] sm:$0xff] %vm4978, %v4940
        %4988 = vst.msk [vmem:[#allocation2 + $0x48] sm:$0xff] %vm4978, %v4945
        %4989 = vst.msk [vmem:[#allocation2 + $0x50] sm:$0xff] %vm4978, %v4950
        %4990 = vst.msk [vmem:[#allocation2 + $0x58] sm:$0xff] %vm4978, %v4955
        %4991 = vst.msk [vmem:[#allocation2 + $0x60] sm:$0xff] %vm4978, %v4960
        %4992 = vst.msk [vmem:[#allocation2 + $0x68] sm:$0xff] %vm4978, %v4965
        %4993 = vst.msk [vmem:[#allocation2 + $0x70] sm:$0xff] %vm4978, %v4970
        %4994 = vst.msk [vmem:[#allocation2 + $0x78] sm:$0xff] %vm4978, %v4975
        %s4995 = scalar_lea.vmem %s5, 256
        %v4996 = vld [vmem:[%s4995] sm:$0xff]
        %v4997 = vld [vmem:[%s4995 + $0x8] sm:$0xff]
        %v4998 = vld [vmem:[%s4995 + $0x10] sm:$0xff]
        %v4999 = vld [vmem:[%s4995 + $0x18] sm:$0xff]
        %v5000 = vld [vmem:[%s4995 + $0x20] sm:$0xff]
        %v5001 = vld [vmem:[%s4995 + $0x28] sm:$0xff]
        %v5002 = vld [vmem:[%s4995 + $0x30] sm:$0xff]
        %v5003 = vld [vmem:[%s4995 + $0x38] sm:$0xff]
        %v5004 = vld [vmem:[%s4995 + $0x40] sm:$0xff]
        %v5005 = vld [vmem:[%s4995 + $0x48] sm:$0xff]
        %v5006 = vld [vmem:[%s4995 + $0x50] sm:$0xff]
        %v5007 = vld [vmem:[%s4995 + $0x58] sm:$0xff]
        %v5008 = vld [vmem:[%s4995 + $0x60] sm:$0xff]
        %v5009 = vld [vmem:[%s4995 + $0x68] sm:$0xff]
        %v5010 = vld [vmem:[%s4995 + $0x70] sm:$0xff]
        %v5011 = vld [vmem:[%s4995 + $0x78] sm:$0xff]
        %v5012 = vld [vmem:[%s4995 + $0x80] sm:$0xff]
        %v5013 = vld [vmem:[%s4995 + $0x88] sm:$0xff]
        %v5014 = vld [vmem:[%s4995 + $0x90] sm:$0xff]
        %v5015 = vld [vmem:[%s4995 + $0x98] sm:$0xff]
        %v5016 = vld [vmem:[%s4995 + $0xa0] sm:$0xff]
        %v5017 = vld [vmem:[%s4995 + $0xa8] sm:$0xff]
        %v5018 = vld [vmem:[%s4995 + $0xb0] sm:$0xff]
        %v5019 = vld [vmem:[%s4995 + $0xb8] sm:$0xff]
        %v5020 = vld [vmem:[%s4995 + $0xc0] sm:$0xff]
        %v5021 = vld [vmem:[%s4995 + $0xc8] sm:$0xff]
        %v5022 = vld [vmem:[%s4995 + $0xd0] sm:$0xff]
        %v5023 = vld [vmem:[%s4995 + $0xd8] sm:$0xff]
        %v5024 = vld [vmem:[%s4995 + $0xe0] sm:$0xff]
        %v5025 = vld [vmem:[%s4995 + $0xe8] sm:$0xff]
        %v5026 = vld [vmem:[%s4995 + $0xf0] sm:$0xff]
        %v5027 = vld [vmem:[%s4995 + $0xf8] sm:$0xff]
        %s5028 = scalar_lea.vmem [#allocation10], 1
        %v5029 = vld [vmem:[%s5028] sm:$0x1]
        %v5031 = vlaneseq
        %v5032 = vshrl.u32 %v5031, 7
        %v5033 = vsub.s32 0, %v5032
        %v5034 = vrot.slane %v5029, %v5033
        %5036 = vmatprep.subr.mxu0 0.0
        %5037 = vmatpush1.msra.mxu0 %v4996
        %5038 = vmatprep.subr.mxu0 0.0
        %5039 = vmatpush1.msra.mxu0 %v4997
        %5040 = vmatprep.subr.mxu0 0.0
        %5041 = vmatpush1.msra.mxu0 %v4998
        %5042 = vmatprep.subr.mxu0 0.0
        %5043 = vmatpush1.msra.mxu0 %v4999
        %5044 = vmatprep.subr.mxu0 0.0
        %5045 = vmatpush1.msra.mxu0 %v5000
        %5046 = vmatprep.subr.mxu0 0.0
        %5047 = vmatpush1.msra.mxu0 %v5001
        %5048 = vmatprep.subr.mxu0 0.0
        %5049 = vmatpush1.msra.mxu0 %v5002
        %5050 = vmatprep.subr.mxu0 0.0
        %5051 = vmatpush1.msra.mxu0 %v5003
        %5052 = vmatprep.subr.mxu0 0.0
        %5053 = vmatpush1.msra.mxu0 %v5004
        %5054 = vmatprep.subr.mxu0 0.0
        %5055 = vmatpush1.msra.mxu0 %v5005
        %5056 = vmatprep.subr.mxu0 0.0
        %5057 = vmatpush1.msra.mxu0 %v5006
        %5058 = vmatprep.subr.mxu0 0.0
        %5059 = vmatpush1.msra.mxu0 %v5007
        %5060 = vmatprep.subr.mxu0 0.0
        %5061 = vmatpush1.msra.mxu0 %v5008
        %5062 = vmatprep.subr.mxu0 0.0
        %5063 = vmatpush1.msra.mxu0 %v5009
        %5064 = vmatprep.subr.mxu0 0.0
        %5065 = vmatpush1.msra.mxu0 %v5010
        %5066 = vmatprep.subr.mxu0 0.0
        %5067 = vmatpush1.msra.mxu0 %v5011
        %5068 = vmatprep.subr.mxu0 0.0
        %5069 = vmatpush1.msra.mxu0 %v5012
        %5070 = vmatprep.subr.mxu0 0.0
        %5071 = vmatpush1.msra.mxu0 %v5013
        %5072 = vmatprep.subr.mxu0 0.0
        %5073 = vmatpush1.msra.mxu0 %v5014
        %5074 = vmatprep.subr.mxu0 0.0
        %5075 = vmatpush1.msra.mxu0 %v5015
        %5076 = vmatprep.subr.mxu0 0.0
        %5077 = vmatpush1.msra.mxu0 %v5016
        %5078 = vmatprep.subr.mxu0 0.0
        %5079 = vmatpush1.msra.mxu0 %v5017
        %5080 = vmatprep.subr.mxu0 0.0
        %5081 = vmatpush1.msra.mxu0 %v5018
        %5082 = vmatprep.subr.mxu0 0.0
        %5083 = vmatpush1.msra.mxu0 %v5019
        %5084 = vmatprep.subr.mxu0 0.0
        %5085 = vmatpush1.msra.mxu0 %v5020
        %5086 = vmatprep.subr.mxu0 0.0
        %5087 = vmatpush1.msra.mxu0 %v5021
        %5088 = vmatprep.subr.mxu0 0.0
        %5089 = vmatpush1.msra.mxu0 %v5022
        %5090 = vmatprep.subr.mxu0 0.0
        %5091 = vmatpush1.msra.mxu0 %v5023
        %5092 = vmatprep.subr.mxu0 0.0
        %5093 = vmatpush1.msra.mxu0 %v5024
        %5094 = vmatprep.subr.mxu0 0.0
        %5095 = vmatpush1.msra.mxu0 %v5025
        %5096 = vmatprep.subr.mxu0 0.0
        %5097 = vmatpush1.msra.mxu0 %v5026
        %5098 = vmatprep.subr.mxu0 0.0
        %5099 = vmatpush1.msra.mxu0 %v5027
        %5100 = vmatprep.mubr.f32.mxu0 %v4763
        %5101 = vmatmul.mubr.f32.gmra.mrb[0].mxu0 %v4762
        %v5102 = vpop.f32.mrb[0].mxu0
        %v5103 = vadd.f32 %v5034, %v5102
        %v5104 = vpop.f32.mrb[0].mxu0
        %5105 = vmatprep.mubr.f32.mxu0 %v4765
        %5106 = vmatmul.mubr.f32.gmra.mrb[0].mxu0 %v4764
        %v5107 = vpop.f32.mrb[0].mxu0
        %v5108 = vadd.f32 %v5034, %v5107
        %v5109 = vpop.f32.mrb[0].mxu0
        %5110 = vmatprep.mubr.f32.mxu0 %v4767
        %5111 = vmatmul.mubr.f32.gmra.mrb[0].mxu0 %v4766
        %v5112 = vpop.f32.mrb[0].mxu0
        %v5113 = vadd.f32 %v5034, %v5112
        %v5114 = vpop.f32.mrb[0].mxu0
        %5115 = vmatprep.mubr.f32.mxu0 %v4769
        %5116 = vmatmul.mubr.f32.gmra.mrb[0].mxu0 %v4768
        %v5117 = vpop.f32.mrb[0].mxu0
        %v5118 = vadd.f32 %v5034, %v5117
        %v5119 = vpop.f32.mrb[0].mxu0
        %5120 = vmatprep.mubr.f32.mxu0 %v4771
        %5121 = vmatmul.mubr.f32.gmra.mrb[0].mxu0 %v4770
        %v5122 = vpop.f32.mrb[0].mxu0
        %v5123 = vadd.f32 %v5034, %v5122
        %v5124 = vpop.f32.mrb[0].mxu0
        %5125 = vmatprep.mubr.f32.mxu0 %v4773
        %5126 = vmatmul.mubr.f32.gmra.mrb[0].mxu0 %v4772
        %v5127 = vpop.f32.mrb[0].mxu0
        %v5128 = vadd.f32 %v5034, %v5127
        %v5129 = vpop.f32.mrb[0].mxu0
        %5130 = vmatprep.mubr.f32.mxu0 %v4775
        %5131 = vmatmul.mubr.f32.gmra.mrb[0].mxu0 %v4774
        %v5132 = vpop.f32.mrb[0].mxu0
        %v5133 = vadd.f32 %v5034, %v5132
        %v5134 = vpop.f32.mrb[0].mxu0
        %5135 = vmatprep.mubr.f32.mxu0 %v4777
        %5136 = vmatmul.mubr.f32.gmra.mrb[0].mxu0 %v4776
        %v5137 = vpop.f32.mrb[0].mxu0
        %v5138 = vadd.f32 %v5034, %v5137
        %v5139 = vpop.f32.mrb[0].mxu0
        %5140 = vmatprep.mubr.f32.mxu0 %v4779
        %5141 = vmatmul.mubr.f32.gmra.mrb[0].mxu0 %v4778
        %v5142 = vpop.f32.mrb[0].mxu0
        %v5143 = vadd.f32 %v5034, %v5142
        %v5144 = vpop.f32.mrb[0].mxu0
        %5145 = vmatprep.mubr.f32.mxu0 %v4781
        %5146 = vmatmul.mubr.f32.gmra.mrb[0].mxu0 %v4780
        %v5147 = vpop.f32.mrb[0].mxu0
        %v5148 = vadd.f32 %v5034, %v5147
        %v5149 = vpop.f32.mrb[0].mxu0
        %5150 = vmatprep.mubr.f32.mxu0 %v4783
        %5151 = vmatmul.mubr.f32.gmra.mrb[0].mxu0 %v4782
        %v5152 = vpop.f32.mrb[0].mxu0
        %v5153 = vadd.f32 %v5034, %v5152
        %v5154 = vpop.f32.mrb[0].mxu0
        %5155 = vmatprep.mubr.f32.mxu0 %v4785
        %5156 = vmatmul.mubr.f32.gmra.mrb[0].mxu0 %v4784
        %v5157 = vpop.f32.mrb[0].mxu0
        %v5158 = vadd.f32 %v5034, %v5157
        %v5159 = vpop.f32.mrb[0].mxu0
        %5160 = vmatprep.mubr.f32.mxu0 %v4787
        %5161 = vmatmul.mubr.f32.gmra.mrb[0].mxu0 %v4786
        %v5162 = vpop.f32.mrb[0].mxu0
        %v5163 = vadd.f32 %v5034, %v5162
        %v5164 = vpop.f32.mrb[0].mxu0
        %5165 = vmatprep.mubr.f32.mxu0 %v4789
        %5166 = vmatmul.mubr.f32.gmra.mrb[0].mxu0 %v4788
        %v5167 = vpop.f32.mrb[0].mxu0
        %v5168 = vadd.f32 %v5034, %v5167
        %v5169 = vpop.f32.mrb[0].mxu0
        %5170 = vmatprep.mubr.f32.mxu0 %v4791
        %5171 = vmatmul.mubr.f32.gmra.mrb[0].mxu0 %v4790
        %v5172 = vpop.f32.mrb[0].mxu0
        %v5173 = vadd.f32 %v5034, %v5172
        %v5174 = vpop.f32.mrb[0].mxu0
        %5175 = vmatprep.mubr.f32.mxu0 %v4793
        %5176 = vmatmul.mubr.f32.gmra.mrb[0].mxu0 %v4792
        %v5177 = vpop.f32.mrb[0].mxu0
        %v5178 = vadd.f32 %v5034, %v5177
        %v5179 = vpop.f32.mrb[0].mxu0
        %5180 = vdwg.mxu0
        %s5181 = scalar_lea.vmem [#allocation2], 128
        %5182 = vst.msk [vmem:[%s5181] sm:$0xff] %vm4978, %v5103
        %5183 = vst.msk [vmem:[%s5181 + $0x8] sm:$0xff] %vm4978, %v5108
        %5184 = vst.msk [vmem:[%s5181 + $0x10] sm:$0xff] %vm4978, %v5113
        %5185 = vst.msk [vmem:[%s5181 + $0x18] sm:$0xff] %vm4978, %v5118
        %5186 = vst.msk [vmem:[%s5181 + $0x20] sm:$0xff] %vm4978, %v5123
        %5187 = vst.msk [vmem:[%s5181 + $0x28] sm:$0xff] %vm4978, %v5128
        %5188 = vst.msk [vmem:[%s5181 + $0x30] sm:$0xff] %vm4978, %v5133
        %5189 = vst.msk [vmem:[%s5181 + $0x38] sm:$0xff] %vm4978, %v5138
        %5190 = vst.msk [vmem:[%s5181 + $0x40] sm:$0xff] %vm4978, %v5143
        %5191 = vst.msk [vmem:[%s5181 + $0x48] sm:$0xff] %vm4978, %v5148
        %5192 = vst.msk [vmem:[%s5181 + $0x50] sm:$0xff] %vm4978, %v5153
        %5193 = vst.msk [vmem:[%s5181 + $0x58] sm:$0xff] %vm4978, %v5158
        %5194 = vst.msk [vmem:[%s5181 + $0x60] sm:$0xff] %vm4978, %v5163
        %5195 = vst.msk [vmem:[%s5181 + $0x68] sm:$0xff] %vm4978, %v5168
        %5196 = vst.msk [vmem:[%s5181 + $0x70] sm:$0xff] %vm4978, %v5173
        %5197 = vst.msk [vmem:[%s5181 + $0x78] sm:$0xff] %vm4978, %v5178
        %s5198 = scalar_lea.vmem %s5, 512
        %v5199 = vld [vmem:[%s5198] sm:$0xff]
        %v5200 = vld [vmem:[%s5198 + $0x8] sm:$0xff]
        %v5201 = vld [vmem:[%s5198 + $0x10] sm:$0xff]
        %v5202 = vld [vmem:[%s5198 + $0x18] sm:$0xff]
        %v5203 = vld [vmem:[%s5198 + $0x20] sm:$0xff]
        %v5204 = vld [vmem:[%s5198 + $0x28] sm:$0xff]
        %v5205 = vld [vmem:[%s5198 + $0x30] sm:$0xff]
        %v5206 = vld [vmem:[%s5198 + $0x38] sm:$0xff]
        %v5207 = vld [vmem:[%s5198 + $0x40] sm:$0xff]
        %v5208 = vld [vmem:[%s5198 + $0x48] sm:$0xff]
        %v5209 = vld [vmem:[%s5198 + $0x50] sm:$0xff]
        %v5210 = vld [vmem:[%s5198 + $0x58] sm:$0xff]
        %v5211 = vld [vmem:[%s5198 + $0x60] sm:$0xff]
        %v5212 = vld [vmem:[%s5198 + $0x68] sm:$0xff]
        %v5213 = vld [vmem:[%s5198 + $0x70] sm:$0xff]
        %v5214 = vld [vmem:[%s5198 + $0x78] sm:$0xff]
        %v5215 = vld [vmem:[%s5198 + $0x80] sm:$0xff]
        %v5216 = vld [vmem:[%s5198 + $0x88] sm:$0xff]
        %v5217 = vld [vmem:[%s5198 + $0x90] sm:$0xff]
        %v5218 = vld [vmem:[%s5198 + $0x98] sm:$0xff]
        %v5219 = vld [vmem:[%s5198 + $0xa0] sm:$0xff]
        %v5220 = vld [vmem:[%s5198 + $0xa8] sm:$0xff]
        %v5221 = vld [vmem:[%s5198 + $0xb0] sm:$0xff]
        %v5222 = vld [vmem:[%s5198 + $0xb8] sm:$0xff]
        %v5223 = vld [vmem:[%s5198 + $0xc0] sm:$0xff]
        %v5224 = vld [vmem:[%s5198 + $0xc8] sm:$0xff]
        %v5225 = vld [vmem:[%s5198 + $0xd0] sm:$0xff]
        %v5226 = vld [vmem:[%s5198 + $0xd8] sm:$0xff]
        %v5227 = vld [vmem:[%s5198 + $0xe0] sm:$0xff]
        %v5228 = vld [vmem:[%s5198 + $0xe8] sm:$0xff]
        %v5229 = vld [vmem:[%s5198 + $0xf0] sm:$0xff]
        %v5230 = vld [vmem:[%s5198 + $0xf8] sm:$0xff]
        %s5231 = scalar_lea.vmem [#allocation10], 2
        %v5232 = vld [vmem:[%s5231] sm:$0x1]
        %v5234 = vlaneseq
        %v5235 = vshrl.u32 %v5234, 7
        %v5236 = vsub.s32 0, %v5235
        %v5237 = vrot.slane %v5232, %v5236
        %5239 = vmatprep.subr.mxu0 0.0
        %5240 = vmatpush1.msra.mxu0 %v5199
        %5241 = vmatprep.subr.mxu0 0.0
        %5242 = vmatpush1.msra.mxu0 %v5200
        %5243 = vmatprep.subr.mxu0 0.0
        %5244 = vmatpush1.msra.mxu0 %v5201
        %5245 = vmatprep.subr.mxu0 0.0
        %5246 = vmatpush1.msra.mxu0 %v5202
        %5247 = vmatprep.subr.mxu0 0.0
        %5248 = vmatpush1.msra.mxu0 %v5203
        %5249 = vmatprep.subr.mxu0 0.0
        %5250 = vmatpush1.msra.mxu0 %v5204
        %5251 = vmatprep.subr.mxu0 0.0
        %5252 = vmatpush1.msra.mxu0 %v5205
        %5253 = vmatprep.subr.mxu0 0.0
        %5254 = vmatpush1.msra.mxu0 %v5206
        %5255 = vmatprep.subr.mxu0 0.0
        %5256 = vmatpush1.msra.mxu0 %v5207
        %5257 = vmatprep.subr.mxu0 0.0
        %5258 = vmatpush1.msra.mxu0 %v5208
        %5259 = vmatprep.subr.mxu0 0.0
        %5260 = vmatpush1.msra.mxu0 %v5209
        %5261 = vmatprep.subr.mxu0 0.0
        %5262 = vmatpush1.msra.mxu0 %v5210
        %5263 = vmatprep.subr.mxu0 0.0
        %5264 = vmatpush1.msra.mxu0 %v5211
        %5265 = vmatprep.subr.mxu0 0.0
        %5266 = vmatpush1.msra.mxu0 %v5212
        %5267 = vmatprep.subr.mxu0 0.0
        %5268 = vmatpush1.msra.mxu0 %v5213
        %5269 = vmatprep.subr.mxu0 0.0
        %5270 = vmatpush1.msra.mxu0 %v5214
        %5271 = vmatprep.subr.mxu0 0.0
        %5272 = vmatpush1.msra.mxu0 %v5215
        %5273 = vmatprep.subr.mxu0 0.0
        %5274 = vmatpush1.msra.mxu0 %v5216
        %5275 = vmatprep.subr.mxu0 0.0
        %5276 = vmatpush1.msra.mxu0 %v5217
        %5277 = vmatprep.subr.mxu0 0.0
        %5278 = vmatpush1.msra.mxu0 %v5218
        %5279 = vmatprep.subr.mxu0 0.0
        %5280 = vmatpush1.msra.mxu0 %v5219
        %5281 = vmatprep.subr.mxu0 0.0
        %5282 = vmatpush1.msra.mxu0 %v5220
        %5283 = vmatprep.subr.mxu0 0.0
        %5284 = vmatpush1.msra.mxu0 %v5221
        %5285 = vmatprep.subr.mxu0 0.0
        %5286 = vmatpush1.msra.mxu0 %v5222
        %5287 = vmatprep.subr.mxu0 0.0
        %5288 = vmatpush1.msra.mxu0 %v5223
        %5289 = vmatprep.subr.mxu0 0.0
        %5290 = vmatpush1.msra.mxu0 %v5224
        %5291 = vmatprep.subr.mxu0 0.0
        %5292 = vmatpush1.msra.mxu0 %v5225
        %5293 = vmatprep.subr.mxu0 0.0
        %5294 = vmatpush1.msra.mxu0 %v5226
        %5295 = vmatprep.subr.mxu0 0.0
        %5296 = vmatpush1.msra.mxu0 %v5227
        %5297 = vmatprep.subr.mxu0 0.0
        %5298 = vmatpush1.msra.mxu0 %v5228
        %5299 = vmatprep.subr.mxu0 0.0
        %5300 = vmatpush1.msra.mxu0 %v5229
        %5301 = vmatprep.subr.mxu0 0.0
        %5302 = vmatpush1.msra.mxu0 %v5230
        %5303 = vmatprep.mubr.f32.mxu0 %v4763
        %5304 = vmatmul.mubr.f32.gmra.mrb[0].mxu0 %v4762
        %v5305 = vpop.f32.mrb[0].mxu0
        %v5306 = vadd.f32 %v5237, %v5305
        %v5307 = vpop.f32.mrb[0].mxu0
        %5308 = vmatprep.mubr.f32.mxu0 %v4765
        %5309 = vmatmul.mubr.f32.gmra.mrb[0].mxu0 %v4764
        %v5310 = vpop.f32.mrb[0].mxu0
        %v5311 = vadd.f32 %v5237, %v5310
        %v5312 = vpop.f32.mrb[0].mxu0
        %5313 = vmatprep.mubr.f32.mxu0 %v4767
        %5314 = vmatmul.mubr.f32.gmra.mrb[0].mxu0 %v4766
        %v5315 = vpop.f32.mrb[0].mxu0
        %v5316 = vadd.f32 %v5237, %v5315
        %v5317 = vpop.f32.mrb[0].mxu0
        %5318 = vmatprep.mubr.f32.mxu0 %v4769
        %5319 = vmatmul.mubr.f32.gmra.mrb[0].mxu0 %v4768
        %v5320 = vpop.f32.mrb[0].mxu0
        %v5321 = vadd.f32 %v5237, %v5320
        %v5322 = vpop.f32.mrb[0].mxu0
        %5323 = vmatprep.mubr.f32.mxu0 %v4771
        %5324 = vmatmul.mubr.f32.gmra.mrb[0].mxu0 %v4770
        %v5325 = vpop.f32.mrb[0].mxu0
        %v5326 = vadd.f32 %v5237, %v5325
        %v5327 = vpop.f32.mrb[0].mxu0
        %5328 = vmatprep.mubr.f32.mxu0 %v4773
        %5329 = vmatmul.mubr.f32.gmra.mrb[0].mxu0 %v4772
        %v5330 = vpop.f32.mrb[0].mxu0
        %v5331 = vadd.f32 %v5237, %v5330
        %v5332 = vpop.f32.mrb[0].mxu0
        %5333 = vmatprep.mubr.f32.mxu0 %v4775
        %5334 = vmatmul.mubr.f32.gmra.mrb[0].mxu0 %v4774
        %v5335 = vpop.f32.mrb[0].mxu0
        %v5336 = vadd.f32 %v5237, %v5335
        %v5337 = vpop.f32.mrb[0].mxu0
        %5338 = vmatprep.mubr.f32.mxu0 %v4777
        %5339 = vmatmul.mubr.f32.gmra.mrb[0].mxu0 %v4776
        %v5340 = vpop.f32.mrb[0].mxu0
        %v5341 = vadd.f32 %v5237, %v5340
        %v5342 = vpop.f32.mrb[0].mxu0
        %5343 = vmatprep.mubr.f32.mxu0 %v4779
        %5344 = vmatmul.mubr.f32.gmra.mrb[0].mxu0 %v4778
        %v5345 = vpop.f32.mrb[0].mxu0
        %v5346 = vadd.f32 %v5237, %v5345
        %v5347 = vpop.f32.mrb[0].mxu0
        %5348 = vmatprep.mubr.f32.mxu0 %v4781
        %5349 = vmatmul.mubr.f32.gmra.mrb[0].mxu0 %v4780
        %v5350 = vpop.f32.mrb[0].mxu0
        %v5351 = vadd.f32 %v5237, %v5350
        %v5352 = vpop.f32.mrb[0].mxu0
        %5353 = vmatprep.mubr.f32.mxu0 %v4783
        %5354 = vmatmul.mubr.f32.gmra.mrb[0].mxu0 %v4782
        %v5355 = vpop.f32.mrb[0].mxu0
        %v5356 = vadd.f32 %v5237, %v5355
        %v5357 = vpop.f32.mrb[0].mxu0
        %5358 = vmatprep.mubr.f32.mxu0 %v4785
        %5359 = vmatmul.mubr.f32.gmra.mrb[0].mxu0 %v4784
        %v5360 = vpop.f32.mrb[0].mxu0
        %v5361 = vadd.f32 %v5237, %v5360
        %v5362 = vpop.f32.mrb[0].mxu0
        %5363 = vmatprep.mubr.f32.mxu0 %v4787
        %5364 = vmatmul.mubr.f32.gmra.mrb[0].mxu0 %v4786
        %v5365 = vpop.f32.mrb[0].mxu0
        %v5366 = vadd.f32 %v5237, %v5365
        %v5367 = vpop.f32.mrb[0].mxu0
        %5368 = vmatprep.mubr.f32.mxu0 %v4789
        %5369 = vmatmul.mubr.f32.gmra.mrb[0].mxu0 %v4788
        %v5370 = vpop.f32.mrb[0].mxu0
        %v5371 = vadd.f32 %v5237, %v5370
        %v5372 = vpop.f32.mrb[0].mxu0
        %5373 = vmatprep.mubr.f32.mxu0 %v4791
        %5374 = vmatmul.mubr.f32.gmra.mrb[0].mxu0 %v4790
        %v5375 = vpop.f32.mrb[0].mxu0
        %v5376 = vadd.f32 %v5237, %v5375
        %v5377 = vpop.f32.mrb[0].mxu0
        %5378 = vmatprep.mubr.f32.mxu0 %v4793
        %5379 = vmatmul.mubr.f32.gmra.mrb[0].mxu0 %v4792
        %v5380 = vpop.f32.mrb[0].mxu0
        %v5381 = vadd.f32 %v5237, %v5380
        %v5382 = vpop.f32.mrb[0].mxu0
        %5383 = vdwg.mxu0
        %s5384 = scalar_lea.vmem [#allocation2], 256
        %5385 = vst.msk [vmem:[%s5384] sm:$0xff] %vm4978, %v5306
        %5386 = vst.msk [vmem:[%s5384 + $0x8] sm:$0xff] %vm4978, %v5311
        %5387 = vst.msk [vmem:[%s5384 + $0x10] sm:$0xff] %vm4978, %v5316
        %5388 = vst.msk [vmem:[%s5384 + $0x18] sm:$0xff] %vm4978, %v5321
        %5389 = vst.msk [vmem:[%s5384 + $0x20] sm:$0xff] %vm4978, %v5326
        %5390 = vst.msk [vmem:[%s5384 + $0x28] sm:$0xff] %vm4978, %v5331
        %5391 = vst.msk [vmem:[%s5384 + $0x30] sm:$0xff] %vm4978, %v5336
        %5392 = vst.msk [vmem:[%s5384 + $0x38] sm:$0xff] %vm4978, %v5341
        %5393 = vst.msk [vmem:[%s5384 + $0x40] sm:$0xff] %vm4978, %v5346
        %5394 = vst.msk [vmem:[%s5384 + $0x48] sm:$0xff] %vm4978, %v5351
        %5395 = vst.msk [vmem:[%s5384 + $0x50] sm:$0xff] %vm4978, %v5356
        %5396 = vst.msk [vmem:[%s5384 + $0x58] sm:$0xff] %vm4978, %v5361
        %5397 = vst.msk [vmem:[%s5384 + $0x60] sm:$0xff] %vm4978, %v5366
        %5398 = vst.msk [vmem:[%s5384 + $0x68] sm:$0xff] %vm4978, %v5371
        %5399 = vst.msk [vmem:[%s5384 + $0x70] sm:$0xff] %vm4978, %v5376
        %5400 = vst.msk [vmem:[%s5384 + $0x78] sm:$0xff] %vm4978, %v5381
        %s5401 = scalar_lea.vmem %s5, 768
        %v5402 = vld [vmem:[%s5401] sm:$0xff]
        %v5403 = vld [vmem:[%s5401 + $0x8] sm:$0xff]
        %v5404 = vld [vmem:[%s5401 + $0x10] sm:$0xff]
        %v5405 = vld [vmem:[%s5401 + $0x18] sm:$0xff]
        %v5406 = vld [vmem:[%s5401 + $0x20] sm:$0xff]
        %v5407 = vld [vmem:[%s5401 + $0x28] sm:$0xff]
        %v5408 = vld [vmem:[%s5401 + $0x30] sm:$0xff]
        %v5409 = vld [vmem:[%s5401 + $0x38] sm:$0xff]
        %v5410 = vld [vmem:[%s5401 + $0x40] sm:$0xff]
        %v5411 = vld [vmem:[%s5401 + $0x48] sm:$0xff]
        %v5412 = vld [vmem:[%s5401 + $0x50] sm:$0xff]
        %v5413 = vld [vmem:[%s5401 + $0x58] sm:$0xff]
        %v5414 = vld [vmem:[%s5401 + $0x60] sm:$0xff]
        %v5415 = vld [vmem:[%s5401 + $0x68] sm:$0xff]
        %v5416 = vld [vmem:[%s5401 + $0x70] sm:$0xff]
        %v5417 = vld [vmem:[%s5401 + $0x78] sm:$0xff]
        %v5418 = vld [vmem:[%s5401 + $0x80] sm:$0xff]
        %v5419 = vld [vmem:[%s5401 + $0x88] sm:$0xff]
        %v5420 = vld [vmem:[%s5401 + $0x90] sm:$0xff]
        %v5421 = vld [vmem:[%s5401 + $0x98] sm:$0xff]
        %v5422 = vld [vmem:[%s5401 + $0xa0] sm:$0xff]
        %v5423 = vld [vmem:[%s5401 + $0xa8] sm:$0xff]
        %v5424 = vld [vmem:[%s5401 + $0xb0] sm:$0xff]
        %v5425 = vld [vmem:[%s5401 + $0xb8] sm:$0xff]
        %v5426 = vld [vmem:[%s5401 + $0xc0] sm:$0xff]
        %v5427 = vld [vmem:[%s5401 + $0xc8] sm:$0xff]
        %v5428 = vld [vmem:[%s5401 + $0xd0] sm:$0xff]
        %v5429 = vld [vmem:[%s5401 + $0xd8] sm:$0xff]
        %v5430 = vld [vmem:[%s5401 + $0xe0] sm:$0xff]
        %v5431 = vld [vmem:[%s5401 + $0xe8] sm:$0xff]
        %v5432 = vld [vmem:[%s5401 + $0xf0] sm:$0xff]
        %v5433 = vld [vmem:[%s5401 + $0xf8] sm:$0xff]
        %s5434 = scalar_lea.vmem [#allocation10], 3
        %v5435 = vld [vmem:[%s5434] sm:$0x1]
        %v5437 = vlaneseq
        %v5438 = vshrl.u32 %v5437, 7
        %v5439 = vsub.s32 0, %v5438
        %v5440 = vrot.slane %v5435, %v5439
        %5442 = vmatprep.subr.mxu0 0.0
        %5443 = vmatpush1.msra.mxu0 %v5402
        %5444 = vmatprep.subr.mxu0 0.0
        %5445 = vmatpush1.msra.mxu0 %v5403
        %5446 = vmatprep.subr.mxu0 0.0
        %5447 = vmatpush1.msra.mxu0 %v5404
        %5448 = vmatprep.subr.mxu0 0.0
        %5449 = vmatpush1.msra.mxu0 %v5405
        %5450 = vmatprep.subr.mxu0 0.0
        %5451 = vmatpush1.msra.mxu0 %v5406
        %5452 = vmatprep.subr.mxu0 0.0
        %5453 = vmatpush1.msra.mxu0 %v5407
        %5454 = vmatprep.subr.mxu0 0.0
        %5455 = vmatpush1.msra.mxu0 %v5408
        %5456 = vmatprep.subr.mxu0 0.0
        %5457 = vmatpush1.msra.mxu0 %v5409
        %5458 = vmatprep.subr.mxu0 0.0
        %5459 = vmatpush1.msra.mxu0 %v5410
        %5460 = vmatprep.subr.mxu0 0.0
        %5461 = vmatpush1.msra.mxu0 %v5411
        %5462 = vmatprep.subr.mxu0 0.0
        %5463 = vmatpush1.msra.mxu0 %v5412
        %5464 = vmatprep.subr.mxu0 0.0
        %5465 = vmatpush1.msra.mxu0 %v5413
        %5466 = vmatprep.subr.mxu0 0.0
        %5467 = vmatpush1.msra.mxu0 %v5414
        %5468 = vmatprep.subr.mxu0 0.0
        %5469 = vmatpush1.msra.mxu0 %v5415
        %5470 = vmatprep.subr.mxu0 0.0
        %5471 = vmatpush1.msra.mxu0 %v5416
        %5472 = vmatprep.subr.mxu0 0.0
        %5473 = vmatpush1.msra.mxu0 %v5417
        %5474 = vmatprep.subr.mxu0 0.0
        %5475 = vmatpush1.msra.mxu0 %v5418
        %5476 = vmatprep.subr.mxu0 0.0
        %5477 = vmatpush1.msra.mxu0 %v5419
        %5478 = vmatprep.subr.mxu0 0.0
        %5479 = vmatpush1.msra.mxu0 %v5420
        %5480 = vmatprep.subr.mxu0 0.0
        %5481 = vmatpush1.msra.mxu0 %v5421
        %5482 = vmatprep.subr.mxu0 0.0
        %5483 = vmatpush1.msra.mxu0 %v5422
        %5484 = vmatprep.subr.mxu0 0.0
        %5485 = vmatpush1.msra.mxu0 %v5423
        %5486 = vmatprep.subr.mxu0 0.0
        %5487 = vmatpush1.msra.mxu0 %v5424
        %5488 = vmatprep.subr.mxu0 0.0
        %5489 = vmatpush1.msra.mxu0 %v5425
        %5490 = vmatprep.subr.mxu0 0.0
        %5491 = vmatpush1.msra.mxu0 %v5426
        %5492 = vmatprep.subr.mxu0 0.0
        %5493 = vmatpush1.msra.mxu0 %v5427
        %5494 = vmatprep.subr.mxu0 0.0
        %5495 = vmatpush1.msra.mxu0 %v5428
        %5496 = vmatprep.subr.mxu0 0.0
        %5497 = vmatpush1.msra.mxu0 %v5429
        %5498 = vmatprep.subr.mxu0 0.0
        %5499 = vmatpush1.msra.mxu0 %v5430
        %5500 = vmatprep.subr.mxu0 0.0
        %5501 = vmatpush1.msra.mxu0 %v5431
        %5502 = vmatprep.subr.mxu0 0.0
        %5503 = vmatpush1.msra.mxu0 %v5432
        %5504 = vmatprep.subr.mxu0 0.0
        %5505 = vmatpush1.msra.mxu0 %v5433
        %5506 = vmatprep.mubr.f32.mxu0 %v4763
        %5507 = vmatmul.mubr.f32.gmra.mrb[0].mxu0 %v4762
        %v5508 = vpop.f32.mrb[0].mxu0
        %v5509 = vadd.f32 %v5440, %v5508
        %v5510 = vpop.f32.mrb[0].mxu0
        %5511 = vmatprep.mubr.f32.mxu0 %v4765
        %5512 = vmatmul.mubr.f32.gmra.mrb[0].mxu0 %v4764
        %v5513 = vpop.f32.mrb[0].mxu0
        %v5514 = vadd.f32 %v5440, %v5513
        %v5515 = vpop.f32.mrb[0].mxu0
        %5516 = vmatprep.mubr.f32.mxu0 %v4767
        %5517 = vmatmul.mubr.f32.gmra.mrb[0].mxu0 %v4766
        %v5518 = vpop.f32.mrb[0].mxu0
        %v5519 = vadd.f32 %v5440, %v5518
        %v5520 = vpop.f32.mrb[0].mxu0
        %5521 = vmatprep.mubr.f32.mxu0 %v4769
        %5522 = vmatmul.mubr.f32.gmra.mrb[0].mxu0 %v4768
        %v5523 = vpop.f32.mrb[0].mxu0
        %v5524 = vadd.f32 %v5440, %v5523
        %v5525 = vpop.f32.mrb[0].mxu0
        %5526 = vmatprep.mubr.f32.mxu0 %v4771
        %5527 = vmatmul.mubr.f32.gmra.mrb[0].mxu0 %v4770
        %v5528 = vpop.f32.mrb[0].mxu0
        %v5529 = vadd.f32 %v5440, %v5528
        %v5530 = vpop.f32.mrb[0].mxu0
        %5531 = vmatprep.mubr.f32.mxu0 %v4773
        %5532 = vmatmul.mubr.f32.gmra.mrb[0].mxu0 %v4772
        %v5533 = vpop.f32.mrb[0].mxu0
        %v5534 = vadd.f32 %v5440, %v5533
        %v5535 = vpop.f32.mrb[0].mxu0
        %5536 = vmatprep.mubr.f32.mxu0 %v4775
        %5537 = vmatmul.mubr.f32.gmra.mrb[0].mxu0 %v4774
        %v5538 = vpop.f32.mrb[0].mxu0
        %v5539 = vadd.f32 %v5440, %v5538
        %v5540 = vpop.f32.mrb[0].mxu0
        %5541 = vmatprep.mubr.f32.mxu0 %v4777
        %5542 = vmatmul.mubr.f32.gmra.mrb[0].mxu0 %v4776
        %v5543 = vpop.f32.mrb[0].mxu0
        %v5544 = vadd.f32 %v5440, %v5543
        %v5545 = vpop.f32.mrb[0].mxu0
        %5546 = vmatprep.mubr.f32.mxu0 %v4779
        %5547 = vmatmul.mubr.f32.gmra.mrb[0].mxu0 %v4778
        %v5548 = vpop.f32.mrb[0].mxu0
        %v5549 = vadd.f32 %v5440, %v5548
        %v5550 = vpop.f32.mrb[0].mxu0
        %5551 = vmatprep.mubr.f32.mxu0 %v4781
        %5552 = vmatmul.mubr.f32.gmra.mrb[0].mxu0 %v4780
        %v5553 = vpop.f32.mrb[0].mxu0
        %v5554 = vadd.f32 %v5440, %v5553
        %v5555 = vpop.f32.mrb[0].mxu0
        %5556 = vmatprep.mubr.f32.mxu0 %v4783
        %5557 = vmatmul.mubr.f32.gmra.mrb[0].mxu0 %v4782
        %v5558 = vpop.f32.mrb[0].mxu0
        %v5559 = vadd.f32 %v5440, %v5558
        %v5560 = vpop.f32.mrb[0].mxu0
        %5561 = vmatprep.mubr.f32.mxu0 %v4785
        %5562 = vmatmul.mubr.f32.gmra.mrb[0].mxu0 %v4784
        %v5563 = vpop.f32.mrb[0].mxu0
        %v5564 = vadd.f32 %v5440, %v5563
        %v5565 = vpop.f32.mrb[0].mxu0
        %5566 = vmatprep.mubr.f32.mxu0 %v4787
        %5567 = vmatmul.mubr.f32.gmra.mrb[0].mxu0 %v4786
        %v5568 = vpop.f32.mrb[0].mxu0
        %v5569 = vadd.f32 %v5440, %v5568
        %v5570 = vpop.f32.mrb[0].mxu0
        %5571 = vmatprep.mubr.f32.mxu0 %v4789
        %5572 = vmatmul.mubr.f32.gmra.mrb[0].mxu0 %v4788
        %v5573 = vpop.f32.mrb[0].mxu0
        %v5574 = vadd.f32 %v5440, %v5573
        %v5575 = vpop.f32.mrb[0].mxu0
        %5576 = vmatprep.mubr.f32.mxu0 %v4791
        %5577 = vmatmul.mubr.f32.gmra.mrb[0].mxu0 %v4790
        %v5578 = vpop.f32.mrb[0].mxu0
        %v5579 = vadd.f32 %v5440, %v5578
        %v5580 = vpop.f32.mrb[0].mxu0
        %5581 = vmatprep.mubr.f32.mxu0 %v4793
        %5582 = vmatmul.mubr.f32.gmra.mrb[0].mxu0 %v4792
        %v5583 = vpop.f32.mrb[0].mxu0
        %v5584 = vadd.f32 %v5440, %v5583
        %v5585 = vpop.f32.mrb[0].mxu0
        %5586 = vdwg.mxu0
        %s5587 = scalar_lea.vmem [#allocation2], 384
        %5588 = vst.msk [vmem:[%s5587] sm:$0xff] %vm4978, %v5509
        %5589 = vst.msk [vmem:[%s5587 + $0x8] sm:$0xff] %vm4978, %v5514
        %5590 = vst.msk [vmem:[%s5587 + $0x10] sm:$0xff] %vm4978, %v5519
        %5591 = vst.msk [vmem:[%s5587 + $0x18] sm:$0xff] %vm4978, %v5524
        %5592 = vst.msk [vmem:[%s5587 + $0x20] sm:$0xff] %vm4978, %v5529
        %5593 = vst.msk [vmem:[%s5587 + $0x28] sm:$0xff] %vm4978, %v5534
        %5594 = vst.msk [vmem:[%s5587 + $0x30] sm:$0xff] %vm4978, %v5539
        %5595 = vst.msk [vmem:[%s5587 + $0x38] sm:$0xff] %vm4978, %v5544
        %5596 = vst.msk [vmem:[%s5587 + $0x40] sm:$0xff] %vm4978, %v5549
        %5597 = vst.msk [vmem:[%s5587 + $0x48] sm:$0xff] %vm4978, %v5554
        %5598 = vst.msk [vmem:[%s5587 + $0x50] sm:$0xff] %vm4978, %v5559
        %5599 = vst.msk [vmem:[%s5587 + $0x58] sm:$0xff] %vm4978, %v5564
        %5600 = vst.msk [vmem:[%s5587 + $0x60] sm:$0xff] %vm4978, %v5569
        %5601 = vst.msk [vmem:[%s5587 + $0x68] sm:$0xff] %vm4978, %v5574
        %5602 = vst.msk [vmem:[%s5587 + $0x70] sm:$0xff] %vm4978, %v5579
        %5603 = vst.msk [vmem:[%s5587 + $0x78] sm:$0xff] %vm4978, %v5584
        %v5604 = vld [vmem:[#allocation2] sm:$0xff]
        %v5605 = vld [vmem:[#allocation2 + $0x8] sm:$0xff]
        %v5606 = vld [vmem:[#allocation2 + $0x10] sm:$0xff]
        %v5607 = vld [vmem:[#allocation2 + $0x18] sm:$0xff]
        %v5608 = vld [vmem:[#allocation2 + $0x20] sm:$0xff]
        %v5609 = vld [vmem:[#allocation2 + $0x28] sm:$0xff]
        %v5610 = vld [vmem:[#allocation2 + $0x30] sm:$0xff]
        %v5611 = vld [vmem:[#allocation2 + $0x38] sm:$0xff]
        %v5612 = vld [vmem:[#allocation2 + $0x40] sm:$0xff]
        %v5613 = vld [vmem:[#allocation2 + $0x48] sm:$0xff]
        %v5614 = vld [vmem:[#allocation2 + $0x50] sm:$0xff]
        %v5615 = vld [vmem:[#allocation2 + $0x58] sm:$0xff]
        %v5616 = vld [vmem:[#allocation2 + $0x60] sm:$0xff]
        %v5617 = vld [vmem:[#allocation2 + $0x68] sm:$0xff]
        %v5618 = vld [vmem:[#allocation2 + $0x70] sm:$0xff]
        %v5619 = vld [vmem:[#allocation2 + $0x78] sm:$0xff]
        %v5620 = vld [vmem:[#allocation2 + $0x80] sm:$0xff]
        %v5621 = vld [vmem:[#allocation2 + $0x88] sm:$0xff]
        %v5622 = vld [vmem:[#allocation2 + $0x90] sm:$0xff]
        %v5623 = vld [vmem:[#allocation2 + $0x98] sm:$0xff]
        %v5624 = vld [vmem:[#allocation2 + $0xa0] sm:$0xff]
        %v5625 = vld [vmem:[#allocation2 + $0xa8] sm:$0xff]
        %v5626 = vld [vmem:[#allocation2 + $0xb0] sm:$0xff]
        %v5627 = vld [vmem:[#allocation2 + $0xb8] sm:$0xff]
        %v5628 = vld [vmem:[#allocation2 + $0xc0] sm:$0xff]
        %v5629 = vld [vmem:[#allocation2 + $0xc8] sm:$0xff]
        %v5630 = vld [vmem:[#allocation2 + $0xd0] sm:$0xff]
        %v5631 = vld [vmem:[#allocation2 + $0xd8] sm:$0xff]
        %v5632 = vld [vmem:[#allocation2 + $0xe0] sm:$0xff]
        %v5633 = vld [vmem:[#allocation2 + $0xe8] sm:$0xff]
        %v5634 = vld [vmem:[#allocation2 + $0xf0] sm:$0xff]
        %v5635 = vld [vmem:[#allocation2 + $0xf8] sm:$0xff]
        %v5636 = vld [vmem:[#allocation2 + $0x100] sm:$0xff]
        %v5637 = vld [vmem:[#allocation2 + $0x108] sm:$0xff]
        %v5638 = vld [vmem:[#allocation2 + $0x110] sm:$0xff]
        %v5639 = vld [vmem:[#allocation2 + $0x118] sm:$0xff]
        %v5640 = vld [vmem:[#allocation2 + $0x120] sm:$0xff]
        %v5641 = vld [vmem:[#allocation2 + $0x128] sm:$0xff]
        %v5642 = vld [vmem:[#allocation2 + $0x130] sm:$0xff]
        %v5643 = vld [vmem:[#allocation2 + $0x138] sm:$0xff]
        %v5644 = vld [vmem:[#allocation2 + $0x140] sm:$0xff]
        %v5645 = vld [vmem:[#allocation2 + $0x148] sm:$0xff]
        %v5646 = vld [vmem:[#allocation2 + $0x150] sm:$0xff]
        %v5647 = vld [vmem:[#allocation2 + $0x158] sm:$0xff]
        %v5648 = vld [vmem:[#allocation2 + $0x160] sm:$0xff]
        %v5649 = vld [vmem:[#allocation2 + $0x168] sm:$0xff]
        %v5650 = vld [vmem:[#allocation2 + $0x170] sm:$0xff]
        %v5651 = vld [vmem:[#allocation2 + $0x178] sm:$0xff]
        %v5652 = vld [vmem:[#allocation2 + $0x180] sm:$0xff]
        %v5653 = vld [vmem:[#allocation2 + $0x188] sm:$0xff]
        %v5654 = vld [vmem:[#allocation2 + $0x190] sm:$0xff]
        %v5655 = vld [vmem:[#allocation2 + $0x198] sm:$0xff]
        %v5656 = vld [vmem:[#allocation2 + $0x1a0] sm:$0xff]
        %v5657 = vld [vmem:[#allocation2 + $0x1a8] sm:$0xff]
        %v5658 = vld [vmem:[#allocation2 + $0x1b0] sm:$0xff]
        %v5659 = vld [vmem:[#allocation2 + $0x1b8] sm:$0xff]
        %v5660 = vld [vmem:[#allocation2 + $0x1c0] sm:$0xff]
        %v5661 = vld [vmem:[#allocation2 + $0x1c8] sm:$0xff]
        %v5662 = vld [vmem:[#allocation2 + $0x1d0] sm:$0xff]
        %v5663 = vld [vmem:[#allocation2 + $0x1d8] sm:$0xff]
        %v5664 = vld [vmem:[#allocation2 + $0x1e0] sm:$0xff]
        %v5665 = vld [vmem:[#allocation2 + $0x1e8] sm:$0xff]
        %v5666 = vld [vmem:[#allocation2 + $0x1f0] sm:$0xff]
        %v5667 = vld [vmem:[#allocation2 + $0x1f8] sm:$0xff]
        %v5668 = vld [vmem:[#allocation3] sm:$0xff]
        %v5669 = vld [vmem:[#allocation3 + $0x8] sm:$0xff]
        %v5670 = vld [vmem:[#allocation3 + $0x10] sm:$0xff]
        %v5671 = vld [vmem:[#allocation3 + $0x18] sm:$0xff]
        %v5672 = vld [vmem:[#allocation3 + $0x20] sm:$0xff]
        %v5673 = vld [vmem:[#allocation3 + $0x28] sm:$0xff]
        %v5674 = vld [vmem:[#allocation3 + $0x30] sm:$0xff]
        %v5675 = vld [vmem:[#allocation3 + $0x38] sm:$0xff]
        %v5676 = vld [vmem:[#allocation3 + $0x40] sm:$0xff]
        %v5677 = vld [vmem:[#allocation3 + $0x48] sm:$0xff]
        %v5678 = vld [vmem:[#allocation3 + $0x50] sm:$0xff]
        %v5679 = vld [vmem:[#allocation3 + $0x58] sm:$0xff]
        %v5680 = vld [vmem:[#allocation3 + $0x60] sm:$0xff]
        %v5681 = vld [vmem:[#allocation3 + $0x68] sm:$0xff]
        %v5682 = vld [vmem:[#allocation3 + $0x70] sm:$0xff]
        %v5683 = vld [vmem:[#allocation3 + $0x78] sm:$0xff]
        %v5684 = vld [vmem:[#allocation3 + $0x80] sm:$0xff]
        %v5685 = vld [vmem:[#allocation3 + $0x88] sm:$0xff]
        %v5686 = vld [vmem:[#allocation3 + $0x90] sm:$0xff]
        %v5687 = vld [vmem:[#allocation3 + $0x98] sm:$0xff]
        %v5688 = vld [vmem:[#allocation3 + $0xa0] sm:$0xff]
        %v5689 = vld [vmem:[#allocation3 + $0xa8] sm:$0xff]
        %v5690 = vld [vmem:[#allocation3 + $0xb0] sm:$0xff]
        %v5691 = vld [vmem:[#allocation3 + $0xb8] sm:$0xff]
        %v5692 = vld [vmem:[#allocation3 + $0xc0] sm:$0xff]
        %v5693 = vld [vmem:[#allocation3 + $0xc8] sm:$0xff]
        %v5694 = vld [vmem:[#allocation3 + $0xd0] sm:$0xff]
        %v5695 = vld [vmem:[#allocation3 + $0xd8] sm:$0xff]
        %v5696 = vld [vmem:[#allocation3 + $0xe0] sm:$0xff]
        %v5697 = vld [vmem:[#allocation3 + $0xe8] sm:$0xff]
        %v5698 = vld [vmem:[#allocation3 + $0xf0] sm:$0xff]
        %v5699 = vld [vmem:[#allocation3 + $0xf8] sm:$0xff]
        %v5700 = vld [vmem:[#allocation3 + $0x100] sm:$0xff]
        %v5701 = vld [vmem:[#allocation3 + $0x108] sm:$0xff]
        %v5702 = vld [vmem:[#allocation3 + $0x110] sm:$0xff]
        %v5703 = vld [vmem:[#allocation3 + $0x118] sm:$0xff]
        %v5704 = vld [vmem:[#allocation3 + $0x120] sm:$0xff]
        %v5705 = vld [vmem:[#allocation3 + $0x128] sm:$0xff]
        %v5706 = vld [vmem:[#allocation3 + $0x130] sm:$0xff]
        %v5707 = vld [vmem:[#allocation3 + $0x138] sm:$0xff]
        %v5708 = vld [vmem:[#allocation3 + $0x140] sm:$0xff]
        %v5709 = vld [vmem:[#allocation3 + $0x148] sm:$0xff]
        %v5710 = vld [vmem:[#allocation3 + $0x150] sm:$0xff]
        %v5711 = vld [vmem:[#allocation3 + $0x158] sm:$0xff]
        %v5712 = vld [vmem:[#allocation3 + $0x160] sm:$0xff]
        %v5713 = vld [vmem:[#allocation3 + $0x168] sm:$0xff]
        %v5714 = vld [vmem:[#allocation3 + $0x170] sm:$0xff]
        %v5715 = vld [vmem:[#allocation3 + $0x178] sm:$0xff]
        %v5716 = vld [vmem:[#allocation3 + $0x180] sm:$0xff]
        %v5717 = vld [vmem:[#allocation3 + $0x188] sm:$0xff]
        %v5718 = vld [vmem:[#allocation3 + $0x190] sm:$0xff]
        %v5719 = vld [vmem:[#allocation3 + $0x198] sm:$0xff]
        %v5720 = vld [vmem:[#allocation3 + $0x1a0] sm:$0xff]
        %v5721 = vld [vmem:[#allocation3 + $0x1a8] sm:$0xff]
        %v5722 = vld [vmem:[#allocation3 + $0x1b0] sm:$0xff]
        %v5723 = vld [vmem:[#allocation3 + $0x1b8] sm:$0xff]
        %v5724 = vld [vmem:[#allocation3 + $0x1c0] sm:$0xff]
        %v5725 = vld [vmem:[#allocation3 + $0x1c8] sm:$0xff]
        %v5726 = vld [vmem:[#allocation3 + $0x1d0] sm:$0xff]
        %v5727 = vld [vmem:[#allocation3 + $0x1d8] sm:$0xff]
        %v5728 = vld [vmem:[#allocation3 + $0x1e0] sm:$0xff]
        %v5729 = vld [vmem:[#allocation3 + $0x1e8] sm:$0xff]
        %v5730 = vld [vmem:[#allocation3 + $0x1f0] sm:$0xff]
        %v5731 = vld [vmem:[#allocation3 + $0x1f8] sm:$0xff]
        %v5732 = vld [vmem:[#allocation3 + $0x200] sm:$0xff]
        %v5733 = vld [vmem:[#allocation3 + $0x208] sm:$0xff]
        %v5734 = vld [vmem:[#allocation3 + $0x210] sm:$0xff]
        %v5735 = vld [vmem:[#allocation3 + $0x218] sm:$0xff]
        %v5736 = vld [vmem:[#allocation3 + $0x220] sm:$0xff]
        %v5737 = vld [vmem:[#allocation3 + $0x228] sm:$0xff]
        %v5738 = vld [vmem:[#allocation3 + $0x230] sm:$0xff]
        %v5739 = vld [vmem:[#allocation3 + $0x238] sm:$0xff]
        %v5740 = vld [vmem:[#allocation3 + $0x240] sm:$0xff]
        %v5741 = vld [vmem:[#allocation3 + $0x248] sm:$0xff]
        %v5742 = vld [vmem:[#allocation3 + $0x250] sm:$0xff]
        %v5743 = vld [vmem:[#allocation3 + $0x258] sm:$0xff]
        %v5744 = vld [vmem:[#allocation3 + $0x260] sm:$0xff]
        %v5745 = vld [vmem:[#allocation3 + $0x268] sm:$0xff]
        %v5746 = vld [vmem:[#allocation3 + $0x270] sm:$0xff]
        %v5747 = vld [vmem:[#allocation3 + $0x278] sm:$0xff]
        %v5748 = vld [vmem:[#allocation3 + $0x280] sm:$0xff]
        %v5749 = vld [vmem:[#allocation3 + $0x288] sm:$0xff]
        %v5750 = vld [vmem:[#allocation3 + $0x290] sm:$0xff]
        %v5751 = vld [vmem:[#allocation3 + $0x298] sm:$0xff]
        %v5752 = vld [vmem:[#allocation3 + $0x2a0] sm:$0xff]
        %v5753 = vld [vmem:[#allocation3 + $0x2a8] sm:$0xff]
        %v5754 = vld [vmem:[#allocation3 + $0x2b0] sm:$0xff]
        %v5755 = vld [vmem:[#allocation3 + $0x2b8] sm:$0xff]
        %v5756 = vld [vmem:[#allocation3 + $0x2c0] sm:$0xff]
        %v5757 = vld [vmem:[#allocation3 + $0x2c8] sm:$0xff]
        %v5758 = vld [vmem:[#allocation3 + $0x2d0] sm:$0xff]
        %v5759 = vld [vmem:[#allocation3 + $0x2d8] sm:$0xff]
        %v5760 = vld [vmem:[#allocation3 + $0x2e0] sm:$0xff]
        %v5761 = vld [vmem:[#allocation3 + $0x2e8] sm:$0xff]
        %v5762 = vld [vmem:[#allocation3 + $0x2f0] sm:$0xff]
        %v5763 = vld [vmem:[#allocation3 + $0x2f8] sm:$0xff]
        %v5764 = vld [vmem:[#allocation3 + $0x300] sm:$0xff]
        %v5765 = vld [vmem:[#allocation3 + $0x308] sm:$0xff]
        %v5766 = vld [vmem:[#allocation3 + $0x310] sm:$0xff]
        %v5767 = vld [vmem:[#allocation3 + $0x318] sm:$0xff]
        %v5768 = vld [vmem:[#allocation3 + $0x320] sm:$0xff]
        %v5769 = vld [vmem:[#allocation3 + $0x328] sm:$0xff]
        %v5770 = vld [vmem:[#allocation3 + $0x330] sm:$0xff]
        %v5771 = vld [vmem:[#allocation3 + $0x338] sm:$0xff]
        %v5772 = vld [vmem:[#allocation3 + $0x340] sm:$0xff]
        %v5773 = vld [vmem:[#allocation3 + $0x348] sm:$0xff]
        %v5774 = vld [vmem:[#allocation3 + $0x350] sm:$0xff]
        %v5775 = vld [vmem:[#allocation3 + $0x358] sm:$0xff]
        %v5776 = vld [vmem:[#allocation3 + $0x360] sm:$0xff]
        %v5777 = vld [vmem:[#allocation3 + $0x368] sm:$0xff]
        %v5778 = vld [vmem:[#allocation3 + $0x370] sm:$0xff]
        %v5779 = vld [vmem:[#allocation3 + $0x378] sm:$0xff]
        %v5780 = vld [vmem:[#allocation3 + $0x380] sm:$0xff]
        %v5781 = vld [vmem:[#allocation3 + $0x388] sm:$0xff]
        %v5782 = vld [vmem:[#allocation3 + $0x390] sm:$0xff]
        %v5783 = vld [vmem:[#allocation3 + $0x398] sm:$0xff]
        %v5784 = vld [vmem:[#allocation3 + $0x3a0] sm:$0xff]
        %v5785 = vld [vmem:[#allocation3 + $0x3a8] sm:$0xff]
        %v5786 = vld [vmem:[#allocation3 + $0x3b0] sm:$0xff]
        %v5787 = vld [vmem:[#allocation3 + $0x3b8] sm:$0xff]
        %v5788 = vld [vmem:[#allocation3 + $0x3c0] sm:$0xff]
        %v5789 = vld [vmem:[#allocation3 + $0x3c8] sm:$0xff]
        %v5790 = vld [vmem:[#allocation3 + $0x3d0] sm:$0xff]
        %v5791 = vld [vmem:[#allocation3 + $0x3d8] sm:$0xff]
        %v5792 = vld [vmem:[#allocation3 + $0x3e0] sm:$0xff]
        %v5793 = vld [vmem:[#allocation3 + $0x3e8] sm:$0xff]
        %v5794 = vld [vmem:[#allocation3 + $0x3f0] sm:$0xff]
        %v5795 = vld [vmem:[#allocation3 + $0x3f8] sm:$0xff]
        %v5796 = vld [vmem:[#allocation4] sm:$0xff]
        %v5797 = vld [vmem:[#allocation4 + $0x8] sm:$0xff]
        %v5798 = vld [vmem:[#allocation4 + $0x10] sm:$0xff]
        %v5799 = vld [vmem:[#allocation4 + $0x18] sm:$0xff]
        %v5800 = vld [vmem:[#allocation4 + $0x20] sm:$0xff]
        %v5801 = vld [vmem:[#allocation4 + $0x28] sm:$0xff]
        %v5802 = vld [vmem:[#allocation4 + $0x30] sm:$0xff]
        %v5803 = vld [vmem:[#allocation4 + $0x38] sm:$0xff]
        %v5804 = vld [vmem:[#allocation4 + $0x40] sm:$0xff]
        %v5805 = vld [vmem:[#allocation4 + $0x48] sm:$0xff]
        %v5806 = vld [vmem:[#allocation4 + $0x50] sm:$0xff]
        %v5807 = vld [vmem:[#allocation4 + $0x58] sm:$0xff]
        %v5808 = vld [vmem:[#allocation4 + $0x60] sm:$0xff]
        %v5809 = vld [vmem:[#allocation4 + $0x68] sm:$0xff]
        %v5810 = vld [vmem:[#allocation4 + $0x70] sm:$0xff]
        %v5811 = vld [vmem:[#allocation4 + $0x78] sm:$0xff]
        %v5812 = vld [vmem:[#allocation4 + $0x80] sm:$0xff]
        %v5813 = vld [vmem:[#allocation4 + $0x88] sm:$0xff]
        %v5814 = vld [vmem:[#allocation4 + $0x90] sm:$0xff]
        %v5815 = vld [vmem:[#allocation4 + $0x98] sm:$0xff]
        %v5816 = vld [vmem:[#allocation4 + $0xa0] sm:$0xff]
        %v5817 = vld [vmem:[#allocation4 + $0xa8] sm:$0xff]
        %v5818 = vld [vmem:[#allocation4 + $0xb0] sm:$0xff]
        %v5819 = vld [vmem:[#allocation4 + $0xb8] sm:$0xff]
        %v5820 = vld [vmem:[#allocation4 + $0xc0] sm:$0xff]
        %v5821 = vld [vmem:[#allocation4 + $0xc8] sm:$0xff]
        %v5822 = vld [vmem:[#allocation4 + $0xd0] sm:$0xff]
        %v5823 = vld [vmem:[#allocation4 + $0xd8] sm:$0xff]
        %v5824 = vld [vmem:[#allocation4 + $0xe0] sm:$0xff]
        %v5825 = vld [vmem:[#allocation4 + $0xe8] sm:$0xff]
        %v5826 = vld [vmem:[#allocation4 + $0xf0] sm:$0xff]
        %v5827 = vld [vmem:[#allocation4 + $0xf8] sm:$0xff]
        %v5828 = vld [vmem:[#allocation4 + $0x100] sm:$0xff]
        %v5829 = vld [vmem:[#allocation4 + $0x108] sm:$0xff]
        %v5830 = vld [vmem:[#allocation4 + $0x110] sm:$0xff]
        %v5831 = vld [vmem:[#allocation4 + $0x118] sm:$0xff]
        %v5832 = vld [vmem:[#allocation4 + $0x120] sm:$0xff]
        %v5833 = vld [vmem:[#allocation4 + $0x128] sm:$0xff]
        %v5834 = vld [vmem:[#allocation4 + $0x130] sm:$0xff]
        %v5835 = vld [vmem:[#allocation4 + $0x138] sm:$0xff]
        %v5836 = vld [vmem:[#allocation4 + $0x140] sm:$0xff]
        %v5837 = vld [vmem:[#allocation4 + $0x148] sm:$0xff]
        %v5838 = vld [vmem:[#allocation4 + $0x150] sm:$0xff]
        %v5839 = vld [vmem:[#allocation4 + $0x158] sm:$0xff]
        %v5840 = vld [vmem:[#allocation4 + $0x160] sm:$0xff]
        %v5841 = vld [vmem:[#allocation4 + $0x168] sm:$0xff]
        %v5842 = vld [vmem:[#allocation4 + $0x170] sm:$0xff]
        %v5843 = vld [vmem:[#allocation4 + $0x178] sm:$0xff]
        %v5844 = vld [vmem:[#allocation4 + $0x180] sm:$0xff]
        %v5845 = vld [vmem:[#allocation4 + $0x188] sm:$0xff]
        %v5846 = vld [vmem:[#allocation4 + $0x190] sm:$0xff]
        %v5847 = vld [vmem:[#allocation4 + $0x198] sm:$0xff]
        %v5848 = vld [vmem:[#allocation4 + $0x1a0] sm:$0xff]
        %v5849 = vld [vmem:[#allocation4 + $0x1a8] sm:$0xff]
        %v5850 = vld [vmem:[#allocation4 + $0x1b0] sm:$0xff]
        %v5851 = vld [vmem:[#allocation4 + $0x1b8] sm:$0xff]
        %v5852 = vld [vmem:[#allocation4 + $0x1c0] sm:$0xff]
        %v5853 = vld [vmem:[#allocation4 + $0x1c8] sm:$0xff]
        %v5854 = vld [vmem:[#allocation4 + $0x1d0] sm:$0xff]
        %v5855 = vld [vmem:[#allocation4 + $0x1d8] sm:$0xff]
        %v5856 = vld [vmem:[#allocation4 + $0x1e0] sm:$0xff]
        %v5857 = vld [vmem:[#allocation4 + $0x1e8] sm:$0xff]
        %v5858 = vld [vmem:[#allocation4 + $0x1f0] sm:$0xff]
        %v5859 = vld [vmem:[#allocation4 + $0x1f8] sm:$0xff]
        %v5860 = vld [vmem:[#allocation4 + $0x200] sm:$0xff]
        %v5861 = vld [vmem:[#allocation4 + $0x208] sm:$0xff]
        %v5862 = vld [vmem:[#allocation4 + $0x210] sm:$0xff]
        %v5863 = vld [vmem:[#allocation4 + $0x218] sm:$0xff]
        %v5864 = vld [vmem:[#allocation4 + $0x220] sm:$0xff]
        %v5865 = vld [vmem:[#allocation4 + $0x228] sm:$0xff]
        %v5866 = vld [vmem:[#allocation4 + $0x230] sm:$0xff]
        %v5867 = vld [vmem:[#allocation4 + $0x238] sm:$0xff]
        %v5868 = vld [vmem:[#allocation4 + $0x240] sm:$0xff]
        %v5869 = vld [vmem:[#allocation4 + $0x248] sm:$0xff]
        %v5870 = vld [vmem:[#allocation4 + $0x250] sm:$0xff]
        %v5871 = vld [vmem:[#allocation4 + $0x258] sm:$0xff]
        %v5872 = vld [vmem:[#allocation4 + $0x260] sm:$0xff]
        %v5873 = vld [vmem:[#allocation4 + $0x268] sm:$0xff]
        %v5874 = vld [vmem:[#allocation4 + $0x270] sm:$0xff]
        %v5875 = vld [vmem:[#allocation4 + $0x278] sm:$0xff]
        %v5876 = vld [vmem:[#allocation4 + $0x280] sm:$0xff]
        %v5877 = vld [vmem:[#allocation4 + $0x288] sm:$0xff]
        %v5878 = vld [vmem:[#allocation4 + $0x290] sm:$0xff]
        %v5879 = vld [vmem:[#allocation4 + $0x298] sm:$0xff]
        %v5880 = vld [vmem:[#allocation4 + $0x2a0] sm:$0xff]
        %v5881 = vld [vmem:[#allocation4 + $0x2a8] sm:$0xff]
        %v5882 = vld [vmem:[#allocation4 + $0x2b0] sm:$0xff]
        %v5883 = vld [vmem:[#allocation4 + $0x2b8] sm:$0xff]
        %v5884 = vld [vmem:[#allocation4 + $0x2c0] sm:$0xff]
        %v5885 = vld [vmem:[#allocation4 + $0x2c8] sm:$0xff]
        %v5886 = vld [vmem:[#allocation4 + $0x2d0] sm:$0xff]
        %v5887 = vld [vmem:[#allocation4 + $0x2d8] sm:$0xff]
        %v5888 = vld [vmem:[#allocation4 + $0x2e0] sm:$0xff]
        %v5889 = vld [vmem:[#allocation4 + $0x2e8] sm:$0xff]
        %v5890 = vld [vmem:[#allocation4 + $0x2f0] sm:$0xff]
        %v5891 = vld [vmem:[#allocation4 + $0x2f8] sm:$0xff]
        %v5892 = vld [vmem:[#allocation4 + $0x300] sm:$0xff]
        %v5893 = vld [vmem:[#allocation4 + $0x308] sm:$0xff]
        %v5894 = vld [vmem:[#allocation4 + $0x310] sm:$0xff]
        %v5895 = vld [vmem:[#allocation4 + $0x318] sm:$0xff]
        %v5896 = vld [vmem:[#allocation4 + $0x320] sm:$0xff]
        %v5897 = vld [vmem:[#allocation4 + $0x328] sm:$0xff]
        %v5898 = vld [vmem:[#allocation4 + $0x330] sm:$0xff]
        %v5899 = vld [vmem:[#allocation4 + $0x338] sm:$0xff]
        %v5900 = vld [vmem:[#allocation4 + $0x340] sm:$0xff]
        %v5901 = vld [vmem:[#allocation4 + $0x348] sm:$0xff]
        %v5902 = vld [vmem:[#allocation4 + $0x350] sm:$0xff]
        %v5903 = vld [vmem:[#allocation4 + $0x358] sm:$0xff]
        %v5904 = vld [vmem:[#allocation4 + $0x360] sm:$0xff]
        %v5905 = vld [vmem:[#allocation4 + $0x368] sm:$0xff]
        %v5906 = vld [vmem:[#allocation4 + $0x370] sm:$0xff]
        %v5907 = vld [vmem:[#allocation4 + $0x378] sm:$0xff]
        %v5908 = vld [vmem:[#allocation4 + $0x380] sm:$0xff]
        %v5909 = vld [vmem:[#allocation4 + $0x388] sm:$0xff]
        %v5910 = vld [vmem:[#allocation4 + $0x390] sm:$0xff]
        %v5911 = vld [vmem:[#allocation4 + $0x398] sm:$0xff]
        %v5912 = vld [vmem:[#allocation4 + $0x3a0] sm:$0xff]
        %v5913 = vld [vmem:[#allocation4 + $0x3a8] sm:$0xff]
        %v5914 = vld [vmem:[#allocation4 + $0x3b0] sm:$0xff]
        %v5915 = vld [vmem:[#allocation4 + $0x3b8] sm:$0xff]
        %v5916 = vld [vmem:[#allocation4 + $0x3c0] sm:$0xff]
        %v5917 = vld [vmem:[#allocation4 + $0x3c8] sm:$0xff]
        %v5918 = vld [vmem:[#allocation4 + $0x3d0] sm:$0xff]
        %v5919 = vld [vmem:[#allocation4 + $0x3d8] sm:$0xff]
        %v5920 = vld [vmem:[#allocation4 + $0x3e0] sm:$0xff]
        %v5921 = vld [vmem:[#allocation4 + $0x3e8] sm:$0xff]
        %v5922 = vld [vmem:[#allocation4 + $0x3f0] sm:$0xff]
        %v5923 = vld [vmem:[#allocation4 + $0x3f8] sm:$0xff]
        %s5924 = smul.u32 %s36, 128
        %v5925 = vlaneseq
        %v5926 = vshrl.u32 %v5925, 7
        %v5927 = vadd.s32 %v5926, 8
        %v5928 = vadd.s32 %v5926, 16
        %v5929 = vadd.s32 %v5926, 24
        %v5930 = vadd.s32 %v5926, 32
        %v5931 = vadd.s32 %v5926, 40
        %v5932 = vadd.s32 %v5926, 48
        %v5933 = vadd.s32 %v5926, 56
        %v5934 = vadd.s32 %v5926, 64
        %v5935 = vadd.s32 %v5926, 72
        %v5936 = vadd.s32 %v5926, 80
        %v5937 = vadd.s32 %v5926, 88
        %v5938 = vadd.s32 %v5926, 96
        %v5939 = vadd.s32 %v5926, 104
        %v5940 = vadd.s32 %v5926, 112
        %v5941 = vadd.s32 %v5926, 120
        %v5942 = vstv %s5924
        %v5943 = vadd.s32 %v5942, %v5926
        %v5944 = vadd.s32 %v5942, %v5927
        %v5945 = vadd.s32 %v5942, %v5928
        %v5946 = vadd.s32 %v5942, %v5929
        %v5947 = vadd.s32 %v5942, %v5930
        %v5948 = vadd.s32 %v5942, %v5931
        %v5949 = vadd.s32 %v5942, %v5932
        %v5950 = vadd.s32 %v5942, %v5933
        %v5951 = vadd.s32 %v5942, %v5934
        %v5952 = vadd.s32 %v5942, %v5935
        %v5953 = vadd.s32 %v5942, %v5936
        %v5954 = vadd.s32 %v5942, %v5937
        %v5955 = vadd.s32 %v5942, %v5938
        %v5956 = vadd.s32 %v5942, %v5939
        %v5957 = vadd.s32 %v5942, %v5940
        %v5958 = vadd.s32 %v5942, %v5941
        %v5959 = vlaneseq
        %v5960 = vand.u32 %v5959, 127
        %v5961 = vadd.s32 %v5960, 128
        %vm5962 = vcmp.gt.s32.totalorder %v5960, %v5943
        %vm5963 = vcmp.gt.s32.totalorder %v5961, %v5943
        %vm5964 = vcmp.gt.s32.totalorder %v5960, %v5944
        %vm5965 = vcmp.gt.s32.totalorder %v5961, %v5944
        %vm5966 = vcmp.gt.s32.totalorder %v5960, %v5945
        %vm5967 = vcmp.gt.s32.totalorder %v5961, %v5945
        %vm5968 = vcmp.gt.s32.totalorder %v5960, %v5946
        %vm5969 = vcmp.gt.s32.totalorder %v5961, %v5946
        %vm5970 = vcmp.gt.s32.totalorder %v5960, %v5947
        %vm5971 = vcmp.gt.s32.totalorder %v5961, %v5947
        %vm5972 = vcmp.gt.s32.totalorder %v5960, %v5948
        %vm5973 = vcmp.gt.s32.totalorder %v5961, %v5948
        %vm5974 = vcmp.gt.s32.totalorder %v5960, %v5949
        %vm5975 = vcmp.gt.s32.totalorder %v5961, %v5949
        %vm5976 = vcmp.gt.s32.totalorder %v5960, %v5950
        %vm5977 = vcmp.gt.s32.totalorder %v5961, %v5950
        %vm5978 = vcmp.gt.s32.totalorder %v5960, %v5951
        %vm5979 = vcmp.gt.s32.totalorder %v5961, %v5951
        %vm5980 = vcmp.gt.s32.totalorder %v5960, %v5952
        %vm5981 = vcmp.gt.s32.totalorder %v5961, %v5952
        %vm5982 = vcmp.gt.s32.totalorder %v5960, %v5953
        %vm5983 = vcmp.gt.s32.totalorder %v5961, %v5953
        %vm5984 = vcmp.gt.s32.totalorder %v5960, %v5954
        %vm5985 = vcmp.gt.s32.totalorder %v5961, %v5954
        %vm5986 = vcmp.gt.s32.totalorder %v5960, %v5955
        %vm5987 = vcmp.gt.s32.totalorder %v5961, %v5955
        %vm5988 = vcmp.gt.s32.totalorder %v5960, %v5956
        %vm5989 = vcmp.gt.s32.totalorder %v5961, %v5956
        %vm5990 = vcmp.gt.s32.totalorder %v5960, %v5957
        %vm5991 = vcmp.gt.s32.totalorder %v5961, %v5957
        %vm5992 = vcmp.gt.s32.totalorder %v5960, %v5958
        %vm5993 = vcmp.gt.s32.totalorder %v5961, %v5958
        %v5994 = vsel %vm5962, -1e+30, 0.0
        %v5995 = vsel %vm5963, -1e+30, 0.0
        %v5996 = vsel %vm5964, -1e+30, 0.0
        %v5997 = vsel %vm5965, -1e+30, 0.0
        %v5998 = vsel %vm5966, -1e+30, 0.0
        %v5999 = vsel %vm5967, -1e+30, 0.0
        %v6000 = vsel %vm5968, -1e+30, 0.0
        %v6001 = vsel %vm5969, -1e+30, 0.0
        %v6002 = vsel %vm5970, -1e+30, 0.0
        %v6003 = vsel %vm5971, -1e+30, 0.0
        %v6004 = vsel %vm5972, -1e+30, 0.0
        %v6005 = vsel %vm5973, -1e+30, 0.0
        %v6006 = vsel %vm5974, -1e+30, 0.0
        %v6007 = vsel %vm5975, -1e+30, 0.0
        %v6008 = vsel %vm5976, -1e+30, 0.0
        %v6009 = vsel %vm5977, -1e+30, 0.0
        %v6010 = vsel %vm5978, -1e+30, 0.0
        %v6011 = vsel %vm5979, -1e+30, 0.0
        %v6012 = vsel %vm5980, -1e+30, 0.0
        %v6013 = vsel %vm5981, -1e+30, 0.0
        %v6014 = vsel %vm5982, -1e+30, 0.0
        %v6015 = vsel %vm5983, -1e+30, 0.0
        %v6016 = vsel %vm5984, -1e+30, 0.0
        %v6017 = vsel %vm5985, -1e+30, 0.0
        %v6018 = vsel %vm5986, -1e+30, 0.0
        %v6019 = vsel %vm5987, -1e+30, 0.0
        %v6020 = vsel %vm5988, -1e+30, 0.0
        %v6021 = vsel %vm5989, -1e+30, 0.0
        %v6022 = vsel %vm5990, -1e+30, 0.0
        %v6023 = vsel %vm5991, -1e+30, 0.0
        %v6024 = vsel %vm5992, -1e+30, 0.0
        %v6025 = vsel %vm5993, -1e+30, 0.0
        %v6027 = vsel %vm4978, %v5604, 0
        %v6030 = vsel %vm4978, %v5605, 0
        %v6033 = vsel %vm4978, %v5606, 0
        %v6036 = vsel %vm4978, %v5607, 0
        %v6039 = vsel %vm4978, %v5608, 0
        %v6042 = vsel %vm4978, %v5609, 0
        %v6045 = vsel %vm4978, %v5610, 0
        %v6048 = vsel %vm4978, %v5611, 0
        %v6051 = vsel %vm4978, %v5612, 0
        %v6054 = vsel %vm4978, %v5613, 0
        %v6057 = vsel %vm4978, %v5614, 0
        %v6060 = vsel %vm4978, %v5615, 0
        %v6063 = vsel %vm4978, %v5616, 0
        %v6066 = vsel %vm4978, %v5617, 0
        %v6069 = vsel %vm4978, %v5618, 0
        %v6072 = vsel %vm4978, %v5619, 0
        %v6075 = vsel %vm4978, %v5668, 0
        %v6078 = vsel %vm4978, %v5669, 0
        %v6081 = vsel %vm4978, %v5670, 0
        %v6084 = vsel %vm4978, %v5671, 0
        %v6087 = vsel %vm4978, %v5672, 0
        %v6090 = vsel %vm4978, %v5673, 0
        %v6093 = vsel %vm4978, %v5674, 0
        %v6096 = vsel %vm4978, %v5675, 0
        %v6099 = vsel %vm4978, %v5676, 0
        %v6102 = vsel %vm4978, %v5677, 0
        %v6105 = vsel %vm4978, %v5678, 0
        %v6108 = vsel %vm4978, %v5679, 0
        %v6111 = vsel %vm4978, %v5680, 0
        %v6114 = vsel %vm4978, %v5681, 0
        %v6117 = vsel %vm4978, %v5682, 0
        %v6120 = vsel %vm4978, %v5683, 0
        %v6123 = vsel %vm4978, %v5684, 0
        %v6126 = vsel %vm4978, %v5685, 0
        %v6129 = vsel %vm4978, %v5686, 0
        %v6132 = vsel %vm4978, %v5687, 0
        %v6135 = vsel %vm4978, %v5688, 0
        %v6138 = vsel %vm4978, %v5689, 0
        %v6141 = vsel %vm4978, %v5690, 0
        %v6144 = vsel %vm4978, %v5691, 0
        %v6147 = vsel %vm4978, %v5692, 0
        %v6150 = vsel %vm4978, %v5693, 0
        %v6153 = vsel %vm4978, %v5694, 0
        %v6156 = vsel %vm4978, %v5695, 0
        %v6159 = vsel %vm4978, %v5696, 0
        %v6162 = vsel %vm4978, %v5697, 0
        %v6165 = vsel %vm4978, %v5698, 0
        %v6168 = vsel %vm4978, %v5699, 0
        %6170 = vmatprep.subr.mxu0 0.0
        %6171 = vmatpush1.xpose.msra.mxu0 %v6075
        %6172 = vmatprep.subr.mxu0 0.0
        %6173 = vmatpush1.xpose.msra.mxu0 %v6078
        %6174 = vmatprep.subr.mxu0 0.0
        %6175 = vmatpush1.xpose.msra.mxu0 %v6081
        %6176 = vmatprep.subr.mxu0 0.0
        %6177 = vmatpush1.xpose.msra.mxu0 %v6084
        %6178 = vmatprep.subr.mxu0 0.0
        %6179 = vmatpush1.xpose.msra.mxu0 %v6087
        %6180 = vmatprep.subr.mxu0 0.0
        %6181 = vmatpush1.xpose.msra.mxu0 %v6090
        %6182 = vmatprep.subr.mxu0 0.0
        %6183 = vmatpush1.xpose.msra.mxu0 %v6093
        %6184 = vmatprep.subr.mxu0 0.0
        %6185 = vmatpush1.xpose.msra.mxu0 %v6096
        %6186 = vmatprep.subr.mxu0 0.0
        %6187 = vmatpush1.xpose.msra.mxu0 %v6099
        %6188 = vmatprep.subr.mxu0 0.0
        %6189 = vmatpush1.xpose.msra.mxu0 %v6102
        %6190 = vmatprep.subr.mxu0 0.0
        %6191 = vmatpush1.xpose.msra.mxu0 %v6105
        %6192 = vmatprep.subr.mxu0 0.0
        %6193 = vmatpush1.xpose.msra.mxu0 %v6108
        %6194 = vmatprep.subr.mxu0 0.0
        %6195 = vmatpush1.xpose.msra.mxu0 %v6111
        %6196 = vmatprep.subr.mxu0 0.0
        %6197 = vmatpush1.xpose.msra.mxu0 %v6114
        %6198 = vmatprep.subr.mxu0 0.0
        %6199 = vmatpush1.xpose.msra.mxu0 %v6117
        %6200 = vmatprep.subr.mxu0 0.0
        %6201 = vmatpush1.xpose.msra.mxu0 %v6120
        %6202 = vmatprep.subr.mxu0 0.0
        %6203 = vmatpush1.xpose.msra.mxu0 %v6123
        %6204 = vmatprep.subr.mxu0 0.0
        %6205 = vmatpush1.xpose.msra.mxu0 %v6126
        %6206 = vmatprep.subr.mxu0 0.0
        %6207 = vmatpush1.xpose.msra.mxu0 %v6129
        %6208 = vmatprep.subr.mxu0 0.0
        %6209 = vmatpush1.xpose.msra.mxu0 %v6132
        %6210 = vmatprep.subr.mxu0 0.0
        %6211 = vmatpush1.xpose.msra.mxu0 %v6135
        %6212 = vmatprep.subr.mxu0 0.0
        %6213 = vmatpush1.xpose.msra.mxu0 %v6138
        %6214 = vmatprep.subr.mxu0 0.0
        %6215 = vmatpush1.xpose.msra.mxu0 %v6141
        %6216 = vmatprep.subr.mxu0 0.0
        %6217 = vmatpush1.xpose.msra.mxu0 %v6144
        %6218 = vmatprep.subr.mxu0 0.0
        %6219 = vmatpush1.xpose.msra.mxu0 %v6147
        %6220 = vmatprep.subr.mxu0 0.0
        %6221 = vmatpush1.xpose.msra.mxu0 %v6150
        %6222 = vmatprep.subr.mxu0 0.0
        %6223 = vmatpush1.xpose.msra.mxu0 %v6153
        %6224 = vmatprep.subr.mxu0 0.0
        %6225 = vmatpush1.xpose.msra.mxu0 %v6156
        %6226 = vmatprep.subr.mxu0 0.0
        %6227 = vmatpush1.xpose.msra.mxu0 %v6159
        %6228 = vmatprep.subr.mxu0 0.0
        %6229 = vmatpush1.xpose.msra.mxu0 %v6162
        %6230 = vmatprep.subr.mxu0 0.0
        %6231 = vmatpush1.xpose.msra.mxu0 %v6165
        %6232 = vmatprep.subr.mxu0 0.0
        %6233 = vmatpush1.xpose.msra.mxu0 %v6168
        %6234 = vmatprep.mubr.f32.mxu0 0.0
        %6235 = vmatmul.mubr.f32.gmra.mrb[0].mxu0 %v6027
        %v6236 = vpop.f32.mrb[0].mxu0
        %v6237 = vadd.f32 %v5994, %v6236
        %v6238 = vpop.f32.mrb[0].mxu0
        %v6239 = vadd.f32 %v5995, %v6238
        %6240 = vmatprep.mubr.f32.mxu0 0.0
        %6241 = vmatmul.mubr.f32.gmra.mrb[0].mxu0 %v6030
        %v6242 = vpop.f32.mrb[0].mxu0
        %v6243 = vadd.f32 %v5996, %v6242
        %v6244 = vpop.f32.mrb[0].mxu0
        %v6245 = vadd.f32 %v5997, %v6244
        %6246 = vmatprep.mubr.f32.mxu0 0.0
        %6247 = vmatmul.mubr.f32.gmra.mrb[0].mxu0 %v6033
        %v6248 = vpop.f32.mrb[0].mxu0
        %v6249 = vadd.f32 %v5998, %v6248
        %v6250 = vpop.f32.mrb[0].mxu0
        %v6251 = vadd.f32 %v5999, %v6250
        %6252 = vmatprep.mubr.f32.mxu0 0.0
        %6253 = vmatmul.mubr.f32.gmra.mrb[0].mxu0 %v6036
        %v6254 = vpop.f32.mrb[0].mxu0
        %v6255 = vadd.f32 %v6000, %v6254
        %v6256 = vpop.f32.mrb[0].mxu0
        %v6257 = vadd.f32 %v6001, %v6256
        %6258 = vmatprep.mubr.f32.mxu0 0.0
        %6259 = vmatmul.mubr.f32.gmra.mrb[0].mxu0 %v6039
        %v6260 = vpop.f32.mrb[0].mxu0
        %v6261 = vadd.f32 %v6002, %v6260
        %v6262 = vpop.f32.mrb[0].mxu0
        %v6263 = vadd.f32 %v6003, %v6262
        %6264 = vmatprep.mubr.f32.mxu0 0.0
        %6265 = vmatmul.mubr.f32.gmra.mrb[0].mxu0 %v6042
        %v6266 = vpop.f32.mrb[0].mxu0
        %v6267 = vadd.f32 %v6004, %v6266
        %v6268 = vpop.f32.mrb[0].mxu0
        %v6269 = vadd.f32 %v6005, %v6268
        %6270 = vmatprep.mubr.f32.mxu0 0.0
        %6271 = vmatmul.mubr.f32.gmra.mrb[0].mxu0 %v6045
        %v6272 = vpop.f32.mrb[0].mxu0
        %v6273 = vadd.f32 %v6006, %v6272
        %v6274 = vpop.f32.mrb[0].mxu0
        %v6275 = vadd.f32 %v6007, %v6274
        %6276 = vmatprep.mubr.f32.mxu0 0.0
        %6277 = vmatmul.mubr.f32.gmra.mrb[0].mxu0 %v6048
        %v6278 = vpop.f32.mrb[0].mxu0
        %v6279 = vadd.f32 %v6008, %v6278
        %v6280 = vpop.f32.mrb[0].mxu0
        %v6281 = vadd.f32 %v6009, %v6280
        %6282 = vmatprep.mubr.f32.mxu0 0.0
        %6283 = vmatmul.mubr.f32.gmra.mrb[0].mxu0 %v6051
        %v6284 = vpop.f32.mrb[0].mxu0
        %v6285 = vadd.f32 %v6010, %v6284
        %v6286 = vpop.f32.mrb[0].mxu0
        %v6287 = vadd.f32 %v6011, %v6286
        %6288 = vmatprep.mubr.f32.mxu0 0.0
        %6289 = vmatmul.mubr.f32.gmra.mrb[0].mxu0 %v6054
        %v6290 = vpop.f32.mrb[0].mxu0
        %v6291 = vadd.f32 %v6012, %v6290
        %v6292 = vpop.f32.mrb[0].mxu0
        %v6293 = vadd.f32 %v6013, %v6292
        %6294 = vmatprep.mubr.f32.mxu0 0.0
        %6295 = vmatmul.mubr.f32.gmra.mrb[0].mxu0 %v6057
        %v6296 = vpop.f32.mrb[0].mxu0
        %v6297 = vadd.f32 %v6014, %v6296
        %v6298 = vpop.f32.mrb[0].mxu0
        %v6299 = vadd.f32 %v6015, %v6298
        %6300 = vmatprep.mubr.f32.mxu0 0.0
        %6301 = vmatmul.mubr.f32.gmra.mrb[0].mxu0 %v6060
        %v6302 = vpop.f32.mrb[0].mxu0
        %v6303 = vadd.f32 %v6016, %v6302
        %v6304 = vpop.f32.mrb[0].mxu0
        %v6305 = vadd.f32 %v6017, %v6304
        %6306 = vmatprep.mubr.f32.mxu0 0.0
        %6307 = vmatmul.mubr.f32.gmra.mrb[0].mxu0 %v6063
        %v6308 = vpop.f32.mrb[0].mxu0
        %v6309 = vadd.f32 %v6018, %v6308
        %v6310 = vpop.f32.mrb[0].mxu0
        %v6311 = vadd.f32 %v6019, %v6310
        %6312 = vmatprep.mubr.f32.mxu0 0.0
        %6313 = vmatmul.mubr.f32.gmra.mrb[0].mxu0 %v6066
        %v6314 = vpop.f32.mrb[0].mxu0
        %v6315 = vadd.f32 %v6020, %v6314
        %v6316 = vpop.f32.mrb[0].mxu0
        %v6317 = vadd.f32 %v6021, %v6316
        %6318 = vmatprep.mubr.f32.mxu0 0.0
        %6319 = vmatmul.mubr.f32.gmra.mrb[0].mxu0 %v6069
        %v6320 = vpop.f32.mrb[0].mxu0
        %v6321 = vadd.f32 %v6022, %v6320
        %v6322 = vpop.f32.mrb[0].mxu0
        %v6323 = vadd.f32 %v6023, %v6322
        %6324 = vmatprep.mubr.f32.mxu0 0.0
        %6325 = vmatmul.mubr.f32.gmra.mrb[0].mxu0 %v6072
        %v6326 = vpop.f32.mrb[0].mxu0
        %v6327 = vadd.f32 %v6024, %v6326
        %v6328 = vpop.f32.mrb[0].mxu0
        %v6329 = vadd.f32 %v6025, %v6328
        %6330 = vdwg.mxu0
        %v6332 = vsel %vm4978, %v5620, 0
        %v6335 = vsel %vm4978, %v5621, 0
        %v6338 = vsel %vm4978, %v5622, 0
        %v6341 = vsel %vm4978, %v5623, 0
        %v6344 = vsel %vm4978, %v5624, 0
        %v6347 = vsel %vm4978, %v5625, 0
        %v6350 = vsel %vm4978, %v5626, 0
        %v6353 = vsel %vm4978, %v5627, 0
        %v6356 = vsel %vm4978, %v5628, 0
        %v6359 = vsel %vm4978, %v5629, 0
        %v6362 = vsel %vm4978, %v5630, 0
        %v6365 = vsel %vm4978, %v5631, 0
        %v6368 = vsel %vm4978, %v5632, 0
        %v6371 = vsel %vm4978, %v5633, 0
        %v6374 = vsel %vm4978, %v5634, 0
        %v6377 = vsel %vm4978, %v5635, 0
        %v6380 = vsel %vm4978, %v5700, 0
        %v6383 = vsel %vm4978, %v5701, 0
        %v6386 = vsel %vm4978, %v5702, 0
        %v6389 = vsel %vm4978, %v5703, 0
        %v6392 = vsel %vm4978, %v5704, 0
        %v6395 = vsel %vm4978, %v5705, 0
        %v6398 = vsel %vm4978, %v5706, 0
        %v6401 = vsel %vm4978, %v5707, 0
        %v6404 = vsel %vm4978, %v5708, 0
        %v6407 = vsel %vm4978, %v5709, 0
        %v6410 = vsel %vm4978, %v5710, 0
        %v6413 = vsel %vm4978, %v5711, 0
        %v6416 = vsel %vm4978, %v5712, 0
        %v6419 = vsel %vm4978, %v5713, 0
        %v6422 = vsel %vm4978, %v5714, 0
        %v6425 = vsel %vm4978, %v5715, 0
        %v6428 = vsel %vm4978, %v5716, 0
        %v6431 = vsel %vm4978, %v5717, 0
        %v6434 = vsel %vm4978, %v5718, 0
        %v6437 = vsel %vm4978, %v5719, 0
        %v6440 = vsel %vm4978, %v5720, 0
        %v6443 = vsel %vm4978, %v5721, 0
        %v6446 = vsel %vm4978, %v5722, 0
        %v6449 = vsel %vm4978, %v5723, 0
        %v6452 = vsel %vm4978, %v5724, 0
        %v6455 = vsel %vm4978, %v5725, 0
        %v6458 = vsel %vm4978, %v5726, 0
        %v6461 = vsel %vm4978, %v5727, 0
        %v6464 = vsel %vm4978, %v5728, 0
        %v6467 = vsel %vm4978, %v5729, 0
        %v6470 = vsel %vm4978, %v5730, 0
        %v6473 = vsel %vm4978, %v5731, 0
        %6475 = vmatprep.subr.mxu0 0.0
        %6476 = vmatpush1.xpose.msra.mxu0 %v6380
        %6477 = vmatprep.subr.mxu0 0.0
        %6478 = vmatpush1.xpose.msra.mxu0 %v6383
        %6479 = vmatprep.subr.mxu0 0.0
        %6480 = vmatpush1.xpose.msra.mxu0 %v6386
        %6481 = vmatprep.subr.mxu0 0.0
        %6482 = vmatpush1.xpose.msra.mxu0 %v6389
        %6483 = vmatprep.subr.mxu0 0.0
        %6484 = vmatpush1.xpose.msra.mxu0 %v6392
        %6485 = vmatprep.subr.mxu0 0.0
        %6486 = vmatpush1.xpose.msra.mxu0 %v6395
        %6487 = vmatprep.subr.mxu0 0.0
        %6488 = vmatpush1.xpose.msra.mxu0 %v6398
        %6489 = vmatprep.subr.mxu0 0.0
        %6490 = vmatpush1.xpose.msra.mxu0 %v6401
        %6491 = vmatprep.subr.mxu0 0.0
        %6492 = vmatpush1.xpose.msra.mxu0 %v6404
        %6493 = vmatprep.subr.mxu0 0.0
        %6494 = vmatpush1.xpose.msra.mxu0 %v6407
        %6495 = vmatprep.subr.mxu0 0.0
        %6496 = vmatpush1.xpose.msra.mxu0 %v6410
        %6497 = vmatprep.subr.mxu0 0.0
        %6498 = vmatpush1.xpose.msra.mxu0 %v6413
        %6499 = vmatprep.subr.mxu0 0.0
        %6500 = vmatpush1.xpose.msra.mxu0 %v6416
        %6501 = vmatprep.subr.mxu0 0.0
        %6502 = vmatpush1.xpose.msra.mxu0 %v6419
        %6503 = vmatprep.subr.mxu0 0.0
        %6504 = vmatpush1.xpose.msra.mxu0 %v6422
        %6505 = vmatprep.subr.mxu0 0.0
        %6506 = vmatpush1.xpose.msra.mxu0 %v6425
        %6507 = vmatprep.subr.mxu0 0.0
        %6508 = vmatpush1.xpose.msra.mxu0 %v6428
        %6509 = vmatprep.subr.mxu0 0.0
        %6510 = vmatpush1.xpose.msra.mxu0 %v6431
        %6511 = vmatprep.subr.mxu0 0.0
        %6512 = vmatpush1.xpose.msra.mxu0 %v6434
        %6513 = vmatprep.subr.mxu0 0.0
        %6514 = vmatpush1.xpose.msra.mxu0 %v6437
        %6515 = vmatprep.subr.mxu0 0.0
        %6516 = vmatpush1.xpose.msra.mxu0 %v6440
        %6517 = vmatprep.subr.mxu0 0.0
        %6518 = vmatpush1.xpose.msra.mxu0 %v6443
        %6519 = vmatprep.subr.mxu0 0.0
        %6520 = vmatpush1.xpose.msra.mxu0 %v6446
        %6521 = vmatprep.subr.mxu0 0.0
        %6522 = vmatpush1.xpose.msra.mxu0 %v6449
        %6523 = vmatprep.subr.mxu0 0.0
        %6524 = vmatpush1.xpose.msra.mxu0 %v6452
        %6525 = vmatprep.subr.mxu0 0.0
        %6526 = vmatpush1.xpose.msra.mxu0 %v6455
        %6527 = vmatprep.subr.mxu0 0.0
        %6528 = vmatpush1.xpose.msra.mxu0 %v6458
        %6529 = vmatprep.subr.mxu0 0.0
        %6530 = vmatpush1.xpose.msra.mxu0 %v6461
        %6531 = vmatprep.subr.mxu0 0.0
        %6532 = vmatpush1.xpose.msra.mxu0 %v6464
        %6533 = vmatprep.subr.mxu0 0.0
        %6534 = vmatpush1.xpose.msra.mxu0 %v6467
        %6535 = vmatprep.subr.mxu0 0.0
        %6536 = vmatpush1.xpose.msra.mxu0 %v6470
        %6537 = vmatprep.subr.mxu0 0.0
        %6538 = vmatpush1.xpose.msra.mxu0 %v6473
        %6539 = vmatprep.mubr.f32.mxu0 0.0
        %6540 = vmatmul.mubr.f32.gmra.mrb[0].mxu0 %v6332
        %v6541 = vpop.f32.mrb[0].mxu0
        %v6542 = vadd.f32 %v5994, %v6541
        %v6543 = vpop.f32.mrb[0].mxu0
        %v6544 = vadd.f32 %v5995, %v6543
        %6545 = vmatprep.mubr.f32.mxu0 0.0
        %6546 = vmatmul.mubr.f32.gmra.mrb[0].mxu0 %v6335
        %v6547 = vpop.f32.mrb[0].mxu0
        %v6548 = vadd.f32 %v5996, %v6547
        %v6549 = vpop.f32.mrb[0].mxu0
        %v6550 = vadd.f32 %v5997, %v6549
        %6551 = vmatprep.mubr.f32.mxu0 0.0
        %6552 = vmatmul.mubr.f32.gmra.mrb[0].mxu0 %v6338
        %v6553 = vpop.f32.mrb[0].mxu0
        %v6554 = vadd.f32 %v5998, %v6553
        %v6555 = vpop.f32.mrb[0].mxu0
        %v6556 = vadd.f32 %v5999, %v6555
        %6557 = vmatprep.mubr.f32.mxu0 0.0
        %6558 = vmatmul.mubr.f32.gmra.mrb[0].mxu0 %v6341
        %v6559 = vpop.f32.mrb[0].mxu0
        %v6560 = vadd.f32 %v6000, %v6559
        %v6561 = vpop.f32.mrb[0].mxu0
        %v6562 = vadd.f32 %v6001, %v6561
        %6563 = vmatprep.mubr.f32.mxu0 0.0
        %6564 = vmatmul.mubr.f32.gmra.mrb[0].mxu0 %v6344
        %v6565 = vpop.f32.mrb[0].mxu0
        %v6566 = vadd.f32 %v6002, %v6565
        %v6567 = vpop.f32.mrb[0].mxu0
        %v6568 = vadd.f32 %v6003, %v6567
        %6569 = vmatprep.mubr.f32.mxu0 0.0
        %6570 = vmatmul.mubr.f32.gmra.mrb[0].mxu0 %v6347
        %v6571 = vpop.f32.mrb[0].mxu0
        %v6572 = vadd.f32 %v6004, %v6571
        %v6573 = vpop.f32.mrb[0].mxu0
        %v6574 = vadd.f32 %v6005, %v6573
        %6575 = vmatprep.mubr.f32.mxu0 0.0
        %6576 = vmatmul.mubr.f32.gmra.mrb[0].mxu0 %v6350
        %v6577 = vpop.f32.mrb[0].mxu0
        %v6578 = vadd.f32 %v6006, %v6577
        %v6579 = vpop.f32.mrb[0].mxu0
        %v6580 = vadd.f32 %v6007, %v6579
        %6581 = vmatprep.mubr.f32.mxu0 0.0
        %6582 = vmatmul.mubr.f32.gmra.mrb[0].mxu0 %v6353
        %v6583 = vpop.f32.mrb[0].mxu0
        %v6584 = vadd.f32 %v6008, %v6583
        %v6585 = vpop.f32.mrb[0].mxu0
        %v6586 = vadd.f32 %v6009, %v6585
        %6587 = vmatprep.mubr.f32.mxu0 0.0
        %6588 = vmatmul.mubr.f32.gmra.mrb[0].mxu0 %v6356
        %v6589 = vpop.f32.mrb[0].mxu0
        %v6590 = vadd.f32 %v6010, %v6589
        %v6591 = vpop.f32.mrb[0].mxu0
        %v6592 = vadd.f32 %v6011, %v6591
        %6593 = vmatprep.mubr.f32.mxu0 0.0
        %6594 = vmatmul.mubr.f32.gmra.mrb[0].mxu0 %v6359
        %v6595 = vpop.f32.mrb[0].mxu0
        %v6596 = vadd.f32 %v6012, %v6595
        %v6597 = vpop.f32.mrb[0].mxu0
        %v6598 = vadd.f32 %v6013, %v6597
        %6599 = vmatprep.mubr.f32.mxu0 0.0
        %6600 = vmatmul.mubr.f32.gmra.mrb[0].mxu0 %v6362
        %v6601 = vpop.f32.mrb[0].mxu0
        %v6602 = vadd.f32 %v6014, %v6601
        %v6603 = vpop.f32.mrb[0].mxu0
        %v6604 = vadd.f32 %v6015, %v6603
        %6605 = vmatprep.mubr.f32.mxu0 0.0
        %6606 = vmatmul.mubr.f32.gmra.mrb[0].mxu0 %v6365
        %v6607 = vpop.f32.mrb[0].mxu0
        %v6608 = vadd.f32 %v6016, %v6607
        %v6609 = vpop.f32.mrb[0].mxu0
        %v6610 = vadd.f32 %v6017, %v6609
        %6611 = vmatprep.mubr.f32.mxu0 0.0
        %6612 = vmatmul.mubr.f32.gmra.mrb[0].mxu0 %v6368
        %v6613 = vpop.f32.mrb[0].mxu0
        %v6614 = vadd.f32 %v6018, %v6613
        %v6615 = vpop.f32.mrb[0].mxu0
        %v6616 = vadd.f32 %v6019, %v6615
        %6617 = vmatprep.mubr.f32.mxu0 0.0
        %6618 = vmatmul.mubr.f32.gmra.mrb[0].mxu0 %v6371
        %v6619 = vpop.f32.mrb[0].mxu0
        %v6620 = vadd.f32 %v6020, %v6619
        %v6621 = vpop.f32.mrb[0].mxu0
        %v6622 = vadd.f32 %v6021, %v6621
        %6623 = vmatprep.mubr.f32.mxu0 0.0
        %6624 = vmatmul.mubr.f32.gmra.mrb[0].mxu0 %v6374
        %v6625 = vpop.f32.mrb[0].mxu0
        %v6626 = vadd.f32 %v6022, %v6625
        %v6627 = vpop.f32.mrb[0].mxu0
        %v6628 = vadd.f32 %v6023, %v6627
        %6629 = vmatprep.mubr.f32.mxu0 0.0
        %6630 = vmatmul.mubr.f32.gmra.mrb[0].mxu0 %v6377
        %v6631 = vpop.f32.mrb[0].mxu0
        %v6632 = vadd.f32 %v6024, %v6631
        %v6633 = vpop.f32.mrb[0].mxu0
        %v6634 = vadd.f32 %v6025, %v6633
        %6635 = vdwg.mxu0
        %v6637 = vsel %vm4978, %v5636, 0
        %v6640 = vsel %vm4978, %v5637, 0
        %v6643 = vsel %vm4978, %v5638, 0
        %v6646 = vsel %vm4978, %v5639, 0
        %v6649 = vsel %vm4978, %v5640, 0
        %v6652 = vsel %vm4978, %v5641, 0
        %v6655 = vsel %vm4978, %v5642, 0
        %v6658 = vsel %vm4978, %v5643, 0
        %v6661 = vsel %vm4978, %v5644, 0
        %v6664 = vsel %vm4978, %v5645, 0
        %v6667 = vsel %vm4978, %v5646, 0
        %v6670 = vsel %vm4978, %v5647, 0
        %v6673 = vsel %vm4978, %v5648, 0
        %v6676 = vsel %vm4978, %v5649, 0
        %v6679 = vsel %vm4978, %v5650, 0
        %v6682 = vsel %vm4978, %v5651, 0
        %v6685 = vsel %vm4978, %v5732, 0
        %v6688 = vsel %vm4978, %v5733, 0
        %v6691 = vsel %vm4978, %v5734, 0
        %v6694 = vsel %vm4978, %v5735, 0
        %v6697 = vsel %vm4978, %v5736, 0
        %v6700 = vsel %vm4978, %v5737, 0
        %v6703 = vsel %vm4978, %v5738, 0
        %v6706 = vsel %vm4978, %v5739, 0
        %v6709 = vsel %vm4978, %v5740, 0
        %v6712 = vsel %vm4978, %v5741, 0
        %v6715 = vsel %vm4978, %v5742, 0
        %v6718 = vsel %vm4978, %v5743, 0
        %v6721 = vsel %vm4978, %v5744, 0
        %v6724 = vsel %vm4978, %v5745, 0
        %v6727 = vsel %vm4978, %v5746, 0
        %v6730 = vsel %vm4978, %v5747, 0
        %v6733 = vsel %vm4978, %v5748, 0
        %v6736 = vsel %vm4978, %v5749, 0
        %v6739 = vsel %vm4978, %v5750, 0
        %v6742 = vsel %vm4978, %v5751, 0
        %v6745 = vsel %vm4978, %v5752, 0
        %v6748 = vsel %vm4978, %v5753, 0
        %v6751 = vsel %vm4978, %v5754, 0
        %v6754 = vsel %vm4978, %v5755, 0
        %v6757 = vsel %vm4978, %v5756, 0
        %v6760 = vsel %vm4978, %v5757, 0
        %v6763 = vsel %vm4978, %v5758, 0
        %v6766 = vsel %vm4978, %v5759, 0
        %v6769 = vsel %vm4978, %v5760, 0
        %v6772 = vsel %vm4978, %v5761, 0
        %v6775 = vsel %vm4978, %v5762, 0
        %v6778 = vsel %vm4978, %v5763, 0
        %6780 = vmatprep.subr.mxu0 0.0
        %6781 = vmatpush1.xpose.msra.mxu0 %v6685
        %6782 = vmatprep.subr.mxu0 0.0
        %6783 = vmatpush1.xpose.msra.mxu0 %v6688
        %6784 = vmatprep.subr.mxu0 0.0
        %6785 = vmatpush1.xpose.msra.mxu0 %v6691
        %6786 = vmatprep.subr.mxu0 0.0
        %6787 = vmatpush1.xpose.msra.mxu0 %v6694
        %6788 = vmatprep.subr.mxu0 0.0
        %6789 = vmatpush1.xpose.msra.mxu0 %v6697
        %6790 = vmatprep.subr.mxu0 0.0
        %6791 = vmatpush1.xpose.msra.mxu0 %v6700
        %6792 = vmatprep.subr.mxu0 0.0
        %6793 = vmatpush1.xpose.msra.mxu0 %v6703
        %6794 = vmatprep.subr.mxu0 0.0
        %6795 = vmatpush1.xpose.msra.mxu0 %v6706
        %6796 = vmatprep.subr.mxu0 0.0
        %6797 = vmatpush1.xpose.msra.mxu0 %v6709
        %6798 = vmatprep.subr.mxu0 0.0
        %6799 = vmatpush1.xpose.msra.mxu0 %v6712
        %6800 = vmatprep.subr.mxu0 0.0
        %6801 = vmatpush1.xpose.msra.mxu0 %v6715
        %6802 = vmatprep.subr.mxu0 0.0
        %6803 = vmatpush1.xpose.msra.mxu0 %v6718
        %6804 = vmatprep.subr.mxu0 0.0
        %6805 = vmatpush1.xpose.msra.mxu0 %v6721
        %6806 = vmatprep.subr.mxu0 0.0
        %6807 = vmatpush1.xpose.msra.mxu0 %v6724
        %6808 = vmatprep.subr.mxu0 0.0
        %6809 = vmatpush1.xpose.msra.mxu0 %v6727
        %6810 = vmatprep.subr.mxu0 0.0
        %6811 = vmatpush1.xpose.msra.mxu0 %v6730
        %6812 = vmatprep.subr.mxu0 0.0
        %6813 = vmatpush1.xpose.msra.mxu0 %v6733
        %6814 = vmatprep.subr.mxu0 0.0
        %6815 = vmatpush1.xpose.msra.mxu0 %v6736
        %6816 = vmatprep.subr.mxu0 0.0
        %6817 = vmatpush1.xpose.msra.mxu0 %v6739
        %6818 = vmatprep.subr.mxu0 0.0
        %6819 = vmatpush1.xpose.msra.mxu0 %v6742
        %6820 = vmatprep.subr.mxu0 0.0
        %6821 = vmatpush1.xpose.msra.mxu0 %v6745
        %6822 = vmatprep.subr.mxu0 0.0
        %6823 = vmatpush1.xpose.msra.mxu0 %v6748
        %6824 = vmatprep.subr.mxu0 0.0
        %6825 = vmatpush1.xpose.msra.mxu0 %v6751
        %6826 = vmatprep.subr.mxu0 0.0
        %6827 = vmatpush1.xpose.msra.mxu0 %v6754
        %6828 = vmatprep.subr.mxu0 0.0
        %6829 = vmatpush1.xpose.msra.mxu0 %v6757
        %6830 = vmatprep.subr.mxu0 0.0
        %6831 = vmatpush1.xpose.msra.mxu0 %v6760
        %6832 = vmatprep.subr.mxu0 0.0
        %6833 = vmatpush1.xpose.msra.mxu0 %v6763
        %6834 = vmatprep.subr.mxu0 0.0
        %6835 = vmatpush1.xpose.msra.mxu0 %v6766
        %6836 = vmatprep.subr.mxu0 0.0
        %6837 = vmatpush1.xpose.msra.mxu0 %v6769
        %6838 = vmatprep.subr.mxu0 0.0
        %6839 = vmatpush1.xpose.msra.mxu0 %v6772
        %6840 = vmatprep.subr.mxu0 0.0
        %6841 = vmatpush1.xpose.msra.mxu0 %v6775
        %6842 = vmatprep.subr.mxu0 0.0
        %6843 = vmatpush1.xpose.msra.mxu0 %v6778
        %6844 = vmatprep.mubr.f32.mxu0 0.0
        %6845 = vmatmul.mubr.f32.gmra.mrb[0].mxu0 %v6637
        %v6846 = vpop.f32.mrb[0].mxu0
        %v6847 = vadd.f32 %v5994, %v6846
        %v6848 = vpop.f32.mrb[0].mxu0
        %v6849 = vadd.f32 %v5995, %v6848
        %6850 = vmatprep.mubr.f32.mxu0 0.0
        %6851 = vmatmul.mubr.f32.gmra.mrb[0].mxu0 %v6640
        %v6852 = vpop.f32.mrb[0].mxu0
        %v6853 = vadd.f32 %v5996, %v6852
        %v6854 = vpop.f32.mrb[0].mxu0
        %v6855 = vadd.f32 %v5997, %v6854
        %6856 = vmatprep.mubr.f32.mxu0 0.0
        %6857 = vmatmul.mubr.f32.gmra.mrb[0].mxu0 %v6643
        %v6858 = vpop.f32.mrb[0].mxu0
        %v6859 = vadd.f32 %v5998, %v6858
        %v6860 = vpop.f32.mrb[0].mxu0
        %v6861 = vadd.f32 %v5999, %v6860
        %6862 = vmatprep.mubr.f32.mxu0 0.0
        %6863 = vmatmul.mubr.f32.gmra.mrb[0].mxu0 %v6646
        %v6864 = vpop.f32.mrb[0].mxu0
        %v6865 = vadd.f32 %v6000, %v6864
        %v6866 = vpop.f32.mrb[0].mxu0
        %v6867 = vadd.f32 %v6001, %v6866
        %6868 = vmatprep.mubr.f32.mxu0 0.0
        %6869 = vmatmul.mubr.f32.gmra.mrb[0].mxu0 %v6649
        %v6870 = vpop.f32.mrb[0].mxu0
        %v6871 = vadd.f32 %v6002, %v6870
        %v6872 = vpop.f32.mrb[0].mxu0
        %v6873 = vadd.f32 %v6003, %v6872
        %6874 = vmatprep.mubr.f32.mxu0 0.0
        %6875 = vmatmul.mubr.f32.gmra.mrb[0].mxu0 %v6652
        %v6876 = vpop.f32.mrb[0].mxu0
        %v6877 = vadd.f32 %v6004, %v6876
        %v6878 = vpop.f32.mrb[0].mxu0
        %v6879 = vadd.f32 %v6005, %v6878
        %6880 = vmatprep.mubr.f32.mxu0 0.0
        %6881 = vmatmul.mubr.f32.gmra.mrb[0].mxu0 %v6655
        %v6882 = vpop.f32.mrb[0].mxu0
        %v6883 = vadd.f32 %v6006, %v6882
        %v6884 = vpop.f32.mrb[0].mxu0
        %v6885 = vadd.f32 %v6007, %v6884
        %6886 = vmatprep.mubr.f32.mxu0 0.0
        %6887 = vmatmul.mubr.f32.gmra.mrb[0].mxu0 %v6658
        %v6888 = vpop.f32.mrb[0].mxu0
        %v6889 = vadd.f32 %v6008, %v6888
        %v6890 = vpop.f32.mrb[0].mxu0
        %v6891 = vadd.f32 %v6009, %v6890
        %6892 = vmatprep.mubr.f32.mxu0 0.0
        %6893 = vmatmul.mubr.f32.gmra.mrb[0].mxu0 %v6661
        %v6894 = vpop.f32.mrb[0].mxu0
        %v6895 = vadd.f32 %v6010, %v6894
        %v6896 = vpop.f32.mrb[0].mxu0
        %v6897 = vadd.f32 %v6011, %v6896
        %6898 = vmatprep.mubr.f32.mxu0 0.0
        %6899 = vmatmul.mubr.f32.gmra.mrb[0].mxu0 %v6664
        %v6900 = vpop.f32.mrb[0].mxu0
        %v6901 = vadd.f32 %v6012, %v6900
        %v6902 = vpop.f32.mrb[0].mxu0
        %v6903 = vadd.f32 %v6013, %v6902
        %6904 = vmatprep.mubr.f32.mxu0 0.0
        %6905 = vmatmul.mubr.f32.gmra.mrb[0].mxu0 %v6667
        %v6906 = vpop.f32.mrb[0].mxu0
        %v6907 = vadd.f32 %v6014, %v6906
        %v6908 = vpop.f32.mrb[0].mxu0
        %v6909 = vadd.f32 %v6015, %v6908
        %6910 = vmatprep.mubr.f32.mxu0 0.0
        %6911 = vmatmul.mubr.f32.gmra.mrb[0].mxu0 %v6670
        %v6912 = vpop.f32.mrb[0].mxu0
        %v6913 = vadd.f32 %v6016, %v6912
        %v6914 = vpop.f32.mrb[0].mxu0
        %v6915 = vadd.f32 %v6017, %v6914
        %6916 = vmatprep.mubr.f32.mxu0 0.0
        %6917 = vmatmul.mubr.f32.gmra.mrb[0].mxu0 %v6673
        %v6918 = vpop.f32.mrb[0].mxu0
        %v6919 = vadd.f32 %v6018, %v6918
        %v6920 = vpop.f32.mrb[0].mxu0
        %v6921 = vadd.f32 %v6019, %v6920
        %6922 = vmatprep.mubr.f32.mxu0 0.0
        %6923 = vmatmul.mubr.f32.gmra.mrb[0].mxu0 %v6676
        %v6924 = vpop.f32.mrb[0].mxu0
        %v6925 = vadd.f32 %v6020, %v6924
        %v6926 = vpop.f32.mrb[0].mxu0
        %v6927 = vadd.f32 %v6021, %v6926
        %6928 = vmatprep.mubr.f32.mxu0 0.0
        %6929 = vmatmul.mubr.f32.gmra.mrb[0].mxu0 %v6679
        %v6930 = vpop.f32.mrb[0].mxu0
        %v6931 = vadd.f32 %v6022, %v6930
        %v6932 = vpop.f32.mrb[0].mxu0
        %v6933 = vadd.f32 %v6023, %v6932
        %6934 = vmatprep.mubr.f32.mxu0 0.0
        %6935 = vmatmul.mubr.f32.gmra.mrb[0].mxu0 %v6682
        %v6936 = vpop.f32.mrb[0].mxu0
        %v6937 = vadd.f32 %v6024, %v6936
        %v6938 = vpop.f32.mrb[0].mxu0
        %v6939 = vadd.f32 %v6025, %v6938
        %6940 = vdwg.mxu0
        %v6942 = vsel %vm4978, %v5652, 0
        %v6945 = vsel %vm4978, %v5653, 0
        %v6948 = vsel %vm4978, %v5654, 0
        %v6951 = vsel %vm4978, %v5655, 0
        %v6954 = vsel %vm4978, %v5656, 0
        %v6957 = vsel %vm4978, %v5657, 0
        %v6960 = vsel %vm4978, %v5658, 0
        %v6963 = vsel %vm4978, %v5659, 0
        %v6966 = vsel %vm4978, %v5660, 0
        %v6969 = vsel %vm4978, %v5661, 0
        %v6972 = vsel %vm4978, %v5662, 0
        %v6975 = vsel %vm4978, %v5663, 0
        %v6978 = vsel %vm4978, %v5664, 0
        %v6981 = vsel %vm4978, %v5665, 0
        %v6984 = vsel %vm4978, %v5666, 0
        %v6987 = vsel %vm4978, %v5667, 0
        %v6990 = vsel %vm4978, %v5764, 0
        %v6993 = vsel %vm4978, %v5765, 0
        %v6996 = vsel %vm4978, %v5766, 0
        %v6999 = vsel %vm4978, %v5767, 0
        %v7002 = vsel %vm4978, %v5768, 0
        %v7005 = vsel %vm4978, %v5769, 0
        %v7008 = vsel %vm4978, %v5770, 0
        %v7011 = vsel %vm4978, %v5771, 0
        %v7014 = vsel %vm4978, %v5772, 0
        %v7017 = vsel %vm4978, %v5773, 0
        %v7020 = vsel %vm4978, %v5774, 0
        %v7023 = vsel %vm4978, %v5775, 0
        %v7026 = vsel %vm4978, %v5776, 0
        %v7029 = vsel %vm4978, %v5777, 0
        %v7032 = vsel %vm4978, %v5778, 0
        %v7035 = vsel %vm4978, %v5779, 0
        %v7038 = vsel %vm4978, %v5780, 0
        %v7041 = vsel %vm4978, %v5781, 0
        %v7044 = vsel %vm4978, %v5782, 0
        %v7047 = vsel %vm4978, %v5783, 0
        %v7050 = vsel %vm4978, %v5784, 0
        %v7053 = vsel %vm4978, %v5785, 0
        %v7056 = vsel %vm4978, %v5786, 0
        %v7059 = vsel %vm4978, %v5787, 0
        %v7062 = vsel %vm4978, %v5788, 0
        %v7065 = vsel %vm4978, %v5789, 0
        %v7068 = vsel %vm4978, %v5790, 0
        %v7071 = vsel %vm4978, %v5791, 0
        %v7074 = vsel %vm4978, %v5792, 0
        %v7077 = vsel %vm4978, %v5793, 0
        %v7080 = vsel %vm4978, %v5794, 0
        %v7083 = vsel %vm4978, %v5795, 0
        %7085 = vmatprep.subr.mxu0 0.0
        %7086 = vmatpush1.xpose.msra.mxu0 %v6990
        %7087 = vmatprep.subr.mxu0 0.0
        %7088 = vmatpush1.xpose.msra.mxu0 %v6993
        %7089 = vmatprep.subr.mxu0 0.0
        %7090 = vmatpush1.xpose.msra.mxu0 %v6996
        %7091 = vmatprep.subr.mxu0 0.0
        %7092 = vmatpush1.xpose.msra.mxu0 %v6999
        %7093 = vmatprep.subr.mxu0 0.0
        %7094 = vmatpush1.xpose.msra.mxu0 %v7002
        %7095 = vmatprep.subr.mxu0 0.0
        %7096 = vmatpush1.xpose.msra.mxu0 %v7005
        %7097 = vmatprep.subr.mxu0 0.0
        %7098 = vmatpush1.xpose.msra.mxu0 %v7008
        %7099 = vmatprep.subr.mxu0 0.0
        %7100 = vmatpush1.xpose.msra.mxu0 %v7011
        %7101 = vmatprep.subr.mxu0 0.0
        %7102 = vmatpush1.xpose.msra.mxu0 %v7014
        %7103 = vmatprep.subr.mxu0 0.0
        %7104 = vmatpush1.xpose.msra.mxu0 %v7017
        %7105 = vmatprep.subr.mxu0 0.0
        %7106 = vmatpush1.xpose.msra.mxu0 %v7020
        %7107 = vmatprep.subr.mxu0 0.0
        %7108 = vmatpush1.xpose.msra.mxu0 %v7023
        %7109 = vmatprep.subr.mxu0 0.0
        %7110 = vmatpush1.xpose.msra.mxu0 %v7026
        %7111 = vmatprep.subr.mxu0 0.0
        %7112 = vmatpush1.xpose.msra.mxu0 %v7029
        %7113 = vmatprep.subr.mxu0 0.0
        %7114 = vmatpush1.xpose.msra.mxu0 %v7032
        %7115 = vmatprep.subr.mxu0 0.0
        %7116 = vmatpush1.xpose.msra.mxu0 %v7035
        %7117 = vmatprep.subr.mxu0 0.0
        %7118 = vmatpush1.xpose.msra.mxu0 %v7038
        %7119 = vmatprep.subr.mxu0 0.0
        %7120 = vmatpush1.xpose.msra.mxu0 %v7041
        %7121 = vmatprep.subr.mxu0 0.0
        %7122 = vmatpush1.xpose.msra.mxu0 %v7044
        %7123 = vmatprep.subr.mxu0 0.0
        %7124 = vmatpush1.xpose.msra.mxu0 %v7047
        %7125 = vmatprep.subr.mxu0 0.0
        %7126 = vmatpush1.xpose.msra.mxu0 %v7050
        %7127 = vmatprep.subr.mxu0 0.0
        %7128 = vmatpush1.xpose.msra.mxu0 %v7053
        %7129 = vmatprep.subr.mxu0 0.0
        %7130 = vmatpush1.xpose.msra.mxu0 %v7056
        %7131 = vmatprep.subr.mxu0 0.0
        %7132 = vmatpush1.xpose.msra.mxu0 %v7059
        %7133 = vmatprep.subr.mxu0 0.0
        %7134 = vmatpush1.xpose.msra.mxu0 %v7062
        %7135 = vmatprep.subr.mxu0 0.0
        %7136 = vmatpush1.xpose.msra.mxu0 %v7065
        %7137 = vmatprep.subr.mxu0 0.0
        %7138 = vmatpush1.xpose.msra.mxu0 %v7068
        %7139 = vmatprep.subr.mxu0 0.0
        %7140 = vmatpush1.xpose.msra.mxu0 %v7071
        %7141 = vmatprep.subr.mxu0 0.0
        %7142 = vmatpush1.xpose.msra.mxu0 %v7074
        %7143 = vmatprep.subr.mxu0 0.0
        %7144 = vmatpush1.xpose.msra.mxu0 %v7077
        %7145 = vmatprep.subr.mxu0 0.0
        %7146 = vmatpush1.xpose.msra.mxu0 %v7080
        %7147 = vmatprep.subr.mxu0 0.0
        %7148 = vmatpush1.xpose.msra.mxu0 %v7083
        %7149 = vmatprep.mubr.f32.mxu0 0.0
        %7150 = vmatmul.mubr.f32.gmra.mrb[0].mxu0 %v6942
        %v7151 = vpop.f32.mrb[0].mxu0
        %v7152 = vadd.f32 %v5994, %v7151
        %v7153 = vpop.f32.mrb[0].mxu0
        %v7154 = vadd.f32 %v5995, %v7153
        %7155 = vmatprep.mubr.f32.mxu0 0.0
        %7156 = vmatmul.mubr.f32.gmra.mrb[0].mxu0 %v6945
        %v7157 = vpop.f32.mrb[0].mxu0
        %v7158 = vadd.f32 %v5996, %v7157
        %v7159 = vpop.f32.mrb[0].mxu0
        %v7160 = vadd.f32 %v5997, %v7159
        %7161 = vmatprep.mubr.f32.mxu0 0.0
        %7162 = vmatmul.mubr.f32.gmra.mrb[0].mxu0 %v6948
        %v7163 = vpop.f32.mrb[0].mxu0
        %v7164 = vadd.f32 %v5998, %v7163
        %v7165 = vpop.f32.mrb[0].mxu0
        %v7166 = vadd.f32 %v5999, %v7165
        %7167 = vmatprep.mubr.f32.mxu0 0.0
        %7168 = vmatmul.mubr.f32.gmra.mrb[0].mxu0 %v6951
        %v7169 = vpop.f32.mrb[0].mxu0
        %v7170 = vadd.f32 %v6000, %v7169
        %v7171 = vpop.f32.mrb[0].mxu0
        %v7172 = vadd.f32 %v6001, %v7171
        %7173 = vmatprep.mubr.f32.mxu0 0.0
        %7174 = vmatmul.mubr.f32.gmra.mrb[0].mxu0 %v6954
        %v7175 = vpop.f32.mrb[0].mxu0
        %v7176 = vadd.f32 %v6002, %v7175
        %v7177 = vpop.f32.mrb[0].mxu0
        %v7178 = vadd.f32 %v6003, %v7177
        %7179 = vmatprep.mubr.f32.mxu0 0.0
        %7180 = vmatmul.mubr.f32.gmra.mrb[0].mxu0 %v6957
        %v7181 = vpop.f32.mrb[0].mxu0
        %v7182 = vadd.f32 %v6004, %v7181
        %v7183 = vpop.f32.mrb[0].mxu0
        %v7184 = vadd.f32 %v6005, %v7183
        %7185 = vmatprep.mubr.f32.mxu0 0.0
        %7186 = vmatmul.mubr.f32.gmra.mrb[0].mxu0 %v6960
        %v7187 = vpop.f32.mrb[0].mxu0
        %v7188 = vadd.f32 %v6006, %v7187
        %v7189 = vpop.f32.mrb[0].mxu0
        %v7190 = vadd.f32 %v6007, %v7189
        %7191 = vmatprep.mubr.f32.mxu0 0.0
        %7192 = vmatmul.mubr.f32.gmra.mrb[0].mxu0 %v6963
        %v7193 = vpop.f32.mrb[0].mxu0
        %v7194 = vadd.f32 %v6008, %v7193
        %v7195 = vpop.f32.mrb[0].mxu0
        %v7196 = vadd.f32 %v6009, %v7195
        %7197 = vmatprep.mubr.f32.mxu0 0.0
        %7198 = vmatmul.mubr.f32.gmra.mrb[0].mxu0 %v6966
        %v7199 = vpop.f32.mrb[0].mxu0
        %v7200 = vadd.f32 %v6010, %v7199
        %v7201 = vpop.f32.mrb[0].mxu0
        %v7202 = vadd.f32 %v6011, %v7201
        %7203 = vmatprep.mubr.f32.mxu0 0.0
        %7204 = vmatmul.mubr.f32.gmra.mrb[0].mxu0 %v6969
        %v7205 = vpop.f32.mrb[0].mxu0
        %v7206 = vadd.f32 %v6012, %v7205
        %v7207 = vpop.f32.mrb[0].mxu0
        %v7208 = vadd.f32 %v6013, %v7207
        %7209 = vmatprep.mubr.f32.mxu0 0.0
        %7210 = vmatmul.mubr.f32.gmra.mrb[0].mxu0 %v6972
        %v7211 = vpop.f32.mrb[0].mxu0
        %v7212 = vadd.f32 %v6014, %v7211
        %v7213 = vpop.f32.mrb[0].mxu0
        %v7214 = vadd.f32 %v6015, %v7213
        %7215 = vmatprep.mubr.f32.mxu0 0.0
        %7216 = vmatmul.mubr.f32.gmra.mrb[0].mxu0 %v6975
        %v7217 = vpop.f32.mrb[0].mxu0
        %v7218 = vadd.f32 %v6016, %v7217
        %v7219 = vpop.f32.mrb[0].mxu0
        %v7220 = vadd.f32 %v6017, %v7219
        %7221 = vmatprep.mubr.f32.mxu0 0.0
        %7222 = vmatmul.mubr.f32.gmra.mrb[0].mxu0 %v6978
        %v7223 = vpop.f32.mrb[0].mxu0
        %v7224 = vadd.f32 %v6018, %v7223
        %v7225 = vpop.f32.mrb[0].mxu0
        %v7226 = vadd.f32 %v6019, %v7225
        %7227 = vmatprep.mubr.f32.mxu0 0.0
        %7228 = vmatmul.mubr.f32.gmra.mrb[0].mxu0 %v6981
        %v7229 = vpop.f32.mrb[0].mxu0
        %v7230 = vadd.f32 %v6020, %v7229
        %v7231 = vpop.f32.mrb[0].mxu0
        %v7232 = vadd.f32 %v6021, %v7231
        %7233 = vmatprep.mubr.f32.mxu0 0.0
        %7234 = vmatmul.mubr.f32.gmra.mrb[0].mxu0 %v6984
        %v7235 = vpop.f32.mrb[0].mxu0
        %v7236 = vadd.f32 %v6022, %v7235
        %v7237 = vpop.f32.mrb[0].mxu0
        %v7238 = vadd.f32 %v6023, %v7237
        %7239 = vmatprep.mubr.f32.mxu0 0.0
        %7240 = vmatmul.mubr.f32.gmra.mrb[0].mxu0 %v6987
        %v7241 = vpop.f32.mrb[0].mxu0
        %v7242 = vadd.f32 %v6024, %v7241
        %v7243 = vpop.f32.mrb[0].mxu0
        %v7244 = vadd.f32 %v6025, %v7243
        %7245 = vdwg.mxu0
        %v7246 = vmax.f32 %v6237, %v6239
        %7247 = vmax.xlane.f32.xlu0 %v7246
        %v7248 = vpop.xlane.xlu0 %7247
        %v7249 = vmax.f32 %v6243, %v6245
        %7250 = vmax.xlane.f32.xlu0 %v7249
        %v7251 = vpop.xlane.xlu0 %7250
        %v7252 = vmax.f32 %v6249, %v6251
        %7253 = vmax.xlane.f32.xlu0 %v7252
        %v7254 = vpop.xlane.xlu0 %7253
        %v7255 = vmax.f32 %v6255, %v6257
        %7256 = vmax.xlane.f32.xlu0 %v7255
        %v7257 = vpop.xlane.xlu0 %7256
        %v7258 = vmax.f32 %v6261, %v6263
        %7259 = vmax.xlane.f32.xlu0 %v7258
        %v7260 = vpop.xlane.xlu0 %7259
        %v7261 = vmax.f32 %v6267, %v6269
        %7262 = vmax.xlane.f32.xlu0 %v7261
        %v7263 = vpop.xlane.xlu0 %7262
        %v7264 = vmax.f32 %v6273, %v6275
        %7265 = vmax.xlane.f32.xlu0 %v7264
        %v7266 = vpop.xlane.xlu0 %7265
        %v7267 = vmax.f32 %v6279, %v6281
        %7268 = vmax.xlane.f32.xlu0 %v7267
        %v7269 = vpop.xlane.xlu0 %7268
        %v7270 = vmax.f32 %v6285, %v6287
        %7271 = vmax.xlane.f32.xlu0 %v7270
        %v7272 = vpop.xlane.xlu0 %7271
        %v7273 = vmax.f32 %v6291, %v6293
        %7274 = vmax.xlane.f32.xlu0 %v7273
        %v7275 = vpop.xlane.xlu0 %7274
        %v7276 = vmax.f32 %v6297, %v6299
        %7277 = vmax.xlane.f32.xlu0 %v7276
        %v7278 = vpop.xlane.xlu0 %7277
        %v7279 = vmax.f32 %v6303, %v6305
        %7280 = vmax.xlane.f32.xlu0 %v7279
        %v7281 = vpop.xlane.xlu0 %7280
        %v7282 = vmax.f32 %v6309, %v6311
        %7283 = vmax.xlane.f32.xlu0 %v7282
        %v7284 = vpop.xlane.xlu0 %7283
        %v7285 = vmax.f32 %v6315, %v6317
        %7286 = vmax.xlane.f32.xlu0 %v7285
        %v7287 = vpop.xlane.xlu0 %7286
        %v7288 = vmax.f32 %v6321, %v6323
        %7289 = vmax.xlane.f32.xlu0 %v7288
        %v7290 = vpop.xlane.xlu0 %7289
        %v7291 = vmax.f32 %v6327, %v6329
        %7292 = vmax.xlane.f32.xlu0 %v7291
        %v7293 = vpop.xlane.xlu0 %7292
        %v7294 = vmax.f32 %v6542, %v6544
        %7295 = vmax.xlane.f32.xlu0 %v7294
        %v7296 = vpop.xlane.xlu0 %7295
        %v7297 = vmax.f32 %v6548, %v6550
        %7298 = vmax.xlane.f32.xlu0 %v7297
        %v7299 = vpop.xlane.xlu0 %7298
        %v7300 = vmax.f32 %v6554, %v6556
        %7301 = vmax.xlane.f32.xlu0 %v7300
        %v7302 = vpop.xlane.xlu0 %7301
        %v7303 = vmax.f32 %v6560, %v6562
        %7304 = vmax.xlane.f32.xlu0 %v7303
        %v7305 = vpop.xlane.xlu0 %7304
        %v7306 = vmax.f32 %v6566, %v6568
        %7307 = vmax.xlane.f32.xlu0 %v7306
        %v7308 = vpop.xlane.xlu0 %7307
        %v7309 = vmax.f32 %v6572, %v6574
        %7310 = vmax.xlane.f32.xlu0 %v7309
        %v7311 = vpop.xlane.xlu0 %7310
        %v7312 = vmax.f32 %v6578, %v6580
        %7313 = vmax.xlane.f32.xlu0 %v7312
        %v7314 = vpop.xlane.xlu0 %7313
        %v7315 = vmax.f32 %v6584, %v6586
        %7316 = vmax.xlane.f32.xlu0 %v7315
        %v7317 = vpop.xlane.xlu0 %7316
        %v7318 = vmax.f32 %v6590, %v6592
        %7319 = vmax.xlane.f32.xlu0 %v7318
        %v7320 = vpop.xlane.xlu0 %7319
        %v7321 = vmax.f32 %v6596, %v6598
        %7322 = vmax.xlane.f32.xlu0 %v7321
        %v7323 = vpop.xlane.xlu0 %7322
        %v7324 = vmax.f32 %v6602, %v6604
        %7325 = vmax.xlane.f32.xlu0 %v7324
        %v7326 = vpop.xlane.xlu0 %7325
        %v7327 = vmax.f32 %v6608, %v6610
        %7328 = vmax.xlane.f32.xlu0 %v7327
        %v7329 = vpop.xlane.xlu0 %7328
        %v7330 = vmax.f32 %v6614, %v6616
        %7331 = vmax.xlane.f32.xlu0 %v7330
        %v7332 = vpop.xlane.xlu0 %7331
        %v7333 = vmax.f32 %v6620, %v6622
        %7334 = vmax.xlane.f32.xlu0 %v7333
        %v7335 = vpop.xlane.xlu0 %7334
        %v7336 = vmax.f32 %v6626, %v6628
        %7337 = vmax.xlane.f32.xlu0 %v7336
        %v7338 = vpop.xlane.xlu0 %7337
        %v7339 = vmax.f32 %v6632, %v6634
        %7340 = vmax.xlane.f32.xlu0 %v7339
        %v7341 = vpop.xlane.xlu0 %7340
        %v7342 = vmax.f32 %v6847, %v6849
        %7343 = vmax.xlane.f32.xlu0 %v7342
        %v7344 = vpop.xlane.xlu0 %7343
        %v7345 = vmax.f32 %v6853, %v6855
        %7346 = vmax.xlane.f32.xlu0 %v7345
        %v7347 = vpop.xlane.xlu0 %7346
        %v7348 = vmax.f32 %v6859, %v6861
        %7349 = vmax.xlane.f32.xlu0 %v7348
        %v7350 = vpop.xlane.xlu0 %7349
        %v7351 = vmax.f32 %v6865, %v6867
        %7352 = vmax.xlane.f32.xlu0 %v7351
        %v7353 = vpop.xlane.xlu0 %7352
        %v7354 = vmax.f32 %v6871, %v6873
        %7355 = vmax.xlane.f32.xlu0 %v7354
        %v7356 = vpop.xlane.xlu0 %7355
        %v7357 = vmax.f32 %v6877, %v6879
        %7358 = vmax.xlane.f32.xlu0 %v7357
        %v7359 = vpop.xlane.xlu0 %7358
        %v7360 = vmax.f32 %v6883, %v6885
        %7361 = vmax.xlane.f32.xlu0 %v7360
        %v7362 = vpop.xlane.xlu0 %7361
        %v7363 = vmax.f32 %v6889, %v6891
        %7364 = vmax.xlane.f32.xlu0 %v7363
        %v7365 = vpop.xlane.xlu0 %7364
        %v7366 = vmax.f32 %v6895, %v6897
        %7367 = vmax.xlane.f32.xlu0 %v7366
        %v7368 = vpop.xlane.xlu0 %7367
        %v7369 = vmax.f32 %v6901, %v6903
        %7370 = vmax.xlane.f32.xlu0 %v7369
        %v7371 = vpop.xlane.xlu0 %7370
        %v7372 = vmax.f32 %v6907, %v6909
        %7373 = vmax.xlane.f32.xlu0 %v7372
        %v7374 = vpop.xlane.xlu0 %7373
        %v7375 = vmax.f32 %v6913, %v6915
        %7376 = vmax.xlane.f32.xlu0 %v7375
        %v7377 = vpop.xlane.xlu0 %7376
        %v7378 = vmax.f32 %v6919, %v6921
        %7379 = vmax.xlane.f32.xlu0 %v7378
        %v7380 = vpop.xlane.xlu0 %7379
        %v7381 = vmax.f32 %v6925, %v6927
        %7382 = vmax.xlane.f32.xlu0 %v7381
        %v7383 = vpop.xlane.xlu0 %7382
        %v7384 = vmax.f32 %v6931, %v6933
        %7385 = vmax.xlane.f32.xlu0 %v7384
        %v7386 = vpop.xlane.xlu0 %7385
        %v7387 = vmax.f32 %v6937, %v6939
        %7388 = vmax.xlane.f32.xlu0 %v7387
        %v7389 = vpop.xlane.xlu0 %7388
        %v7390 = vmax.f32 %v7152, %v7154
        %7391 = vmax.xlane.f32.xlu0 %v7390
        %v7392 = vpop.xlane.xlu0 %7391
        %v7393 = vmax.f32 %v7158, %v7160
        %7394 = vmax.xlane.f32.xlu0 %v7393
        %v7395 = vpop.xlane.xlu0 %7394
        %v7396 = vmax.f32 %v7164, %v7166
        %7397 = vmax.xlane.f32.xlu0 %v7396
        %v7398 = vpop.xlane.xlu0 %7397
        %v7399 = vmax.f32 %v7170, %v7172
        %7400 = vmax.xlane.f32.xlu0 %v7399
        %v7401 = vpop.xlane.xlu0 %7400
        %v7402 = vmax.f32 %v7176, %v7178
        %7403 = vmax.xlane.f32.xlu0 %v7402
        %v7404 = vpop.xlane.xlu0 %7403
        %v7405 = vmax.f32 %v7182, %v7184
        %7406 = vmax.xlane.f32.xlu0 %v7405
        %v7407 = vpop.xlane.xlu0 %7406
        %v7408 = vmax.f32 %v7188, %v7190
        %7409 = vmax.xlane.f32.xlu0 %v7408
        %v7410 = vpop.xlane.xlu0 %7409
        %v7411 = vmax.f32 %v7194, %v7196
        %7412 = vmax.xlane.f32.xlu0 %v7411
        %v7413 = vpop.xlane.xlu0 %7412
        %v7414 = vmax.f32 %v7200, %v7202
        %7415 = vmax.xlane.f32.xlu0 %v7414
        %v7416 = vpop.xlane.xlu0 %7415
        %v7417 = vmax.f32 %v7206, %v7208
        %7418 = vmax.xlane.f32.xlu0 %v7417
        %v7419 = vpop.xlane.xlu0 %7418
        %v7420 = vmax.f32 %v7212, %v7214
        %7421 = vmax.xlane.f32.xlu0 %v7420
        %v7422 = vpop.xlane.xlu0 %7421
        %v7423 = vmax.f32 %v7218, %v7220
        %7424 = vmax.xlane.f32.xlu0 %v7423
        %v7425 = vpop.xlane.xlu0 %7424
        %v7426 = vmax.f32 %v7224, %v7226
        %7427 = vmax.xlane.f32.xlu0 %v7426
        %v7428 = vpop.xlane.xlu0 %7427
        %v7429 = vmax.f32 %v7230, %v7232
        %7430 = vmax.xlane.f32.xlu0 %v7429
        %v7431 = vpop.xlane.xlu0 %7430
        %v7432 = vmax.f32 %v7236, %v7238
        %7433 = vmax.xlane.f32.xlu0 %v7432
        %v7434 = vpop.xlane.xlu0 %7433
        %v7435 = vmax.f32 %v7242, %v7244
        %7436 = vmax.xlane.f32.xlu0 %v7435
        %v7437 = vpop.xlane.xlu0 %7436
        %v7438 = vsub.f32 %v6237, %v7248
        %v7439 = vsub.f32 %v6239, %v7248
        %v7440 = vsub.f32 %v6243, %v7251
        %v7441 = vsub.f32 %v6245, %v7251
        %v7442 = vsub.f32 %v6249, %v7254
        %v7443 = vsub.f32 %v6251, %v7254
        %v7444 = vsub.f32 %v6255, %v7257
        %v7445 = vsub.f32 %v6257, %v7257
        %v7446 = vsub.f32 %v6261, %v7260
        %v7447 = vsub.f32 %v6263, %v7260
        %v7448 = vsub.f32 %v6267, %v7263
        %v7449 = vsub.f32 %v6269, %v7263
        %v7450 = vsub.f32 %v6273, %v7266
        %v7451 = vsub.f32 %v6275, %v7266
        %v7452 = vsub.f32 %v6279, %v7269
        %v7453 = vsub.f32 %v6281, %v7269
        %v7454 = vsub.f32 %v6285, %v7272
        %v7455 = vsub.f32 %v6287, %v7272
        %v7456 = vsub.f32 %v6291, %v7275
        %v7457 = vsub.f32 %v6293, %v7275
        %v7458 = vsub.f32 %v6297, %v7278
        %v7459 = vsub.f32 %v6299, %v7278
        %v7460 = vsub.f32 %v6303, %v7281
        %v7461 = vsub.f32 %v6305, %v7281
        %v7462 = vsub.f32 %v6309, %v7284
        %v7463 = vsub.f32 %v6311, %v7284
        %v7464 = vsub.f32 %v6315, %v7287
        %v7465 = vsub.f32 %v6317, %v7287
        %v7466 = vsub.f32 %v6321, %v7290
        %v7467 = vsub.f32 %v6323, %v7290
        %v7468 = vsub.f32 %v6327, %v7293
        %v7469 = vsub.f32 %v6329, %v7293
        %v7470 = vsub.f32 %v6542, %v7296
        %v7471 = vsub.f32 %v6544, %v7296
        %v7472 = vsub.f32 %v6548, %v7299
        %v7473 = vsub.f32 %v6550, %v7299
        %v7474 = vsub.f32 %v6554, %v7302
        %v7475 = vsub.f32 %v6556, %v7302
        %v7476 = vsub.f32 %v6560, %v7305
        %v7477 = vsub.f32 %v6562, %v7305
        %v7478 = vsub.f32 %v6566, %v7308
        %v7479 = vsub.f32 %v6568, %v7308
        %v7480 = vsub.f32 %v6572, %v7311
        %v7481 = vsub.f32 %v6574, %v7311
        %v7482 = vsub.f32 %v6578, %v7314
        %v7483 = vsub.f32 %v6580, %v7314
        %v7484 = vsub.f32 %v6584, %v7317
        %v7485 = vsub.f32 %v6586, %v7317
        %v7486 = vsub.f32 %v6590, %v7320
        %v7487 = vsub.f32 %v6592, %v7320
        %v7488 = vsub.f32 %v6596, %v7323
        %v7489 = vsub.f32 %v6598, %v7323
        %v7490 = vsub.f32 %v6602, %v7326
        %v7491 = vsub.f32 %v6604, %v7326
        %v7492 = vsub.f32 %v6608, %v7329
        %v7493 = vsub.f32 %v6610, %v7329
        %v7494 = vsub.f32 %v6614, %v7332
        %v7495 = vsub.f32 %v6616, %v7332
        %v7496 = vsub.f32 %v6620, %v7335
        %v7497 = vsub.f32 %v6622, %v7335
        %v7498 = vsub.f32 %v6626, %v7338
        %v7499 = vsub.f32 %v6628, %v7338
        %v7500 = vsub.f32 %v6632, %v7341
        %v7501 = vsub.f32 %v6634, %v7341
        %v7502 = vsub.f32 %v6847, %v7344
        %v7503 = vsub.f32 %v6849, %v7344
        %v7504 = vsub.f32 %v6853, %v7347
        %v7505 = vsub.f32 %v6855, %v7347
        %v7506 = vsub.f32 %v6859, %v7350
        %v7507 = vsub.f32 %v6861, %v7350
        %v7508 = vsub.f32 %v6865, %v7353
        %v7509 = vsub.f32 %v6867, %v7353
        %v7510 = vsub.f32 %v6871, %v7356
        %v7511 = vsub.f32 %v6873, %v7356
        %v7512 = vsub.f32 %v6877, %v7359
        %v7513 = vsub.f32 %v6879, %v7359
        %v7514 = vsub.f32 %v6883, %v7362
        %v7515 = vsub.f32 %v6885, %v7362
        %v7516 = vsub.f32 %v6889, %v7365
        %v7517 = vsub.f32 %v6891, %v7365
        %v7518 = vsub.f32 %v6895, %v7368
        %v7519 = vsub.f32 %v6897, %v7368
        %v7520 = vsub.f32 %v6901, %v7371
        %v7521 = vsub.f32 %v6903, %v7371
        %v7522 = vsub.f32 %v6907, %v7374
        %v7523 = vsub.f32 %v6909, %v7374
        %v7524 = vsub.f32 %v6913, %v7377
        %v7525 = vsub.f32 %v6915, %v7377
        %v7526 = vsub.f32 %v6919, %v7380
        %v7527 = vsub.f32 %v6921, %v7380
        %v7528 = vsub.f32 %v6925, %v7383
        %v7529 = vsub.f32 %v6927, %v7383
        %v7530 = vsub.f32 %v6931, %v7386
        %v7531 = vsub.f32 %v6933, %v7386
        %v7532 = vsub.f32 %v6937, %v7389
        %v7533 = vsub.f32 %v6939, %v7389
        %v7534 = vsub.f32 %v7152, %v7392
        %v7535 = vsub.f32 %v7154, %v7392
        %v7536 = vsub.f32 %v7158, %v7395
        %v7537 = vsub.f32 %v7160, %v7395
        %v7538 = vsub.f32 %v7164, %v7398
        %v7539 = vsub.f32 %v7166, %v7398
        %v7540 = vsub.f32 %v7170, %v7401
        %v7541 = vsub.f32 %v7172, %v7401
        %v7542 = vsub.f32 %v7176, %v7404
        %v7543 = vsub.f32 %v7178, %v7404
        %v7544 = vsub.f32 %v7182, %v7407
        %v7545 = vsub.f32 %v7184, %v7407
        %v7546 = vsub.f32 %v7188, %v7410
        %v7547 = vsub.f32 %v7190, %v7410
        %v7548 = vsub.f32 %v7194, %v7413
        %v7549 = vsub.f32 %v7196, %v7413
        %v7550 = vsub.f32 %v7200, %v7416
        %v7551 = vsub.f32 %v7202, %v7416
        %v7552 = vsub.f32 %v7206, %v7419
        %v7553 = vsub.f32 %v7208, %v7419
        %v7554 = vsub.f32 %v7212, %v7422
        %v7555 = vsub.f32 %v7214, %v7422
        %v7556 = vsub.f32 %v7218, %v7425
        %v7557 = vsub.f32 %v7220, %v7425
        %v7558 = vsub.f32 %v7224, %v7428
        %v7559 = vsub.f32 %v7226, %v7428
        %v7560 = vsub.f32 %v7230, %v7431
        %v7561 = vsub.f32 %v7232, %v7431
        %v7562 = vsub.f32 %v7236, %v7434
        %v7563 = vsub.f32 %v7238, %v7434
        %v7564 = vsub.f32 %v7242, %v7437
        %v7565 = vsub.f32 %v7244, %v7437
        %v7566 = vmul.f32 %v7438, 1.442695
        %v7567 = vpow.pop %v7566
        %v7568 = vmul.f32 %v7439, 1.442695
        %v7569 = vpow.pop %v7568
        %v7570 = vmul.f32 %v7440, 1.442695
        %v7571 = vpow.pop %v7570
        %v7572 = vmul.f32 %v7441, 1.442695
        %v7573 = vpow.pop %v7572
        %v7574 = vmul.f32 %v7442, 1.442695
        %v7575 = vpow.pop %v7574
        %v7576 = vmul.f32 %v7443, 1.442695
        %v7577 = vpow.pop %v7576
        %v7578 = vmul.f32 %v7444, 1.442695
        %v7579 = vpow.pop %v7578
        %v7580 = vmul.f32 %v7445, 1.442695
        %v7581 = vpow.pop %v7580
        %v7582 = vmul.f32 %v7446, 1.442695
        %v7583 = vpow.pop %v7582
        %v7584 = vmul.f32 %v7447, 1.442695
        %v7585 = vpow.pop %v7584
        %v7586 = vmul.f32 %v7448, 1.442695
        %v7587 = vpow.pop %v7586
        %v7588 = vmul.f32 %v7449, 1.442695
        %v7589 = vpow.pop %v7588
        %v7590 = vmul.f32 %v7450, 1.442695
        %v7591 = vpow.pop %v7590
        %v7592 = vmul.f32 %v7451, 1.442695
        %v7593 = vpow.pop %v7592
        %v7594 = vmul.f32 %v7452, 1.442695
        %v7595 = vpow.pop %v7594
        %v7596 = vmul.f32 %v7453, 1.442695
        %v7597 = vpow.pop %v7596
        %v7598 = vmul.f32 %v7454, 1.442695
        %v7599 = vpow.pop %v7598
        %v7600 = vmul.f32 %v7455, 1.442695
        %v7601 = vpow.pop %v7600
        %v7602 = vmul.f32 %v7456, 1.442695
        %v7603 = vpow.pop %v7602
        %v7604 = vmul.f32 %v7457, 1.442695
        %v7605 = vpow.pop %v7604
        %v7606 = vmul.f32 %v7458, 1.442695
        %v7607 = vpow.pop %v7606
        %v7608 = vmul.f32 %v7459, 1.442695
        %v7609 = vpow.pop %v7608
        %v7610 = vmul.f32 %v7460, 1.442695
        %v7611 = vpow.pop %v7610
        %v7612 = vmul.f32 %v7461, 1.442695
        %v7613 = vpow.pop %v7612
        %v7614 = vmul.f32 %v7462, 1.442695
        %v7615 = vpow.pop %v7614
        %v7616 = vmul.f32 %v7463, 1.442695
        %v7617 = vpow.pop %v7616
        %v7618 = vmul.f32 %v7464, 1.442695
        %v7619 = vpow.pop %v7618
        %v7620 = vmul.f32 %v7465, 1.442695
        %v7621 = vpow.pop %v7620
        %v7622 = vmul.f32 %v7466, 1.442695
        %v7623 = vpow.pop %v7622
        %v7624 = vmul.f32 %v7467, 1.442695
        %v7625 = vpow.pop %v7624
        %v7626 = vmul.f32 %v7468, 1.442695
        %v7627 = vpow.pop %v7626
        %v7628 = vmul.f32 %v7469, 1.442695
        %v7629 = vpow.pop %v7628
        %v7630 = vmul.f32 %v7470, 1.442695
        %v7631 = vpow.pop %v7630
        %v7632 = vmul.f32 %v7471, 1.442695
        %v7633 = vpow.pop %v7632
        %v7634 = vmul.f32 %v7472, 1.442695
        %v7635 = vpow.pop %v7634
        %v7636 = vmul.f32 %v7473, 1.442695
        %v7637 = vpow.pop %v7636
        %v7638 = vmul.f32 %v7474, 1.442695
        %v7639 = vpow.pop %v7638
        %v7640 = vmul.f32 %v7475, 1.442695
        %v7641 = vpow.pop %v7640
        %v7642 = vmul.f32 %v7476, 1.442695
        %v7643 = vpow.pop %v7642
        %v7644 = vmul.f32 %v7477, 1.442695
        %v7645 = vpow.pop %v7644
        %v7646 = vmul.f32 %v7478, 1.442695
        %v7647 = vpow.pop %v7646
        %v7648 = vmul.f32 %v7479, 1.442695
        %v7649 = vpow.pop %v7648
        %v7650 = vmul.f32 %v7480, 1.442695
        %v7651 = vpow.pop %v7650
        %v7652 = vmul.f32 %v7481, 1.442695
        %v7653 = vpow.pop %v7652
        %v7654 = vmul.f32 %v7482, 1.442695
        %v7655 = vpow.pop %v7654
        %v7656 = vmul.f32 %v7483, 1.442695
        %v7657 = vpow.pop %v7656
        %v7658 = vmul.f32 %v7484, 1.442695
        %v7659 = vpow.pop %v7658
        %v7660 = vmul.f32 %v7485, 1.442695
        %v7661 = vpow.pop %v7660
        %v7662 = vmul.f32 %v7486, 1.442695
        %v7663 = vpow.pop %v7662
        %v7664 = vmul.f32 %v7487, 1.442695
        %v7665 = vpow.pop %v7664
        %v7666 = vmul.f32 %v7488, 1.442695
        %v7667 = vpow.pop %v7666
        %v7668 = vmul.f32 %v7489, 1.442695
        %v7669 = vpow.pop %v7668
        %v7670 = vmul.f32 %v7490, 1.442695
        %v7671 = vpow.pop %v7670
        %v7672 = vmul.f32 %v7491, 1.442695
        %v7673 = vpow.pop %v7672
        %v7674 = vmul.f32 %v7492, 1.442695
        %v7675 = vpow.pop %v7674
        %v7676 = vmul.f32 %v7493, 1.442695
        %v7677 = vpow.pop %v7676
        %v7678 = vmul.f32 %v7494, 1.442695
        %v7679 = vpow.pop %v7678
        %v7680 = vmul.f32 %v7495, 1.442695
        %v7681 = vpow.pop %v7680
        %v7682 = vmul.f32 %v7496, 1.442695
        %v7683 = vpow.pop %v7682
        %v7684 = vmul.f32 %v7497, 1.442695
        %v7685 = vpow.pop %v7684
        %v7686 = vmul.f32 %v7498, 1.442695
        %v7687 = vpow.pop %v7686
        %v7688 = vmul.f32 %v7499, 1.442695
        %v7689 = vpow.pop %v7688
        %v7690 = vmul.f32 %v7500, 1.442695
        %v7691 = vpow.pop %v7690
        %v7692 = vmul.f32 %v7501, 1.442695
        %v7693 = vpow.pop %v7692
        %v7694 = vmul.f32 %v7502, 1.442695
        %v7695 = vpow.pop %v7694
        %v7696 = vmul.f32 %v7503, 1.442695
        %v7697 = vpow.pop %v7696
        %v7698 = vmul.f32 %v7504, 1.442695
        %v7699 = vpow.pop %v7698
        %v7700 = vmul.f32 %v7505, 1.442695
        %v7701 = vpow.pop %v7700
        %v7702 = vmul.f32 %v7506, 1.442695
        %v7703 = vpow.pop %v7702
        %v7704 = vmul.f32 %v7507, 1.442695
        %v7705 = vpow.pop %v7704
        %v7706 = vmul.f32 %v7508, 1.442695
        %v7707 = vpow.pop %v7706
        %v7708 = vmul.f32 %v7509, 1.442695
        %v7709 = vpow.pop %v7708
        %v7710 = vmul.f32 %v7510, 1.442695
        %v7711 = vpow.pop %v7710
        %v7712 = vmul.f32 %v7511, 1.442695
        %v7713 = vpow.pop %v7712
        %v7714 = vmul.f32 %v7512, 1.442695
        %v7715 = vpow.pop %v7714
        %v7716 = vmul.f32 %v7513, 1.442695
        %v7717 = vpow.pop %v7716
        %v7718 = vmul.f32 %v7514, 1.442695
        %v7719 = vpow.pop %v7718
        %v7720 = vmul.f32 %v7515, 1.442695
        %v7721 = vpow.pop %v7720
        %v7722 = vmul.f32 %v7516, 1.442695
        %v7723 = vpow.pop %v7722
        %v7724 = vmul.f32 %v7517, 1.442695
        %v7725 = vpow.pop %v7724
        %v7726 = vmul.f32 %v7518, 1.442695
        %v7727 = vpow.pop %v7726
        %v7728 = vmul.f32 %v7519, 1.442695
        %v7729 = vpow.pop %v7728
        %v7730 = vmul.f32 %v7520, 1.442695
        %v7731 = vpow.pop %v7730
        %v7732 = vmul.f32 %v7521, 1.442695
        %v7733 = vpow.pop %v7732
        %v7734 = vmul.f32 %v7522, 1.442695
        %v7735 = vpow.pop %v7734
        %v7736 = vmul.f32 %v7523, 1.442695
        %v7737 = vpow.pop %v7736
        %v7738 = vmul.f32 %v7524, 1.442695
        %v7739 = vpow.pop %v7738
        %v7740 = vmul.f32 %v7525, 1.442695
        %v7741 = vpow.pop %v7740
        %v7742 = vmul.f32 %v7526, 1.442695
        %v7743 = vpow.pop %v7742
        %v7744 = vmul.f32 %v7527, 1.442695
        %v7745 = vpow.pop %v7744
        %v7746 = vmul.f32 %v7528, 1.442695
        %v7747 = vpow.pop %v7746
        %v7748 = vmul.f32 %v7529, 1.442695
        %v7749 = vpow.pop %v7748
        %v7750 = vmul.f32 %v7530, 1.442695
        %v7751 = vpow.pop %v7750
        %v7752 = vmul.f32 %v7531, 1.442695
        %v7753 = vpow.pop %v7752
        %v7754 = vmul.f32 %v7532, 1.442695
        %v7755 = vpow.pop %v7754
        %v7756 = vmul.f32 %v7533, 1.442695
        %v7757 = vpow.pop %v7756
        %v7758 = vmul.f32 %v7534, 1.442695
        %v7759 = vpow.pop %v7758
        %v7760 = vmul.f32 %v7535, 1.442695
        %v7761 = vpow.pop %v7760
        %v7762 = vmul.f32 %v7536, 1.442695
        %v7763 = vpow.pop %v7762
        %v7764 = vmul.f32 %v7537, 1.442695
        %v7765 = vpow.pop %v7764
        %v7766 = vmul.f32 %v7538, 1.442695
        %v7767 = vpow.pop %v7766
        %v7768 = vmul.f32 %v7539, 1.442695
        %v7769 = vpow.pop %v7768
        %v7770 = vmul.f32 %v7540, 1.442695
        %v7771 = vpow.pop %v7770
        %v7772 = vmul.f32 %v7541, 1.442695
        %v7773 = vpow.pop %v7772
        %v7774 = vmul.f32 %v7542, 1.442695
        %v7775 = vpow.pop %v7774
        %v7776 = vmul.f32 %v7543, 1.442695
        %v7777 = vpow.pop %v7776
        %v7778 = vmul.f32 %v7544, 1.442695
        %v7779 = vpow.pop %v7778
        %v7780 = vmul.f32 %v7545, 1.442695
        %v7781 = vpow.pop %v7780
        %v7782 = vmul.f32 %v7546, 1.442695
        %v7783 = vpow.pop %v7782
        %v7784 = vmul.f32 %v7547, 1.442695
        %v7785 = vpow.pop %v7784
        %v7786 = vmul.f32 %v7548, 1.442695
        %v7787 = vpow.pop %v7786
        %v7788 = vmul.f32 %v7549, 1.442695
        %v7789 = vpow.pop %v7788
        %v7790 = vmul.f32 %v7550, 1.442695
        %v7791 = vpow.pop %v7790
        %v7792 = vmul.f32 %v7551, 1.442695
        %v7793 = vpow.pop %v7792
        %v7794 = vmul.f32 %v7552, 1.442695
        %v7795 = vpow.pop %v7794
        %v7796 = vmul.f32 %v7553, 1.442695
        %v7797 = vpow.pop %v7796
        %v7798 = vmul.f32 %v7554, 1.442695
        %v7799 = vpow.pop %v7798
        %v7800 = vmul.f32 %v7555, 1.442695
        %v7801 = vpow.pop %v7800
        %v7802 = vmul.f32 %v7556, 1.442695
        %v7803 = vpow.pop %v7802
        %v7804 = vmul.f32 %v7557, 1.442695
        %v7805 = vpow.pop %v7804
        %v7806 = vmul.f32 %v7558, 1.442695
        %v7807 = vpow.pop %v7806
        %v7808 = vmul.f32 %v7559, 1.442695
        %v7809 = vpow.pop %v7808
        %v7810 = vmul.f32 %v7560, 1.442695
        %v7811 = vpow.pop %v7810
        %v7812 = vmul.f32 %v7561, 1.442695
        %v7813 = vpow.pop %v7812
        %v7814 = vmul.f32 %v7562, 1.442695
        %v7815 = vpow.pop %v7814
        %v7816 = vmul.f32 %v7563, 1.442695
        %v7817 = vpow.pop %v7816
        %v7818 = vmul.f32 %v7564, 1.442695
        %v7819 = vpow.pop %v7818
        %v7820 = vmul.f32 %v7565, 1.442695
        %v7821 = vpow.pop %v7820
        %v7822 = vadd.f32 %v7567, %v7569
        %7823 = vadd.xlane.f32.xlu0 %v7822
        %v7824 = vpop.xlane.xlu0 %7823
        %v7825 = vadd.f32 %v7571, %v7573
        %7826 = vadd.xlane.f32.xlu0 %v7825
        %v7827 = vpop.xlane.xlu0 %7826
        %v7828 = vadd.f32 %v7575, %v7577
        %7829 = vadd.xlane.f32.xlu0 %v7828
        %v7830 = vpop.xlane.xlu0 %7829
        %v7831 = vadd.f32 %v7579, %v7581
        %7832 = vadd.xlane.f32.xlu0 %v7831
        %v7833 = vpop.xlane.xlu0 %7832
        %v7834 = vadd.f32 %v7583, %v7585
        %7835 = vadd.xlane.f32.xlu0 %v7834
        %v7836 = vpop.xlane.xlu0 %7835
        %v7837 = vadd.f32 %v7587, %v7589
        %7838 = vadd.xlane.f32.xlu0 %v7837
        %v7839 = vpop.xlane.xlu0 %7838
        %v7840 = vadd.f32 %v7591, %v7593
        %7841 = vadd.xlane.f32.xlu0 %v7840
        %v7842 = vpop.xlane.xlu0 %7841
        %v7843 = vadd.f32 %v7595, %v7597
        %7844 = vadd.xlane.f32.xlu0 %v7843
        %v7845 = vpop.xlane.xlu0 %7844
        %v7846 = vadd.f32 %v7599, %v7601
        %7847 = vadd.xlane.f32.xlu0 %v7846
        %v7848 = vpop.xlane.xlu0 %7847
        %v7849 = vadd.f32 %v7603, %v7605
        %7850 = vadd.xlane.f32.xlu0 %v7849
        %v7851 = vpop.xlane.xlu0 %7850
        %v7852 = vadd.f32 %v7607, %v7609
        %7853 = vadd.xlane.f32.xlu0 %v7852
        %v7854 = vpop.xlane.xlu0 %7853
        %v7855 = vadd.f32 %v7611, %v7613
        %7856 = vadd.xlane.f32.xlu0 %v7855
        %v7857 = vpop.xlane.xlu0 %7856
        %v7858 = vadd.f32 %v7615, %v7617
        %7859 = vadd.xlane.f32.xlu0 %v7858
        %v7860 = vpop.xlane.xlu0 %7859
        %v7861 = vadd.f32 %v7619, %v7621
        %7862 = vadd.xlane.f32.xlu0 %v7861
        %v7863 = vpop.xlane.xlu0 %7862
        %v7864 = vadd.f32 %v7623, %v7625
        %7865 = vadd.xlane.f32.xlu0 %v7864
        %v7866 = vpop.xlane.xlu0 %7865
        %v7867 = vadd.f32 %v7627, %v7629
        %7868 = vadd.xlane.f32.xlu0 %v7867
        %v7869 = vpop.xlane.xlu0 %7868
        %v7870 = vadd.f32 %v7631, %v7633
        %7871 = vadd.xlane.f32.xlu0 %v7870
        %v7872 = vpop.xlane.xlu0 %7871
        %v7873 = vadd.f32 %v7635, %v7637
        %7874 = vadd.xlane.f32.xlu0 %v7873
        %v7875 = vpop.xlane.xlu0 %7874
        %v7876 = vadd.f32 %v7639, %v7641
        %7877 = vadd.xlane.f32.xlu0 %v7876
        %v7878 = vpop.xlane.xlu0 %7877
        %v7879 = vadd.f32 %v7643, %v7645
        %7880 = vadd.xlane.f32.xlu0 %v7879
        %v7881 = vpop.xlane.xlu0 %7880
        %v7882 = vadd.f32 %v7647, %v7649
        %7883 = vadd.xlane.f32.xlu0 %v7882
        %v7884 = vpop.xlane.xlu0 %7883
        %v7885 = vadd.f32 %v7651, %v7653
        %7886 = vadd.xlane.f32.xlu0 %v7885
        %v7887 = vpop.xlane.xlu0 %7886
        %v7888 = vadd.f32 %v7655, %v7657
        %7889 = vadd.xlane.f32.xlu0 %v7888
        %v7890 = vpop.xlane.xlu0 %7889
        %v7891 = vadd.f32 %v7659, %v7661
        %7892 = vadd.xlane.f32.xlu0 %v7891
        %v7893 = vpop.xlane.xlu0 %7892
        %v7894 = vadd.f32 %v7663, %v7665
        %7895 = vadd.xlane.f32.xlu0 %v7894
        %v7896 = vpop.xlane.xlu0 %7895
        %v7897 = vadd.f32 %v7667, %v7669
        %7898 = vadd.xlane.f32.xlu0 %v7897
        %v7899 = vpop.xlane.xlu0 %7898
        %v7900 = vadd.f32 %v7671, %v7673
        %7901 = vadd.xlane.f32.xlu0 %v7900
        %v7902 = vpop.xlane.xlu0 %7901
        %v7903 = vadd.f32 %v7675, %v7677
        %7904 = vadd.xlane.f32.xlu0 %v7903
        %v7905 = vpop.xlane.xlu0 %7904
        %v7906 = vadd.f32 %v7679, %v7681
        %7907 = vadd.xlane.f32.xlu0 %v7906
        %v7908 = vpop.xlane.xlu0 %7907
        %v7909 = vadd.f32 %v7683, %v7685
        %7910 = vadd.xlane.f32.xlu0 %v7909
        %v7911 = vpop.xlane.xlu0 %7910
        %v7912 = vadd.f32 %v7687, %v7689
        %7913 = vadd.xlane.f32.xlu0 %v7912
        %v7914 = vpop.xlane.xlu0 %7913
        %v7915 = vadd.f32 %v7691, %v7693
        %7916 = vadd.xlane.f32.xlu0 %v7915
        %v7917 = vpop.xlane.xlu0 %7916
        %v7918 = vadd.f32 %v7695, %v7697
        %7919 = vadd.xlane.f32.xlu0 %v7918
        %v7920 = vpop.xlane.xlu0 %7919
        %v7921 = vadd.f32 %v7699, %v7701
        %7922 = vadd.xlane.f32.xlu0 %v7921
        %v7923 = vpop.xlane.xlu0 %7922
        %v7924 = vadd.f32 %v7703, %v7705
        %7925 = vadd.xlane.f32.xlu0 %v7924
        %v7926 = vpop.xlane.xlu0 %7925
        %v7927 = vadd.f32 %v7707, %v7709
        %7928 = vadd.xlane.f32.xlu0 %v7927
        %v7929 = vpop.xlane.xlu0 %7928
        %v7930 = vadd.f32 %v7711, %v7713
        %7931 = vadd.xlane.f32.xlu0 %v7930
        %v7932 = vpop.xlane.xlu0 %7931
        %v7933 = vadd.f32 %v7715, %v7717
        %7934 = vadd.xlane.f32.xlu0 %v7933
        %v7935 = vpop.xlane.xlu0 %7934
        %v7936 = vadd.f32 %v7719, %v7721
        %7937 = vadd.xlane.f32.xlu0 %v7936
        %v7938 = vpop.xlane.xlu0 %7937
        %v7939 = vadd.f32 %v7723, %v7725
        %7940 = vadd.xlane.f32.xlu0 %v7939
        %v7941 = vpop.xlane.xlu0 %7940
        %v7942 = vadd.f32 %v7727, %v7729
        %7943 = vadd.xlane.f32.xlu0 %v7942
        %v7944 = vpop.xlane.xlu0 %7943
        %v7945 = vadd.f32 %v7731, %v7733
        %7946 = vadd.xlane.f32.xlu0 %v7945
        %v7947 = vpop.xlane.xlu0 %7946
        %v7948 = vadd.f32 %v7735, %v7737
        %7949 = vadd.xlane.f32.xlu0 %v7948
        %v7950 = vpop.xlane.xlu0 %7949
        %v7951 = vadd.f32 %v7739, %v7741
        %7952 = vadd.xlane.f32.xlu0 %v7951
        %v7953 = vpop.xlane.xlu0 %7952
        %v7954 = vadd.f32 %v7743, %v7745
        %7955 = vadd.xlane.f32.xlu0 %v7954
        %v7956 = vpop.xlane.xlu0 %7955
        %v7957 = vadd.f32 %v7747, %v7749
        %7958 = vadd.xlane.f32.xlu0 %v7957
        %v7959 = vpop.xlane.xlu0 %7958
        %v7960 = vadd.f32 %v7751, %v7753
        %7961 = vadd.xlane.f32.xlu0 %v7960
        %v7962 = vpop.xlane.xlu0 %7961
        %v7963 = vadd.f32 %v7755, %v7757
        %7964 = vadd.xlane.f32.xlu0 %v7963
        %v7965 = vpop.xlane.xlu0 %7964
        %v7966 = vadd.f32 %v7759, %v7761
        %7967 = vadd.xlane.f32.xlu0 %v7966
        %v7968 = vpop.xlane.xlu0 %7967
        %v7969 = vadd.f32 %v7763, %v7765
        %7970 = vadd.xlane.f32.xlu0 %v7969
        %v7971 = vpop.xlane.xlu0 %7970
        %v7972 = vadd.f32 %v7767, %v7769
        %7973 = vadd.xlane.f32.xlu0 %v7972
        %v7974 = vpop.xlane.xlu0 %7973
        %v7975 = vadd.f32 %v7771, %v7773
        %7976 = vadd.xlane.f32.xlu0 %v7975
        %v7977 = vpop.xlane.xlu0 %7976
        %v7978 = vadd.f32 %v7775, %v7777
        %7979 = vadd.xlane.f32.xlu0 %v7978
        %v7980 = vpop.xlane.xlu0 %7979
        %v7981 = vadd.f32 %v7779, %v7781
        %7982 = vadd.xlane.f32.xlu0 %v7981
        %v7983 = vpop.xlane.xlu0 %7982
        %v7984 = vadd.f32 %v7783, %v7785
        %7985 = vadd.xlane.f32.xlu0 %v7984
        %v7986 = vpop.xlane.xlu0 %7985
        %v7987 = vadd.f32 %v7787, %v7789
        %7988 = vadd.xlane.f32.xlu0 %v7987
        %v7989 = vpop.xlane.xlu0 %7988
        %v7990 = vadd.f32 %v7791, %v7793
        %7991 = vadd.xlane.f32.xlu0 %v7990
        %v7992 = vpop.xlane.xlu0 %7991
        %v7993 = vadd.f32 %v7795, %v7797
        %7994 = vadd.xlane.f32.xlu0 %v7993
        %v7995 = vpop.xlane.xlu0 %7994
        %v7996 = vadd.f32 %v7799, %v7801
        %7997 = vadd.xlane.f32.xlu0 %v7996
        %v7998 = vpop.xlane.xlu0 %7997
        %v7999 = vadd.f32 %v7803, %v7805
        %8000 = vadd.xlane.f32.xlu0 %v7999
        %v8001 = vpop.xlane.xlu0 %8000
        %v8002 = vadd.f32 %v7807, %v7809
        %8003 = vadd.xlane.f32.xlu0 %v8002
        %v8004 = vpop.xlane.xlu0 %8003
        %v8005 = vadd.f32 %v7811, %v7813
        %8006 = vadd.xlane.f32.xlu0 %v8005
        %v8007 = vpop.xlane.xlu0 %8006
        %v8008 = vadd.f32 %v7815, %v7817
        %8009 = vadd.xlane.f32.xlu0 %v8008
        %v8010 = vpop.xlane.xlu0 %8009
        %v8011 = vadd.f32 %v7819, %v7821
        %8012 = vadd.xlane.f32.xlu0 %v8011
        %v8013 = vpop.xlane.xlu0 %8012
        %v8014 = vrcp.pop %v7824
        %v8015 = vrcp.pop %v7827
        %v8016 = vrcp.pop %v7830
        %v8017 = vrcp.pop %v7833
        %v8018 = vrcp.pop %v7836
        %v8019 = vrcp.pop %v7839
        %v8020 = vrcp.pop %v7842
        %v8021 = vrcp.pop %v7845
        %v8022 = vrcp.pop %v7848
        %v8023 = vrcp.pop %v7851
        %v8024 = vrcp.pop %v7854
        %v8025 = vrcp.pop %v7857
        %v8026 = vrcp.pop %v7860
        %v8027 = vrcp.pop %v7863
        %v8028 = vrcp.pop %v7866
        %v8029 = vrcp.pop %v7869
        %v8030 = vrcp.pop %v7872
        %v8031 = vrcp.pop %v7875
        %v8032 = vrcp.pop %v7878
        %v8033 = vrcp.pop %v7881
        %v8034 = vrcp.pop %v7884
        %v8035 = vrcp.pop %v7887
        %v8036 = vrcp.pop %v7890
        %v8037 = vrcp.pop %v7893
        %v8038 = vrcp.pop %v7896
        %v8039 = vrcp.pop %v7899
        %v8040 = vrcp.pop %v7902
        %v8041 = vrcp.pop %v7905
        %v8042 = vrcp.pop %v7908
        %v8043 = vrcp.pop %v7911
        %v8044 = vrcp.pop %v7914
        %v8045 = vrcp.pop %v7917
        %v8046 = vrcp.pop %v7920
        %v8047 = vrcp.pop %v7923
        %v8048 = vrcp.pop %v7926
        %v8049 = vrcp.pop %v7929
        %v8050 = vrcp.pop %v7932
        %v8051 = vrcp.pop %v7935
        %v8052 = vrcp.pop %v7938
        %v8053 = vrcp.pop %v7941
        %v8054 = vrcp.pop %v7944
        %v8055 = vrcp.pop %v7947
        %v8056 = vrcp.pop %v7950
        %v8057 = vrcp.pop %v7953
        %v8058 = vrcp.pop %v7956
        %v8059 = vrcp.pop %v7959
        %v8060 = vrcp.pop %v7962
        %v8061 = vrcp.pop %v7965
        %v8062 = vrcp.pop %v7968
        %v8063 = vrcp.pop %v7971
        %v8064 = vrcp.pop %v7974
        %v8065 = vrcp.pop %v7977
        %v8066 = vrcp.pop %v7980
        %v8067 = vrcp.pop %v7983
        %v8068 = vrcp.pop %v7986
        %v8069 = vrcp.pop %v7989
        %v8070 = vrcp.pop %v7992
        %v8071 = vrcp.pop %v7995
        %v8072 = vrcp.pop %v7998
        %v8073 = vrcp.pop %v8001
        %v8074 = vrcp.pop %v8004
        %v8075 = vrcp.pop %v8007
        %v8076 = vrcp.pop %v8010
        %v8077 = vrcp.pop %v8013
        %v8078 = vmul.f32 %v7824, %v8014
        %v8079 = vmul.f32 %v7827, %v8015
        %v8080 = vmul.f32 %v7830, %v8016
        %v8081 = vmul.f32 %v7833, %v8017
        %v8082 = vmul.f32 %v7836, %v8018
        %v8083 = vmul.f32 %v7839, %v8019
        %v8084 = vmul.f32 %v7842, %v8020
        %v8085 = vmul.f32 %v7845, %v8021
        %v8086 = vmul.f32 %v7848, %v8022
        %v8087 = vmul.f32 %v7851, %v8023
        %v8088 = vmul.f32 %v7854, %v8024
        %v8089 = vmul.f32 %v7857, %v8025
        %v8090 = vmul.f32 %v7860, %v8026
        %v8091 = vmul.f32 %v7863, %v8027
        %v8092 = vmul.f32 %v7866, %v8028
        %v8093 = vmul.f32 %v7869, %v8029
        %v8094 = vmul.f32 %v7872, %v8030
        %v8095 = vmul.f32 %v7875, %v8031
        %v8096 = vmul.f32 %v7878, %v8032
        %v8097 = vmul.f32 %v7881, %v8033
        %v8098 = vmul.f32 %v7884, %v8034
        %v8099 = vmul.f32 %v7887, %v8035
        %v8100 = vmul.f32 %v7890, %v8036
        %v8101 = vmul.f32 %v7893, %v8037
        %v8102 = vmul.f32 %v7896, %v8038
        %v8103 = vmul.f32 %v7899, %v8039
        %v8104 = vmul.f32 %v7902, %v8040
        %v8105 = vmul.f32 %v7905, %v8041
        %v8106 = vmul.f32 %v7908, %v8042
        %v8107 = vmul.f32 %v7911, %v8043
        %v8108 = vmul.f32 %v7914, %v8044
        %v8109 = vmul.f32 %v7917, %v8045
        %v8110 = vmul.f32 %v7920, %v8046
        %v8111 = vmul.f32 %v7923, %v8047
        %v8112 = vmul.f32 %v7926, %v8048
        %v8113 = vmul.f32 %v7929, %v8049
        %v8114 = vmul.f32 %v7932, %v8050
        %v8115 = vmul.f32 %v7935, %v8051
        %v8116 = vmul.f32 %v7938, %v8052
        %v8117 = vmul.f32 %v7941, %v8053
        %v8118 = vmul.f32 %v7944, %v8054
        %v8119 = vmul.f32 %v7947, %v8055
        %v8120 = vmul.f32 %v7950, %v8056
        %v8121 = vmul.f32 %v7953, %v8057
        %v8122 = vmul.f32 %v7956, %v8058
        %v8123 = vmul.f32 %v7959, %v8059
        %v8124 = vmul.f32 %v7962, %v8060
        %v8125 = vmul.f32 %v7965, %v8061
        %v8126 = vmul.f32 %v7968, %v8062
        %v8127 = vmul.f32 %v7971, %v8063
        %v8128 = vmul.f32 %v7974, %v8064
        %v8129 = vmul.f32 %v7977, %v8065
        %v8130 = vmul.f32 %v7980, %v8066
        %v8131 = vmul.f32 %v7983, %v8067
        %v8132 = vmul.f32 %v7986, %v8068
        %v8133 = vmul.f32 %v7989, %v8069
        %v8134 = vmul.f32 %v7992, %v8070
        %v8135 = vmul.f32 %v7995, %v8071
        %v8136 = vmul.f32 %v7998, %v8072
        %v8137 = vmul.f32 %v8001, %v8073
        %v8138 = vmul.f32 %v8004, %v8074
        %v8139 = vmul.f32 %v8007, %v8075
        %v8140 = vmul.f32 %v8010, %v8076
        %v8141 = vmul.f32 %v8013, %v8077
        %v8142 = vsub.f32 2.0, %v8078
        %v8143 = vsub.f32 2.0, %v8079
        %v8144 = vsub.f32 2.0, %v8080
        %v8145 = vsub.f32 2.0, %v8081
        %v8146 = vsub.f32 2.0, %v8082
        %v8147 = vsub.f32 2.0, %v8083
        %v8148 = vsub.f32 2.0, %v8084
        %v8149 = vsub.f32 2.0, %v8085
        %v8150 = vsub.f32 2.0, %v8086
        %v8151 = vsub.f32 2.0, %v8087
        %v8152 = vsub.f32 2.0, %v8088
        %v8153 = vsub.f32 2.0, %v8089
        %v8154 = vsub.f32 2.0, %v8090
        %v8155 = vsub.f32 2.0, %v8091
        %v8156 = vsub.f32 2.0, %v8092
        %v8157 = vsub.f32 2.0, %v8093
        %v8158 = vsub.f32 2.0, %v8094
        %v8159 = vsub.f32 2.0, %v8095
        %v8160 = vsub.f32 2.0, %v8096
        %v8161 = vsub.f32 2.0, %v8097
        %v8162 = vsub.f32 2.0, %v8098
        %v8163 = vsub.f32 2.0, %v8099
        %v8164 = vsub.f32 2.0, %v8100
        %v8165 = vsub.f32 2.0, %v8101
        %v8166 = vsub.f32 2.0, %v8102
        %v8167 = vsub.f32 2.0, %v8103
        %v8168 = vsub.f32 2.0, %v8104
        %v8169 = vsub.f32 2.0, %v8105
        %v8170 = vsub.f32 2.0, %v8106
        %v8171 = vsub.f32 2.0, %v8107
        %v8172 = vsub.f32 2.0, %v8108
        %v8173 = vsub.f32 2.0, %v8109
        %v8174 = vsub.f32 2.0, %v8110
        %v8175 = vsub.f32 2.0, %v8111
        %v8176 = vsub.f32 2.0, %v8112
        %v8177 = vsub.f32 2.0, %v8113
        %v8178 = vsub.f32 2.0, %v8114
        %v8179 = vsub.f32 2.0, %v8115
        %v8180 = vsub.f32 2.0, %v8116
        %v8181 = vsub.f32 2.0, %v8117
        %v8182 = vsub.f32 2.0, %v8118
        %v8183 = vsub.f32 2.0, %v8119
        %v8184 = vsub.f32 2.0, %v8120
        %v8185 = vsub.f32 2.0, %v8121
        %v8186 = vsub.f32 2.0, %v8122
        %v8187 = vsub.f32 2.0, %v8123
        %v8188 = vsub.f32 2.0, %v8124
        %v8189 = vsub.f32 2.0, %v8125
        %v8190 = vsub.f32 2.0, %v8126
        %v8191 = vsub.f32 2.0, %v8127
        %v8192 = vsub.f32 2.0, %v8128
        %v8193 = vsub.f32 2.0, %v8129
        %v8194 = vsub.f32 2.0, %v8130
        %v8195 = vsub.f32 2.0, %v8131
        %v8196 = vsub.f32 2.0, %v8132
        %v8197 = vsub.f32 2.0, %v8133
        %v8198 = vsub.f32 2.0, %v8134
        %v8199 = vsub.f32 2.0, %v8135
        %v8200 = vsub.f32 2.0, %v8136
        %v8201 = vsub.f32 2.0, %v8137
        %v8202 = vsub.f32 2.0, %v8138
        %v8203 = vsub.f32 2.0, %v8139
        %v8204 = vsub.f32 2.0, %v8140
        %v8205 = vsub.f32 2.0, %v8141
        %v8206 = vmul.f32 %v8014, %v8142
        %v8207 = vmul.f32 %v8015, %v8143
        %v8208 = vmul.f32 %v8016, %v8144
        %v8209 = vmul.f32 %v8017, %v8145
        %v8210 = vmul.f32 %v8018, %v8146
        %v8211 = vmul.f32 %v8019, %v8147
        %v8212 = vmul.f32 %v8020, %v8148
        %v8213 = vmul.f32 %v8021, %v8149
        %v8214 = vmul.f32 %v8022, %v8150
        %v8215 = vmul.f32 %v8023, %v8151
        %v8216 = vmul.f32 %v8024, %v8152
        %v8217 = vmul.f32 %v8025, %v8153
        %v8218 = vmul.f32 %v8026, %v8154
        %v8219 = vmul.f32 %v8027, %v8155
        %v8220 = vmul.f32 %v8028, %v8156
        %v8221 = vmul.f32 %v8029, %v8157
        %v8222 = vmul.f32 %v8030, %v8158
        %v8223 = vmul.f32 %v8031, %v8159
        %v8224 = vmul.f32 %v8032, %v8160
        %v8225 = vmul.f32 %v8033, %v8161
        %v8226 = vmul.f32 %v8034, %v8162
        %v8227 = vmul.f32 %v8035, %v8163
        %v8228 = vmul.f32 %v8036, %v8164
        %v8229 = vmul.f32 %v8037, %v8165
        %v8230 = vmul.f32 %v8038, %v8166
        %v8231 = vmul.f32 %v8039, %v8167
        %v8232 = vmul.f32 %v8040, %v8168
        %v8233 = vmul.f32 %v8041, %v8169
        %v8234 = vmul.f32 %v8042, %v8170
        %v8235 = vmul.f32 %v8043, %v8171
        %v8236 = vmul.f32 %v8044, %v8172
        %v8237 = vmul.f32 %v8045, %v8173
        %v8238 = vmul.f32 %v8046, %v8174
        %v8239 = vmul.f32 %v8047, %v8175
        %v8240 = vmul.f32 %v8048, %v8176
        %v8241 = vmul.f32 %v8049, %v8177
        %v8242 = vmul.f32 %v8050, %v8178
        %v8243 = vmul.f32 %v8051, %v8179
        %v8244 = vmul.f32 %v8052, %v8180
        %v8245 = vmul.f32 %v8053, %v8181
        %v8246 = vmul.f32 %v8054, %v8182
        %v8247 = vmul.f32 %v8055, %v8183
        %v8248 = vmul.f32 %v8056, %v8184
        %v8249 = vmul.f32 %v8057, %v8185
        %v8250 = vmul.f32 %v8058, %v8186
        %v8251 = vmul.f32 %v8059, %v8187
        %v8252 = vmul.f32 %v8060, %v8188
        %v8253 = vmul.f32 %v8061, %v8189
        %v8254 = vmul.f32 %v8062, %v8190
        %v8255 = vmul.f32 %v8063, %v8191
        %v8256 = vmul.f32 %v8064, %v8192
        %v8257 = vmul.f32 %v8065, %v8193
        %v8258 = vmul.f32 %v8066, %v8194
        %v8259 = vmul.f32 %v8067, %v8195
        %v8260 = vmul.f32 %v8068, %v8196
        %v8261 = vmul.f32 %v8069, %v8197
        %v8262 = vmul.f32 %v8070, %v8198
        %v8263 = vmul.f32 %v8071, %v8199
        %v8264 = vmul.f32 %v8072, %v8200
        %v8265 = vmul.f32 %v8073, %v8201
        %v8266 = vmul.f32 %v8074, %v8202
        %v8267 = vmul.f32 %v8075, %v8203
        %v8268 = vmul.f32 %v8076, %v8204
        %v8269 = vmul.f32 %v8077, %v8205
        %v8270 = vmul.f32 %v7567, %v8206
        %v8271 = vmul.f32 %v7569, %v8206
        %v8272 = vmul.f32 %v7571, %v8207
        %v8273 = vmul.f32 %v7573, %v8207
        %v8274 = vmul.f32 %v7575, %v8208
        %v8275 = vmul.f32 %v7577, %v8208
        %v8276 = vmul.f32 %v7579, %v8209
        %v8277 = vmul.f32 %v7581, %v8209
        %v8278 = vmul.f32 %v7583, %v8210
        %v8279 = vmul.f32 %v7585, %v8210
        %v8280 = vmul.f32 %v7587, %v8211
        %v8281 = vmul.f32 %v7589, %v8211
        %v8282 = vmul.f32 %v7591, %v8212
        %v8283 = vmul.f32 %v7593, %v8212
        %v8284 = vmul.f32 %v7595, %v8213
        %v8285 = vmul.f32 %v7597, %v8213
        %v8286 = vmul.f32 %v7599, %v8214
        %v8287 = vmul.f32 %v7601, %v8214
        %v8288 = vmul.f32 %v7603, %v8215
        %v8289 = vmul.f32 %v7605, %v8215
        %v8290 = vmul.f32 %v7607, %v8216
        %v8291 = vmul.f32 %v7609, %v8216
        %v8292 = vmul.f32 %v7611, %v8217
        %v8293 = vmul.f32 %v7613, %v8217
        %v8294 = vmul.f32 %v7615, %v8218
        %v8295 = vmul.f32 %v7617, %v8218
        %v8296 = vmul.f32 %v7619, %v8219
        %v8297 = vmul.f32 %v7621, %v8219
        %v8298 = vmul.f32 %v7623, %v8220
        %v8299 = vmul.f32 %v7625, %v8220
        %v8300 = vmul.f32 %v7627, %v8221
        %v8301 = vmul.f32 %v7629, %v8221
        %v8302 = vmul.f32 %v7631, %v8222
        %v8303 = vmul.f32 %v7633, %v8222
        %v8304 = vmul.f32 %v7635, %v8223
        %v8305 = vmul.f32 %v7637, %v8223
        %v8306 = vmul.f32 %v7639, %v8224
        %v8307 = vmul.f32 %v7641, %v8224
        %v8308 = vmul.f32 %v7643, %v8225
        %v8309 = vmul.f32 %v7645, %v8225
        %v8310 = vmul.f32 %v7647, %v8226
        %v8311 = vmul.f32 %v7649, %v8226
        %v8312 = vmul.f32 %v7651, %v8227
        %v8313 = vmul.f32 %v7653, %v8227
        %v8314 = vmul.f32 %v7655, %v8228
        %v8315 = vmul.f32 %v7657, %v8228
        %v8316 = vmul.f32 %v7659, %v8229
        %v8317 = vmul.f32 %v7661, %v8229
        %v8318 = vmul.f32 %v7663, %v8230
        %v8319 = vmul.f32 %v7665, %v8230
        %v8320 = vmul.f32 %v7667, %v8231
        %v8321 = vmul.f32 %v7669, %v8231
        %v8322 = vmul.f32 %v7671, %v8232
        %v8323 = vmul.f32 %v7673, %v8232
        %v8324 = vmul.f32 %v7675, %v8233
        %v8325 = vmul.f32 %v7677, %v8233
        %v8326 = vmul.f32 %v7679, %v8234
        %v8327 = vmul.f32 %v7681, %v8234
        %v8328 = vmul.f32 %v7683, %v8235
        %v8329 = vmul.f32 %v7685, %v8235
        %v8330 = vmul.f32 %v7687, %v8236
        %v8331 = vmul.f32 %v7689, %v8236
        %v8332 = vmul.f32 %v7691, %v8237
        %v8333 = vmul.f32 %v7693, %v8237
        %v8334 = vmul.f32 %v7695, %v8238
        %v8335 = vmul.f32 %v7697, %v8238
        %v8336 = vmul.f32 %v7699, %v8239
        %v8337 = vmul.f32 %v7701, %v8239
        %v8338 = vmul.f32 %v7703, %v8240
        %v8339 = vmul.f32 %v7705, %v8240
        %v8340 = vmul.f32 %v7707, %v8241
        %v8341 = vmul.f32 %v7709, %v8241
        %v8342 = vmul.f32 %v7711, %v8242
        %v8343 = vmul.f32 %v7713, %v8242
        %v8344 = vmul.f32 %v7715, %v8243
        %v8345 = vmul.f32 %v7717, %v8243
        %v8346 = vmul.f32 %v7719, %v8244
        %v8347 = vmul.f32 %v7721, %v8244
        %v8348 = vmul.f32 %v7723, %v8245
        %v8349 = vmul.f32 %v7725, %v8245
        %v8350 = vmul.f32 %v7727, %v8246
        %v8351 = vmul.f32 %v7729, %v8246
        %v8352 = vmul.f32 %v7731, %v8247
        %v8353 = vmul.f32 %v7733, %v8247
        %v8354 = vmul.f32 %v7735, %v8248
        %v8355 = vmul.f32 %v7737, %v8248
        %v8356 = vmul.f32 %v7739, %v8249
        %v8357 = vmul.f32 %v7741, %v8249
        %v8358 = vmul.f32 %v7743, %v8250
        %v8359 = vmul.f32 %v7745, %v8250
        %v8360 = vmul.f32 %v7747, %v8251
        %v8361 = vmul.f32 %v7749, %v8251
        %v8362 = vmul.f32 %v7751, %v8252
        %v8363 = vmul.f32 %v7753, %v8252
        %v8364 = vmul.f32 %v7755, %v8253
        %v8365 = vmul.f32 %v7757, %v8253
        %v8366 = vmul.f32 %v7759, %v8254
        %v8367 = vmul.f32 %v7761, %v8254
        %v8368 = vmul.f32 %v7763, %v8255
        %v8369 = vmul.f32 %v7765, %v8255
        %v8370 = vmul.f32 %v7767, %v8256
        %v8371 = vmul.f32 %v7769, %v8256
        %v8372 = vmul.f32 %v7771, %v8257
        %v8373 = vmul.f32 %v7773, %v8257
        %v8374 = vmul.f32 %v7775, %v8258
        %v8375 = vmul.f32 %v7777, %v8258
        %v8376 = vmul.f32 %v7779, %v8259
        %v8377 = vmul.f32 %v7781, %v8259
        %v8378 = vmul.f32 %v7783, %v8260
        %v8379 = vmul.f32 %v7785, %v8260
        %v8380 = vmul.f32 %v7787, %v8261
        %v8381 = vmul.f32 %v7789, %v8261
        %v8382 = vmul.f32 %v7791, %v8262
        %v8383 = vmul.f32 %v7793, %v8262
        %v8384 = vmul.f32 %v7795, %v8263
        %v8385 = vmul.f32 %v7797, %v8263
        %v8386 = vmul.f32 %v7799, %v8264
        %v8387 = vmul.f32 %v7801, %v8264
        %v8388 = vmul.f32 %v7803, %v8265
        %v8389 = vmul.f32 %v7805, %v8265
        %v8390 = vmul.f32 %v7807, %v8266
        %v8391 = vmul.f32 %v7809, %v8266
        %v8392 = vmul.f32 %v7811, %v8267
        %v8393 = vmul.f32 %v7813, %v8267
        %v8394 = vmul.f32 %v7815, %v8268
        %v8395 = vmul.f32 %v7817, %v8268
        %v8396 = vmul.f32 %v7819, %v8269
        %v8397 = vmul.f32 %v7821, %v8269
        %8398 = vmatprep.subr.mxu0 0.0
        %8399 = vmatpush1.msra.mxu0 %v5796
        %8400 = vmatprep.subr.mxu0 0.0
        %8401 = vmatpush1.msra.mxu0 %v5797
        %8402 = vmatprep.subr.mxu0 0.0
        %8403 = vmatpush1.msra.mxu0 %v5798
        %8404 = vmatprep.subr.mxu0 0.0
        %8405 = vmatpush1.msra.mxu0 %v5799
        %8406 = vmatprep.subr.mxu0 0.0
        %8407 = vmatpush1.msra.mxu0 %v5800
        %8408 = vmatprep.subr.mxu0 0.0
        %8409 = vmatpush1.msra.mxu0 %v5801
        %8410 = vmatprep.subr.mxu0 0.0
        %8411 = vmatpush1.msra.mxu0 %v5802
        %8412 = vmatprep.subr.mxu0 0.0
        %8413 = vmatpush1.msra.mxu0 %v5803
        %8414 = vmatprep.subr.mxu0 0.0
        %8415 = vmatpush1.msra.mxu0 %v5804
        %8416 = vmatprep.subr.mxu0 0.0
        %8417 = vmatpush1.msra.mxu0 %v5805
        %8418 = vmatprep.subr.mxu0 0.0
        %8419 = vmatpush1.msra.mxu0 %v5806
        %8420 = vmatprep.subr.mxu0 0.0
        %8421 = vmatpush1.msra.mxu0 %v5807
        %8422 = vmatprep.subr.mxu0 0.0
        %8423 = vmatpush1.msra.mxu0 %v5808
        %8424 = vmatprep.subr.mxu0 0.0
        %8425 = vmatpush1.msra.mxu0 %v5809
        %8426 = vmatprep.subr.mxu0 0.0
        %8427 = vmatpush1.msra.mxu0 %v5810
        %8428 = vmatprep.subr.mxu0 0.0
        %8429 = vmatpush1.msra.mxu0 %v5811
        %8430 = vmatprep.subr.mxu0 0.0
        %8431 = vmatpush1.msra.mxu0 %v5812
        %8432 = vmatprep.subr.mxu0 0.0
        %8433 = vmatpush1.msra.mxu0 %v5813
        %8434 = vmatprep.subr.mxu0 0.0
        %8435 = vmatpush1.msra.mxu0 %v5814
        %8436 = vmatprep.subr.mxu0 0.0
        %8437 = vmatpush1.msra.mxu0 %v5815
        %8438 = vmatprep.subr.mxu0 0.0
        %8439 = vmatpush1.msra.mxu0 %v5816
        %8440 = vmatprep.subr.mxu0 0.0
        %8441 = vmatpush1.msra.mxu0 %v5817
        %8442 = vmatprep.subr.mxu0 0.0
        %8443 = vmatpush1.msra.mxu0 %v5818
        %8444 = vmatprep.subr.mxu0 0.0
        %8445 = vmatpush1.msra.mxu0 %v5819
        %8446 = vmatprep.subr.mxu0 0.0
        %8447 = vmatpush1.msra.mxu0 %v5820
        %8448 = vmatprep.subr.mxu0 0.0
        %8449 = vmatpush1.msra.mxu0 %v5821
        %8450 = vmatprep.subr.mxu0 0.0
        %8451 = vmatpush1.msra.mxu0 %v5822
        %8452 = vmatprep.subr.mxu0 0.0
        %8453 = vmatpush1.msra.mxu0 %v5823
        %8454 = vmatprep.subr.mxu0 0.0
        %8455 = vmatpush1.msra.mxu0 %v5824
        %8456 = vmatprep.subr.mxu0 0.0
        %8457 = vmatpush1.msra.mxu0 %v5825
        %8458 = vmatprep.subr.mxu0 0.0
        %8459 = vmatpush1.msra.mxu0 %v5826
        %8460 = vmatprep.subr.mxu0 0.0
        %8461 = vmatpush1.msra.mxu0 %v5827
        %8462 = vmatprep.mubr.f32.mxu0 %v8271
        %8463 = vmatmul.mubr.f32.gmra.mrb[0].mxu0 %v8270
        %v8464 = vpop.f32.mrb[0].mxu0
        %v8465 = vadd.f32 0.0, %v8464
        %v8466 = vpop.f32.mrb[0].mxu0
        %8467 = vmatprep.mubr.f32.mxu0 %v8273
        %8468 = vmatmul.mubr.f32.gmra.mrb[0].mxu0 %v8272
        %v8469 = vpop.f32.mrb[0].mxu0
        %v8470 = vadd.f32 0.0, %v8469
        %v8471 = vpop.f32.mrb[0].mxu0
        %8472 = vmatprep.mubr.f32.mxu0 %v8275
        %8473 = vmatmul.mubr.f32.gmra.mrb[0].mxu0 %v8274
        %v8474 = vpop.f32.mrb[0].mxu0
        %v8475 = vadd.f32 0.0, %v8474
        %v8476 = vpop.f32.mrb[0].mxu0
        %8477 = vmatprep.mubr.f32.mxu0 %v8277
        %8478 = vmatmul.mubr.f32.gmra.mrb[0].mxu0 %v8276
        %v8479 = vpop.f32.mrb[0].mxu0
        %v8480 = vadd.f32 0.0, %v8479
        %v8481 = vpop.f32.mrb[0].mxu0
        %8482 = vmatprep.mubr.f32.mxu0 %v8279
        %8483 = vmatmul.mubr.f32.gmra.mrb[0].mxu0 %v8278
        %v8484 = vpop.f32.mrb[0].mxu0
        %v8485 = vadd.f32 0.0, %v8484
        %v8486 = vpop.f32.mrb[0].mxu0
        %8487 = vmatprep.mubr.f32.mxu0 %v8281
        %8488 = vmatmul.mubr.f32.gmra.mrb[0].mxu0 %v8280
        %v8489 = vpop.f32.mrb[0].mxu0
        %v8490 = vadd.f32 0.0, %v8489
        %v8491 = vpop.f32.mrb[0].mxu0
        %8492 = vmatprep.mubr.f32.mxu0 %v8283
        %8493 = vmatmul.mubr.f32.gmra.mrb[0].mxu0 %v8282
        %v8494 = vpop.f32.mrb[0].mxu0
        %v8495 = vadd.f32 0.0, %v8494
        %v8496 = vpop.f32.mrb[0].mxu0
        %8497 = vmatprep.mubr.f32.mxu0 %v8285
        %8498 = vmatmul.mubr.f32.gmra.mrb[0].mxu0 %v8284
        %v8499 = vpop.f32.mrb[0].mxu0
        %v8500 = vadd.f32 0.0, %v8499
        %v8501 = vpop.f32.mrb[0].mxu0
        %8502 = vmatprep.mubr.f32.mxu0 %v8287
        %8503 = vmatmul.mubr.f32.gmra.mrb[0].mxu0 %v8286
        %v8504 = vpop.f32.mrb[0].mxu0
        %v8505 = vadd.f32 0.0, %v8504
        %v8506 = vpop.f32.mrb[0].mxu0
        %8507 = vmatprep.mubr.f32.mxu0 %v8289
        %8508 = vmatmul.mubr.f32.gmra.mrb[0].mxu0 %v8288
        %v8509 = vpop.f32.mrb[0].mxu0
        %v8510 = vadd.f32 0.0, %v8509
        %v8511 = vpop.f32.mrb[0].mxu0
        %8512 = vmatprep.mubr.f32.mxu0 %v8291
        %8513 = vmatmul.mubr.f32.gmra.mrb[0].mxu0 %v8290
        %v8514 = vpop.f32.mrb[0].mxu0
        %v8515 = vadd.f32 0.0, %v8514
        %v8516 = vpop.f32.mrb[0].mxu0
        %8517 = vmatprep.mubr.f32.mxu0 %v8293
        %8518 = vmatmul.mubr.f32.gmra.mrb[0].mxu0 %v8292
        %v8519 = vpop.f32.mrb[0].mxu0
        %v8520 = vadd.f32 0.0, %v8519
        %v8521 = vpop.f32.mrb[0].mxu0
        %8522 = vmatprep.mubr.f32.mxu0 %v8295
        %8523 = vmatmul.mubr.f32.gmra.mrb[0].mxu0 %v8294
        %v8524 = vpop.f32.mrb[0].mxu0
        %v8525 = vadd.f32 0.0, %v8524
        %v8526 = vpop.f32.mrb[0].mxu0
        %8527 = vmatprep.mubr.f32.mxu0 %v8297
        %8528 = vmatmul.mubr.f32.gmra.mrb[0].mxu0 %v8296
        %v8529 = vpop.f32.mrb[0].mxu0
        %v8530 = vadd.f32 0.0, %v8529
        %v8531 = vpop.f32.mrb[0].mxu0
        %8532 = vmatprep.mubr.f32.mxu0 %v8299
        %8533 = vmatmul.mubr.f32.gmra.mrb[0].mxu0 %v8298
        %v8534 = vpop.f32.mrb[0].mxu0
        %v8535 = vadd.f32 0.0, %v8534
        %v8536 = vpop.f32.mrb[0].mxu0
        %8537 = vmatprep.mubr.f32.mxu0 %v8301
        %8538 = vmatmul.mubr.f32.gmra.mrb[0].mxu0 %v8300
        %v8539 = vpop.f32.mrb[0].mxu0
        %v8540 = vadd.f32 0.0, %v8539
        %v8541 = vpop.f32.mrb[0].mxu0
        %8542 = vdwg.mxu0
        %8543 = vmatprep.subr.mxu0 0.0
        %8544 = vmatpush1.msra.mxu0 %v5828
        %8545 = vmatprep.subr.mxu0 0.0
        %8546 = vmatpush1.msra.mxu0 %v5829
        %8547 = vmatprep.subr.mxu0 0.0
        %8548 = vmatpush1.msra.mxu0 %v5830
        %8549 = vmatprep.subr.mxu0 0.0
        %8550 = vmatpush1.msra.mxu0 %v5831
        %8551 = vmatprep.subr.mxu0 0.0
        %8552 = vmatpush1.msra.mxu0 %v5832
        %8553 = vmatprep.subr.mxu0 0.0
        %8554 = vmatpush1.msra.mxu0 %v5833
        %8555 = vmatprep.subr.mxu0 0.0
        %8556 = vmatpush1.msra.mxu0 %v5834
        %8557 = vmatprep.subr.mxu0 0.0
        %8558 = vmatpush1.msra.mxu0 %v5835
        %8559 = vmatprep.subr.mxu0 0.0
        %8560 = vmatpush1.msra.mxu0 %v5836
        %8561 = vmatprep.subr.mxu0 0.0
        %8562 = vmatpush1.msra.mxu0 %v5837
        %8563 = vmatprep.subr.mxu0 0.0
        %8564 = vmatpush1.msra.mxu0 %v5838
        %8565 = vmatprep.subr.mxu0 0.0
        %8566 = vmatpush1.msra.mxu0 %v5839
        %8567 = vmatprep.subr.mxu0 0.0
        %8568 = vmatpush1.msra.mxu0 %v5840
        %8569 = vmatprep.subr.mxu0 0.0
        %8570 = vmatpush1.msra.mxu0 %v5841
        %8571 = vmatprep.subr.mxu0 0.0
        %8572 = vmatpush1.msra.mxu0 %v5842
        %8573 = vmatprep.subr.mxu0 0.0
        %8574 = vmatpush1.msra.mxu0 %v5843
        %8575 = vmatprep.subr.mxu0 0.0
        %8576 = vmatpush1.msra.mxu0 %v5844
        %8577 = vmatprep.subr.mxu0 0.0
        %8578 = vmatpush1.msra.mxu0 %v5845
        %8579 = vmatprep.subr.mxu0 0.0
        %8580 = vmatpush1.msra.mxu0 %v5846
        %8581 = vmatprep.subr.mxu0 0.0
        %8582 = vmatpush1.msra.mxu0 %v5847
        %8583 = vmatprep.subr.mxu0 0.0
        %8584 = vmatpush1.msra.mxu0 %v5848
        %8585 = vmatprep.subr.mxu0 0.0
        %8586 = vmatpush1.msra.mxu0 %v5849
        %8587 = vmatprep.subr.mxu0 0.0
        %8588 = vmatpush1.msra.mxu0 %v5850
        %8589 = vmatprep.subr.mxu0 0.0
        %8590 = vmatpush1.msra.mxu0 %v5851
        %8591 = vmatprep.subr.mxu0 0.0
        %8592 = vmatpush1.msra.mxu0 %v5852
        %8593 = vmatprep.subr.mxu0 0.0
        %8594 = vmatpush1.msra.mxu0 %v5853
        %8595 = vmatprep.subr.mxu0 0.0
        %8596 = vmatpush1.msra.mxu0 %v5854
        %8597 = vmatprep.subr.mxu0 0.0
        %8598 = vmatpush1.msra.mxu0 %v5855
        %8599 = vmatprep.subr.mxu0 0.0
        %8600 = vmatpush1.msra.mxu0 %v5856
        %8601 = vmatprep.subr.mxu0 0.0
        %8602 = vmatpush1.msra.mxu0 %v5857
        %8603 = vmatprep.subr.mxu0 0.0
        %8604 = vmatpush1.msra.mxu0 %v5858
        %8605 = vmatprep.subr.mxu0 0.0
        %8606 = vmatpush1.msra.mxu0 %v5859
        %8607 = vmatprep.mubr.f32.mxu0 %v8303
        %8608 = vmatmul.mubr.f32.gmra.mrb[0].mxu0 %v8302
        %v8609 = vpop.f32.mrb[0].mxu0
        %v8610 = vadd.f32 0.0, %v8609
        %v8611 = vpop.f32.mrb[0].mxu0
        %8612 = vmatprep.mubr.f32.mxu0 %v8305
        %8613 = vmatmul.mubr.f32.gmra.mrb[0].mxu0 %v8304
        %v8614 = vpop.f32.mrb[0].mxu0
        %v8615 = vadd.f32 0.0, %v8614
        %v8616 = vpop.f32.mrb[0].mxu0
        %8617 = vmatprep.mubr.f32.mxu0 %v8307
        %8618 = vmatmul.mubr.f32.gmra.mrb[0].mxu0 %v8306
        %v8619 = vpop.f32.mrb[0].mxu0
        %v8620 = vadd.f32 0.0, %v8619
        %v8621 = vpop.f32.mrb[0].mxu0
        %8622 = vmatprep.mubr.f32.mxu0 %v8309
        %8623 = vmatmul.mubr.f32.gmra.mrb[0].mxu0 %v8308
        %v8624 = vpop.f32.mrb[0].mxu0
        %v8625 = vadd.f32 0.0, %v8624
        %v8626 = vpop.f32.mrb[0].mxu0
        %8627 = vmatprep.mubr.f32.mxu0 %v8311
        %8628 = vmatmul.mubr.f32.gmra.mrb[0].mxu0 %v8310
        %v8629 = vpop.f32.mrb[0].mxu0
        %v8630 = vadd.f32 0.0, %v8629
        %v8631 = vpop.f32.mrb[0].mxu0
        %8632 = vmatprep.mubr.f32.mxu0 %v8313
        %8633 = vmatmul.mubr.f32.gmra.mrb[0].mxu0 %v8312
        %v8634 = vpop.f32.mrb[0].mxu0
        %v8635 = vadd.f32 0.0, %v8634
        %v8636 = vpop.f32.mrb[0].mxu0
        %8637 = vmatprep.mubr.f32.mxu0 %v8315
        %8638 = vmatmul.mubr.f32.gmra.mrb[0].mxu0 %v8314
        %v8639 = vpop.f32.mrb[0].mxu0
        %v8640 = vadd.f32 0.0, %v8639
        %v8641 = vpop.f32.mrb[0].mxu0
        %8642 = vmatprep.mubr.f32.mxu0 %v8317
        %8643 = vmatmul.mubr.f32.gmra.mrb[0].mxu0 %v8316
        %v8644 = vpop.f32.mrb[0].mxu0
        %v8645 = vadd.f32 0.0, %v8644
        %v8646 = vpop.f32.mrb[0].mxu0
        %8647 = vmatprep.mubr.f32.mxu0 %v8319
        %8648 = vmatmul.mubr.f32.gmra.mrb[0].mxu0 %v8318
        %v8649 = vpop.f32.mrb[0].mxu0
        %v8650 = vadd.f32 0.0, %v8649
        %v8651 = vpop.f32.mrb[0].mxu0
        %8652 = vmatprep.mubr.f32.mxu0 %v8321
        %8653 = vmatmul.mubr.f32.gmra.mrb[0].mxu0 %v8320
        %v8654 = vpop.f32.mrb[0].mxu0
        %v8655 = vadd.f32 0.0, %v8654
        %v8656 = vpop.f32.mrb[0].mxu0
        %8657 = vmatprep.mubr.f32.mxu0 %v8323
        %8658 = vmatmul.mubr.f32.gmra.mrb[0].mxu0 %v8322
        %v8659 = vpop.f32.mrb[0].mxu0
        %v8660 = vadd.f32 0.0, %v8659
        %v8661 = vpop.f32.mrb[0].mxu0
        %8662 = vmatprep.mubr.f32.mxu0 %v8325
        %8663 = vmatmul.mubr.f32.gmra.mrb[0].mxu0 %v8324
        %v8664 = vpop.f32.mrb[0].mxu0
        %v8665 = vadd.f32 0.0, %v8664
        %v8666 = vpop.f32.mrb[0].mxu0
        %8667 = vmatprep.mubr.f32.mxu0 %v8327
        %8668 = vmatmul.mubr.f32.gmra.mrb[0].mxu0 %v8326
        %v8669 = vpop.f32.mrb[0].mxu0
        %v8670 = vadd.f32 0.0, %v8669
        %v8671 = vpop.f32.mrb[0].mxu0
        %8672 = vmatprep.mubr.f32.mxu0 %v8329
        %8673 = vmatmul.mubr.f32.gmra.mrb[0].mxu0 %v8328
        %v8674 = vpop.f32.mrb[0].mxu0
        %v8675 = vadd.f32 0.0, %v8674
        %v8676 = vpop.f32.mrb[0].mxu0
        %8677 = vmatprep.mubr.f32.mxu0 %v8331
        %8678 = vmatmul.mubr.f32.gmra.mrb[0].mxu0 %v8330
        %v8679 = vpop.f32.mrb[0].mxu0
        %v8680 = vadd.f32 0.0, %v8679
        %v8681 = vpop.f32.mrb[0].mxu0
        %8682 = vmatprep.mubr.f32.mxu0 %v8333
        %8683 = vmatmul.mubr.f32.gmra.mrb[0].mxu0 %v8332
        %v8684 = vpop.f32.mrb[0].mxu0
        %v8685 = vadd.f32 0.0, %v8684
        %v8686 = vpop.f32.mrb[0].mxu0
        %8687 = vdwg.mxu0
        %8688 = vmatprep.subr.mxu0 0.0
        %8689 = vmatpush1.msra.mxu0 %v5860
        %8690 = vmatprep.subr.mxu0 0.0
        %8691 = vmatpush1.msra.mxu0 %v5861
        %8692 = vmatprep.subr.mxu0 0.0
        %8693 = vmatpush1.msra.mxu0 %v5862
        %8694 = vmatprep.subr.mxu0 0.0
        %8695 = vmatpush1.msra.mxu0 %v5863
        %8696 = vmatprep.subr.mxu0 0.0
        %8697 = vmatpush1.msra.mxu0 %v5864
        %8698 = vmatprep.subr.mxu0 0.0
        %8699 = vmatpush1.msra.mxu0 %v5865
        %8700 = vmatprep.subr.mxu0 0.0
        %8701 = vmatpush1.msra.mxu0 %v5866
        %8702 = vmatprep.subr.mxu0 0.0
        %8703 = vmatpush1.msra.mxu0 %v5867
        %8704 = vmatprep.subr.mxu0 0.0
        %8705 = vmatpush1.msra.mxu0 %v5868
        %8706 = vmatprep.subr.mxu0 0.0
        %8707 = vmatpush1.msra.mxu0 %v5869
        %8708 = vmatprep.subr.mxu0 0.0
        %8709 = vmatpush1.msra.mxu0 %v5870
        %8710 = vmatprep.subr.mxu0 0.0
        %8711 = vmatpush1.msra.mxu0 %v5871
        %8712 = vmatprep.subr.mxu0 0.0
        %8713 = vmatpush1.msra.mxu0 %v5872
        %8714 = vmatprep.subr.mxu0 0.0
        %8715 = vmatpush1.msra.mxu0 %v5873
        %8716 = vmatprep.subr.mxu0 0.0
        %8717 = vmatpush1.msra.mxu0 %v5874
        %8718 = vmatprep.subr.mxu0 0.0
        %8719 = vmatpush1.msra.mxu0 %v5875
        %8720 = vmatprep.subr.mxu0 0.0
        %8721 = vmatpush1.msra.mxu0 %v5876
        %8722 = vmatprep.subr.mxu0 0.0
        %8723 = vmatpush1.msra.mxu0 %v5877
        %8724 = vmatprep.subr.mxu0 0.0
        %8725 = vmatpush1.msra.mxu0 %v5878
        %8726 = vmatprep.subr.mxu0 0.0
        %8727 = vmatpush1.msra.mxu0 %v5879
        %8728 = vmatprep.subr.mxu0 0.0
        %8729 = vmatpush1.msra.mxu0 %v5880
        %8730 = vmatprep.subr.mxu0 0.0
        %8731 = vmatpush1.msra.mxu0 %v5881
        %8732 = vmatprep.subr.mxu0 0.0
        %8733 = vmatpush1.msra.mxu0 %v5882
        %8734 = vmatprep.subr.mxu0 0.0
        %8735 = vmatpush1.msra.mxu0 %v5883
        %8736 = vmatprep.subr.mxu0 0.0
        %8737 = vmatpush1.msra.mxu0 %v5884
        %8738 = vmatprep.subr.mxu0 0.0
        %8739 = vmatpush1.msra.mxu0 %v5885
        %8740 = vmatprep.subr.mxu0 0.0
        %8741 = vmatpush1.msra.mxu0 %v5886
        %8742 = vmatprep.subr.mxu0 0.0
        %8743 = vmatpush1.msra.mxu0 %v5887
        %8744 = vmatprep.subr.mxu0 0.0
        %8745 = vmatpush1.msra.mxu0 %v5888
        %8746 = vmatprep.subr.mxu0 0.0
        %8747 = vmatpush1.msra.mxu0 %v5889
        %8748 = vmatprep.subr.mxu0 0.0
        %8749 = vmatpush1.msra.mxu0 %v5890
        %8750 = vmatprep.subr.mxu0 0.0
        %8751 = vmatpush1.msra.mxu0 %v5891
        %8752 = vmatprep.mubr.f32.mxu0 %v8335
        %8753 = vmatmul.mubr.f32.gmra.mrb[0].mxu0 %v8334
        %v8754 = vpop.f32.mrb[0].mxu0
        %v8755 = vadd.f32 0.0, %v8754
        %v8756 = vpop.f32.mrb[0].mxu0
        %8757 = vmatprep.mubr.f32.mxu0 %v8337
        %8758 = vmatmul.mubr.f32.gmra.mrb[0].mxu0 %v8336
        %v8759 = vpop.f32.mrb[0].mxu0
        %v8760 = vadd.f32 0.0, %v8759
        %v8761 = vpop.f32.mrb[0].mxu0
        %8762 = vmatprep.mubr.f32.mxu0 %v8339
        %8763 = vmatmul.mubr.f32.gmra.mrb[0].mxu0 %v8338
        %v8764 = vpop.f32.mrb[0].mxu0
        %v8765 = vadd.f32 0.0, %v8764
        %v8766 = vpop.f32.mrb[0].mxu0
        %8767 = vmatprep.mubr.f32.mxu0 %v8341
        %8768 = vmatmul.mubr.f32.gmra.mrb[0].mxu0 %v8340
        %v8769 = vpop.f32.mrb[0].mxu0
        %v8770 = vadd.f32 0.0, %v8769
        %v8771 = vpop.f32.mrb[0].mxu0
        %8772 = vmatprep.mubr.f32.mxu0 %v8343
        %8773 = vmatmul.mubr.f32.gmra.mrb[0].mxu0 %v8342
        %v8774 = vpop.f32.mrb[0].mxu0
        %v8775 = vadd.f32 0.0, %v8774
        %v8776 = vpop.f32.mrb[0].mxu0
        %8777 = vmatprep.mubr.f32.mxu0 %v8345
        %8778 = vmatmul.mubr.f32.gmra.mrb[0].mxu0 %v8344
        %v8779 = vpop.f32.mrb[0].mxu0
        %v8780 = vadd.f32 0.0, %v8779
        %v8781 = vpop.f32.mrb[0].mxu0
        %8782 = vmatprep.mubr.f32.mxu0 %v8347
        %8783 = vmatmul.mubr.f32.gmra.mrb[0].mxu0 %v8346
        %v8784 = vpop.f32.mrb[0].mxu0
        %v8785 = vadd.f32 0.0, %v8784
        %v8786 = vpop.f32.mrb[0].mxu0
        %8787 = vmatprep.mubr.f32.mxu0 %v8349
        %8788 = vmatmul.mubr.f32.gmra.mrb[0].mxu0 %v8348
        %v8789 = vpop.f32.mrb[0].mxu0
        %v8790 = vadd.f32 0.0, %v8789
        %v8791 = vpop.f32.mrb[0].mxu0
        %8792 = vmatprep.mubr.f32.mxu0 %v8351
        %8793 = vmatmul.mubr.f32.gmra.mrb[0].mxu0 %v8350
        %v8794 = vpop.f32.mrb[0].mxu0
        %v8795 = vadd.f32 0.0, %v8794
        %v8796 = vpop.f32.mrb[0].mxu0
        %8797 = vmatprep.mubr.f32.mxu0 %v8353
        %8798 = vmatmul.mubr.f32.gmra.mrb[0].mxu0 %v8352
        %v8799 = vpop.f32.mrb[0].mxu0
        %v8800 = vadd.f32 0.0, %v8799
        %v8801 = vpop.f32.mrb[0].mxu0
        %8802 = vmatprep.mubr.f32.mxu0 %v8355
        %8803 = vmatmul.mubr.f32.gmra.mrb[0].mxu0 %v8354
        %v8804 = vpop.f32.mrb[0].mxu0
        %v8805 = vadd.f32 0.0, %v8804
        %v8806 = vpop.f32.mrb[0].mxu0
        %8807 = vmatprep.mubr.f32.mxu0 %v8357
        %8808 = vmatmul.mubr.f32.gmra.mrb[0].mxu0 %v8356
        %v8809 = vpop.f32.mrb[0].mxu0
        %v8810 = vadd.f32 0.0, %v8809
        %v8811 = vpop.f32.mrb[0].mxu0
        %8812 = vmatprep.mubr.f32.mxu0 %v8359
        %8813 = vmatmul.mubr.f32.gmra.mrb[0].mxu0 %v8358
        %v8814 = vpop.f32.mrb[0].mxu0
        %v8815 = vadd.f32 0.0, %v8814
        %v8816 = vpop.f32.mrb[0].mxu0
        %8817 = vmatprep.mubr.f32.mxu0 %v8361
        %8818 = vmatmul.mubr.f32.gmra.mrb[0].mxu0 %v8360
        %v8819 = vpop.f32.mrb[0].mxu0
        %v8820 = vadd.f32 0.0, %v8819
        %v8821 = vpop.f32.mrb[0].mxu0
        %8822 = vmatprep.mubr.f32.mxu0 %v8363
        %8823 = vmatmul.mubr.f32.gmra.mrb[0].mxu0 %v8362
        %v8824 = vpop.f32.mrb[0].mxu0
        %v8825 = vadd.f32 0.0, %v8824
        %v8826 = vpop.f32.mrb[0].mxu0
        %8827 = vmatprep.mubr.f32.mxu0 %v8365
        %8828 = vmatmul.mubr.f32.gmra.mrb[0].mxu0 %v8364
        %v8829 = vpop.f32.mrb[0].mxu0
        %v8830 = vadd.f32 0.0, %v8829
        %v8831 = vpop.f32.mrb[0].mxu0
        %8832 = vdwg.mxu0
        %8833 = vmatprep.subr.mxu0 0.0
        %8834 = vmatpush1.msra.mxu0 %v5892
        %8835 = vmatprep.subr.mxu0 0.0
        %8836 = vmatpush1.msra.mxu0 %v5893
        %8837 = vmatprep.subr.mxu0 0.0
        %8838 = vmatpush1.msra.mxu0 %v5894
        %8839 = vmatprep.subr.mxu0 0.0
        %8840 = vmatpush1.msra.mxu0 %v5895
        %8841 = vmatprep.subr.mxu0 0.0
        %8842 = vmatpush1.msra.mxu0 %v5896
        %8843 = vmatprep.subr.mxu0 0.0
        %8844 = vmatpush1.msra.mxu0 %v5897
        %8845 = vmatprep.subr.mxu0 0.0
        %8846 = vmatpush1.msra.mxu0 %v5898
        %8847 = vmatprep.subr.mxu0 0.0
        %8848 = vmatpush1.msra.mxu0 %v5899
        %8849 = vmatprep.subr.mxu0 0.0
        %8850 = vmatpush1.msra.mxu0 %v5900
        %8851 = vmatprep.subr.mxu0 0.0
        %8852 = vmatpush1.msra.mxu0 %v5901
        %8853 = vmatprep.subr.mxu0 0.0
        %8854 = vmatpush1.msra.mxu0 %v5902
        %8855 = vmatprep.subr.mxu0 0.0
        %8856 = vmatpush1.msra.mxu0 %v5903
        %8857 = vmatprep.subr.mxu0 0.0
        %8858 = vmatpush1.msra.mxu0 %v5904
        %8859 = vmatprep.subr.mxu0 0.0
        %8860 = vmatpush1.msra.mxu0 %v5905
        %8861 = vmatprep.subr.mxu0 0.0
        %8862 = vmatpush1.msra.mxu0 %v5906
        %8863 = vmatprep.subr.mxu0 0.0
        %8864 = vmatpush1.msra.mxu0 %v5907
        %8865 = vmatprep.subr.mxu0 0.0
        %8866 = vmatpush1.msra.mxu0 %v5908
        %8867 = vmatprep.subr.mxu0 0.0
        %8868 = vmatpush1.msra.mxu0 %v5909
        %8869 = vmatprep.subr.mxu0 0.0
        %8870 = vmatpush1.msra.mxu0 %v5910
        %8871 = vmatprep.subr.mxu0 0.0
        %8872 = vmatpush1.msra.mxu0 %v5911
        %8873 = vmatprep.subr.mxu0 0.0
        %8874 = vmatpush1.msra.mxu0 %v5912
        %8875 = vmatprep.subr.mxu0 0.0
        %8876 = vmatpush1.msra.mxu0 %v5913
        %8877 = vmatprep.subr.mxu0 0.0
        %8878 = vmatpush1.msra.mxu0 %v5914
        %8879 = vmatprep.subr.mxu0 0.0
        %8880 = vmatpush1.msra.mxu0 %v5915
        %8881 = vmatprep.subr.mxu0 0.0
        %8882 = vmatpush1.msra.mxu0 %v5916
        %8883 = vmatprep.subr.mxu0 0.0
        %8884 = vmatpush1.msra.mxu0 %v5917
        %8885 = vmatprep.subr.mxu0 0.0
        %8886 = vmatpush1.msra.mxu0 %v5918
        %8887 = vmatprep.subr.mxu0 0.0
        %8888 = vmatpush1.msra.mxu0 %v5919
        %8889 = vmatprep.subr.mxu0 0.0
        %8890 = vmatpush1.msra.mxu0 %v5920
        %8891 = vmatprep.subr.mxu0 0.0
        %8892 = vmatpush1.msra.mxu0 %v5921
        %8893 = vmatprep.subr.mxu0 0.0
        %8894 = vmatpush1.msra.mxu0 %v5922
        %8895 = vmatprep.subr.mxu0 0.0
        %8896 = vmatpush1.msra.mxu0 %v5923
        %8897 = vmatprep.mubr.f32.mxu0 %v8367
        %8898 = vmatmul.mubr.f32.gmra.mrb[0].mxu0 %v8366
        %v8899 = vpop.f32.mrb[0].mxu0
        %v8900 = vadd.f32 0.0, %v8899
        %v8901 = vpop.f32.mrb[0].mxu0
        %8902 = vmatprep.mubr.f32.mxu0 %v8369
        %8903 = vmatmul.mubr.f32.gmra.mrb[0].mxu0 %v8368
        %v8904 = vpop.f32.mrb[0].mxu0
        %v8905 = vadd.f32 0.0, %v8904
        %v8906 = vpop.f32.mrb[0].mxu0
        %8907 = vmatprep.mubr.f32.mxu0 %v8371
        %8908 = vmatmul.mubr.f32.gmra.mrb[0].mxu0 %v8370
        %v8909 = vpop.f32.mrb[0].mxu0
        %v8910 = vadd.f32 0.0, %v8909
        %v8911 = vpop.f32.mrb[0].mxu0
        %8912 = vmatprep.mubr.f32.mxu0 %v8373
        %8913 = vmatmul.mubr.f32.gmra.mrb[0].mxu0 %v8372
        %v8914 = vpop.f32.mrb[0].mxu0
        %v8915 = vadd.f32 0.0, %v8914
        %v8916 = vpop.f32.mrb[0].mxu0
        %8917 = vmatprep.mubr.f32.mxu0 %v8375
        %8918 = vmatmul.mubr.f32.gmra.mrb[0].mxu0 %v8374
        %v8919 = vpop.f32.mrb[0].mxu0
        %v8920 = vadd.f32 0.0, %v8919
        %v8921 = vpop.f32.mrb[0].mxu0
        %8922 = vmatprep.mubr.f32.mxu0 %v8377
        %8923 = vmatmul.mubr.f32.gmra.mrb[0].mxu0 %v8376
        %v8924 = vpop.f32.mrb[0].mxu0
        %v8925 = vadd.f32 0.0, %v8924
        %v8926 = vpop.f32.mrb[0].mxu0
        %8927 = vmatprep.mubr.f32.mxu0 %v8379
        %8928 = vmatmul.mubr.f32.gmra.mrb[0].mxu0 %v8378
        %v8929 = vpop.f32.mrb[0].mxu0
        %v8930 = vadd.f32 0.0, %v8929
        %v8931 = vpop.f32.mrb[0].mxu0
        %8932 = vmatprep.mubr.f32.mxu0 %v8381
        %8933 = vmatmul.mubr.f32.gmra.mrb[0].mxu0 %v8380
        %v8934 = vpop.f32.mrb[0].mxu0
        %v8935 = vadd.f32 0.0, %v8934
        %v8936 = vpop.f32.mrb[0].mxu0
        %8937 = vmatprep.mubr.f32.mxu0 %v8383
        %8938 = vmatmul.mubr.f32.gmra.mrb[0].mxu0 %v8382
        %v8939 = vpop.f32.mrb[0].mxu0
        %v8940 = vadd.f32 0.0, %v8939
        %v8941 = vpop.f32.mrb[0].mxu0
        %8942 = vmatprep.mubr.f32.mxu0 %v8385
        %8943 = vmatmul.mubr.f32.gmra.mrb[0].mxu0 %v8384
        %v8944 = vpop.f32.mrb[0].mxu0
        %v8945 = vadd.f32 0.0, %v8944
        %v8946 = vpop.f32.mrb[0].mxu0
        %8947 = vmatprep.mubr.f32.mxu0 %v8387
        %8948 = vmatmul.mubr.f32.gmra.mrb[0].mxu0 %v8386
        %v8949 = vpop.f32.mrb[0].mxu0
        %v8950 = vadd.f32 0.0, %v8949
        %v8951 = vpop.f32.mrb[0].mxu0
        %8952 = vmatprep.mubr.f32.mxu0 %v8389
        %8953 = vmatmul.mubr.f32.gmra.mrb[0].mxu0 %v8388
        %v8954 = vpop.f32.mrb[0].mxu0
        %v8955 = vadd.f32 0.0, %v8954
        %v8956 = vpop.f32.mrb[0].mxu0
        %8957 = vmatprep.mubr.f32.mxu0 %v8391
        %8958 = vmatmul.mubr.f32.gmra.mrb[0].mxu0 %v8390
        %v8959 = vpop.f32.mrb[0].mxu0
        %v8960 = vadd.f32 0.0, %v8959
        %v8961 = vpop.f32.mrb[0].mxu0
        %8962 = vmatprep.mubr.f32.mxu0 %v8393
        %8963 = vmatmul.mubr.f32.gmra.mrb[0].mxu0 %v8392
        %v8964 = vpop.f32.mrb[0].mxu0
        %v8965 = vadd.f32 0.0, %v8964
        %v8966 = vpop.f32.mrb[0].mxu0
        %8967 = vmatprep.mubr.f32.mxu0 %v8395
        %8968 = vmatmul.mubr.f32.gmra.mrb[0].mxu0 %v8394
        %v8969 = vpop.f32.mrb[0].mxu0
        %v8970 = vadd.f32 0.0, %v8969
        %v8971 = vpop.f32.mrb[0].mxu0
        %8972 = vmatprep.mubr.f32.mxu0 %v8397
        %8973 = vmatmul.mubr.f32.gmra.mrb[0].mxu0 %v8396
        %v8974 = vpop.f32.mrb[0].mxu0
        %v8975 = vadd.f32 0.0, %v8974
        %v8976 = vpop.f32.mrb[0].mxu0
        %8977 = vdwg.mxu0
        %v8978 = vld [vmem:[%s11] sm:$0xff]
        %v8979 = vld [vmem:[%s11 + $0x8] sm:$0xff]
        %v8980 = vld [vmem:[%s11 + $0x10] sm:$0xff]
        %v8981 = vld [vmem:[%s11 + $0x18] sm:$0xff]
        %v8982 = vld [vmem:[%s11 + $0x20] sm:$0xff]
        %v8983 = vld [vmem:[%s11 + $0x28] sm:$0xff]
        %v8984 = vld [vmem:[%s11 + $0x30] sm:$0xff]
        %v8985 = vld [vmem:[%s11 + $0x38] sm:$0xff]
        %v8986 = vld [vmem:[%s11 + $0x40] sm:$0xff]
        %v8987 = vld [vmem:[%s11 + $0x48] sm:$0xff]
        %v8988 = vld [vmem:[%s11 + $0x50] sm:$0xff]
        %v8989 = vld [vmem:[%s11 + $0x58] sm:$0xff]
        %v8990 = vld [vmem:[%s11 + $0x60] sm:$0xff]
        %v8991 = vld [vmem:[%s11 + $0x68] sm:$0xff]
        %v8992 = vld [vmem:[%s11 + $0x70] sm:$0xff]
        %v8993 = vld [vmem:[%s11 + $0x78] sm:$0xff]
        %v8994 = vld [vmem:[%s11 + $0x80] sm:$0xff]
        %v8995 = vld [vmem:[%s11 + $0x88] sm:$0xff]
        %v8996 = vld [vmem:[%s11 + $0x90] sm:$0xff]
        %v8997 = vld [vmem:[%s11 + $0x98] sm:$0xff]
        %v8998 = vld [vmem:[%s11 + $0xa0] sm:$0xff]
        %v8999 = vld [vmem:[%s11 + $0xa8] sm:$0xff]
        %v9000 = vld [vmem:[%s11 + $0xb0] sm:$0xff]
        %v9001 = vld [vmem:[%s11 + $0xb8] sm:$0xff]
        %v9002 = vld [vmem:[%s11 + $0xc0] sm:$0xff]
        %v9003 = vld [vmem:[%s11 + $0xc8] sm:$0xff]
        %v9004 = vld [vmem:[%s11 + $0xd0] sm:$0xff]
        %v9005 = vld [vmem:[%s11 + $0xd8] sm:$0xff]
        %v9006 = vld [vmem:[%s11 + $0xe0] sm:$0xff]
        %v9007 = vld [vmem:[%s11 + $0xe8] sm:$0xff]
        %v9008 = vld [vmem:[%s11 + $0xf0] sm:$0xff]
        %v9009 = vld [vmem:[%s11 + $0xf8] sm:$0xff]
        %v9010 = vld [vmem:[%s11 + $0x100] sm:$0xff]
        %v9011 = vld [vmem:[%s11 + $0x108] sm:$0xff]
        %v9012 = vld [vmem:[%s11 + $0x110] sm:$0xff]
        %v9013 = vld [vmem:[%s11 + $0x118] sm:$0xff]
        %v9014 = vld [vmem:[%s11 + $0x120] sm:$0xff]
        %v9015 = vld [vmem:[%s11 + $0x128] sm:$0xff]
        %v9016 = vld [vmem:[%s11 + $0x130] sm:$0xff]
        %v9017 = vld [vmem:[%s11 + $0x138] sm:$0xff]
        %v9018 = vld [vmem:[%s11 + $0x140] sm:$0xff]
        %v9019 = vld [vmem:[%s11 + $0x148] sm:$0xff]
        %v9020 = vld [vmem:[%s11 + $0x150] sm:$0xff]
        %v9021 = vld [vmem:[%s11 + $0x158] sm:$0xff]
        %v9022 = vld [vmem:[%s11 + $0x160] sm:$0xff]
        %v9023 = vld [vmem:[%s11 + $0x168] sm:$0xff]
        %v9024 = vld [vmem:[%s11 + $0x170] sm:$0xff]
        %v9025 = vld [vmem:[%s11 + $0x178] sm:$0xff]
        %v9026 = vld [vmem:[%s11 + $0x180] sm:$0xff]
        %v9027 = vld [vmem:[%s11 + $0x188] sm:$0xff]
        %v9028 = vld [vmem:[%s11 + $0x190] sm:$0xff]
        %v9029 = vld [vmem:[%s11 + $0x198] sm:$0xff]
        %v9030 = vld [vmem:[%s11 + $0x1a0] sm:$0xff]
        %v9031 = vld [vmem:[%s11 + $0x1a8] sm:$0xff]
        %v9032 = vld [vmem:[%s11 + $0x1b0] sm:$0xff]
        %v9033 = vld [vmem:[%s11 + $0x1b8] sm:$0xff]
        %v9034 = vld [vmem:[%s11 + $0x1c0] sm:$0xff]
        %v9035 = vld [vmem:[%s11 + $0x1c8] sm:$0xff]
        %v9036 = vld [vmem:[%s11 + $0x1d0] sm:$0xff]
        %v9037 = vld [vmem:[%s11 + $0x1d8] sm:$0xff]
        %v9038 = vld [vmem:[%s11 + $0x1e0] sm:$0xff]
        %v9039 = vld [vmem:[%s11 + $0x1e8] sm:$0xff]
        %v9040 = vld [vmem:[%s11 + $0x1f0] sm:$0xff]
        %v9041 = vld [vmem:[%s11 + $0x1f8] sm:$0xff]
        %v9043 = vsel %vm4978, %v8465, 0
        %v9046 = vsel %vm4978, %v8470, 0
        %v9049 = vsel %vm4978, %v8475, 0
        %v9052 = vsel %vm4978, %v8480, 0
        %v9055 = vsel %vm4978, %v8485, 0
        %v9058 = vsel %vm4978, %v8490, 0
        %v9061 = vsel %vm4978, %v8495, 0
        %v9064 = vsel %vm4978, %v8500, 0
        %v9067 = vsel %vm4978, %v8505, 0
        %v9070 = vsel %vm4978, %v8510, 0
        %v9073 = vsel %vm4978, %v8515, 0
        %v9076 = vsel %vm4978, %v8520, 0
        %v9079 = vsel %vm4978, %v8525, 0
        %v9082 = vsel %vm4978, %v8530, 0
        %v9085 = vsel %vm4978, %v8535, 0
        %v9088 = vsel %vm4978, %v8540, 0
        %9090 = vmatprep.subr.mxu0 %v8979
        %9091 = vmatpush1.msra.mxu0 %v8978
        %9092 = vmatprep.subr.mxu0 %v8981
        %9093 = vmatpush1.msra.mxu0 %v8980
        %9094 = vmatprep.subr.mxu0 %v8983
        %9095 = vmatpush1.msra.mxu0 %v8982
        %9096 = vmatprep.subr.mxu0 %v8985
        %9097 = vmatpush1.msra.mxu0 %v8984
        %9098 = vmatprep.subr.mxu0 %v8987
        %9099 = vmatpush1.msra.mxu0 %v8986
        %9100 = vmatprep.subr.mxu0 %v8989
        %9101 = vmatpush1.msra.mxu0 %v8988
        %9102 = vmatprep.subr.mxu0 %v8991
        %9103 = vmatpush1.msra.mxu0 %v8990
        %9104 = vmatprep.subr.mxu0 %v8993
        %9105 = vmatpush1.msra.mxu0 %v8992
        %9106 = vmatprep.subr.mxu0 0.0
        %9107 = vmatpush1.msra.mxu0 0.0
        %9108 = vmatprep.subr.mxu0 0.0
        %9109 = vmatpush1.msra.mxu0 0.0
        %9110 = vmatprep.subr.mxu0 0.0
        %9111 = vmatpush1.msra.mxu0 0.0
        %9112 = vmatprep.subr.mxu0 0.0
        %9113 = vmatpush1.msra.mxu0 0.0
        %9114 = vmatprep.subr.mxu0 0.0
        %9115 = vmatpush1.msra.mxu0 0.0
        %9116 = vmatprep.subr.mxu0 0.0
        %9117 = vmatpush1.msra.mxu0 0.0
        %9118 = vmatprep.subr.mxu0 0.0
        %9119 = vmatpush1.msra.mxu0 0.0
        %9120 = vmatprep.subr.mxu0 0.0
        %9121 = vmatpush1.msra.mxu0 0.0
        %9122 = vmatprep.subr.mxu0 0.0
        %9123 = vmatpush1.msra.mxu0 0.0
        %9124 = vmatprep.subr.mxu0 0.0
        %9125 = vmatpush1.msra.mxu0 0.0
        %9126 = vmatprep.subr.mxu0 0.0
        %9127 = vmatpush1.msra.mxu0 0.0
        %9128 = vmatprep.subr.mxu0 0.0
        %9129 = vmatpush1.msra.mxu0 0.0
        %9130 = vmatprep.subr.mxu0 0.0
        %9131 = vmatpush1.msra.mxu0 0.0
        %9132 = vmatprep.subr.mxu0 0.0
        %9133 = vmatpush1.msra.mxu0 0.0
        %9134 = vmatprep.subr.mxu0 0.0
        %9135 = vmatpush1.msra.mxu0 0.0
        %9136 = vmatprep.subr.mxu0 0.0
        %9137 = vmatpush1.msra.mxu0 0.0
        %9138 = vmatprep.subr.mxu0 0.0
        %9139 = vmatpush1.msra.mxu0 0.0
        %9140 = vmatprep.subr.mxu0 0.0
        %9141 = vmatpush1.msra.mxu0 0.0
        %9142 = vmatprep.subr.mxu0 0.0
        %9143 = vmatpush1.msra.mxu0 0.0
        %9144 = vmatprep.subr.mxu0 0.0
        %9145 = vmatpush1.msra.mxu0 0.0
        %9146 = vmatprep.subr.mxu0 0.0
        %9147 = vmatpush1.msra.mxu0 0.0
        %9148 = vmatprep.subr.mxu0 0.0
        %9149 = vmatpush1.msra.mxu0 0.0
        %9150 = vmatprep.subr.mxu0 0.0
        %9151 = vmatpush1.msra.mxu0 0.0
        %9152 = vmatprep.subr.mxu0 0.0
        %9153 = vmatpush1.msra.mxu0 0.0
        %9154 = vmatprep.mubr.f32.mxu0 0.0
        %9155 = vmatmul.mubr.f32.gmra.mrb[0].mxu0 %v9043
        %v9156 = vpop.f32.mrb[0].mxu0
        %v9157 = vadd.f32 0.0, %v9156
        %v9158 = vpop.f32.mrb[0].mxu0
        %v9159 = vadd.f32 0.0, %v9158
        %9160 = vmatprep.mubr.f32.mxu0 0.0
        %9161 = vmatmul.mubr.f32.gmra.mrb[0].mxu0 %v9046
        %v9162 = vpop.f32.mrb[0].mxu0
        %v9163 = vadd.f32 0.0, %v9162
        %v9164 = vpop.f32.mrb[0].mxu0
        %v9165 = vadd.f32 0.0, %v9164
        %9166 = vmatprep.mubr.f32.mxu0 0.0
        %9167 = vmatmul.mubr.f32.gmra.mrb[0].mxu0 %v9049
        %v9168 = vpop.f32.mrb[0].mxu0
        %v9169 = vadd.f32 0.0, %v9168
        %v9170 = vpop.f32.mrb[0].mxu0
        %v9171 = vadd.f32 0.0, %v9170
        %9172 = vmatprep.mubr.f32.mxu0 0.0
        %9173 = vmatmul.mubr.f32.gmra.mrb[0].mxu0 %v9052
        %v9174 = vpop.f32.mrb[0].mxu0
        %v9175 = vadd.f32 0.0, %v9174
        %v9176 = vpop.f32.mrb[0].mxu0
        %v9177 = vadd.f32 0.0, %v9176
        %9178 = vmatprep.mubr.f32.mxu0 0.0
        %9179 = vmatmul.mubr.f32.gmra.mrb[0].mxu0 %v9055
        %v9180 = vpop.f32.mrb[0].mxu0
        %v9181 = vadd.f32 0.0, %v9180
        %v9182 = vpop.f32.mrb[0].mxu0
        %v9183 = vadd.f32 0.0, %v9182
        %9184 = vmatprep.mubr.f32.mxu0 0.0
        %9185 = vmatmul.mubr.f32.gmra.mrb[0].mxu0 %v9058
        %v9186 = vpop.f32.mrb[0].mxu0
        %v9187 = vadd.f32 0.0, %v9186
        %v9188 = vpop.f32.mrb[0].mxu0
        %v9189 = vadd.f32 0.0, %v9188
        %9190 = vmatprep.mubr.f32.mxu0 0.0
        %9191 = vmatmul.mubr.f32.gmra.mrb[0].mxu0 %v9061
        %v9192 = vpop.f32.mrb[0].mxu0
        %v9193 = vadd.f32 0.0, %v9192
        %v9194 = vpop.f32.mrb[0].mxu0
        %v9195 = vadd.f32 0.0, %v9194
        %9196 = vmatprep.mubr.f32.mxu0 0.0
        %9197 = vmatmul.mubr.f32.gmra.mrb[0].mxu0 %v9064
        %v9198 = vpop.f32.mrb[0].mxu0
        %v9199 = vadd.f32 0.0, %v9198
        %v9200 = vpop.f32.mrb[0].mxu0
        %v9201 = vadd.f32 0.0, %v9200
        %9202 = vmatprep.mubr.f32.mxu0 0.0
        %9203 = vmatmul.mubr.f32.gmra.mrb[0].mxu0 %v9067
        %v9204 = vpop.f32.mrb[0].mxu0
        %v9205 = vadd.f32 0.0, %v9204
        %v9206 = vpop.f32.mrb[0].mxu0
        %v9207 = vadd.f32 0.0, %v9206
        %9208 = vmatprep.mubr.f32.mxu0 0.0
        %9209 = vmatmul.mubr.f32.gmra.mrb[0].mxu0 %v9070
        %v9210 = vpop.f32.mrb[0].mxu0
        %v9211 = vadd.f32 0.0, %v9210
        %v9212 = vpop.f32.mrb[0].mxu0
        %v9213 = vadd.f32 0.0, %v9212
        %9214 = vmatprep.mubr.f32.mxu0 0.0
        %9215 = vmatmul.mubr.f32.gmra.mrb[0].mxu0 %v9073
        %v9216 = vpop.f32.mrb[0].mxu0
        %v9217 = vadd.f32 0.0, %v9216
        %v9218 = vpop.f32.mrb[0].mxu0
        %v9219 = vadd.f32 0.0, %v9218
        %9220 = vmatprep.mubr.f32.mxu0 0.0
        %9221 = vmatmul.mubr.f32.gmra.mrb[0].mxu0 %v9076
        %v9222 = vpop.f32.mrb[0].mxu0
        %v9223 = vadd.f32 0.0, %v9222
        %v9224 = vpop.f32.mrb[0].mxu0
        %v9225 = vadd.f32 0.0, %v9224
        %9226 = vmatprep.mubr.f32.mxu0 0.0
        %9227 = vmatmul.mubr.f32.gmra.mrb[0].mxu0 %v9079
        %v9228 = vpop.f32.mrb[0].mxu0
        %v9229 = vadd.f32 0.0, %v9228
        %v9230 = vpop.f32.mrb[0].mxu0
        %v9231 = vadd.f32 0.0, %v9230
        %9232 = vmatprep.mubr.f32.mxu0 0.0
        %9233 = vmatmul.mubr.f32.gmra.mrb[0].mxu0 %v9082
        %v9234 = vpop.f32.mrb[0].mxu0
        %v9235 = vadd.f32 0.0, %v9234
        %v9236 = vpop.f32.mrb[0].mxu0
        %v9237 = vadd.f32 0.0, %v9236
        %9238 = vmatprep.mubr.f32.mxu0 0.0
        %9239 = vmatmul.mubr.f32.gmra.mrb[0].mxu0 %v9085
        %v9240 = vpop.f32.mrb[0].mxu0
        %v9241 = vadd.f32 0.0, %v9240
        %v9242 = vpop.f32.mrb[0].mxu0
        %v9243 = vadd.f32 0.0, %v9242
        %9244 = vmatprep.mubr.f32.mxu0 0.0
        %9245 = vmatmul.mubr.f32.gmra.mrb[0].mxu0 %v9088
        %v9246 = vpop.f32.mrb[0].mxu0
        %v9247 = vadd.f32 0.0, %v9246
        %v9248 = vpop.f32.mrb[0].mxu0
        %v9249 = vadd.f32 0.0, %v9248
        %9250 = vdwg.mxu0
        %v9252 = vsel %vm4978, %v8610, 0
        %v9255 = vsel %vm4978, %v8615, 0
        %v9258 = vsel %vm4978, %v8620, 0
        %v9261 = vsel %vm4978, %v8625, 0
        %v9264 = vsel %vm4978, %v8630, 0
        %v9267 = vsel %vm4978, %v8635, 0
        %v9270 = vsel %vm4978, %v8640, 0
        %v9273 = vsel %vm4978, %v8645, 0
        %v9276 = vsel %vm4978, %v8650, 0
        %v9279 = vsel %vm4978, %v8655, 0
        %v9282 = vsel %vm4978, %v8660, 0
        %v9285 = vsel %vm4978, %v8665, 0
        %v9288 = vsel %vm4978, %v8670, 0
        %v9291 = vsel %vm4978, %v8675, 0
        %v9294 = vsel %vm4978, %v8680, 0
        %v9297 = vsel %vm4978, %v8685, 0
        %9299 = vmatprep.subr.mxu0 %v8995
        %9300 = vmatpush1.msra.mxu0 %v8994
        %9301 = vmatprep.subr.mxu0 %v8997
        %9302 = vmatpush1.msra.mxu0 %v8996
        %9303 = vmatprep.subr.mxu0 %v8999
        %9304 = vmatpush1.msra.mxu0 %v8998
        %9305 = vmatprep.subr.mxu0 %v9001
        %9306 = vmatpush1.msra.mxu0 %v9000
        %9307 = vmatprep.subr.mxu0 %v9003
        %9308 = vmatpush1.msra.mxu0 %v9002
        %9309 = vmatprep.subr.mxu0 %v9005
        %9310 = vmatpush1.msra.mxu0 %v9004
        %9311 = vmatprep.subr.mxu0 %v9007
        %9312 = vmatpush1.msra.mxu0 %v9006
        %9313 = vmatprep.subr.mxu0 %v9009
        %9314 = vmatpush1.msra.mxu0 %v9008
        %9315 = vmatprep.subr.mxu0 0.0
        %9316 = vmatpush1.msra.mxu0 0.0
        %9317 = vmatprep.subr.mxu0 0.0
        %9318 = vmatpush1.msra.mxu0 0.0
        %9319 = vmatprep.subr.mxu0 0.0
        %9320 = vmatpush1.msra.mxu0 0.0
        %9321 = vmatprep.subr.mxu0 0.0
        %9322 = vmatpush1.msra.mxu0 0.0
        %9323 = vmatprep.subr.mxu0 0.0
        %9324 = vmatpush1.msra.mxu0 0.0
        %9325 = vmatprep.subr.mxu0 0.0
        %9326 = vmatpush1.msra.mxu0 0.0
        %9327 = vmatprep.subr.mxu0 0.0
        %9328 = vmatpush1.msra.mxu0 0.0
        %9329 = vmatprep.subr.mxu0 0.0
        %9330 = vmatpush1.msra.mxu0 0.0
        %9331 = vmatprep.subr.mxu0 0.0
        %9332 = vmatpush1.msra.mxu0 0.0
        %9333 = vmatprep.subr.mxu0 0.0
        %9334 = vmatpush1.msra.mxu0 0.0
        %9335 = vmatprep.subr.mxu0 0.0
        %9336 = vmatpush1.msra.mxu0 0.0
        %9337 = vmatprep.subr.mxu0 0.0
        %9338 = vmatpush1.msra.mxu0 0.0
        %9339 = vmatprep.subr.mxu0 0.0
        %9340 = vmatpush1.msra.mxu0 0.0
        %9341 = vmatprep.subr.mxu0 0.0
        %9342 = vmatpush1.msra.mxu0 0.0
        %9343 = vmatprep.subr.mxu0 0.0
        %9344 = vmatpush1.msra.mxu0 0.0
        %9345 = vmatprep.subr.mxu0 0.0
        %9346 = vmatpush1.msra.mxu0 0.0
        %9347 = vmatprep.subr.mxu0 0.0
        %9348 = vmatpush1.msra.mxu0 0.0
        %9349 = vmatprep.subr.mxu0 0.0
        %9350 = vmatpush1.msra.mxu0 0.0
        %9351 = vmatprep.subr.mxu0 0.0
        %9352 = vmatpush1.msra.mxu0 0.0
        %9353 = vmatprep.subr.mxu0 0.0
        %9354 = vmatpush1.msra.mxu0 0.0
        %9355 = vmatprep.subr.mxu0 0.0
        %9356 = vmatpush1.msra.mxu0 0.0
        %9357 = vmatprep.subr.mxu0 0.0
        %9358 = vmatpush1.msra.mxu0 0.0
        %9359 = vmatprep.subr.mxu0 0.0
        %9360 = vmatpush1.msra.mxu0 0.0
        %9361 = vmatprep.subr.mxu0 0.0
        %9362 = vmatpush1.msra.mxu0 0.0
        %9363 = vmatprep.mubr.f32.mxu0 0.0
        %9364 = vmatmul.mubr.f32.gmra.mrb[0].mxu0 %v9252
        %v9365 = vpop.f32.mrb[0].mxu0
        %v9366 = vadd.f32 0.0, %v9365
        %v9367 = vpop.f32.mrb[0].mxu0
        %v9368 = vadd.f32 0.0, %v9367
        %9369 = vmatprep.mubr.f32.mxu0 0.0
        %9370 = vmatmul.mubr.f32.gmra.mrb[0].mxu0 %v9255
        %v9371 = vpop.f32.mrb[0].mxu0
        %v9372 = vadd.f32 0.0, %v9371
        %v9373 = vpop.f32.mrb[0].mxu0
        %v9374 = vadd.f32 0.0, %v9373
        %9375 = vmatprep.mubr.f32.mxu0 0.0
        %9376 = vmatmul.mubr.f32.gmra.mrb[0].mxu0 %v9258
        %v9377 = vpop.f32.mrb[0].mxu0
        %v9378 = vadd.f32 0.0, %v9377
        %v9379 = vpop.f32.mrb[0].mxu0
        %v9380 = vadd.f32 0.0, %v9379
        %9381 = vmatprep.mubr.f32.mxu0 0.0
        %9382 = vmatmul.mubr.f32.gmra.mrb[0].mxu0 %v9261
        %v9383 = vpop.f32.mrb[0].mxu0
        %v9384 = vadd.f32 0.0, %v9383
        %v9385 = vpop.f32.mrb[0].mxu0
        %v9386 = vadd.f32 0.0, %v9385
        %9387 = vmatprep.mubr.f32.mxu0 0.0
        %9388 = vmatmul.mubr.f32.gmra.mrb[0].mxu0 %v9264
        %v9389 = vpop.f32.mrb[0].mxu0
        %v9390 = vadd.f32 0.0, %v9389
        %v9391 = vpop.f32.mrb[0].mxu0
        %v9392 = vadd.f32 0.0, %v9391
        %9393 = vmatprep.mubr.f32.mxu0 0.0
        %9394 = vmatmul.mubr.f32.gmra.mrb[0].mxu0 %v9267
        %v9395 = vpop.f32.mrb[0].mxu0
        %v9396 = vadd.f32 0.0, %v9395
        %v9397 = vpop.f32.mrb[0].mxu0
        %v9398 = vadd.f32 0.0, %v9397
        %9399 = vmatprep.mubr.f32.mxu0 0.0
        %9400 = vmatmul.mubr.f32.gmra.mrb[0].mxu0 %v9270
        %v9401 = vpop.f32.mrb[0].mxu0
        %v9402 = vadd.f32 0.0, %v9401
        %v9403 = vpop.f32.mrb[0].mxu0
        %v9404 = vadd.f32 0.0, %v9403
        %9405 = vmatprep.mubr.f32.mxu0 0.0
        %9406 = vmatmul.mubr.f32.gmra.mrb[0].mxu0 %v9273
        %v9407 = vpop.f32.mrb[0].mxu0
        %v9408 = vadd.f32 0.0, %v9407
        %v9409 = vpop.f32.mrb[0].mxu0
        %v9410 = vadd.f32 0.0, %v9409
        %9411 = vmatprep.mubr.f32.mxu0 0.0
        %9412 = vmatmul.mubr.f32.gmra.mrb[0].mxu0 %v9276
        %v9413 = vpop.f32.mrb[0].mxu0
        %v9414 = vadd.f32 0.0, %v9413
        %v9415 = vpop.f32.mrb[0].mxu0
        %v9416 = vadd.f32 0.0, %v9415
        %9417 = vmatprep.mubr.f32.mxu0 0.0
        %9418 = vmatmul.mubr.f32.gmra.mrb[0].mxu0 %v9279
        %v9419 = vpop.f32.mrb[0].mxu0
        %v9420 = vadd.f32 0.0, %v9419
        %v9421 = vpop.f32.mrb[0].mxu0
        %v9422 = vadd.f32 0.0, %v9421
        %9423 = vmatprep.mubr.f32.mxu0 0.0
        %9424 = vmatmul.mubr.f32.gmra.mrb[0].mxu0 %v9282
        %v9425 = vpop.f32.mrb[0].mxu0
        %v9426 = vadd.f32 0.0, %v9425
        %v9427 = vpop.f32.mrb[0].mxu0
        %v9428 = vadd.f32 0.0, %v9427
        %9429 = vmatprep.mubr.f32.mxu0 0.0
        %9430 = vmatmul.mubr.f32.gmra.mrb[0].mxu0 %v9285
        %v9431 = vpop.f32.mrb[0].mxu0
        %v9432 = vadd.f32 0.0, %v9431
        %v9433 = vpop.f32.mrb[0].mxu0
        %v9434 = vadd.f32 0.0, %v9433
        %9435 = vmatprep.mubr.f32.mxu0 0.0
        %9436 = vmatmul.mubr.f32.gmra.mrb[0].mxu0 %v9288
        %v9437 = vpop.f32.mrb[0].mxu0
        %v9438 = vadd.f32 0.0, %v9437
        %v9439 = vpop.f32.mrb[0].mxu0
        %v9440 = vadd.f32 0.0, %v9439
        %9441 = vmatprep.mubr.f32.mxu0 0.0
        %9442 = vmatmul.mubr.f32.gmra.mrb[0].mxu0 %v9291
        %v9443 = vpop.f32.mrb[0].mxu0
        %v9444 = vadd.f32 0.0, %v9443
        %v9445 = vpop.f32.mrb[0].mxu0
        %v9446 = vadd.f32 0.0, %v9445
        %9447 = vmatprep.mubr.f32.mxu0 0.0
        %9448 = vmatmul.mubr.f32.gmra.mrb[0].mxu0 %v9294
        %v9449 = vpop.f32.mrb[0].mxu0
        %v9450 = vadd.f32 0.0, %v9449
        %v9451 = vpop.f32.mrb[0].mxu0
        %v9452 = vadd.f32 0.0, %v9451
        %9453 = vmatprep.mubr.f32.mxu0 0.0
        %9454 = vmatmul.mubr.f32.gmra.mrb[0].mxu0 %v9297
        %v9455 = vpop.f32.mrb[0].mxu0
        %v9456 = vadd.f32 0.0, %v9455
        %v9457 = vpop.f32.mrb[0].mxu0
        %v9458 = vadd.f32 0.0, %v9457
        %9459 = vdwg.mxu0
        %v9461 = vsel %vm4978, %v8755, 0
        %v9464 = vsel %vm4978, %v8760, 0
        %v9467 = vsel %vm4978, %v8765, 0
        %v9470 = vsel %vm4978, %v8770, 0
        %v9473 = vsel %vm4978, %v8775, 0
        %v9476 = vsel %vm4978, %v8780, 0
        %v9479 = vsel %vm4978, %v8785, 0
        %v9482 = vsel %vm4978, %v8790, 0
        %v9485 = vsel %vm4978, %v8795, 0
        %v9488 = vsel %vm4978, %v8800, 0
        %v9491 = vsel %vm4978, %v8805, 0
        %v9494 = vsel %vm4978, %v8810, 0
        %v9497 = vsel %vm4978, %v8815, 0
        %v9500 = vsel %vm4978, %v8820, 0
        %v9503 = vsel %vm4978, %v8825, 0
        %v9506 = vsel %vm4978, %v8830, 0
        %9508 = vmatprep.subr.mxu0 %v9011
        %9509 = vmatpush1.msra.mxu0 %v9010
        %9510 = vmatprep.subr.mxu0 %v9013
        %9511 = vmatpush1.msra.mxu0 %v9012
        %9512 = vmatprep.subr.mxu0 %v9015
        %9513 = vmatpush1.msra.mxu0 %v9014
        %9514 = vmatprep.subr.mxu0 %v9017
        %9515 = vmatpush1.msra.mxu0 %v9016
        %9516 = vmatprep.subr.mxu0 %v9019
        %9517 = vmatpush1.msra.mxu0 %v9018
        %9518 = vmatprep.subr.mxu0 %v9021
        %9519 = vmatpush1.msra.mxu0 %v9020
        %9520 = vmatprep.subr.mxu0 %v9023
        %9521 = vmatpush1.msra.mxu0 %v9022
        %9522 = vmatprep.subr.mxu0 %v9025
        %9523 = vmatpush1.msra.mxu0 %v9024
        %9524 = vmatprep.subr.mxu0 0.0
        %9525 = vmatpush1.msra.mxu0 0.0
        %9526 = vmatprep.subr.mxu0 0.0
        %9527 = vmatpush1.msra.mxu0 0.0
        %9528 = vmatprep.subr.mxu0 0.0
        %9529 = vmatpush1.msra.mxu0 0.0
        %9530 = vmatprep.subr.mxu0 0.0
        %9531 = vmatpush1.msra.mxu0 0.0
        %9532 = vmatprep.subr.mxu0 0.0
        %9533 = vmatpush1.msra.mxu0 0.0
        %9534 = vmatprep.subr.mxu0 0.0
        %9535 = vmatpush1.msra.mxu0 0.0
        %9536 = vmatprep.subr.mxu0 0.0
        %9537 = vmatpush1.msra.mxu0 0.0
        %9538 = vmatprep.subr.mxu0 0.0
        %9539 = vmatpush1.msra.mxu0 0.0
        %9540 = vmatprep.subr.mxu0 0.0
        %9541 = vmatpush1.msra.mxu0 0.0
        %9542 = vmatprep.subr.mxu0 0.0
        %9543 = vmatpush1.msra.mxu0 0.0
        %9544 = vmatprep.subr.mxu0 0.0
        %9545 = vmatpush1.msra.mxu0 0.0
        %9546 = vmatprep.subr.mxu0 0.0
        %9547 = vmatpush1.msra.mxu0 0.0
        %9548 = vmatprep.subr.mxu0 0.0
        %9549 = vmatpush1.msra.mxu0 0.0
        %9550 = vmatprep.subr.mxu0 0.0
        %9551 = vmatpush1.msra.mxu0 0.0
        %9552 = vmatprep.subr.mxu0 0.0
        %9553 = vmatpush1.msra.mxu0 0.0
        %9554 = vmatprep.subr.mxu0 0.0
        %9555 = vmatpush1.msra.mxu0 0.0
        %9556 = vmatprep.subr.mxu0 0.0
        %9557 = vmatpush1.msra.mxu0 0.0
        %9558 = vmatprep.subr.mxu0 0.0
        %9559 = vmatpush1.msra.mxu0 0.0
        %9560 = vmatprep.subr.mxu0 0.0
        %9561 = vmatpush1.msra.mxu0 0.0
        %9562 = vmatprep.subr.mxu0 0.0
        %9563 = vmatpush1.msra.mxu0 0.0
        %9564 = vmatprep.subr.mxu0 0.0
        %9565 = vmatpush1.msra.mxu0 0.0
        %9566 = vmatprep.subr.mxu0 0.0
        %9567 = vmatpush1.msra.mxu0 0.0
        %9568 = vmatprep.subr.mxu0 0.0
        %9569 = vmatpush1.msra.mxu0 0.0
        %9570 = vmatprep.subr.mxu0 0.0
        %9571 = vmatpush1.msra.mxu0 0.0
        %9572 = vmatprep.mubr.f32.mxu0 0.0
        %9573 = vmatmul.mubr.f32.gmra.mrb[0].mxu0 %v9461
        %v9574 = vpop.f32.mrb[0].mxu0
        %v9575 = vadd.f32 0.0, %v9574
        %v9576 = vpop.f32.mrb[0].mxu0
        %v9577 = vadd.f32 0.0, %v9576
        %9578 = vmatprep.mubr.f32.mxu0 0.0
        %9579 = vmatmul.mubr.f32.gmra.mrb[0].mxu0 %v9464
        %v9580 = vpop.f32.mrb[0].mxu0
        %v9581 = vadd.f32 0.0, %v9580
        %v9582 = vpop.f32.mrb[0].mxu0
        %v9583 = vadd.f32 0.0, %v9582
        %9584 = vmatprep.mubr.f32.mxu0 0.0
        %9585 = vmatmul.mubr.f32.gmra.mrb[0].mxu0 %v9467
        %v9586 = vpop.f32.mrb[0].mxu0
        %v9587 = vadd.f32 0.0, %v9586
        %v9588 = vpop.f32.mrb[0].mxu0
        %v9589 = vadd.f32 0.0, %v9588
        %9590 = vmatprep.mubr.f32.mxu0 0.0
        %9591 = vmatmul.mubr.f32.gmra.mrb[0].mxu0 %v9470
        %v9592 = vpop.f32.mrb[0].mxu0
        %v9593 = vadd.f32 0.0, %v9592
        %v9594 = vpop.f32.mrb[0].mxu0
        %v9595 = vadd.f32 0.0, %v9594
        %9596 = vmatprep.mubr.f32.mxu0 0.0
        %9597 = vmatmul.mubr.f32.gmra.mrb[0].mxu0 %v9473
        %v9598 = vpop.f32.mrb[0].mxu0
        %v9599 = vadd.f32 0.0, %v9598
        %v9600 = vpop.f32.mrb[0].mxu0
        %v9601 = vadd.f32 0.0, %v9600
        %9602 = vmatprep.mubr.f32.mxu0 0.0
        %9603 = vmatmul.mubr.f32.gmra.mrb[0].mxu0 %v9476
        %v9604 = vpop.f32.mrb[0].mxu0
        %v9605 = vadd.f32 0.0, %v9604
        %v9606 = vpop.f32.mrb[0].mxu0
        %v9607 = vadd.f32 0.0, %v9606
        %9608 = vmatprep.mubr.f32.mxu0 0.0
        %9609 = vmatmul.mubr.f32.gmra.mrb[0].mxu0 %v9479
        %v9610 = vpop.f32.mrb[0].mxu0
        %v9611 = vadd.f32 0.0, %v9610
        %v9612 = vpop.f32.mrb[0].mxu0
        %v9613 = vadd.f32 0.0, %v9612
        %9614 = vmatprep.mubr.f32.mxu0 0.0
        %9615 = vmatmul.mubr.f32.gmra.mrb[0].mxu0 %v9482
        %v9616 = vpop.f32.mrb[0].mxu0
        %v9617 = vadd.f32 0.0, %v9616
        %v9618 = vpop.f32.mrb[0].mxu0
        %v9619 = vadd.f32 0.0, %v9618
        %9620 = vmatprep.mubr.f32.mxu0 0.0
        %9621 = vmatmul.mubr.f32.gmra.mrb[0].mxu0 %v9485
        %v9622 = vpop.f32.mrb[0].mxu0
        %v9623 = vadd.f32 0.0, %v9622
        %v9624 = vpop.f32.mrb[0].mxu0
        %v9625 = vadd.f32 0.0, %v9624
        %9626 = vmatprep.mubr.f32.mxu0 0.0
        %9627 = vmatmul.mubr.f32.gmra.mrb[0].mxu0 %v9488
        %v9628 = vpop.f32.mrb[0].mxu0
        %v9629 = vadd.f32 0.0, %v9628
        %v9630 = vpop.f32.mrb[0].mxu0
        %v9631 = vadd.f32 0.0, %v9630
        %9632 = vmatprep.mubr.f32.mxu0 0.0
        %9633 = vmatmul.mubr.f32.gmra.mrb[0].mxu0 %v9491
        %v9634 = vpop.f32.mrb[0].mxu0
        %v9635 = vadd.f32 0.0, %v9634
        %v9636 = vpop.f32.mrb[0].mxu0
        %v9637 = vadd.f32 0.0, %v9636
        %9638 = vmatprep.mubr.f32.mxu0 0.0
        %9639 = vmatmul.mubr.f32.gmra.mrb[0].mxu0 %v9494
        %v9640 = vpop.f32.mrb[0].mxu0
        %v9641 = vadd.f32 0.0, %v9640
        %v9642 = vpop.f32.mrb[0].mxu0
        %v9643 = vadd.f32 0.0, %v9642
        %9644 = vmatprep.mubr.f32.mxu0 0.0
        %9645 = vmatmul.mubr.f32.gmra.mrb[0].mxu0 %v9497
        %v9646 = vpop.f32.mrb[0].mxu0
        %v9647 = vadd.f32 0.0, %v9646
        %v9648 = vpop.f32.mrb[0].mxu0
        %v9649 = vadd.f32 0.0, %v9648
        %9650 = vmatprep.mubr.f32.mxu0 0.0
        %9651 = vmatmul.mubr.f32.gmra.mrb[0].mxu0 %v9500
        %v9652 = vpop.f32.mrb[0].mxu0
        %v9653 = vadd.f32 0.0, %v9652
        %v9654 = vpop.f32.mrb[0].mxu0
        %v9655 = vadd.f32 0.0, %v9654
        %9656 = vmatprep.mubr.f32.mxu0 0.0
        %9657 = vmatmul.mubr.f32.gmra.mrb[0].mxu0 %v9503
        %v9658 = vpop.f32.mrb[0].mxu0
        %v9659 = vadd.f32 0.0, %v9658
        %v9660 = vpop.f32.mrb[0].mxu0
        %v9661 = vadd.f32 0.0, %v9660
        %9662 = vmatprep.mubr.f32.mxu0 0.0
        %9663 = vmatmul.mubr.f32.gmra.mrb[0].mxu0 %v9506
        %v9664 = vpop.f32.mrb[0].mxu0
        %v9665 = vadd.f32 0.0, %v9664
        %v9666 = vpop.f32.mrb[0].mxu0
        %v9667 = vadd.f32 0.0, %v9666
        %9668 = vdwg.mxu0
        %v9670 = vsel %vm4978, %v8900, 0
        %v9673 = vsel %vm4978, %v8905, 0
        %v9676 = vsel %vm4978, %v8910, 0
        %v9679 = vsel %vm4978, %v8915, 0
        %v9682 = vsel %vm4978, %v8920, 0
        %v9685 = vsel %vm4978, %v8925, 0
        %v9688 = vsel %vm4978, %v8930, 0
        %v9691 = vsel %vm4978, %v8935, 0
        %v9694 = vsel %vm4978, %v8940, 0
        %v9697 = vsel %vm4978, %v8945, 0
        %v9700 = vsel %vm4978, %v8950, 0
        %v9703 = vsel %vm4978, %v8955, 0
        %v9706 = vsel %vm4978, %v8960, 0
        %v9709 = vsel %vm4978, %v8965, 0
        %v9712 = vsel %vm4978, %v8970, 0
        %v9715 = vsel %vm4978, %v8975, 0
        %9717 = vmatprep.subr.mxu0 %v9027
        %9718 = vmatpush1.msra.mxu0 %v9026
        %9719 = vmatprep.subr.mxu0 %v9029
        %9720 = vmatpush1.msra.mxu0 %v9028
        %9721 = vmatprep.subr.mxu0 %v9031
        %9722 = vmatpush1.msra.mxu0 %v9030
        %9723 = vmatprep.subr.mxu0 %v9033
        %9724 = vmatpush1.msra.mxu0 %v9032
        %9725 = vmatprep.subr.mxu0 %v9035
        %9726 = vmatpush1.msra.mxu0 %v9034
        %9727 = vmatprep.subr.mxu0 %v9037
        %9728 = vmatpush1.msra.mxu0 %v9036
        %9729 = vmatprep.subr.mxu0 %v9039
        %9730 = vmatpush1.msra.mxu0 %v9038
        %9731 = vmatprep.subr.mxu0 %v9041
        %9732 = vmatpush1.msra.mxu0 %v9040
        %9733 = vmatprep.subr.mxu0 0.0
        %9734 = vmatpush1.msra.mxu0 0.0
        %9735 = vmatprep.subr.mxu0 0.0
        %9736 = vmatpush1.msra.mxu0 0.0
        %9737 = vmatprep.subr.mxu0 0.0
        %9738 = vmatpush1.msra.mxu0 0.0
        %9739 = vmatprep.subr.mxu0 0.0
        %9740 = vmatpush1.msra.mxu0 0.0
        %9741 = vmatprep.subr.mxu0 0.0
        %9742 = vmatpush1.msra.mxu0 0.0
        %9743 = vmatprep.subr.mxu0 0.0
        %9744 = vmatpush1.msra.mxu0 0.0
        %9745 = vmatprep.subr.mxu0 0.0
        %9746 = vmatpush1.msra.mxu0 0.0
        %9747 = vmatprep.subr.mxu0 0.0
        %9748 = vmatpush1.msra.mxu0 0.0
        %9749 = vmatprep.subr.mxu0 0.0
        %9750 = vmatpush1.msra.mxu0 0.0
        %9751 = vmatprep.subr.mxu0 0.0
        %9752 = vmatpush1.msra.mxu0 0.0
        %9753 = vmatprep.subr.mxu0 0.0
        %9754 = vmatpush1.msra.mxu0 0.0
        %9755 = vmatprep.subr.mxu0 0.0
        %9756 = vmatpush1.msra.mxu0 0.0
        %9757 = vmatprep.subr.mxu0 0.0
        %9758 = vmatpush1.msra.mxu0 0.0
        %9759 = vmatprep.subr.mxu0 0.0
        %9760 = vmatpush1.msra.mxu0 0.0
        %9761 = vmatprep.subr.mxu0 0.0
        %9762 = vmatpush1.msra.mxu0 0.0
        %9763 = vmatprep.subr.mxu0 0.0
        %9764 = vmatpush1.msra.mxu0 0.0
        %9765 = vmatprep.subr.mxu0 0.0
        %9766 = vmatpush1.msra.mxu0 0.0
        %9767 = vmatprep.subr.mxu0 0.0
        %9768 = vmatpush1.msra.mxu0 0.0
        %9769 = vmatprep.subr.mxu0 0.0
        %9770 = vmatpush1.msra.mxu0 0.0
        %9771 = vmatprep.subr.mxu0 0.0
        %9772 = vmatpush1.msra.mxu0 0.0
        %9773 = vmatprep.subr.mxu0 0.0
        %9774 = vmatpush1.msra.mxu0 0.0
        %9775 = vmatprep.subr.mxu0 0.0
        %9776 = vmatpush1.msra.mxu0 0.0
        %9777 = vmatprep.subr.mxu0 0.0
        %9778 = vmatpush1.msra.mxu0 0.0
        %9779 = vmatprep.subr.mxu0 0.0
        %9780 = vmatpush1.msra.mxu0 0.0
        %9781 = vmatprep.mubr.f32.mxu0 0.0
        %9782 = vmatmul.mubr.f32.gmra.mrb[0].mxu0 %v9670
        %v9783 = vpop.f32.mrb[0].mxu0
        %v9784 = vadd.f32 0.0, %v9783
        %v9785 = vpop.f32.mrb[0].mxu0
        %v9786 = vadd.f32 0.0, %v9785
        %9787 = vmatprep.mubr.f32.mxu0 0.0
        %9788 = vmatmul.mubr.f32.gmra.mrb[0].mxu0 %v9673
        %v9789 = vpop.f32.mrb[0].mxu0
        %v9790 = vadd.f32 0.0, %v9789
        %v9791 = vpop.f32.mrb[0].mxu0
        %v9792 = vadd.f32 0.0, %v9791
        %9793 = vmatprep.mubr.f32.mxu0 0.0
        %9794 = vmatmul.mubr.f32.gmra.mrb[0].mxu0 %v9676
        %v9795 = vpop.f32.mrb[0].mxu0
        %v9796 = vadd.f32 0.0, %v9795
        %v9797 = vpop.f32.mrb[0].mxu0
        %v9798 = vadd.f32 0.0, %v9797
        %9799 = vmatprep.mubr.f32.mxu0 0.0
        %9800 = vmatmul.mubr.f32.gmra.mrb[0].mxu0 %v9679
        %v9801 = vpop.f32.mrb[0].mxu0
        %v9802 = vadd.f32 0.0, %v9801
        %v9803 = vpop.f32.mrb[0].mxu0
        %v9804 = vadd.f32 0.0, %v9803
        %9805 = vmatprep.mubr.f32.mxu0 0.0
        %9806 = vmatmul.mubr.f32.gmra.mrb[0].mxu0 %v9682
        %v9807 = vpop.f32.mrb[0].mxu0
        %v9808 = vadd.f32 0.0, %v9807
        %v9809 = vpop.f32.mrb[0].mxu0
        %v9810 = vadd.f32 0.0, %v9809
        %9811 = vmatprep.mubr.f32.mxu0 0.0
        %9812 = vmatmul.mubr.f32.gmra.mrb[0].mxu0 %v9685
        %v9813 = vpop.f32.mrb[0].mxu0
        %v9814 = vadd.f32 0.0, %v9813
        %v9815 = vpop.f32.mrb[0].mxu0
        %v9816 = vadd.f32 0.0, %v9815
        %9817 = vmatprep.mubr.f32.mxu0 0.0
        %9818 = vmatmul.mubr.f32.gmra.mrb[0].mxu0 %v9688
        %v9819 = vpop.f32.mrb[0].mxu0
        %v9820 = vadd.f32 0.0, %v9819
        %v9821 = vpop.f32.mrb[0].mxu0
        %v9822 = vadd.f32 0.0, %v9821
        %9823 = vmatprep.mubr.f32.mxu0 0.0
        %9824 = vmatmul.mubr.f32.gmra.mrb[0].mxu0 %v9691
        %v9825 = vpop.f32.mrb[0].mxu0
        %v9826 = vadd.f32 0.0, %v9825
        %v9827 = vpop.f32.mrb[0].mxu0
        %v9828 = vadd.f32 0.0, %v9827
        %9829 = vmatprep.mubr.f32.mxu0 0.0
        %9830 = vmatmul.mubr.f32.gmra.mrb[0].mxu0 %v9694
        %v9831 = vpop.f32.mrb[0].mxu0
        %v9832 = vadd.f32 0.0, %v9831
        %v9833 = vpop.f32.mrb[0].mxu0
        %v9834 = vadd.f32 0.0, %v9833
        %9835 = vmatprep.mubr.f32.mxu0 0.0
        %9836 = vmatmul.mubr.f32.gmra.mrb[0].mxu0 %v9697
        %v9837 = vpop.f32.mrb[0].mxu0
        %v9838 = vadd.f32 0.0, %v9837
        %v9839 = vpop.f32.mrb[0].mxu0
        %v9840 = vadd.f32 0.0, %v9839
        %9841 = vmatprep.mubr.f32.mxu0 0.0
        %9842 = vmatmul.mubr.f32.gmra.mrb[0].mxu0 %v9700
        %v9843 = vpop.f32.mrb[0].mxu0
        %v9844 = vadd.f32 0.0, %v9843
        %v9845 = vpop.f32.mrb[0].mxu0
        %v9846 = vadd.f32 0.0, %v9845
        %9847 = vmatprep.mubr.f32.mxu0 0.0
        %9848 = vmatmul.mubr.f32.gmra.mrb[0].mxu0 %v9703
        %v9849 = vpop.f32.mrb[0].mxu0
        %v9850 = vadd.f32 0.0, %v9849
        %v9851 = vpop.f32.mrb[0].mxu0
        %v9852 = vadd.f32 0.0, %v9851
        %9853 = vmatprep.mubr.f32.mxu0 0.0
        %9854 = vmatmul.mubr.f32.gmra.mrb[0].mxu0 %v9706
        %v9855 = vpop.f32.mrb[0].mxu0
        %v9856 = vadd.f32 0.0, %v9855
        %v9857 = vpop.f32.mrb[0].mxu0
        %v9858 = vadd.f32 0.0, %v9857
        %9859 = vmatprep.mubr.f32.mxu0 0.0
        %9860 = vmatmul.mubr.f32.gmra.mrb[0].mxu0 %v9709
        %v9861 = vpop.f32.mrb[0].mxu0
        %v9862 = vadd.f32 0.0, %v9861
        %v9863 = vpop.f32.mrb[0].mxu0
        %v9864 = vadd.f32 0.0, %v9863
        %9865 = vmatprep.mubr.f32.mxu0 0.0
        %9866 = vmatmul.mubr.f32.gmra.mrb[0].mxu0 %v9712
        %v9867 = vpop.f32.mrb[0].mxu0
        %v9868 = vadd.f32 0.0, %v9867
        %v9869 = vpop.f32.mrb[0].mxu0
        %v9870 = vadd.f32 0.0, %v9869
        %9871 = vmatprep.mubr.f32.mxu0 0.0
        %9872 = vmatmul.mubr.f32.gmra.mrb[0].mxu0 %v9715
        %v9873 = vpop.f32.mrb[0].mxu0
        %v9874 = vadd.f32 0.0, %v9873
        %v9875 = vpop.f32.mrb[0].mxu0
        %v9876 = vadd.f32 0.0, %v9875
        %9877 = vdwg.mxu0
        %v9878 = vadd.f32 %v9157, %v9366
        %v9879 = vadd.f32 %v9159, %v9368
        %v9880 = vadd.f32 %v9163, %v9372
        %v9881 = vadd.f32 %v9165, %v9374
        %v9882 = vadd.f32 %v9169, %v9378
        %v9883 = vadd.f32 %v9171, %v9380
        %v9884 = vadd.f32 %v9175, %v9384
        %v9885 = vadd.f32 %v9177, %v9386
        %v9886 = vadd.f32 %v9181, %v9390
        %v9887 = vadd.f32 %v9183, %v9392
        %v9888 = vadd.f32 %v9187, %v9396
        %v9889 = vadd.f32 %v9189, %v9398
        %v9890 = vadd.f32 %v9193, %v9402
        %v9891 = vadd.f32 %v9195, %v9404
        %v9892 = vadd.f32 %v9199, %v9408
        %v9893 = vadd.f32 %v9201, %v9410
        %v9894 = vadd.f32 %v9205, %v9414
        %v9895 = vadd.f32 %v9207, %v9416
        %v9896 = vadd.f32 %v9211, %v9420
        %v9897 = vadd.f32 %v9213, %v9422
        %v9898 = vadd.f32 %v9217, %v9426
        %v9899 = vadd.f32 %v9219, %v9428
        %v9900 = vadd.f32 %v9223, %v9432
        %v9901 = vadd.f32 %v9225, %v9434
        %v9902 = vadd.f32 %v9229, %v9438
        %v9903 = vadd.f32 %v9231, %v9440
        %v9904 = vadd.f32 %v9235, %v9444
        %v9905 = vadd.f32 %v9237, %v9446
        %v9906 = vadd.f32 %v9241, %v9450
        %v9907 = vadd.f32 %v9243, %v9452
        %v9908 = vadd.f32 %v9247, %v9456
        %v9909 = vadd.f32 %v9249, %v9458
        %v9910 = vadd.f32 %v9878, %v9575
        %v9911 = vadd.f32 %v9879, %v9577
        %v9912 = vadd.f32 %v9880, %v9581
        %v9913 = vadd.f32 %v9881, %v9583
        %v9914 = vadd.f32 %v9882, %v9587
        %v9915 = vadd.f32 %v9883, %v9589
        %v9916 = vadd.f32 %v9884, %v9593
        %v9917 = vadd.f32 %v9885, %v9595
        %v9918 = vadd.f32 %v9886, %v9599
        %v9919 = vadd.f32 %v9887, %v9601
        %v9920 = vadd.f32 %v9888, %v9605
        %v9921 = vadd.f32 %v9889, %v9607
        %v9922 = vadd.f32 %v9890, %v9611
        %v9923 = vadd.f32 %v9891, %v9613
        %v9924 = vadd.f32 %v9892, %v9617
        %v9925 = vadd.f32 %v9893, %v9619
        %v9926 = vadd.f32 %v9894, %v9623
        %v9927 = vadd.f32 %v9895, %v9625
        %v9928 = vadd.f32 %v9896, %v9629
        %v9929 = vadd.f32 %v9897, %v9631
        %v9930 = vadd.f32 %v9898, %v9635
        %v9931 = vadd.f32 %v9899, %v9637
        %v9932 = vadd.f32 %v9900, %v9641
        %v9933 = vadd.f32 %v9901, %v9643
        %v9934 = vadd.f32 %v9902, %v9647
        %v9935 = vadd.f32 %v9903, %v9649
        %v9936 = vadd.f32 %v9904, %v9653
        %v9937 = vadd.f32 %v9905, %v9655
        %v9938 = vadd.f32 %v9906, %v9659
        %v9939 = vadd.f32 %v9907, %v9661
        %v9940 = vadd.f32 %v9908, %v9665
        %v9941 = vadd.f32 %v9909, %v9667
        %v9942 = vadd.f32 %v9910, %v9784
        %v9943 = vadd.f32 %v9911, %v9786
        %v9944 = vadd.f32 %v9912, %v9790
        %v9945 = vadd.f32 %v9913, %v9792
        %v9946 = vadd.f32 %v9914, %v9796
        %v9947 = vadd.f32 %v9915, %v9798
        %v9948 = vadd.f32 %v9916, %v9802
        %v9949 = vadd.f32 %v9917, %v9804
        %v9950 = vadd.f32 %v9918, %v9808
        %v9951 = vadd.f32 %v9919, %v9810
        %v9952 = vadd.f32 %v9920, %v9814
        %v9953 = vadd.f32 %v9921, %v9816
        %v9954 = vadd.f32 %v9922, %v9820
        %v9955 = vadd.f32 %v9923, %v9822
        %v9956 = vadd.f32 %v9924, %v9826
        %v9957 = vadd.f32 %v9925, %v9828
        %v9958 = vadd.f32 %v9926, %v9832
        %v9959 = vadd.f32 %v9927, %v9834
        %v9960 = vadd.f32 %v9928, %v9838
        %v9961 = vadd.f32 %v9929, %v9840
        %v9962 = vadd.f32 %v9930, %v9844
        %v9963 = vadd.f32 %v9931, %v9846
        %v9964 = vadd.f32 %v9932, %v9850
        %v9965 = vadd.f32 %v9933, %v9852
        %v9966 = vadd.f32 %v9934, %v9856
        %v9967 = vadd.f32 %v9935, %v9858
        %v9968 = vadd.f32 %v9936, %v9862
        %v9969 = vadd.f32 %v9937, %v9864
        %v9970 = vadd.f32 %v9938, %v9868
        %v9971 = vadd.f32 %v9939, %v9870
        %v9972 = vadd.f32 %v9940, %v9874
        %v9973 = vadd.f32 %v9941, %v9876
        %v9974 = vld [vmem:[#allocation14] sm:$0x3]
        %v9976 = vlaneseq
        %v9977 = vshrl.u32 %v9976, 7
        %v9978 = vsub.s32 0, %v9977
        %v9979 = vrot.slane %v9974, %v9978
        %v9980 = vlaneseq
        %v9981 = vshrl.u32 %v9980, 7
        %v9982 = vsub.s32 1, %v9981
        %v9983 = vrot.slane %v9974, %v9982
        %v9986 = vadd.f32 %v9942, %v9979
        %v9987 = vadd.f32 %v9943, %v9983
        %v9988 = vadd.f32 %v9944, %v9979
        %v9989 = vadd.f32 %v9945, %v9983
        %v9990 = vadd.f32 %v9946, %v9979
        %v9991 = vadd.f32 %v9947, %v9983
        %v9992 = vadd.f32 %v9948, %v9979
        %v9993 = vadd.f32 %v9949, %v9983
        %v9994 = vadd.f32 %v9950, %v9979
        %v9995 = vadd.f32 %v9951, %v9983
        %v9996 = vadd.f32 %v9952, %v9979
        %v9997 = vadd.f32 %v9953, %v9983
        %v9998 = vadd.f32 %v9954, %v9979
        %v9999 = vadd.f32 %v9955, %v9983
        %v10000 = vadd.f32 %v9956, %v9979
        %v10001 = vadd.f32 %v9957, %v9983
        %v10002 = vadd.f32 %v9958, %v9979
        %v10003 = vadd.f32 %v9959, %v9983
        %v10004 = vadd.f32 %v9960, %v9979
        %v10005 = vadd.f32 %v9961, %v9983
        %v10006 = vadd.f32 %v9962, %v9979
        %v10007 = vadd.f32 %v9963, %v9983
        %v10008 = vadd.f32 %v9964, %v9979
        %v10009 = vadd.f32 %v9965, %v9983
        %v10010 = vadd.f32 %v9966, %v9979
        %v10011 = vadd.f32 %v9967, %v9983
        %v10012 = vadd.f32 %v9968, %v9979
        %v10013 = vadd.f32 %v9969, %v9983
        %v10014 = vadd.f32 %v9970, %v9979
        %v10015 = vadd.f32 %v9971, %v9983
        %v10016 = vadd.f32 %v9972, %v9979
        %v10017 = vadd.f32 %v9973, %v9983
        %v10018 = vadd.f32 %v4762, %v9986
        %v10019 = vadd.f32 %v4763, %v9987
        %v10020 = vadd.f32 %v4764, %v9988
        %v10021 = vadd.f32 %v4765, %v9989
        %v10022 = vadd.f32 %v4766, %v9990
        %v10023 = vadd.f32 %v4767, %v9991
        %v10024 = vadd.f32 %v4768, %v9992
        %v10025 = vadd.f32 %v4769, %v9993
        %v10026 = vadd.f32 %v4770, %v9994
        %v10027 = vadd.f32 %v4771, %v9995
        %v10028 = vadd.f32 %v4772, %v9996
        %v10029 = vadd.f32 %v4773, %v9997
        %v10030 = vadd.f32 %v4774, %v9998
        %v10031 = vadd.f32 %v4775, %v9999
        %v10032 = vadd.f32 %v4776, %v10000
        %v10033 = vadd.f32 %v4777, %v10001
        %v10034 = vadd.f32 %v4778, %v10002
        %v10035 = vadd.f32 %v4779, %v10003
        %v10036 = vadd.f32 %v4780, %v10004
        %v10037 = vadd.f32 %v4781, %v10005
        %v10038 = vadd.f32 %v4782, %v10006
        %v10039 = vadd.f32 %v4783, %v10007
        %v10040 = vadd.f32 %v4784, %v10008
        %v10041 = vadd.f32 %v4785, %v10009
        %v10042 = vadd.f32 %v4786, %v10010
        %v10043 = vadd.f32 %v4787, %v10011
        %v10044 = vadd.f32 %v4788, %v10012
        %v10045 = vadd.f32 %v4789, %v10013
        %v10046 = vadd.f32 %v4790, %v10014
        %v10047 = vadd.f32 %v4791, %v10015
        %v10048 = vadd.f32 %v4792, %v10016
        %v10049 = vadd.f32 %v4793, %v10017
        %10050 = vst [vmem:[%s572] sm:$0xff] %v10018
        %10051 = vst [vmem:[%s572 + $0x8] sm:$0xff] %v10019
        %10052 = vst [vmem:[%s572 + $0x10] sm:$0xff] %v10020
        %10053 = vst [vmem:[%s572 + $0x18] sm:$0xff] %v10021
        %10054 = vst [vmem:[%s572 + $0x20] sm:$0xff] %v10022
        %10055 = vst [vmem:[%s572 + $0x28] sm:$0xff] %v10023
        %10056 = vst [vmem:[%s572 + $0x30] sm:$0xff] %v10024
        %10057 = vst [vmem:[%s572 + $0x38] sm:$0xff] %v10025
        %10058 = vst [vmem:[%s572 + $0x40] sm:$0xff] %v10026
        %10059 = vst [vmem:[%s572 + $0x48] sm:$0xff] %v10027
        %10060 = vst [vmem:[%s572 + $0x50] sm:$0xff] %v10028
        %10061 = vst [vmem:[%s572 + $0x58] sm:$0xff] %v10029
        %10062 = vst [vmem:[%s572 + $0x60] sm:$0xff] %v10030
        %10063 = vst [vmem:[%s572 + $0x68] sm:$0xff] %v10031
        %10064 = vst [vmem:[%s572 + $0x70] sm:$0xff] %v10032
        %10065 = vst [vmem:[%s572 + $0x78] sm:$0xff] %v10033
        %10066 = vst [vmem:[%s572 + $0x80] sm:$0xff] %v10034
        %10067 = vst [vmem:[%s572 + $0x88] sm:$0xff] %v10035
        %10068 = vst [vmem:[%s572 + $0x90] sm:$0xff] %v10036
        %10069 = vst [vmem:[%s572 + $0x98] sm:$0xff] %v10037
        %10070 = vst [vmem:[%s572 + $0xa0] sm:$0xff] %v10038
        %10071 = vst [vmem:[%s572 + $0xa8] sm:$0xff] %v10039
        %10072 = vst [vmem:[%s572 + $0xb0] sm:$0xff] %v10040
        %10073 = vst [vmem:[%s572 + $0xb8] sm:$0xff] %v10041
        %10074 = vst [vmem:[%s572 + $0xc0] sm:$0xff] %v10042
        %10075 = vst [vmem:[%s572 + $0xc8] sm:$0xff] %v10043
        %10076 = vst [vmem:[%s572 + $0xd0] sm:$0xff] %v10044
        %10077 = vst [vmem:[%s572 + $0xd8] sm:$0xff] %v10045
        %10078 = vst [vmem:[%s572 + $0xe0] sm:$0xff] %v10046
        %10079 = vst [vmem:[%s572 + $0xe8] sm:$0xff] %v10047
        %10080 = vst [vmem:[%s572 + $0xf0] sm:$0xff] %v10048
        %10081 = vst [vmem:[%s572 + $0xf8] sm:$0xff] %v10049
        %s10082 = sand.u32 %s343, 1
        %s10083 = scalar_lea.sflag [#allocation7], %s10082
        %s10084 = sand.u32 %s343, 1
        %s10085 = smul.addr %s10084, 256
        %s10086 = scalar_lea.vmem [#allocation16], %s10085
        // Predicated region
        $region101: #{tpu_custom_call.1} parent=71 // pred_check
          %p10087 = pneg %p353
        $region102: #{tpu_custom_call.1} parent=71 // pred_check_branch
          %10089 = sbr.rel (%p10087) target = $region104
        $region103: #{tpu_custom_call.1} parent=71 // pred_region
          %s10090 = smul.u32 16, %s36
          %s10092 = ssub.s32 4096, 4096
          %10093 = vsyncadd %s10083, %s10092
          %s10094 = smul.addr %s10090, 2
          %s10095 = smul.addr %s35, 64
          %s10096 = sadd.s32 %s10094, %s10095
          %s10097 = smul.addr %s10096, 128
          %s10098 = scalar_lea.hbm %s13, %s10097
          %s10099 = sshll.u32 %s10086, 4
          %s10100 = int_to_ptr.vmem [resolvable:$true] %s10099
          %10105 = dma.vmem_to_hbm [thread:$0]  %s10100, 4096, %s10098, %s10083, 256, 256, 16
        $region104: #{tpu_custom_call.1} parent=71 // pred_fallthru
          _
      $region72: #{tpu_custom_call.1} parent=5 // pred_fallthru
        _
      %p10106 = scmp.le.s32.totalorder 2, %s26
      // Predicated region
      $region105: #{tpu_custom_call.1} parent=5 // pred_check
        %p10107 = pneg %p10106
      $region106: #{tpu_custom_call.1} parent=5 // pred_check_branch
        %10109 = sbr.rel (%p10107) target = $region108
      $region107: #{tpu_custom_call.1} parent=5 // pred_region
        %s10110 = ssub.s32 %s26, 2
        // Predicated region
        $region109: #{tpu_custom_call.1} parent=107 // pred_check
          %p10111 = pneg %p359
        $region110: #{tpu_custom_call.1} parent=107 // pred_check_branch
          %10113 = sbr.rel (%p10111) target = $region112
        $region111: #{tpu_custom_call.1} parent=107 // pred_region
          %s10114 = sand.u32 %s344, 1
          %s10115 = scalar_lea.sflag [#allocation7], %s10114
          %s10116 = sand.u32 %s344, 1
          %s10117 = smul.addr %s10116, 256
          %s10118 = scalar_lea.vmem [#allocation16], %s10117
          %10119 = dma.done %s10115, 4096
        $region112: #{tpu_custom_call.1} parent=107 // pred_fallthru
          _
      $region108: #{tpu_custom_call.1} parent=5 // pred_fallthru
        _
    $region6: #{tpu_custom_call.1} parent=1 // loop_footer
      %s30 = sadd.s32 1, %s26
    $region7: #{tpu_custom_call.1} parent=1 // loop_footer_branch
      %25 = sbr.rel target = $region3
    $region8: #{tpu_custom_call.1} parent=1 // loop_exit
      _
    %10120 = vsyncpa [#allocation6], 1
    %s10121 = scalar_lea.sflag [#allocation6], 1
    %10122 = vsyncpa %s10121, 1
    %10123 = vsyncpa [#allocation9], 1
    %10124 = vsyncpa [#allocation12], 1
    %10125 = vsyncpa [#allocation15], 1
    %10126 = vsyncpa [#allocation7], 1
    %s10127 = scalar_lea.sflag [#allocation7], 1
    %10128 = vsyncpa %s10127, 1

</llo_original>
